<compile_context>
chip_gen: v7x
topology: tpu7x:2x2x1
jax: 0.10.0
libtpu: 0.0.40
codegen_flags: <defaults>
</compile_context>

<pallas_src>
import math

import jax
import jax.numpy as jnp
from jax.experimental import pallas as pl
from jax.experimental.pallas import tpu as pltpu


_MM_DTYPE = jnp.bfloat16   # MXU operand dtype; accumulation stays float32.


# ----------------------------------------------------------------------------
# In-kernel math helpers (all f32)
# ----------------------------------------------------------------------------
def _gelu_tanh(x):
    # tanh-approximate GELU (runs on the EUP slot). PyTorch nn.GELU() default
    # is the exact erf form; deviation is ~1e-3 max abs on activations.
    c = math.sqrt(2.0 / math.pi)
    return 0.5 * x * (1.0 + jnp.tanh(c * (x + 0.044715 * (x * x * x))))


def _layernorm(t, eps=1e-5):
    # LayerNorm with elementwise_affine=False (as in PerFeatureEncoderLayer).
    m = jnp.mean(t, axis=-1, keepdims=True)
    c = t - m
    v = jnp.mean(c * c, axis=-1, keepdims=True)
    return c * jax.lax.rsqrt(v + eps)


def _softmax(s):
    m = jnp.max(s, axis=-1, keepdims=True)
    e = jnp.exp(s - m)
    # EUP approximate reciprocal instead of an exact vector divide.
    return e * pl.reciprocal(jnp.sum(e, axis=-1, keepdims=True), approx=True)


def _mha(q_in2, kv_in2, nb, nq, nk, wqkv, wo, bo, nhead, hdim):
    """Multi-head attention over a leading batch axis.

    q_in2  : (nb*nq, E) bf16 query-side activations
    kv_in2 : (nb*nk, E) bf16 key/value-side activations
    wqkv   : (3, E, E)  bf16, wqkv[0] already includes the 1/sqrt(hdim) scale
    wo     : (H, D, E)  bf16 out_proj rows pre-split per head
    bo     : (1, E)     f32 out_proj bias
    returns (nb*nq, E) f32
    """
    E = q_in2.shape[-1]
    q = jnp.dot(q_in2, wqkv[0], preferred_element_type=jnp.float32)
    k = jnp.dot(kv_in2, wqkv[1], preferred_element_type=jnp.float32)
    v = jnp.dot(kv_in2, wqkv[2], preferred_element_type=jnp.float32)
    q3 = q.astype(_MM_DTYPE).reshape(nb, nq, E)
    k3 = k.astype(_MM_DTYPE).reshape(nb, nk, E)
    v3 = v.astype(_MM_DTYPE).reshape(nb, nk, E)

    out = jnp.zeros((nb * nq, E), jnp.float32)
    for h in range(nhead):                      # static unroll over heads
        lo = h * hdim
        qh = q3[:, :, lo:lo + hdim]             # (nb, nq, D) bf16 lane slice
        kh = k3[:, :, lo:lo + hdim]
        vh = v3[:, :, lo:lo + hdim]
        sc = jnp.einsum('bqd,bkd->bqk', qh, kh, preferred_element_type=jnp.float32)
        p = _softmax(sc).astype(_MM_DTYPE)
        ah = jnp.einsum('bqk,bkd->bqd', p, vh, preferred_element_type=jnp.float32)
        # head merge fused into the out-projection (no lane concat):
        out = out + jnp.dot(ah.astype(_MM_DTYPE).reshape(nb * nq, hdim), wo[h],
                            preferred_element_type=jnp.float32)
    return out + bo


# ----------------------------------------------------------------------------
# Pallas kernel: the full encoder stack.
# grid = (B,); all layer weights are VMEM-resident (constant index_maps) and
# the layer loop runs inside the kernel. The (1,S,F,E) state block stays in
# VMEM for the whole layer loop and is aliased to the output.
# ----------------------------------------------------------------------------
def make_fused_stack_kernel(nlayers, nhead, single_eval_pos):
    def kernel(x_ref,
               wqkv_f_ref, wo_f_ref, bo_f_ref,
               wqkv_i_ref, wo_i_ref, bo_i_ref,
               w1_ref, b1_ref, w2_ref, b2_ref,
               o_ref):
        _, S, F, E = x_ref.shape
        H = nhead
        D = E // H
        sep = single_eval_pos

        # Seed the VMEM-resident residual stream from the (aliased) input block.
        o_ref[...] = x_ref[...]

        def layer_body(l, carry):
            x = o_ref[0].astype(jnp.float32)                   # (S, F, E) f32

            wqkv_f = wqkv_f_ref[l]                             # (3, E, E) bf16
            wo_f = wo_f_ref[l]                                 # (H, D, E) bf16
            bo_f = bo_f_ref[l]                                 # (1, E)    f32
            wqkv_i = wqkv_i_ref[l]
            wo_i = wo_i_ref[l]
            bo_i = bo_i_ref[l]
            w1 = w1_ref[l]                                     # (E, Hd) bf16
            b1 = b1_ref[l]                                     # (1, Hd) f32
            w2 = w2_ref[l]                                     # (Hd, E) bf16
            b2 = b2_ref[l]                                     # (1, E)  f32

            # ---- sublayer 1: attention between features (batch axis = items S,
            #      tokens = feature groups + y token). No relayout needed. ----
            xb = x.reshape(S * F, E).astype(_MM_DTYPE)
            a = _mha(xb, xb, S, F, F, wqkv_f, wo_f, bo_f, H, D)
            x = _layernorm(x + a.reshape(S, F, E))             # post-norm

            # ---- sublayer 2: attention between items (batch axis = features).
            #      Every query (train & test) attends only to the first `sep`
            #      train items -> K/V statically sliced, no mask tensor.
            #      One bf16 transpose in, one f32 transpose out. ----
            xt = jnp.transpose(x.astype(_MM_DTYPE), (1, 0, 2))     # (F, S, E)
            q2 = xt.reshape(F * S, E)
            kv2 = xt[:, :sep, :].reshape(F * sep, E)
            a = _mha(q2, kv2, F, S, sep, wqkv_i, wo_i, bo_i, H, D)
            a = jnp.transpose(a.reshape(F, S, E), (1, 0, 2))       # (S, F, E)
            x = _layernorm(x + a)

            # ---- sublayer 3: MLP (linear1 -> tanh GELU -> linear2) ----
            xb = x.reshape(S * F, E).astype(_MM_DTYPE)
            hmid = jnp.dot(xb, w1, preferred_element_type=jnp.float32) + b1
            hmid = _gelu_tanh(hmid)
            m = jnp.dot(hmid.astype(_MM_DTYPE), w2,
                        preferred_element_type=jnp.float32) + b2
            x = _layernorm(x + m.reshape(S, F, E))

            o_ref[0] = x.astype(o_ref.dtype)
            return carry

        jax.lax.fori_loop(0, nlayers, layer_body, 0)

    return kernel


def _vmem_limit_bytes():
    # Derive the scoped VMEM limit from the chip (≈96 MiB v5e/v6e, ≈48 MiB v7x)
    # instead of hardcoding; keep 25% headroom for compiler temporaries.
    try:
        cap = int(pltpu.get_tpu_info().vmem_capacity_bytes)
    except Exception:  # pragma: no cover - conservative fallback
        cap = 64 * 1024 * 1024
    return min(max(cap * 3 // 4, 32 * 1024 * 1024), 128 * 1024 * 1024)


def stack_layer_params(layers, *, nhead):
    """Stack per-layer weights with a leading layer dim in the layouts the
    kernel wants: QKV -> (L,3,E,E) with the 1/sqrt(D) scale folded into Q (in
    f32, before the bf16 cast); out_proj -> (L,H,D,E) rows pre-split per head.
    Matmul weights are stored bf16 (halves weight DMA); biases stay f32."""
    E = layers[0]["wqkv_f"].shape[0]
    H = nhead
    D = E // H
    scale = 1.0 / math.sqrt(D)

    def stack_qkv(name):
        ws = []
        for lw in layers:
            w = lw[name]                                    # (E, 3E) f32
            ws.append(jnp.stack([w[:, :E] * scale,          # q (pre-scaled)
                                 w[:, E:2 * E],             # k
                                 w[:, 2 * E:]]))            # v
        return jnp.stack(ws).astype(_MM_DTYPE)              # (L, 3, E, E)

    def stack_out(name):
        return jnp.stack([lw[name].reshape(H, D, E) for lw in layers]
                         ).astype(_MM_DTYPE)                # (L, H, D, E)

    return {
        "wqkv_f": stack_qkv("wqkv_f"),
        "wqkv_i": stack_qkv("wqkv_i"),
        "wo_f": stack_out("wo_f"),
        "wo_i": stack_out("wo_i"),
        "w1": jnp.stack([lw["w1"] for lw in layers]).astype(_MM_DTYPE),
        "w2": jnp.stack([lw["w2"] for lw in layers]).astype(_MM_DTYPE),
        "bo_f": jnp.stack([lw["bo_f"] for lw in layers]).astype(jnp.float32),
        "bo_i": jnp.stack([lw["bo_i"] for lw in layers]).astype(jnp.float32),
        "b1": jnp.stack([lw["b1"] for lw in layers]).astype(jnp.float32),
        "b2": jnp.stack([lw["b2"] for lw in layers]).astype(jnp.float32),
    }


def apply_encoder_stack(state, stacked, *, nhead, single_eval_pos):
    B, S, F, E = state.shape
    L, _, _, _ = stacked["wqkv_f"].shape
    H = nhead
    D = E // H
    Hd = stacked["w1"].shape[-1]

    kernel = make_fused_stack_kernel(nlayers=L, nhead=nhead,
                                     single_eval_pos=single_eval_pos)

    state_spec = pl.BlockSpec((1, S, F, E), lambda b: (b, 0, 0, 0))

    def wspec(shape):
        nd = len(shape)
        # Constant index_map across the grid -> fetched once, VMEM-resident.
        return pl.BlockSpec(shape, lambda b, _nd=nd: (0,) * _nd)

    return pl.pallas_call(
        kernel,
        out_shape=jax.ShapeDtypeStruct(state.shape, state.dtype),
        grid=(B,),
        in_specs=[
            state_spec,
            wspec((L, 3, E, E)), wspec((L, H, D, E)), wspec((L, 1, E)),
            wspec((L, 3, E, E)), wspec((L, H, D, E)), wspec((L, 1, E)),
            wspec((L, E, Hd)), wspec((L, 1, Hd)), wspec((L, Hd, E)), wspec((L, 1, E)),
        ],
        out_specs=state_spec,
        input_output_aliases={0: 0},          # state is updated in place
        compiler_params=pltpu.CompilerParams(
            dimension_semantics=("parallel",),
            vmem_limit_bytes=_vmem_limit_bytes(),
        ),
    )(state,
      stacked["wqkv_f"], stacked["wo_f"], stacked["bo_f"],
      stacked["wqkv_i"], stacked["wo_i"], stacked["bo_i"],
      stacked["w1"], stacked["b1"], stacked["w2"], stacked["b2"])


# ----------------------------------------------------------------------------
# Pallas kernel: "standard" decoder head (Linear -> GELU -> Linear),
# tiled over rows; output padded to a lane-dense 128-wide slab.
# ----------------------------------------------------------------------------
def decoder_kernel(x_ref, w1_ref, b1_ref, w2_ref, b2_ref, o_ref):
    x = x_ref[...]                                                 # (TN, E) bf16
    h = jnp.dot(x, w1_ref[...], preferred_element_type=jnp.float32) + b1_ref[...]
    h = _gelu_tanh(h)
    out = jnp.dot(h.astype(_MM_DTYPE), w2_ref[...],
                  preferred_element_type=jnp.float32) + b2_ref[...]
    o_ref[...] = out.astype(o_ref.dtype)


def apply_decoder(x2d, params):
    N, E = x2d.shape
    Hd = params["dec_w1"].shape[1]
    O = params["dec_w2"].shape[1]
    Opad = ((O + 127) // 128) * 128                                # lane-dense out

    TN = 256 if N >= 256 else N                                    # row tile
    Npad = ((N + TN - 1) // TN) * TN

    xb = x2d.astype(_MM_DTYPE)                                     # pre-cast bf16
    if Npad != N:
        xb = jnp.pad(xb, ((0, Npad - N), (0, 0)))
    w1 = params["dec_w1"].astype(_MM_DTYPE)
    b1 = params["dec_b1"].astype(jnp.float32)
    w2 = params["dec_w2"]
    b2 = params["dec_b2"]
    if Opad != O:
        w2 = jnp.pad(w2, ((0, 0), (0, Opad - O)))
        b2 = jnp.pad(b2, ((0, 0), (0, Opad - O)))
    w2 = w2.astype(_MM_DTYPE)
    b2 = b2.astype(jnp.float32)

    out = pl.pallas_call(
        decoder_kernel,
        out_shape=jax.ShapeDtypeStruct((Npad, Opad), jnp.float32),
        grid=(Npad // TN,),
        in_specs=[pl.BlockSpec((TN, E), lambda i: (i, 0)),
                  pl.BlockSpec((E, Hd), lambda i: (0, 0)),
                  pl.BlockSpec((1, Hd), lambda i: (0, 0)),
                  pl.BlockSpec((Hd, Opad), lambda i: (0, 0)),
                  pl.BlockSpec((1, Opad), lambda i: (0, 0))],
        out_specs=pl.BlockSpec((TN, Opad), lambda i: (i, 0)),
        compiler_params=pltpu.CompilerParams(
            dimension_semantics=("parallel",)),
    )(xb, w1, b1, w2, b2)
    return out[:N, :O]


# ----------------------------------------------------------------------------
# Parameter init (deterministic; honors zero_init=True of init_weights)
# ----------------------------------------------------------------------------
def init_params(key, *, ninp, nhead, nhid, nlayers, features_per_group, n_out):
    assert ninp % nhead == 0

    def rnd(k, shape, scale=0.05):
        return jax.random.normal(k, shape, jnp.float32) * scale

    keys = jax.random.split(key, 8 + 4 * nlayers)
    it = iter(keys)
    p = {
        "enc_w": rnd(next(it), (features_per_group, ninp)),   # x encoder Linear
        "enc_b": rnd(next(it), (ninp,)),
        "y_w": rnd(next(it), (1, ninp)),                      # y encoder Linear
        "y_b": rnd(next(it), (ninp,)),
        "dec_w1": rnd(next(it), (ninp, nhid)),                # decoder['standard']
        "dec_b1": rnd(next(it), (1, nhid)),
        "dec_w2": rnd(next(it), (nhid, n_out)),
        "dec_b2": rnd(next(it), (1, n_out)),
        "layers": [],
    }
    for _ in range(nlayers):
        p["layers"].append({
            "wqkv_f": rnd(next(it), (ninp, 3 * ninp)),
            "wo_f": jnp.zeros((ninp, ninp), jnp.float32),     # zero_init: out_proj
            "bo_f": jnp.zeros((1, ninp), jnp.float32),
            "wqkv_i": rnd(next(it), (ninp, 3 * ninp)),
            "wo_i": jnp.zeros((ninp, ninp), jnp.float32),     # zero_init: out_proj
            "bo_i": jnp.zeros((1, ninp), jnp.float32),
            "w1": rnd(next(it), (ninp, nhid)),
            "b1": rnd(next(it), (1, nhid)),
            "w2": jnp.zeros((nhid, ninp), jnp.float32),       # zero_init: linear2
            "b2": jnp.zeros((1, ninp), jnp.float32),
        })
    return p


# ----------------------------------------------------------------------------
# Full forward: model(train_x, train_y, test_x) -> decoder_dict['standard'](test)
# ----------------------------------------------------------------------------
def per_feature_transformer_forward(params, train_x, train_y, test_x, *,
                                    nhead, features_per_group):
    x = jnp.concatenate([train_x, test_x], axis=0)            # (S, B, num_features)
    single_eval_pos = train_x.shape[0]
    assert single_eval_pos >= 1, "item attention needs at least one train row"
    S, B, nf = x.shape
    n = features_per_group

    # pad features to a multiple of features_per_group
    pad = (-nf) % n
    if pad:
        x = jnp.concatenate([x, jnp.zeros((S, B, pad), x.dtype)], axis=-1)
    Fg = x.shape[-1] // n
    # 's b (f n) -> b s f n'
    x = x.reshape(S, B, Fg, n).transpose(1, 0, 2, 3)          # (B, S, Fg, n)

    # y: (sep, B) -> (B, sep, 1) -> NaN-pad test rows -> (S, B, 1)
    y = jnp.transpose(train_y[..., None], (1, 0, 2))          # (B, sep, 1)
    y = jnp.concatenate(
        [y, jnp.full((B, S - single_eval_pos, 1), jnp.nan, y.dtype)], axis=1)
    y = jnp.transpose(y, (1, 0, 2))                           # (S, B, 1)
    # y_encoder: NaN->0 then Linear(1, ninp); then .transpose(0, 1)
    embedded_y = jnp.nan_to_num(y, nan=0.0) @ params["y_w"] + params["y_b"]
    embedded_y = jnp.transpose(embedded_y, (1, 0, 2))         # (B, S, E)

    # x encoder: 'b s f n -> s (b f) n' -> Linear(n, ninp) -> 's (b f) e -> b s f e'
    x_in = x.transpose(1, 0, 2, 3).reshape(S, B * Fg, n)
    ex = x_in @ params["enc_w"] + params["enc_b"]             # (S, B*Fg, E)
    embedded_x = ex.reshape(S, B, Fg, -1).transpose(1, 0, 2, 3)  # (B, S, Fg, E)

    # add_embeddings: feature_positional_embedding=None, data_dags=None -> identity
    state = jnp.concatenate([embedded_x, embedded_y[:, :, None, :]], axis=2)  # (B,S,Fg+1,E)

    # LayerStack: one fused Pallas call, layer loop inside the kernel
    stacked = stack_layer_params(params["layers"], nhead=nhead)
    state = apply_encoder_stack(state, stacked, nhead=nhead,
                                single_eval_pos=single_eval_pos)

    # last feature token (= y position), split train / test, -> (seq, batch, E)
    test_out = jnp.transpose(state[:, single_eval_pos:, -1, :], (1, 0, 2))
    train_out = jnp.transpose(state[:, :single_eval_pos, -1, :], (1, 0, 2))

    St, Bt, E = test_out.shape
    standard = apply_decoder(test_out.reshape(St * Bt, E), params).reshape(St, Bt, -1)
    # only_return_standard_out=True -> decoder_dict['standard'] output
    # (train_embeddings returned alongside for inspection)
    return standard, train_out


# ----------------------------------------------------------------------------
if __name__ == "__main__":
    SEQ_TRAIN, SEQ_TEST, BATCH, NUM_FEATURES = 6, 2, 2, 5
    NINP, NHEAD, NHID, NLAYERS, FPG, NOUT = 32, 4, 64, 2, 2, 10

    key = jax.random.PRNGKey(0)
    kx, ky, kt, kp = jax.random.split(key, 4)
    train_x = jax.random.normal(kx, (SEQ_TRAIN, BATCH, NUM_FEATURES), jnp.float32)
    train_y = jax.random.normal(ky, (SEQ_TRAIN, BATCH), jnp.float32)
    test_x = jax.random.normal(kt, (SEQ_TEST, BATCH, NUM_FEATURES), jnp.float32)

    params = init_params(kp, ninp=NINP, nhead=NHEAD, nhid=NHID, nlayers=NLAYERS,
                         features_per_group=FPG, n_out=NOUT)

    fwd = jax.jit(per_feature_transformer_forward,
                  static_argnames=("nhead", "features_per_group"))
    standard_out, train_embeddings = fwd(params, train_x, train_y, test_x,
                                         nhead=NHEAD, features_per_group=FPG)
    jax.block_until_ready((standard_out, train_embeddings))

    assert standard_out.shape == (SEQ_TEST, BATCH, NOUT)
    assert train_embeddings.shape == (SEQ_TRAIN, BATCH, NINP)
    assert not bool(jnp.isnan(standard_out).any())
    assert not bool(jnp.isnan(train_embeddings).any())
    print("KERNEL_OK")
</pallas_src>

<mosaic_0001>
module attributes {stable_mosaic.version = 11 : i64} {
  func.func @decoder_kernel(%arg0: i32, %arg1: memref<4x32xbf16, #tpu.memory_space<vmem>>, %arg2: memref<32x64xbf16, #tpu.memory_space<vmem>>, %arg3: memref<1x64xf32, #tpu.memory_space<vmem>>, %arg4: memref<64x128xbf16, #tpu.memory_space<vmem>>, %arg5: memref<1x128xf32, #tpu.memory_space<vmem>>, %arg6: memref<4x128xf32, #tpu.memory_space<vmem>>) attributes {dimension_semantics = [#tpu.dimension_semantics<parallel>], iteration_bounds = array<i64: 1>, scalar_prefetch = 0 : i64, scratch_operands = 0 : i64, tpu.core_type = #tpu.core_type<tc>, window_params = [{transform_indices = @transform_0, window_bounds = array<i64: 4, 32>}, {pipeline_mode = #tpu.pipeline_mode<synchronous>, transform_indices = @transform_1, window_bounds = array<i64: 32, 64>}, {pipeline_mode = #tpu.pipeline_mode<synchronous>, transform_indices = @transform_2, window_bounds = array<i64: 1, 64>}, {pipeline_mode = #tpu.pipeline_mode<synchronous>, transform_indices = @transform_3, window_bounds = array<i64: 64, 128>}, {pipeline_mode = #tpu.pipeline_mode<synchronous>, transform_indices = @transform_4, window_bounds = array<i64: 1, 128>}, {transform_indices = @transform_5, window_bounds = array<i64: 4, 128>}]} {
    %c0 = arith.constant 0 : index
    %c0_0 = arith.constant 0 : index
    %0 = vector.load %arg1[%c0, %c0_0] : memref<4x32xbf16, #tpu.memory_space<vmem>>, vector<4x32xbf16>
    %c0_1 = arith.constant 0 : index
    %c0_2 = arith.constant 0 : index
    %1 = vector.load %arg2[%c0_1, %c0_2] : memref<32x64xbf16, #tpu.memory_space<vmem>>, vector<32x64xbf16>
    %cst = arith.constant dense<0.000000e+00> : vector<4x64xf32>
    %2 = tpu.matmul %0, %1, %cst {dimension_numbers = #tpu.dot_dimension_numbers<[1], [0], [0], [1], [0, 0, 1, 1], [], []>} : vector<4x32xbf16>, vector<32x64xbf16>, vector<4x64xf32> -> vector<4x64xf32>
    %c0_3 = arith.constant 0 : index
    %c0_4 = arith.constant 0 : index
    %3 = vector.load %arg3[%c0_3, %c0_4] : memref<1x64xf32, #tpu.memory_space<vmem>>, vector<1x64xf32>
    %4 = vector.broadcast %3 : vector<1x64xf32> to vector<4x64xf32>
    %5 = arith.addf %2, %4 : vector<4x64xf32>
    %cst_5 = arith.constant 5.000000e-01 : f32
    %6 = vector.broadcast %cst_5 : f32 to vector<4x64xf32>
    %7 = arith.mulf %6, %5 : vector<4x64xf32>
    %8 = arith.mulf %5, %5 : vector<4x64xf32>
    %9 = arith.mulf %8, %5 : vector<4x64xf32>
    %cst_6 = arith.constant 4.471500e-02 : f32
    %10 = vector.broadcast %cst_6 : f32 to vector<4x64xf32>
    %11 = arith.mulf %10, %9 : vector<4x64xf32>
    %12 = arith.addf %5, %11 : vector<4x64xf32>
    %cst_7 = arith.constant 0.797884583 : f32
    %13 = vector.broadcast %cst_7 : f32 to vector<4x64xf32>
    %14 = arith.mulf %13, %12 : vector<4x64xf32>
    %15 = math.tanh %14 : vector<4x64xf32>
    %cst_8 = arith.constant 1.000000e+00 : f32
    %16 = vector.broadcast %cst_8 : f32 to vector<4x64xf32>
    %17 = arith.addf %16, %15 : vector<4x64xf32>
    %18 = arith.mulf %7, %17 : vector<4x64xf32>
    %19 = arith.truncf %18 : vector<4x64xf32> to vector<4x64xbf16>
    %c0_9 = arith.constant 0 : index
    %c0_10 = arith.constant 0 : index
    %20 = vector.load %arg4[%c0_9, %c0_10] : memref<64x128xbf16, #tpu.memory_space<vmem>>, vector<64x128xbf16>
    %cst_11 = arith.constant dense<0.000000e+00> : vector<4x128xf32>
    %21 = tpu.matmul %19, %20, %cst_11 {dimension_numbers = #tpu.dot_dimension_numbers<[1], [0], [0], [1], [0, 0, 1, 1], [], []>} : vector<4x64xbf16>, vector<64x128xbf16>, vector<4x128xf32> -> vector<4x128xf32>
    %c0_12 = arith.constant 0 : index
    %c0_13 = arith.constant 0 : index
    %22 = vector.load %arg5[%c0_12, %c0_13] : memref<1x128xf32, #tpu.memory_space<vmem>>, vector<1x128xf32>
    %23 = vector.broadcast %22 : vector<1x128xf32> to vector<4x128xf32>
    %24 = arith.addf %21, %23 : vector<4x128xf32>
    %c0_14 = arith.constant 0 : index
    %c0_15 = arith.constant 0 : index
    %25 = vector.load %arg6[%c0_14, %c0_15] : memref<4x128xf32, #tpu.memory_space<vmem>>, vector<4x128xf32>
    tpu.vector_store %arg6[%c0_14, %c0_15], %24 {strides = array<i32>} : memref<4x128xf32, #tpu.memory_space<vmem>>, vector<4x128xf32>,
    return
  }
  func.func @transform_0(%arg0: i32) -> (i32, i32) {
    %c0_i32 = arith.constant 0 : i32
    %c0_i32_0 = arith.constant 0 : i32
    return %arg0, %c0_i32 : i32, i32
  }
  func.func @transform_1(%arg0: i32) -> (i32, i32) {
    %c0_i32 = arith.constant 0 : i32
    %c0_i32_0 = arith.constant 0 : i32
    %c0_i32_1 = arith.constant 0 : i32
    return %c0_i32, %c0_i32_0 : i32, i32
  }
  func.func @transform_2(%arg0: i32) -> (i32, i32) {
    %c0_i32 = arith.constant 0 : i32
    %c0_i32_0 = arith.constant 0 : i32
    %c0_i32_1 = arith.constant 0 : i32
    return %c0_i32, %c0_i32_0 : i32, i32
  }
  func.func @transform_3(%arg0: i32) -> (i32, i32) {
    %c0_i32 = arith.constant 0 : i32
    %c0_i32_0 = arith.constant 0 : i32
    %c0_i32_1 = arith.constant 0 : i32
    return %c0_i32, %c0_i32_0 : i32, i32
  }
  func.func @transform_4(%arg0: i32) -> (i32, i32) {
    %c0_i32 = arith.constant 0 : i32
    %c0_i32_0 = arith.constant 0 : i32
    %c0_i32_1 = arith.constant 0 : i32
    return %c0_i32, %c0_i32_0 : i32, i32
  }
  func.func @transform_5(%arg0: i32) -> (i32, i32) {
    %c0_i32 = arith.constant 0 : i32
    %c0_i32_0 = arith.constant 0 : i32
    return %arg0, %c0_i32 : i32, i32
  }
}

module attributes {stable_mosaic.version = 11 : i64} {
  func.func @kernel(%arg0: i32, %arg1: memref<1x8x4x32xf32, #tpu.memory_space<vmem>>, %arg2: memref<2x3x32x32xbf16, #tpu.memory_space<vmem>>, %arg3: memref<2x4x8x32xbf16, #tpu.memory_space<vmem>>, %arg4: memref<2x1x32xf32, #tpu.memory_space<vmem>>, %arg5: memref<2x3x32x32xbf16, #tpu.memory_space<vmem>>, %arg6: memref<2x4x8x32xbf16, #tpu.memory_space<vmem>>, %arg7: memref<2x1x32xf32, #tpu.memory_space<vmem>>, %arg8: memref<2x32x64xbf16, #tpu.memory_space<vmem>>, %arg9: memref<2x1x64xf32, #tpu.memory_space<vmem>>, %arg10: memref<2x64x32xbf16, #tpu.memory_space<vmem>>, %arg11: memref<2x1x32xf32, #tpu.memory_space<vmem>>, %arg12: memref<1x8x4x32xf32, #tpu.memory_space<vmem>>) attributes {dimension_semantics = [#tpu.dimension_semantics<parallel>], iteration_bounds = array<i64: 2>, scalar_prefetch = 0 : i64, scratch_operands = 0 : i64, tpu.core_type = #tpu.core_type<tc>, window_params = [{transform_indices = @transform_0, window_bounds = array<i64: 1, 8, 4, 32>}, {pipeline_mode = #tpu.pipeline_mode<synchronous>, transform_indices = @transform_1, window_bounds = array<i64: 2, 3, 32, 32>}, {pipeline_mode = #tpu.pipeline_mode<synchronous>, transform_indices = @transform_2, window_bounds = array<i64: 2, 4, 8, 32>}, {pipeline_mode = #tpu.pipeline_mode<synchronous>, transform_indices = @transform_3, window_bounds = array<i64: 2, 1, 32>}, {pipeline_mode = #tpu.pipeline_mode<synchronous>, transform_indices = @transform_4, window_bounds = array<i64: 2, 3, 32, 32>}, {pipeline_mode = #tpu.pipeline_mode<synchronous>, transform_indices = @transform_5, window_bounds = array<i64: 2, 4, 8, 32>}, {pipeline_mode = #tpu.pipeline_mode<synchronous>, transform_indices = @transform_6, window_bounds = array<i64: 2, 1, 32>}, {pipeline_mode = #tpu.pipeline_mode<synchronous>, transform_indices = @transform_7, window_bounds = array<i64: 2, 32, 64>}, {pipeline_mode = #tpu.pipeline_mode<synchronous>, transform_indices = @transform_8, window_bounds = array<i64: 2, 1, 64>}, {pipeline_mode = #tpu.pipeline_mode<synchronous>, transform_indices = @transform_9, window_bounds = array<i64: 2, 64, 32>}, {pipeline_mode = #tpu.pipeline_mode<synchronous>, transform_indices = @transform_10, window_bounds = array<i64: 2, 1, 32>}, {transform_indices = @transform_11, window_bounds = array<i64: 1, 8, 4, 32>}]} {
    %c0 = arith.constant 0 : index
    %c0_0 = arith.constant 0 : index
    %c0_1 = arith.constant 0 : index
    %c0_2 = arith.constant 0 : index
    %0 = vector.load %arg1[%c0, %c0_0, %c0_1, %c0_2] : memref<1x8x4x32xf32, #tpu.memory_space<vmem>>, vector<1x8x4x32xf32>
    %c0_3 = arith.constant 0 : index
    %c0_4 = arith.constant 0 : index
    %c0_5 = arith.constant 0 : index
    %c0_6 = arith.constant 0 : index
    %1 = vector.load %arg12[%c0_3, %c0_4, %c0_5, %c0_6] : memref<1x8x4x32xf32, #tpu.memory_space<vmem>>, vector<1x8x4x32xf32>
    tpu.vector_store %arg12[%c0_3, %c0_4, %c0_5, %c0_6], %0 {strides = array<i32>} : memref<1x8x4x32xf32, #tpu.memory_space<vmem>>, vector<1x8x4x32xf32>,
    %c0_i32 = arith.constant 0 : i32
    %c2_i32 = arith.constant 2 : i32
    %2 = arith.addi %c0_i32, %c2_i32 : i32
    %c1_i32 = arith.constant 1 : i32
    scf.for %arg13 = %c0_i32 to %2 step %c1_i32  : i32 {
      %c0_8 = arith.constant 0 : index
      %c0_9 = arith.constant 0 : index
      %c0_10 = arith.constant 0 : index
      %c0_11 = arith.constant 0 : index
      %3 = vector.load %arg12[%c0_8, %c0_9, %c0_10, %c0_11] : memref<1x8x4x32xf32, #tpu.memory_space<vmem>>, vector<1x8x4x32xf32>
      %4 = vector.shape_cast %3 : vector<1x8x4x32xf32> to vector<8x4x32xf32>
      %5 = arith.index_cast %arg13 : i32 to index
      %c0_12 = arith.constant 0 : index
      %c0_13 = arith.constant 0 : index
      %c0_14 = arith.constant 0 : index
      %6 = vector.load %arg2[%5, %c0_12, %c0_13, %c0_14] : memref<2x3x32x32xbf16, #tpu.memory_space<vmem>>, vector<1x3x32x32xbf16>
      %7 = vector.shape_cast %6 : vector<1x3x32x32xbf16> to vector<3x32x32xbf16>
      %8 = arith.index_cast %arg13 : i32 to index
      %c0_15 = arith.constant 0 : index
      %c0_16 = arith.constant 0 : index
      %c0_17 = arith.constant 0 : index
      %9 = vector.load %arg3[%8, %c0_15, %c0_16, %c0_17] : memref<2x4x8x32xbf16, #tpu.memory_space<vmem>>, vector<1x4x8x32xbf16>
      %10 = vector.shape_cast %9 : vector<1x4x8x32xbf16> to vector<4x8x32xbf16>
      %11 = arith.index_cast %arg13 : i32 to index
      %c0_18 = arith.constant 0 : index
      %c0_19 = arith.constant 0 : index
      %12 = vector.load %arg4[%11, %c0_18, %c0_19] : memref<2x1x32xf32, #tpu.memory_space<vmem>>, vector<1x1x32xf32>
      %13 = vector.shape_cast %12 : vector<1x1x32xf32> to vector<1x32xf32>
      %14 = arith.index_cast %arg13 : i32 to index
      %c0_20 = arith.constant 0 : index
      %c0_21 = arith.constant 0 : index
      %c0_22 = arith.constant 0 : index
      %15 = vector.load %arg5[%14, %c0_20, %c0_21, %c0_22] : memref<2x3x32x32xbf16, #tpu.memory_space<vmem>>, vector<1x3x32x32xbf16>
      %16 = vector.shape_cast %15 : vector<1x3x32x32xbf16> to vector<3x32x32xbf16>
      %17 = arith.index_cast %arg13 : i32 to index
      %c0_23 = arith.constant 0 : index
      %c0_24 = arith.constant 0 : index
      %c0_25 = arith.constant 0 : index
      %18 = vector.load %arg6[%17, %c0_23, %c0_24, %c0_25] : memref<2x4x8x32xbf16, #tpu.memory_space<vmem>>, vector<1x4x8x32xbf16>
      %19 = vector.shape_cast %18 : vector<1x4x8x32xbf16> to vector<4x8x32xbf16>
      %20 = arith.index_cast %arg13 : i32 to index
      %c0_26 = arith.constant 0 : index
      %c0_27 = arith.constant 0 : index
      %21 = vector.load %arg7[%20, %c0_26, %c0_27] : memref<2x1x32xf32, #tpu.memory_space<vmem>>, vector<1x1x32xf32>
      %22 = vector.shape_cast %21 : vector<1x1x32xf32> to vector<1x32xf32>
      %23 = arith.index_cast %arg13 : i32 to index
      %c0_28 = arith.constant 0 : index
      %c0_29 = arith.constant 0 : index
      %24 = vector.load %arg8[%23, %c0_28, %c0_29] : memref<2x32x64xbf16, #tpu.memory_space<vmem>>, vector<1x32x64xbf16>
      %25 = vector.shape_cast %24 : vector<1x32x64xbf16> to vector<32x64xbf16>
      %26 = arith.index_cast %arg13 : i32 to index
      %c0_30 = arith.constant 0 : index
      %c0_31 = arith.constant 0 : index
      %27 = vector.load %arg9[%26, %c0_30, %c0_31] : memref<2x1x64xf32, #tpu.memory_space<vmem>>, vector<1x1x64xf32>
      %28 = vector.shape_cast %27 : vector<1x1x64xf32> to vector<1x64xf32>
      %29 = arith.index_cast %arg13 : i32 to index
      %c0_32 = arith.constant 0 : index
      %c0_33 = arith.constant 0 : index
      %30 = vector.load %arg10[%29, %c0_32, %c0_33] : memref<2x64x32xbf16, #tpu.memory_space<vmem>>, vector<1x64x32xbf16>
      %31 = vector.shape_cast %30 : vector<1x64x32xbf16> to vector<64x32xbf16>
      %32 = arith.index_cast %arg13 : i32 to index
      %c0_34 = arith.constant 0 : index
      %c0_35 = arith.constant 0 : index
      %33 = vector.load %arg11[%32, %c0_34, %c0_35] : memref<2x1x32xf32, #tpu.memory_space<vmem>>, vector<1x1x32xf32>
      %34 = vector.shape_cast %33 : vector<1x1x32xf32> to vector<1x32xf32>
      %35 = vector.shape_cast %4 : vector<8x4x32xf32> to vector<32x32xf32>
      %36 = arith.truncf %35 : vector<32x32xf32> to vector<32x32xbf16>
      %37 = vector.extract_strided_slice %7 {offsets = [0, 0, 0], sizes = [1, 32, 32], strides = [1, 1, 1]} : vector<3x32x32xbf16> to vector<1x32x32xbf16>
      %38 = vector.shape_cast %37 : vector<1x32x32xbf16> to vector<32x32xbf16>
      %cst = arith.constant dense<0.000000e+00> : vector<32x32xf32>
      %39 = tpu.matmul %36, %38, %cst {dimension_numbers = #tpu.dot_dimension_numbers<[1], [0], [0], [1], [0, 0, 1, 1], [], []>} : vector<32x32xbf16>, vector<32x32xbf16>, vector<32x32xf32> -> vector<32x32xf32>
      %40 = vector.extract_strided_slice %7 {offsets = [1, 0, 0], sizes = [1, 32, 32], strides = [1, 1, 1]} : vector<3x32x32xbf16> to vector<1x32x32xbf16>
      %41 = vector.shape_cast %40 : vector<1x32x32xbf16> to vector<32x32xbf16>
      %cst_36 = arith.constant dense<0.000000e+00> : vector<32x32xf32>
      %42 = tpu.matmul %36, %41, %cst_36 {dimension_numbers = #tpu.dot_dimension_numbers<[1], [0], [0], [1], [0, 0, 1, 1], [], []>} : vector<32x32xbf16>, vector<32x32xbf16>, vector<32x32xf32> -> vector<32x32xf32>
      %43 = vector.extract_strided_slice %7 {offsets = [2, 0, 0], sizes = [1, 32, 32], strides = [1, 1, 1]} : vector<3x32x32xbf16> to vector<1x32x32xbf16>
      %44 = vector.shape_cast %43 : vector<1x32x32xbf16> to vector<32x32xbf16>
      %cst_37 = arith.constant dense<0.000000e+00> : vector<32x32xf32>
      %45 = tpu.matmul %36, %44, %cst_37 {dimension_numbers = #tpu.dot_dimension_numbers<[1], [0], [0], [1], [0, 0, 1, 1], [], []>} : vector<32x32xbf16>, vector<32x32xbf16>, vector<32x32xf32> -> vector<32x32xf32>
      %46 = arith.truncf %39 : vector<32x32xf32> to vector<32x32xbf16>
      %47 = vector.shape_cast %46 : vector<32x32xbf16> to vector<8x4x32xbf16>
      %48 = arith.truncf %42 : vector<32x32xf32> to vector<32x32xbf16>
      %49 = vector.shape_cast %48 : vector<32x32xbf16> to vector<8x4x32xbf16>
      %50 = arith.truncf %45 : vector<32x32xf32> to vector<32x32xbf16>
      %51 = vector.shape_cast %50 : vector<32x32xbf16> to vector<8x4x32xbf16>
      %cst_38 = arith.constant 0.000000e+00 : f32
      %52 = vector.broadcast %cst_38 : f32 to vector<32x32xf32>
      %53 = vector.extract_strided_slice %47 {offsets = [0, 0, 0], sizes = [8, 4, 8], strides = [1, 1, 1]} : vector<8x4x32xbf16> to vector<8x4x8xbf16>
      %54 = vector.extract_strided_slice %49 {offsets = [0, 0, 0], sizes = [8, 4, 8], strides = [1, 1, 1]} : vector<8x4x32xbf16> to vector<8x4x8xbf16>
      %55 = vector.extract_strided_slice %51 {offsets = [0, 0, 0], sizes = [8, 4, 8], strides = [1, 1, 1]} : vector<8x4x32xbf16> to vector<8x4x8xbf16>
      "tpu.trace_start"() <{level = 10 : i32, message = "bqd,bkd->bqk"}> : () -> ()
      %cst_39 = arith.constant dense<0.000000e+00> : vector<8x4x4xf32>
      %56 = tpu.matmul %53, %54, %cst_39 {dimension_numbers = #tpu.dot_dimension_numbers<[2], [2], [1], [1], [0, 0, 0, 1, 1, 1], [0], [0]>} : vector<8x4x8xbf16>, vector<8x4x8xbf16>, vector<8x4x4xf32> -> vector<8x4x4xf32>
      "tpu.trace_stop"() : () -> ()
      %cst_40 = arith.constant dense<0xFF800000> : vector<8x4xf32>
      %57 = vector.multi_reduction <maximumf>, %56, %cst_40 [2] : vector<8x4x4xf32> to vector<8x4xf32>
      %58 = vector.shape_cast %57 : vector<8x4xf32> to vector<8x4x1xf32>
      %59 = vector.broadcast %58 : vector<8x4x1xf32> to vector<8x4x4xf32>
      %60 = arith.subf %56, %59 : vector<8x4x4xf32>
      %61 = math.exp %60 : vector<8x4x4xf32>
      %cst_41 = arith.constant dense<0.000000e+00> : vector<8x4xf32>
      %62 = vector.multi_reduction <add>, %61, %cst_41 [2] : vector<8x4x4xf32> to vector<8x4xf32>
      %63 = vector.shape_cast %62 : vector<8x4xf32> to vector<8x4x1xf32>
      %64 = tpu.reciprocal %63 {approx = true} : vector<8x4x1xf32> -> vector<8x4x1xf32>
      %65 = vector.broadcast %64 : vector<8x4x1xf32> to vector<8x4x4xf32>
      %66 = arith.mulf %61, %65 : vector<8x4x4xf32>
      %67 = arith.truncf %66 : vector<8x4x4xf32> to vector<8x4x4xbf16>
      "tpu.trace_start"() <{level = 10 : i32, message = "bqk,bkd->bqd"}> : () -> ()
      %cst_42 = arith.constant dense<0.000000e+00> : vector<8x4x8xf32>
      %68 = tpu.matmul %67, %55, %cst_42 {dimension_numbers = #tpu.dot_dimension_numbers<[2], [1], [1], [2], [0, 0, 0, 1, 1, 2], [0], [0]>} : vector<8x4x4xbf16>, vector<8x4x8xbf16>, vector<8x4x8xf32> -> vector<8x4x8xf32>
      "tpu.trace_stop"() : () -> ()
      %69 = arith.truncf %68 : vector<8x4x8xf32> to vector<8x4x8xbf16>
      %70 = vector.shape_cast %69 : vector<8x4x8xbf16> to vector<32x8xbf16>
      %71 = vector.extract_strided_slice %10 {offsets = [0, 0, 0], sizes = [1, 8, 32], strides = [1, 1, 1]} : vector<4x8x32xbf16> to vector<1x8x32xbf16>
      %72 = vector.shape_cast %71 : vector<1x8x32xbf16> to vector<8x32xbf16>
      %cst_43 = arith.constant dense<0.000000e+00> : vector<32x32xf32>
      %73 = tpu.matmul %70, %72, %cst_43 {dimension_numbers = #tpu.dot_dimension_numbers<[1], [0], [0], [1], [0, 0, 1, 1], [], []>} : vector<32x8xbf16>, vector<8x32xbf16>, vector<32x32xf32> -> vector<32x32xf32>
      %74 = arith.addf %52, %73 : vector<32x32xf32>
      %75 = vector.extract_strided_slice %47 {offsets = [0, 0, 8], sizes = [8, 4, 8], strides = [1, 1, 1]} : vector<8x4x32xbf16> to vector<8x4x8xbf16>
      %76 = vector.extract_strided_slice %49 {offsets = [0, 0, 8], sizes = [8, 4, 8], strides = [1, 1, 1]} : vector<8x4x32xbf16> to vector<8x4x8xbf16>
      %77 = vector.extract_strided_slice %51 {offsets = [0, 0, 8], sizes = [8, 4, 8], strides = [1, 1, 1]} : vector<8x4x32xbf16> to vector<8x4x8xbf16>
      "tpu.trace_start"() <{level = 10 : i32, message = "bqd,bkd->bqk"}> : () -> ()
      %cst_44 = arith.constant dense<0.000000e+00> : vector<8x4x4xf32>
      %78 = tpu.matmul %75, %76, %cst_44 {dimension_numbers = #tpu.dot_dimension_numbers<[2], [2], [1], [1], [0, 0, 0, 1, 1, 1], [0], [0]>} : vector<8x4x8xbf16>, vector<8x4x8xbf16>, vector<8x4x4xf32> -> vector<8x4x4xf32>
      "tpu.trace_stop"() : () -> ()
      %cst_45 = arith.constant dense<0xFF800000> : vector<8x4xf32>
      %79 = vector.multi_reduction <maximumf>, %78, %cst_45 [2] : vector<8x4x4xf32> to vector<8x4xf32>
      %80 = vector.shape_cast %79 : vector<8x4xf32> to vector<8x4x1xf32>
      %81 = vector.broadcast %80 : vector<8x4x1xf32> to vector<8x4x4xf32>
      %82 = arith.subf %78, %81 : vector<8x4x4xf32>
      %83 = math.exp %82 : vector<8x4x4xf32>
      %cst_46 = arith.constant dense<0.000000e+00> : vector<8x4xf32>
      %84 = vector.multi_reduction <add>, %83, %cst_46 [2] : vector<8x4x4xf32> to vector<8x4xf32>
      %85 = vector.shape_cast %84 : vector<8x4xf32> to vector<8x4x1xf32>
      %86 = tpu.reciprocal %85 {approx = true} : vector<8x4x1xf32> -> vector<8x4x1xf32>
      %87 = vector.broadcast %86 : vector<8x4x1xf32> to vector<8x4x4xf32>
      %88 = arith.mulf %83, %87 : vector<8x4x4xf32>
      %89 = arith.truncf %88 : vector<8x4x4xf32> to vector<8x4x4xbf16>
      "tpu.trace_start"() <{level = 10 : i32, message = "bqk,bkd->bqd"}> : () -> ()
      %cst_47 = arith.constant dense<0.000000e+00> : vector<8x4x8xf32>
      %90 = tpu.matmul %89, %77, %cst_47 {dimension_numbers = #tpu.dot_dimension_numbers<[2], [1], [1], [2], [0, 0, 0, 1, 1, 2], [0], [0]>} : vector<8x4x4xbf16>, vector<8x4x8xbf16>, vector<8x4x8xf32> -> vector<8x4x8xf32>
      "tpu.trace_stop"() : () -> ()
      %91 = arith.truncf %90 : vector<8x4x8xf32> to vector<8x4x8xbf16>
      %92 = vector.shape_cast %91 : vector<8x4x8xbf16> to vector<32x8xbf16>
      %93 = vector.extract_strided_slice %10 {offsets = [1, 0, 0], sizes = [1, 8, 32], strides = [1, 1, 1]} : vector<4x8x32xbf16> to vector<1x8x32xbf16>
      %94 = vector.shape_cast %93 : vector<1x8x32xbf16> to vector<8x32xbf16>
      %cst_48 = arith.constant dense<0.000000e+00> : vector<32x32xf32>
      %95 = tpu.matmul %92, %94, %cst_48 {dimension_numbers = #tpu.dot_dimension_numbers<[1], [0], [0], [1], [0, 0, 1, 1], [], []>} : vector<32x8xbf16>, vector<8x32xbf16>, vector<32x32xf32> -> vector<32x32xf32>
      %96 = arith.addf %74, %95 : vector<32x32xf32>
      %97 = vector.extract_strided_slice %47 {offsets = [0, 0, 16], sizes = [8, 4, 8], strides = [1, 1, 1]} : vector<8x4x32xbf16> to vector<8x4x8xbf16>
      %98 = vector.extract_strided_slice %49 {offsets = [0, 0, 16], sizes = [8, 4, 8], strides = [1, 1, 1]} : vector<8x4x32xbf16> to vector<8x4x8xbf16>
      %99 = vector.extract_strided_slice %51 {offsets = [0, 0, 16], sizes = [8, 4, 8], strides = [1, 1, 1]} : vector<8x4x32xbf16> to vector<8x4x8xbf16>
      "tpu.trace_start"() <{level = 10 : i32, message = "bqd,bkd->bqk"}> : () -> ()
      %cst_49 = arith.constant dense<0.000000e+00> : vector<8x4x4xf32>
      %100 = tpu.matmul %97, %98, %cst_49 {dimension_numbers = #tpu.dot_dimension_numbers<[2], [2], [1], [1], [0, 0, 0, 1, 1, 1], [0], [0]>} : vector<8x4x8xbf16>, vector<8x4x8xbf16>, vector<8x4x4xf32> -> vector<8x4x4xf32>
      "tpu.trace_stop"() : () -> ()
      %cst_50 = arith.constant dense<0xFF800000> : vector<8x4xf32>
      %101 = vector.multi_reduction <maximumf>, %100, %cst_50 [2] : vector<8x4x4xf32> to vector<8x4xf32>
      %102 = vector.shape_cast %101 : vector<8x4xf32> to vector<8x4x1xf32>
      %103 = vector.broadcast %102 : vector<8x4x1xf32> to vector<8x4x4xf32>
      %104 = arith.subf %100, %103 : vector<8x4x4xf32>
      %105 = math.exp %104 : vector<8x4x4xf32>
      %cst_51 = arith.constant dense<0.000000e+00> : vector<8x4xf32>
      %106 = vector.multi_reduction <add>, %105, %cst_51 [2] : vector<8x4x4xf32> to vector<8x4xf32>
      %107 = vector.shape_cast %106 : vector<8x4xf32> to vector<8x4x1xf32>
      %108 = tpu.reciprocal %107 {approx = true} : vector<8x4x1xf32> -> vector<8x4x1xf32>
      %109 = vector.broadcast %108 : vector<8x4x1xf32> to vector<8x4x4xf32>
      %110 = arith.mulf %105, %109 : vector<8x4x4xf32>
      %111 = arith.truncf %110 : vector<8x4x4xf32> to vector<8x4x4xbf16>
      "tpu.trace_start"() <{level = 10 : i32, message = "bqk,bkd->bqd"}> : () -> ()
      %cst_52 = arith.constant dense<0.000000e+00> : vector<8x4x8xf32>
      %112 = tpu.matmul %111, %99, %cst_52 {dimension_numbers = #tpu.dot_dimension_numbers<[2], [1], [1], [2], [0, 0, 0, 1, 1, 2], [0], [0]>} : vector<8x4x4xbf16>, vector<8x4x8xbf16>, vector<8x4x8xf32> -> vector<8x4x8xf32>
      "tpu.trace_stop"() : () -> ()
      %113 = arith.truncf %112 : vector<8x4x8xf32> to vector<8x4x8xbf16>
      %114 = vector.shape_cast %113 : vector<8x4x8xbf16> to vector<32x8xbf16>
      %115 = vector.extract_strided_slice %10 {offsets = [2, 0, 0], sizes = [1, 8, 32], strides = [1, 1, 1]} : vector<4x8x32xbf16> to vector<1x8x32xbf16>
      %116 = vector.shape_cast %115 : vector<1x8x32xbf16> to vector<8x32xbf16>
      %cst_53 = arith.constant dense<0.000000e+00> : vector<32x32xf32>
      %117 = tpu.matmul %114, %116, %cst_53 {dimension_numbers = #tpu.dot_dimension_numbers<[1], [0], [0], [1], [0, 0, 1, 1], [], []>} : vector<32x8xbf16>, vector<8x32xbf16>, vector<32x32xf32> -> vector<32x32xf32>
      %118 = arith.addf %96, %117 : vector<32x32xf32>
      %119 = vector.extract_strided_slice %47 {offsets = [0, 0, 24], sizes = [8, 4, 8], strides = [1, 1, 1]} : vector<8x4x32xbf16> to vector<8x4x8xbf16>
      %120 = vector.extract_strided_slice %49 {offsets = [0, 0, 24], sizes = [8, 4, 8], strides = [1, 1, 1]} : vector<8x4x32xbf16> to vector<8x4x8xbf16>
      %121 = vector.extract_strided_slice %51 {offsets = [0, 0, 24], sizes = [8, 4, 8], strides = [1, 1, 1]} : vector<8x4x32xbf16> to vector<8x4x8xbf16>
      "tpu.trace_start"() <{level = 10 : i32, message = "bqd,bkd->bqk"}> : () -> ()
      %cst_54 = arith.constant dense<0.000000e+00> : vector<8x4x4xf32>
      %122 = tpu.matmul %119, %120, %cst_54 {dimension_numbers = #tpu.dot_dimension_numbers<[2], [2], [1], [1], [0, 0, 0, 1, 1, 1], [0], [0]>} : vector<8x4x8xbf16>, vector<8x4x8xbf16>, vector<8x4x4xf32> -> vector<8x4x4xf32>
      "tpu.trace_stop"() : () -> ()
      %cst_55 = arith.constant dense<0xFF800000> : vector<8x4xf32>
      %123 = vector.multi_reduction <maximumf>, %122, %cst_55 [2] : vector<8x4x4xf32> to vector<8x4xf32>
      %124 = vector.shape_cast %123 : vector<8x4xf32> to vector<8x4x1xf32>
      %125 = vector.broadcast %124 : vector<8x4x1xf32> to vector<8x4x4xf32>
      %126 = arith.subf %122, %125 : vector<8x4x4xf32>
      %127 = math.exp %126 : vector<8x4x4xf32>
      %cst_56 = arith.constant dense<0.000000e+00> : vector<8x4xf32>
      %128 = vector.multi_reduction <add>, %127, %cst_56 [2] : vector<8x4x4xf32> to vector<8x4xf32>
      %129 = vector.shape_cast %128 : vector<8x4xf32> to vector<8x4x1xf32>
      %130 = tpu.reciprocal %129 {approx = true} : vector<8x4x1xf32> -> vector<8x4x1xf32>
      %131 = vector.broadcast %130 : vector<8x4x1xf32> to vector<8x4x4xf32>
      %132 = arith.mulf %127, %131 : vector<8x4x4xf32>
      %133 = arith.truncf %132 : vector<8x4x4xf32> to vector<8x4x4xbf16>
      "tpu.trace_start"() <{level = 10 : i32, message = "bqk,bkd->bqd"}> : () -> ()
      %cst_57 = arith.constant dense<0.000000e+00> : vector<8x4x8xf32>
      %134 = tpu.matmul %133, %121, %cst_57 {dimension_numbers = #tpu.dot_dimension_numbers<[2], [1], [1], [2], [0, 0, 0, 1, 1, 2], [0], [0]>} : vector<8x4x4xbf16>, vector<8x4x8xbf16>, vector<8x4x8xf32> -> vector<8x4x8xf32>
      "tpu.trace_stop"() : () -> ()
      %135 = arith.truncf %134 : vector<8x4x8xf32> to vector<8x4x8xbf16>
      %136 = vector.shape_cast %135 : vector<8x4x8xbf16> to vector<32x8xbf16>
      %137 = vector.extract_strided_slice %10 {offsets = [3, 0, 0], sizes = [1, 8, 32], strides = [1, 1, 1]} : vector<4x8x32xbf16> to vector<1x8x32xbf16>
      %138 = vector.shape_cast %137 : vector<1x8x32xbf16> to vector<8x32xbf16>
      %cst_58 = arith.constant dense<0.000000e+00> : vector<32x32xf32>
      %139 = tpu.matmul %136, %138, %cst_58 {dimension_numbers = #tpu.dot_dimension_numbers<[1], [0], [0], [1], [0, 0, 1, 1], [], []>} : vector<32x8xbf16>, vector<8x32xbf16>, vector<32x32xf32> -> vector<32x32xf32>
      %140 = arith.addf %118, %139 : vector<32x32xf32>
      %141 = vector.broadcast %13 : vector<1x32xf32> to vector<32x32xf32>
      %142 = arith.addf %140, %141 : vector<32x32xf32>
      %143 = vector.shape_cast %142 : vector<32x32xf32> to vector<8x4x32xf32>
      %144 = arith.addf %4, %143 : vector<8x4x32xf32>
      %cst_59 = arith.constant dense<0.000000e+00> : vector<8x4xf32>
      %145 = vector.multi_reduction <add>, %144, %cst_59 [2] : vector<8x4x32xf32> to vector<8x4xf32>
      %146 = vector.shape_cast %145 : vector<8x4xf32> to vector<8x4x1xf32>
      %cst_60 = arith.constant 3.200000e+01 : f32
      %147 = vector.broadcast %cst_60 : f32 to vector<8x4x1xf32>
      %148 = arith.divf %146, %147 : vector<8x4x1xf32>
      %149 = vector.broadcast %148 : vector<8x4x1xf32> to vector<8x4x32xf32>
      %150 = arith.subf %144, %149 : vector<8x4x32xf32>
      %151 = arith.mulf %150, %150 : vector<8x4x32xf32>
      %cst_61 = arith.constant dense<0.000000e+00> : vector<8x4xf32>
      %152 = vector.multi_reduction <add>, %151, %cst_61 [2] : vector<8x4x32xf32> to vector<8x4xf32>
      %153 = vector.shape_cast %152 : vector<8x4xf32> to vector<8x4x1xf32>
      %cst_62 = arith.constant 3.200000e+01 : f32
      %154 = vector.broadcast %cst_62 : f32 to vector<8x4x1xf32>
      %155 = arith.divf %153, %154 : vector<8x4x1xf32>
      %cst_63 = arith.constant 9.99999974E-6 : f32
      %156 = vector.broadcast %cst_63 : f32 to vector<8x4x1xf32>
      %157 = arith.addf %155, %156 : vector<8x4x1xf32>
      %158 = math.rsqrt %157 : vector<8x4x1xf32>
      %159 = vector.broadcast %158 : vector<8x4x1xf32> to vector<8x4x32xf32>
      %160 = arith.mulf %150, %159 : vector<8x4x32xf32>
      %161 = arith.truncf %160 : vector<8x4x32xf32> to vector<8x4x32xbf16>
      %162 = tpu.transpose %161, [1, 0, 2] : vector<8x4x32xbf16> -> vector<4x8x32xbf16>
      %163 = vector.shape_cast %162 : vector<4x8x32xbf16> to vector<32x32xbf16>
      %164 = vector.extract_strided_slice %162 {offsets = [0, 0, 0], sizes = [4, 6, 32], strides = [1, 1, 1]} : vector<4x8x32xbf16> to vector<4x6x32xbf16>
      %165 = vector.shape_cast %164 : vector<4x6x32xbf16> to vector<24x32xbf16>
      %166 = vector.extract_strided_slice %16 {offsets = [0, 0, 0], sizes = [1, 32, 32], strides = [1, 1, 1]} : vector<3x32x32xbf16> to vector<1x32x32xbf16>
      %167 = vector.shape_cast %166 : vector<1x32x32xbf16> to vector<32x32xbf16>
      %cst_64 = arith.constant dense<0.000000e+00> : vector<32x32xf32>
      %168 = tpu.matmul %163, %167, %cst_64 {dimension_numbers = #tpu.dot_dimension_numbers<[1], [0], [0], [1], [0, 0, 1, 1], [], []>} : vector<32x32xbf16>, vector<32x32xbf16>, vector<32x32xf32> -> vector<32x32xf32>
      %169 = vector.extract_strided_slice %16 {offsets = [1, 0, 0], sizes = [1, 32, 32], strides = [1, 1, 1]} : vector<3x32x32xbf16> to vector<1x32x32xbf16>
      %170 = vector.shape_cast %169 : vector<1x32x32xbf16> to vector<32x32xbf16>
      %cst_65 = arith.constant dense<0.000000e+00> : vector<24x32xf32>
      %171 = tpu.matmul %165, %170, %cst_65 {dimension_numbers = #tpu.dot_dimension_numbers<[1], [0], [0], [1], [0, 0, 1, 1], [], []>} : vector<24x32xbf16>, vector<32x32xbf16>, vector<24x32xf32> -> vector<24x32xf32>
      %172 = vector.extract_strided_slice %16 {offsets = [2, 0, 0], sizes = [1, 32, 32], strides = [1, 1, 1]} : vector<3x32x32xbf16> to vector<1x32x32xbf16>
      %173 = vector.shape_cast %172 : vector<1x32x32xbf16> to vector<32x32xbf16>
      %cst_66 = arith.constant dense<0.000000e+00> : vector<24x32xf32>
      %174 = tpu.matmul %165, %173, %cst_66 {dimension_numbers = #tpu.dot_dimension_numbers<[1], [0], [0], [1], [0, 0, 1, 1], [], []>} : vector<24x32xbf16>, vector<32x32xbf16>, vector<24x32xf32> -> vector<24x32xf32>
      %175 = arith.truncf %168 : vector<32x32xf32> to vector<32x32xbf16>
      %176 = vector.shape_cast %175 : vector<32x32xbf16> to vector<4x8x32xbf16>
      %177 = arith.truncf %171 : vector<24x32xf32> to vector<24x32xbf16>
      %178 = vector.shape_cast %177 : vector<24x32xbf16> to vector<4x6x32xbf16>
      %179 = arith.truncf %174 : vector<24x32xf32> to vector<24x32xbf16>
      %180 = vector.shape_cast %179 : vector<24x32xbf16> to vector<4x6x32xbf16>
      %cst_67 = arith.constant 0.000000e+00 : f32
      %181 = vector.broadcast %cst_67 : f32 to vector<32x32xf32>
      %182 = vector.extract_strided_slice %176 {offsets = [0, 0, 0], sizes = [4, 8, 8], strides = [1, 1, 1]} : vector<4x8x32xbf16> to vector<4x8x8xbf16>
      %183 = vector.extract_strided_slice %178 {offsets = [0, 0, 0], sizes = [4, 6, 8], strides = [1, 1, 1]} : vector<4x6x32xbf16> to vector<4x6x8xbf16>
      %184 = vector.extract_strided_slice %180 {offsets = [0, 0, 0], sizes = [4, 6, 8], strides = [1, 1, 1]} : vector<4x6x32xbf16> to vector<4x6x8xbf16>
      "tpu.trace_start"() <{level = 10 : i32, message = "bqd,bkd->bqk"}> : () -> ()
      %cst_68 = arith.constant dense<0.000000e+00> : vector<4x8x6xf32>
      %185 = tpu.matmul %182, %183, %cst_68 {dimension_numbers = #tpu.dot_dimension_numbers<[2], [2], [1], [1], [0, 0, 0, 1, 1, 1], [0], [0]>} : vector<4x8x8xbf16>, vector<4x6x8xbf16>, vector<4x8x6xf32> -> vector<4x8x6xf32>
      "tpu.trace_stop"() : () -> ()
      %cst_69 = arith.constant dense<0xFF800000> : vector<4x8xf32>
      %186 = vector.multi_reduction <maximumf>, %185, %cst_69 [2] : vector<4x8x6xf32> to vector<4x8xf32>
      %187 = vector.shape_cast %186 : vector<4x8xf32> to vector<4x8x1xf32>
      %188 = vector.broadcast %187 : vector<4x8x1xf32> to vector<4x8x6xf32>
      %189 = arith.subf %185, %188 : vector<4x8x6xf32>
      %190 = math.exp %189 : vector<4x8x6xf32>
      %cst_70 = arith.constant dense<0.000000e+00> : vector<4x8xf32>
      %191 = vector.multi_reduction <add>, %190, %cst_70 [2] : vector<4x8x6xf32> to vector<4x8xf32>
      %192 = vector.shape_cast %191 : vector<4x8xf32> to vector<4x8x1xf32>
      %193 = tpu.reciprocal %192 {approx = true} : vector<4x8x1xf32> -> vector<4x8x1xf32>
      %194 = vector.broadcast %193 : vector<4x8x1xf32> to vector<4x8x6xf32>
      %195 = arith.mulf %190, %194 : vector<4x8x6xf32>
      %196 = arith.truncf %195 : vector<4x8x6xf32> to vector<4x8x6xbf16>
      "tpu.trace_start"() <{level = 10 : i32, message = "bqk,bkd->bqd"}> : () -> ()
      %cst_71 = arith.constant dense<0.000000e+00> : vector<4x8x8xf32>
      %197 = tpu.matmul %196, %184, %cst_71 {dimension_numbers = #tpu.dot_dimension_numbers<[2], [1], [1], [2], [0, 0, 0, 1, 1, 2], [0], [0]>} : vector<4x8x6xbf16>, vector<4x6x8xbf16>, vector<4x8x8xf32> -> vector<4x8x8xf32>
      "tpu.trace_stop"() : () -> ()
      %198 = arith.truncf %197 : vector<4x8x8xf32> to vector<4x8x8xbf16>
      %199 = vector.shape_cast %198 : vector<4x8x8xbf16> to vector<32x8xbf16>
      %200 = vector.extract_strided_slice %19 {offsets = [0, 0, 0], sizes = [1, 8, 32], strides = [1, 1, 1]} : vector<4x8x32xbf16> to vector<1x8x32xbf16>
      %201 = vector.shape_cast %200 : vector<1x8x32xbf16> to vector<8x32xbf16>
      %cst_72 = arith.constant dense<0.000000e+00> : vector<32x32xf32>
      %202 = tpu.matmul %199, %201, %cst_72 {dimension_numbers = #tpu.dot_dimension_numbers<[1], [0], [0], [1], [0, 0, 1, 1], [], []>} : vector<32x8xbf16>, vector<8x32xbf16>, vector<32x32xf32> -> vector<32x32xf32>
      %203 = arith.addf %181, %202 : vector<32x32xf32>
      %204 = vector.extract_strided_slice %176 {offsets = [0, 0, 8], sizes = [4, 8, 8], strides = [1, 1, 1]} : vector<4x8x32xbf16> to vector<4x8x8xbf16>
      %205 = vector.extract_strided_slice %178 {offsets = [0, 0, 8], sizes = [4, 6, 8], strides = [1, 1, 1]} : vector<4x6x32xbf16> to vector<4x6x8xbf16>
      %206 = vector.extract_strided_slice %180 {offsets = [0, 0, 8], sizes = [4, 6, 8], strides = [1, 1, 1]} : vector<4x6x32xbf16> to vector<4x6x8xbf16>
      "tpu.trace_start"() <{level = 10 : i32, message = "bqd,bkd->bqk"}> : () -> ()
      %cst_73 = arith.constant dense<0.000000e+00> : vector<4x8x6xf32>
      %207 = tpu.matmul %204, %205, %cst_73 {dimension_numbers = #tpu.dot_dimension_numbers<[2], [2], [1], [1], [0, 0, 0, 1, 1, 1], [0], [0]>} : vector<4x8x8xbf16>, vector<4x6x8xbf16>, vector<4x8x6xf32> -> vector<4x8x6xf32>
      "tpu.trace_stop"() : () -> ()
      %cst_74 = arith.constant dense<0xFF800000> : vector<4x8xf32>
      %208 = vector.multi_reduction <maximumf>, %207, %cst_74 [2] : vector<4x8x6xf32> to vector<4x8xf32>
      %209 = vector.shape_cast %208 : vector<4x8xf32> to vector<4x8x1xf32>
      %210 = vector.broadcast %209 : vector<4x8x1xf32> to vector<4x8x6xf32>
      %211 = arith.subf %207, %210 : vector<4x8x6xf32>
      %212 = math.exp %211 : vector<4x8x6xf32>
      %cst_75 = arith.constant dense<0.000000e+00> : vector<4x8xf32>
      %213 = vector.multi_reduction <add>, %212, %cst_75 [2] : vector<4x8x6xf32> to vector<4x8xf32>
      %214 = vector.shape_cast %213 : vector<4x8xf32> to vector<4x8x1xf32>
      %215 = tpu.reciprocal %214 {approx = true} : vector<4x8x1xf32> -> vector<4x8x1xf32>
      %216 = vector.broadcast %215 : vector<4x8x1xf32> to vector<4x8x6xf32>
      %217 = arith.mulf %212, %216 : vector<4x8x6xf32>
      %218 = arith.truncf %217 : vector<4x8x6xf32> to vector<4x8x6xbf16>
      "tpu.trace_start"() <{level = 10 : i32, message = "bqk,bkd->bqd"}> : () -> ()
      %cst_76 = arith.constant dense<0.000000e+00> : vector<4x8x8xf32>
      %219 = tpu.matmul %218, %206, %cst_76 {dimension_numbers = #tpu.dot_dimension_numbers<[2], [1], [1], [2], [0, 0, 0, 1, 1, 2], [0], [0]>} : vector<4x8x6xbf16>, vector<4x6x8xbf16>, vector<4x8x8xf32> -> vector<4x8x8xf32>
      "tpu.trace_stop"() : () -> ()
      %220 = arith.truncf %219 : vector<4x8x8xf32> to vector<4x8x8xbf16>
      %221 = vector.shape_cast %220 : vector<4x8x8xbf16> to vector<32x8xbf16>
      %222 = vector.extract_strided_slice %19 {offsets = [1, 0, 0], sizes = [1, 8, 32], strides = [1, 1, 1]} : vector<4x8x32xbf16> to vector<1x8x32xbf16>
      %223 = vector.shape_cast %222 : vector<1x8x32xbf16> to vector<8x32xbf16>
      %cst_77 = arith.constant dense<0.000000e+00> : vector<32x32xf32>
      %224 = tpu.matmul %221, %223, %cst_77 {dimension_numbers = #tpu.dot_dimension_numbers<[1], [0], [0], [1], [0, 0, 1, 1], [], []>} : vector<32x8xbf16>, vector<8x32xbf16>, vector<32x32xf32> -> vector<32x32xf32>
      %225 = arith.addf %203, %224 : vector<32x32xf32>
      %226 = vector.extract_strided_slice %176 {offsets = [0, 0, 16], sizes = [4, 8, 8], strides = [1, 1, 1]} : vector<4x8x32xbf16> to vector<4x8x8xbf16>
      %227 = vector.extract_strided_slice %178 {offsets = [0, 0, 16], sizes = [4, 6, 8], strides = [1, 1, 1]} : vector<4x6x32xbf16> to vector<4x6x8xbf16>
      %228 = vector.extract_strided_slice %180 {offsets = [0, 0, 16], sizes = [4, 6, 8], strides = [1, 1, 1]} : vector<4x6x32xbf16> to vector<4x6x8xbf16>
      "tpu.trace_start"() <{level = 10 : i32, message = "bqd,bkd->bqk"}> : () -> ()
      %cst_78 = arith.constant dense<0.000000e+00> : vector<4x8x6xf32>
      %229 = tpu.matmul %226, %227, %cst_78 {dimension_numbers = #tpu.dot_dimension_numbers<[2], [2], [1], [1], [0, 0, 0, 1, 1, 1], [0], [0]>} : vector<4x8x8xbf16>, vector<4x6x8xbf16>, vector<4x8x6xf32> -> vector<4x8x6xf32>
      "tpu.trace_stop"() : () -> ()
      %cst_79 = arith.constant dense<0xFF800000> : vector<4x8xf32>
      %230 = vector.multi_reduction <maximumf>, %229, %cst_79 [2] : vector<4x8x6xf32> to vector<4x8xf32>
      %231 = vector.shape_cast %230 : vector<4x8xf32> to vector<4x8x1xf32>
      %232 = vector.broadcast %231 : vector<4x8x1xf32> to vector<4x8x6xf32>
      %233 = arith.subf %229, %232 : vector<4x8x6xf32>
      %234 = math.exp %233 : vector<4x8x6xf32>
      %cst_80 = arith.constant dense<0.000000e+00> : vector<4x8xf32>
      %235 = vector.multi_reduction <add>, %234, %cst_80 [2] : vector<4x8x6xf32> to vector<4x8xf32>
      %236 = vector.shape_cast %235 : vector<4x8xf32> to vector<4x8x1xf32>
      %237 = tpu.reciprocal %236 {approx = true} : vector<4x8x1xf32> -> vector<4x8x1xf32>
      %238 = vector.broadcast %237 : vector<4x8x1xf32> to vector<4x8x6xf32>
      %239 = arith.mulf %234, %238 : vector<4x8x6xf32>
      %240 = arith.truncf %239 : vector<4x8x6xf32> to vector<4x8x6xbf16>
      "tpu.trace_start"() <{level = 10 : i32, message = "bqk,bkd->bqd"}> : () -> ()
      %cst_81 = arith.constant dense<0.000000e+00> : vector<4x8x8xf32>
      %241 = tpu.matmul %240, %228, %cst_81 {dimension_numbers = #tpu.dot_dimension_numbers<[2], [1], [1], [2], [0, 0, 0, 1, 1, 2], [0], [0]>} : vector<4x8x6xbf16>, vector<4x6x8xbf16>, vector<4x8x8xf32> -> vector<4x8x8xf32>
      "tpu.trace_stop"() : () -> ()
      %242 = arith.truncf %241 : vector<4x8x8xf32> to vector<4x8x8xbf16>
      %243 = vector.shape_cast %242 : vector<4x8x8xbf16> to vector<32x8xbf16>
      %244 = vector.extract_strided_slice %19 {offsets = [2, 0, 0], sizes = [1, 8, 32], strides = [1, 1, 1]} : vector<4x8x32xbf16> to vector<1x8x32xbf16>
      %245 = vector.shape_cast %244 : vector<1x8x32xbf16> to vector<8x32xbf16>
      %cst_82 = arith.constant dense<0.000000e+00> : vector<32x32xf32>
      %246 = tpu.matmul %243, %245, %cst_82 {dimension_numbers = #tpu.dot_dimension_numbers<[1], [0], [0], [1], [0, 0, 1, 1], [], []>} : vector<32x8xbf16>, vector<8x32xbf16>, vector<32x32xf32> -> vector<32x32xf32>
      %247 = arith.addf %225, %246 : vector<32x32xf32>
      %248 = vector.extract_strided_slice %176 {offsets = [0, 0, 24], sizes = [4, 8, 8], strides = [1, 1, 1]} : vector<4x8x32xbf16> to vector<4x8x8xbf16>
      %249 = vector.extract_strided_slice %178 {offsets = [0, 0, 24], sizes = [4, 6, 8], strides = [1, 1, 1]} : vector<4x6x32xbf16> to vector<4x6x8xbf16>
      %250 = vector.extract_strided_slice %180 {offsets = [0, 0, 24], sizes = [4, 6, 8], strides = [1, 1, 1]} : vector<4x6x32xbf16> to vector<4x6x8xbf16>
      "tpu.trace_start"() <{level = 10 : i32, message = "bqd,bkd->bqk"}> : () -> ()
      %cst_83 = arith.constant dense<0.000000e+00> : vector<4x8x6xf32>
      %251 = tpu.matmul %248, %249, %cst_83 {dimension_numbers = #tpu.dot_dimension_numbers<[2], [2], [1], [1], [0, 0, 0, 1, 1, 1], [0], [0]>} : vector<4x8x8xbf16>, vector<4x6x8xbf16>, vector<4x8x6xf32> -> vector<4x8x6xf32>
      "tpu.trace_stop"() : () -> ()
      %cst_84 = arith.constant dense<0xFF800000> : vector<4x8xf32>
      %252 = vector.multi_reduction <maximumf>, %251, %cst_84 [2] : vector<4x8x6xf32> to vector<4x8xf32>
      %253 = vector.shape_cast %252 : vector<4x8xf32> to vector<4x8x1xf32>
      %254 = vector.broadcast %253 : vector<4x8x1xf32> to vector<4x8x6xf32>
      %255 = arith.subf %251, %254 : vector<4x8x6xf32>
      %256 = math.exp %255 : vector<4x8x6xf32>
      %cst_85 = arith.constant dense<0.000000e+00> : vector<4x8xf32>
      %257 = vector.multi_reduction <add>, %256, %cst_85 [2] : vector<4x8x6xf32> to vector<4x8xf32>
      %258 = vector.shape_cast %257 : vector<4x8xf32> to vector<4x8x1xf32>
      %259 = tpu.reciprocal %258 {approx = true} : vector<4x8x1xf32> -> vector<4x8x1xf32>
      %260 = vector.broadcast %259 : vector<4x8x1xf32> to vector<4x8x6xf32>
      %261 = arith.mulf %256, %260 : vector<4x8x6xf32>
      %262 = arith.truncf %261 : vector<4x8x6xf32> to vector<4x8x6xbf16>
      "tpu.trace_start"() <{level = 10 : i32, message = "bqk,bkd->bqd"}> : () -> ()
      %cst_86 = arith.constant dense<0.000000e+00> : vector<4x8x8xf32>
      %263 = tpu.matmul %262, %250, %cst_86 {dimension_numbers = #tpu.dot_dimension_numbers<[2], [1], [1], [2], [0, 0, 0, 1, 1, 2], [0], [0]>} : vector<4x8x6xbf16>, vector<4x6x8xbf16>, vector<4x8x8xf32> -> vector<4x8x8xf32>
      "tpu.trace_stop"() : () -> ()
      %264 = arith.truncf %263 : vector<4x8x8xf32> to vector<4x8x8xbf16>
      %265 = vector.shape_cast %264 : vector<4x8x8xbf16> to vector<32x8xbf16>
      %266 = vector.extract_strided_slice %19 {offsets = [3, 0, 0], sizes = [1, 8, 32], strides = [1, 1, 1]} : vector<4x8x32xbf16> to vector<1x8x32xbf16>
      %267 = vector.shape_cast %266 : vector<1x8x32xbf16> to vector<8x32xbf16>
      %cst_87 = arith.constant dense<0.000000e+00> : vector<32x32xf32>
      %268 = tpu.matmul %265, %267, %cst_87 {dimension_numbers = #tpu.dot_dimension_numbers<[1], [0], [0], [1], [0, 0, 1, 1], [], []>} : vector<32x8xbf16>, vector<8x32xbf16>, vector<32x32xf32> -> vector<32x32xf32>
      %269 = arith.addf %247, %268 : vector<32x32xf32>
      %270 = vector.broadcast %22 : vector<1x32xf32> to vector<32x32xf32>
      %271 = arith.addf %269, %270 : vector<32x32xf32>
      %272 = vector.shape_cast %271 : vector<32x32xf32> to vector<4x8x32xf32>
      %273 = tpu.transpose %272, [1, 0, 2] : vector<4x8x32xf32> -> vector<8x4x32xf32>
      %274 = arith.addf %160, %273 : vector<8x4x32xf32>
      %cst_88 = arith.constant dense<0.000000e+00> : vector<8x4xf32>
      %275 = vector.multi_reduction <add>, %274, %cst_88 [2] : vector<8x4x32xf32> to vector<8x4xf32>
      %276 = vector.shape_cast %275 : vector<8x4xf32> to vector<8x4x1xf32>
      %cst_89 = arith.constant 3.200000e+01 : f32
      %277 = vector.broadcast %cst_89 : f32 to vector<8x4x1xf32>
      %278 = arith.divf %276, %277 : vector<8x4x1xf32>
      %279 = vector.broadcast %278 : vector<8x4x1xf32> to vector<8x4x32xf32>
      %280 = arith.subf %274, %279 : vector<8x4x32xf32>
      %281 = arith.mulf %280, %280 : vector<8x4x32xf32>
      %cst_90 = arith.constant dense<0.000000e+00> : vector<8x4xf32>
      %282 = vector.multi_reduction <add>, %281, %cst_90 [2] : vector<8x4x32xf32> to vector<8x4xf32>
      %283 = vector.shape_cast %282 : vector<8x4xf32> to vector<8x4x1xf32>
      %cst_91 = arith.constant 3.200000e+01 : f32
      %284 = vector.broadcast %cst_91 : f32 to vector<8x4x1xf32>
      %285 = arith.divf %283, %284 : vector<8x4x1xf32>
      %cst_92 = arith.constant 9.99999974E-6 : f32
      %286 = vector.broadcast %cst_92 : f32 to vector<8x4x1xf32>
      %287 = arith.addf %285, %286 : vector<8x4x1xf32>
      %288 = math.rsqrt %287 : vector<8x4x1xf32>
      %289 = vector.broadcast %288 : vector<8x4x1xf32> to vector<8x4x32xf32>
      %290 = arith.mulf %280, %289 : vector<8x4x32xf32>
      %291 = vector.shape_cast %290 : vector<8x4x32xf32> to vector<32x32xf32>
      %292 = arith.truncf %291 : vector<32x32xf32> to vector<32x32xbf16>
      %cst_93 = arith.constant dense<0.000000e+00> : vector<32x64xf32>
      %293 = tpu.matmul %292, %25, %cst_93 {dimension_numbers = #tpu.dot_dimension_numbers<[1], [0], [0], [1], [0, 0, 1, 1], [], []>} : vector<32x32xbf16>, vector<32x64xbf16>, vector<32x64xf32> -> vector<32x64xf32>
      %294 = vector.broadcast %28 : vector<1x64xf32> to vector<32x64xf32>
      %295 = arith.addf %293, %294 : vector<32x64xf32>
      %cst_94 = arith.constant 5.000000e-01 : f32
      %296 = vector.broadcast %cst_94 : f32 to vector<32x64xf32>
      %297 = arith.mulf %296, %295 : vector<32x64xf32>
      %298 = arith.mulf %295, %295 : vector<32x64xf32>
      %299 = arith.mulf %298, %295 : vector<32x64xf32>
      %cst_95 = arith.constant 4.471500e-02 : f32
      %300 = vector.broadcast %cst_95 : f32 to vector<32x64xf32>
      %301 = arith.mulf %300, %299 : vector<32x64xf32>
      %302 = arith.addf %295, %301 : vector<32x64xf32>
      %cst_96 = arith.constant 0.797884583 : f32
      %303 = vector.broadcast %cst_96 : f32 to vector<32x64xf32>
      %304 = arith.mulf %303, %302 : vector<32x64xf32>
      %305 = math.tanh %304 : vector<32x64xf32>
      %cst_97 = arith.constant 1.000000e+00 : f32
      %306 = vector.broadcast %cst_97 : f32 to vector<32x64xf32>
      %307 = arith.addf %306, %305 : vector<32x64xf32>
      %308 = arith.mulf %297, %307 : vector<32x64xf32>
      %309 = arith.truncf %308 : vector<32x64xf32> to vector<32x64xbf16>
      %cst_98 = arith.constant dense<0.000000e+00> : vector<32x32xf32>
      %310 = tpu.matmul %309, %31, %cst_98 {dimension_numbers = #tpu.dot_dimension_numbers<[1], [0], [0], [1], [0, 0, 1, 1], [], []>} : vector<32x64xbf16>, vector<64x32xbf16>, vector<32x32xf32> -> vector<32x32xf32>
      %311 = vector.broadcast %34 : vector<1x32xf32> to vector<32x32xf32>
      %312 = arith.addf %310, %311 : vector<32x32xf32>
      %313 = vector.shape_cast %312 : vector<32x32xf32> to vector<8x4x32xf32>
      %314 = arith.addf %290, %313 : vector<8x4x32xf32>
      %cst_99 = arith.constant dense<0.000000e+00> : vector<8x4xf32>
      %315 = vector.multi_reduction <add>, %314, %cst_99 [2] : vector<8x4x32xf32> to vector<8x4xf32>
      %316 = vector.shape_cast %315 : vector<8x4xf32> to vector<8x4x1xf32>
      %cst_100 = arith.constant 3.200000e+01 : f32
      %317 = vector.broadcast %cst_100 : f32 to vector<8x4x1xf32>
      %318 = arith.divf %316, %317 : vector<8x4x1xf32>
      %319 = vector.broadcast %318 : vector<8x4x1xf32> to vector<8x4x32xf32>
      %320 = arith.subf %314, %319 : vector<8x4x32xf32>
      %321 = arith.mulf %320, %320 : vector<8x4x32xf32>
      %cst_101 = arith.constant dense<0.000000e+00> : vector<8x4xf32>
      %322 = vector.multi_reduction <add>, %321, %cst_101 [2] : vector<8x4x32xf32> to vector<8x4xf32>
      %323 = vector.shape_cast %322 : vector<8x4xf32> to vector<8x4x1xf32>
      %cst_102 = arith.constant 3.200000e+01 : f32
      %324 = vector.broadcast %cst_102 : f32 to vector<8x4x1xf32>
      %325 = arith.divf %323, %324 : vector<8x4x1xf32>
      %cst_103 = arith.constant 9.99999974E-6 : f32
      %326 = vector.broadcast %cst_103 : f32 to vector<8x4x1xf32>
      %327 = arith.addf %325, %326 : vector<8x4x1xf32>
      %328 = math.rsqrt %327 : vector<8x4x1xf32>
      %329 = vector.broadcast %328 : vector<8x4x1xf32> to vector<8x4x32xf32>
      %330 = arith.mulf %320, %329 : vector<8x4x32xf32>
      %c0_104 = arith.constant 0 : index
      %c0_105 = arith.constant 0 : index
      %c0_106 = arith.constant 0 : index
      %c0_107 = arith.constant 0 : index
      %331 = vector.load %arg12[%c0_104, %c0_105, %c0_106, %c0_107] : memref<1x8x4x32xf32, #tpu.memory_space<vmem>>, vector<1x8x4x32xf32>
      %332 = vector.shape_cast %331 : vector<1x8x4x32xf32> to vector<8x4x32xf32>
      %333 = vector.shape_cast %330 : vector<8x4x32xf32> to vector<1x8x4x32xf32>
      tpu.vector_store %arg12[%c0_104, %c0_105, %c0_106, %c0_107], %333 {strides = array<i32>} : memref<1x8x4x32xf32, #tpu.memory_space<vmem>>, vector<1x8x4x32xf32>,
    }
    %c2_i32_7 = arith.constant 2 : i32
    return
  }
  func.func @transform_0(%arg0: i32) -> (i32, i32, i32, i32) {
    %c0_i32 = arith.constant 0 : i32
    %c0_i32_0 = arith.constant 0 : i32
    %c0_i32_1 = arith.constant 0 : i32
    %c0_i32_2 = arith.constant 0 : i32
    return %arg0, %c0_i32, %c0_i32_0, %c0_i32_1 : i32, i32, i32, i32
  }
  func.func @transform_1(%arg0: i32) -> (i32, i32, i32, i32) {
    %c0_i32 = arith.constant 0 : i32
    %c0_i32_0 = arith.constant 0 : i32
    %c0_i32_1 = arith.constant 0 : i32
    %c0_i32_2 = arith.constant 0 : i32
    %c0_i32_3 = arith.constant 0 : i32
    return %c0_i32, %c0_i32_0, %c0_i32_1, %c0_i32_2 : i32, i32, i32, i32
  }
  func.func @transform_2(%arg0: i32) -> (i32, i32, i32, i32) {
    %c0_i32 = arith.constant 0 : i32
    %c0_i32_0 = arith.constant 0 : i32
    %c0_i32_1 = arith.constant 0 : i32
    %c0_i32_2 = arith.constant 0 : i32
    %c0_i32_3 = arith.constant 0 : i32
    return %c0_i32, %c0_i32_0, %c0_i32_1, %c0_i32_2 : i32, i32, i32, i32
  }
  func.func @transform_3(%arg0: i32) -> (i32, i32, i32) {
    %c0_i32 = arith.constant 0 : i32
    %c0_i32_0 = arith.constant 0 : i32
    %c0_i32_1 = arith.constant 0 : i32
    %c0_i32_2 = arith.constant 0 : i32
    return %c0_i32, %c0_i32_0, %c0_i32_1 : i32, i32, i32
  }
  func.func @transform_4(%arg0: i32) -> (i32, i32, i32, i32) {
    %c0_i32 = arith.constant 0 : i32
    %c0_i32_0 = arith.constant 0 : i32
    %c0_i32_1 = arith.constant 0 : i32
    %c0_i32_2 = arith.constant 0 : i32
    %c0_i32_3 = arith.constant 0 : i32
    return %c0_i32, %c0_i32_0, %c0_i32_1, %c0_i32_2 : i32, i32, i32, i32
  }
  func.func @transform_5(%arg0: i32) -> (i32, i32, i32, i32) {
    %c0_i32 = arith.constant 0 : i32
    %c0_i32_0 = arith.constant 0 : i32
    %c0_i32_1 = arith.constant 0 : i32
    %c0_i32_2 = arith.constant 0 : i32
    %c0_i32_3 = arith.constant 0 : i32
    return %c0_i32, %c0_i32_0, %c0_i32_1, %c0_i32_2 : i32, i32, i32, i32
  }
  func.func @transform_6(%arg0: i32) -> (i32, i32, i32) {
    %c0_i32 = arith.constant 0 : i32
    %c0_i32_0 = arith.constant 0 : i32
    %c0_i32_1 = arith.constant 0 : i32
    %c0_i32_2 = arith.constant 0 : i32
    return %c0_i32, %c0_i32_0, %c0_i32_1 : i32, i32, i32
  }
  func.func @transform_7(%arg0: i32) -> (i32, i32, i32) {
    %c0_i32 = arith.constant 0 : i32
    %c0_i32_0 = arith.constant 0 : i32
    %c0_i32_1 = arith.constant 0 : i32
    %c0_i32_2 = arith.constant 0 : i32
    return %c0_i32, %c0_i32_0, %c0_i32_1 : i32, i32, i32
  }
  func.func @transform_8(%arg0: i32) -> (i32, i32, i32) {
    %c0_i32 = arith.constant 0 : i32
    %c0_i32_0 = arith.constant 0 : i32
    %c0_i32_1 = arith.constant 0 : i32
    %c0_i32_2 = arith.constant 0 : i32
    return %c0_i32, %c0_i32_0, %c0_i32_1 : i32, i32, i32
  }
  func.func @transform_9(%arg0: i32) -> (i32, i32, i32) {
    %c0_i32 = arith.constant 0 : i32
    %c0_i32_0 = arith.constant 0 : i32
    %c0_i32_1 = arith.constant 0 : i32
    %c0_i32_2 = arith.constant 0 : i32
    return %c0_i32, %c0_i32_0, %c0_i32_1 : i32, i32, i32
  }
  func.func @transform_10(%arg0: i32) -> (i32, i32, i32) {
    %c0_i32 = arith.constant 0 : i32
    %c0_i32_0 = arith.constant 0 : i32
    %c0_i32_1 = arith.constant 0 : i32
    %c0_i32_2 = arith.constant 0 : i32
    return %c0_i32, %c0_i32_0, %c0_i32_1 : i32, i32, i32
  }
  func.func @transform_11(%arg0: i32) -> (i32, i32, i32, i32) {
    %c0_i32 = arith.constant 0 : i32
    %c0_i32_0 = arith.constant 0 : i32
    %c0_i32_1 = arith.constant 0 : i32
    %c0_i32_2 = arith.constant 0 : i32
    return %arg0, %c0_i32, %c0_i32_0, %c0_i32_1 : i32, i32, i32, i32
  }
}

</mosaic_0001>

<llo_original>
// kernel: per_feature_transformer_forward.3
$region0: #{per_feature_transformer_forward.3}
  #allocation0 [shape = 'u32[]', space=smem, size = 0x4, offset = 0x4, fixed_abs, tag = 'smem constant byte address 0x4 - core index']
  #allocation1 [shape = 'u32[144,128]{1,0:T(1,128)}', space=vmem, size = 0x12000, scoped, tag = 'internal scratch']
  %s0 = inlined_call_operand.vmem [shape: bf16[4,32], index: 0, kind: input, shape index: {}]
  %s1 = inlined_call_operand.vmem [shape: bf16[32,64], index: 1, kind: input, shape index: {}]
  %s2 = inlined_call_operand.vmem [shape: f32[1,64], index: 2, kind: input, shape index: {}]
  %s3 = inlined_call_operand.vmem [shape: bf16[64,128], index: 3, kind: input, shape index: {}]
  %s4 = inlined_call_operand.vmem [shape: f32[1,128], index: 4, kind: input, shape index: {}]
  %s5 = inlined_call_operand.hbm [shape: f32[4,128], index: 5, kind: output, shape index: {}]
  %s6 = sld [smem:[#allocation0]]
  $region30: #{per_feature_transformer_forward.3} parent=0
    _
  %s8 = ssub.s32 1, %s6
  %s9 = scalar_select 0, %s8, %s6
  $region1: #{per_feature_transformer_forward.3} parent=0
    #allocation2 [shape = 'u8[2048]{0}', space=vmem, size = 0x800, scoped, tag = 'output window, operand 0, single buffered']
    #allocation3 [shape = 's32[1]{0}', space=sflag, size = 0x4, scoped, tag = 'scoped memory for per_feature_transformer_forward.3']
    %10 = vsyncpa [#allocation3], 0
    // Predicated region
    $region2: #{per_feature_transformer_forward.3} parent=1 // pred_check
      _
    $region3: #{per_feature_transformer_forward.3} parent=1 // pred_check_branch
      %12 = sbr.rel (0) target = $region5
    $region4: #{per_feature_transformer_forward.3} parent=1 // pred_region
      _
    $region5: #{per_feature_transformer_forward.3} parent=1 // pred_fallthru
      _
    // Predicated region
    $region6: #{per_feature_transformer_forward.3} parent=1 // pred_check
      _
    $region7: #{per_feature_transformer_forward.3} parent=1 // pred_check_branch
      %14 = sbr.rel (0) target = $region9
    $region8: #{per_feature_transformer_forward.3} parent=1 // pred_region
      _
    $region9: #{per_feature_transformer_forward.3} parent=1 // pred_fallthru
      _
    // Predicated region
    $region10: #{per_feature_transformer_forward.3} parent=1 // pred_check
      _
    $region11: #{per_feature_transformer_forward.3} parent=1 // pred_check_branch
      %16 = sbr.rel (0) target = $region13
    $region12: #{per_feature_transformer_forward.3} parent=1 // pred_region
      _
    $region13: #{per_feature_transformer_forward.3} parent=1 // pred_fallthru
      _
    // Predicated region
    $region14: #{per_feature_transformer_forward.3} parent=1 // pred_check
      _
    $region15: #{per_feature_transformer_forward.3} parent=1 // pred_check_branch
      %18 = sbr.rel (0) target = $region17
    $region16: #{per_feature_transformer_forward.3} parent=1 // pred_region
      _
    $region17: #{per_feature_transformer_forward.3} parent=1 // pred_fallthru
      _
    // Predicated region
    $region18: #{per_feature_transformer_forward.3} parent=1 // pred_check
      _
    $region19: #{per_feature_transformer_forward.3} parent=1 // pred_check_branch
      %20 = sbr.rel (0) target = $region21
    $region20: #{per_feature_transformer_forward.3} parent=1 // pred_region
      _
    $region21: #{per_feature_transformer_forward.3} parent=1 // pred_fallthru
      _
    %v22 = vld [vmem:[%s0] sm:$0x3]
    %v23 = vld [vmem:[%s1] sm:$0xf]
    %v24 = vld [vmem:[%s1 + $0x4] sm:$0xf]
    %v25 = vld [vmem:[%s1 + $0x8] sm:$0xf]
    %v26 = vld [vmem:[%s1 + $0xc] sm:$0xf]
    %v27 = vld [vmem:[%s2] sm:$0x1]
    %v29 = vlaneseq
    %v30 = vshrl.u32 %v29, 7
    %v31 = vsub.s32 0, %v30
    %v32 = vrot.slane %v27, %v31
    %v38 = vunpack.c.l.b16 %v23
    %v39 = vunpack.c.l.b16 %v24
    %v40 = vunpack.c.l.b16 %v25
    %v41 = vunpack.c.l.b16 %v26
    %v42 = vpack.c.b16 %v39, %v38
    %v43 = vpack.c.b16 %v41, %v40
    %vm46 = vcmask 261120
    %v48 = vsel %vm46, %v22, 0
    %50 = vmatprep.subr.bf16.mxu0 0
    %51 = vmatpush1.bf16.msra.mxu0 %v42
    %52 = vmatprep.subr.bf16.mxu0 0
    %53 = vmatpush1.bf16.msra.mxu0 %v43
    %54 = vmatprep.subr.bf16.mxu0 0
    %55 = vmatpush1.bf16.msra.mxu0 0
    %56 = vmatprep.subr.bf16.mxu0 0
    %57 = vmatpush1.bf16.msra.mxu0 0
    %58 = vmatprep.subr.bf16.mxu0 0
    %59 = vmatpush1.bf16.msra.mxu0 0
    %60 = vmatprep.subr.bf16.mxu0 0
    %61 = vmatpush1.bf16.msra.mxu0 0
    %62 = vmatprep.subr.bf16.mxu0 0
    %63 = vmatpush1.bf16.msra.mxu0 0
    %64 = vmatprep.subr.bf16.mxu0 0
    %65 = vmatpush1.bf16.msra.mxu0 0
    %66 = vmatprep.subr.bf16.mxu0 0
    %67 = vmatpush1.bf16.msra.mxu0 0
    %68 = vmatprep.subr.bf16.mxu0 0
    %69 = vmatpush1.bf16.msra.mxu0 0
    %70 = vmatprep.subr.bf16.mxu0 0
    %71 = vmatpush1.bf16.msra.mxu0 0
    %72 = vmatprep.subr.bf16.mxu0 0
    %73 = vmatpush1.bf16.msra.mxu0 0
    %74 = vmatprep.subr.bf16.mxu0 0
    %75 = vmatpush1.bf16.msra.mxu0 0
    %76 = vmatprep.subr.bf16.mxu0 0
    %77 = vmatpush1.bf16.msra.mxu0 0
    %78 = vmatprep.subr.bf16.mxu0 0
    %79 = vmatpush1.bf16.msra.mxu0 0
    %80 = vmatprep.subr.bf16.mxu0 0
    %81 = vmatpush1.bf16.msra.mxu0 0
    %82 = vmatprep.mubr.bf16.mxu0 0
    %83 = vmatmul.mubr.bf16.gmra.mrb[0].mxu0 %v48
    %v84 = vpop.f32.mrb[0].mxu0
    %v85 = vadd.f32 %v32, %v84
    %v86 = vpop.f32.mrb[0].mxu0
    %v87 = vpop.f32.mrb[0].mxu0
    %v88 = vpop.f32.mrb[0].mxu0
    %89 = vdwg.mxu0
    %v90 = vmul.f32 %v85, 0.5
    %v91 = vmul.f32 %v85, %v85
    %v92 = vmul.f32 %v91, %v85
    %v93 = vmul.f32 %v92, 0.044715
    %v94 = vadd.f32 %v85, %v93
    %v95 = vmul.f32 %v94, 0.7978846
    %v96 = vtanh.pop %v95
    %v97 = vadd.f32 %v96, 1.0
    %v98 = vmul.f32 %v90, %v97
    %v99 = vpack.c.bf16 %v98, %v98
    %v100 = vld [vmem:[%s3] sm:$0xf]
    %v101 = vld [vmem:[%s3 + $0x4] sm:$0xf]
    %v102 = vld [vmem:[%s3 + $0x8] sm:$0xf]
    %v103 = vld [vmem:[%s3 + $0xc] sm:$0xf]
    %v104 = vld [vmem:[%s3 + $0x10] sm:$0xf]
    %v105 = vld [vmem:[%s3 + $0x14] sm:$0xf]
    %v106 = vld [vmem:[%s3 + $0x18] sm:$0xf]
    %v107 = vld [vmem:[%s3 + $0x1c] sm:$0xf]
    %v108 = vld [vmem:[%s4] sm:$0x1]
    %v110 = vlaneseq
    %v111 = vshrl.u32 %v110, 7
    %v112 = vsub.s32 0, %v111
    %v113 = vrot.slane %v108, %v112
    %v123 = vunpack.c.l.b16 %v100
    %v124 = vunpack.c.l.b16 %v101
    %v125 = vunpack.c.l.b16 %v102
    %v126 = vunpack.c.l.b16 %v103
    %v127 = vunpack.c.l.b16 %v104
    %v128 = vunpack.c.l.b16 %v105
    %v129 = vunpack.c.l.b16 %v106
    %v130 = vunpack.c.l.b16 %v107
    %v131 = vpack.c.b16 %v124, %v123
    %v132 = vpack.c.b16 %v126, %v125
    %v133 = vpack.c.b16 %v128, %v127
    %v134 = vpack.c.b16 %v130, %v129
    %vm139 = vcmask 523264
    %v141 = vsel %vm139, %v99, 0
    %143 = vmatprep.subr.bf16.mxu0 0
    %144 = vmatpush1.bf16.msra.mxu0 %v131
    %145 = vmatprep.subr.bf16.mxu0 0
    %146 = vmatpush1.bf16.msra.mxu0 %v132
    %147 = vmatprep.subr.bf16.mxu0 0
    %148 = vmatpush1.bf16.msra.mxu0 %v133
    %149 = vmatprep.subr.bf16.mxu0 0
    %150 = vmatpush1.bf16.msra.mxu0 %v134
    %151 = vmatprep.subr.bf16.mxu0 0
    %152 = vmatpush1.bf16.msra.mxu0 0
    %153 = vmatprep.subr.bf16.mxu0 0
    %154 = vmatpush1.bf16.msra.mxu0 0
    %155 = vmatprep.subr.bf16.mxu0 0
    %156 = vmatpush1.bf16.msra.mxu0 0
    %157 = vmatprep.subr.bf16.mxu0 0
    %158 = vmatpush1.bf16.msra.mxu0 0
    %159 = vmatprep.subr.bf16.mxu0 0
    %160 = vmatpush1.bf16.msra.mxu0 0
    %161 = vmatprep.subr.bf16.mxu0 0
    %162 = vmatpush1.bf16.msra.mxu0 0
    %163 = vmatprep.subr.bf16.mxu0 0
    %164 = vmatpush1.bf16.msra.mxu0 0
    %165 = vmatprep.subr.bf16.mxu0 0
    %166 = vmatpush1.bf16.msra.mxu0 0
    %167 = vmatprep.subr.bf16.mxu0 0
    %168 = vmatpush1.bf16.msra.mxu0 0
    %169 = vmatprep.subr.bf16.mxu0 0
    %170 = vmatpush1.bf16.msra.mxu0 0
    %171 = vmatprep.subr.bf16.mxu0 0
    %172 = vmatpush1.bf16.msra.mxu0 0
    %173 = vmatprep.subr.bf16.mxu0 0
    %174 = vmatpush1.bf16.msra.mxu0 0
    %175 = vmatprep.mubr.bf16.mxu0 0
    %176 = vmatmul.mubr.bf16.gmra.mrb[0].mxu0 %v141
    %v177 = vpop.f32.mrb[0].mxu0
    %v178 = vadd.f32 %v113, %v177
    %v179 = vpop.f32.mrb[0].mxu0
    %v180 = vpop.f32.mrb[0].mxu0
    %v181 = vpop.f32.mrb[0].mxu0
    %182 = vdwg.mxu0
    %183 = vst [vmem:[#allocation2] sm:$0xf] %v178
    // Predicated region
    $region22: #{per_feature_transformer_forward.3} parent=1 // pred_check
      _
    $region23: #{per_feature_transformer_forward.3} parent=1 // pred_check_branch
      %185 = sbr.rel (0) target = $region25
    $region24: #{per_feature_transformer_forward.3} parent=1 // pred_region
      %s187 = ssub.s32 64, 64
      %188 = vsyncadd [#allocation3], %s187
      %s190 = sshll.u32 [#allocation2], 4
      %s191 = int_to_ptr.vmem [resolvable:$true] %s190
      %193 = dma.vmem_to_hbm [thread:$0]  %s191, 64, %s5, [#allocation3]
    $region25: #{per_feature_transformer_forward.3} parent=1 // pred_fallthru
      _
    // Predicated region
    $region26: #{per_feature_transformer_forward.3} parent=1 // pred_check
      _
    $region27: #{per_feature_transformer_forward.3} parent=1 // pred_check_branch
      %195 = sbr.rel (0) target = $region29
    $region28: #{per_feature_transformer_forward.3} parent=1 // pred_region
      %196 = dma.done [#allocation3], 64
    $region29: #{per_feature_transformer_forward.3} parent=1 // pred_fallthru
      _
    %197 = vsyncpa [#allocation3], 1

// kernel: per_feature_transformer_forward.2
$region0: #{per_feature_transformer_forward.2}
  #allocation0 [shape = 'u32[]', space=smem, size = 0x4, offset = 0x4, fixed_abs, tag = 'smem constant byte address 0x4 - core index']
  #allocation1 [shape = 'u32[144,128]{1,0:T(1,128)}', space=vmem, size = 0x12000, scoped, tag = 'internal scratch']
  %s0 = inlined_call_operand.vmem [shape: f32[2,8,4,32], index: 0, kind: input, shape index: {}, may-alias: {0,11}]
  %s1 = inlined_call_operand.vmem [shape: bf16[2,3,32,32], index: 1, kind: input, shape index: {}]
  %s2 = inlined_call_operand.vmem [shape: bf16[2,4,8,32], index: 2, kind: input, shape index: {}]
  %s3 = inlined_call_operand.vmem [shape: f32[2,1,32], index: 3, kind: input, shape index: {}]
  %s4 = inlined_call_operand.vmem [shape: bf16[2,3,32,32], index: 4, kind: input, shape index: {}]
  %s5 = inlined_call_operand.vmem [shape: bf16[2,4,8,32], index: 5, kind: input, shape index: {}]
  %s6 = inlined_call_operand.vmem [shape: f32[2,1,32], index: 6, kind: input, shape index: {}]
  %s7 = inlined_call_operand.vmem [shape: bf16[2,32,64], index: 7, kind: input, shape index: {}]
  %s8 = inlined_call_operand.vmem [shape: f32[2,1,64], index: 8, kind: input, shape index: {}]
  %s9 = inlined_call_operand.vmem [shape: bf16[2,64,32], index: 9, kind: input, shape index: {}]
  %s10 = inlined_call_operand.vmem [shape: f32[2,1,32], index: 10, kind: input, shape index: {}]
  %s11 = inlined_call_operand.vmem [shape: f32[2,8,4,32], index: 11, kind: output, shape index: {}, may-alias: {0,11}]
  %s12 = sld [smem:[#allocation0]]
  $region84: #{per_feature_transformer_forward.2} parent=0
    _
  %s14 = ssub.s32 1, %s12
  %s15 = scalar_select 0, %s14, %s12
  loop: start=0, step=1, limit=4
  $region2: #{per_feature_transformer_forward.2} parent=0 // loop_pre_header
    _
  $region3: #{per_feature_transformer_forward.2} parent=0 // loop_header
    %s17 = sphi 0, %s21
    %p18 = scmp.ge.s32.totalorder %s17, 4
    %s27 = sphi 0, %s29
    %s30 = sphi 0, %s27
    %s31 = sphi 0, %s30
    %s47 = sphi 0, %s31
    %s51 = sphi 0, %s51
    %s53 = sphi 0, %s51
    %s54 = sphi 0, %s53
    %s68 = sphi 0, %s54
    %s72 = sphi 0, %s72
    %s74 = sphi 0, %s72
    %s75 = sphi 0, %s74
    %s89 = sphi 0, %s75
    %s93 = sphi 0, %s93
    %s95 = sphi 0, %s93
    %s96 = sphi 0, %s95
    %s110 = sphi 0, %s96
    %s114 = sphi 0, %s114
    %s116 = sphi 0, %s114
    %s117 = sphi 0, %s116
    %s131 = sphi 0, %s117
    %s135 = sphi 0, %s135
    %s137 = sphi 0, %s135
    %s138 = sphi 0, %s137
    %s152 = sphi 0, %s138
    %s156 = sphi 0, %s156
    %s158 = sphi 0, %s156
    %s159 = sphi 0, %s158
    %s173 = sphi 0, %s159
    %s177 = sphi 0, %s177
    %s179 = sphi 0, %s177
    %s180 = sphi 0, %s179
    %s194 = sphi 0, %s180
    %s198 = sphi 0, %s198
    %s200 = sphi 0, %s198
    %s201 = sphi 0, %s200
    %s215 = sphi 0, %s201
    %s219 = sphi 0, %s219
    %s221 = sphi 0, %s219
    %s222 = sphi 0, %s221
    %s236 = sphi 0, %s222
    %s240 = sphi 0, %s240
    %s242 = sphi 0, %s240
    %s243 = sphi 0, %s242
    %s257 = sphi 0, %s243
    %s263 = sphi 0, %s265
    %s266 = sphi 0, %s263
    %s267 = sphi 0, %s266
    %s283 = sphi 0, %s267
  $region4: #{per_feature_transformer_forward.2} parent=0 // loop_header_branch
    %20 = sbr.rel (%p18) target = $region8
  $region5: #{per_feature_transformer_forward.2} parent=0 // loop_body
    %s22 = ssub.s32 %s17, 1
    %s23 = ssub.s32 %s17, 2
    %s24 = sadd.s32 %s17, 1
    %s25 = ssub.s32 %s17, %s24
    %p26 = scmp.eq.s32.totalorder %s25, 0
    %s28 = sadd.s32 %s27, 1
    %s29 = scalar_select %p26, %s27, %s28
    %p32 = pneg %p26
    %p33 = scmp.eq.s32.totalorder %s17, 1
    %p34 = por %p32, %p33
    %p35 = scmp.ne.s32.totalorder %s27, %s30
    %p36 = scmp.eq.s32.totalorder %s17, 0
    %p37 = por %p35, %p36
    %p38 = scmp.ne.s32.totalorder %s27, %s30
    %p39 = scmp.eq.s32.totalorder %s22, 1
    %p40 = por %p38, %p39
    %p41 = scmp.ne.s32.totalorder %s30, %s31
    %p42 = scmp.eq.s32.totalorder %s22, 0
    %p43 = por %p41, %p42
    %p44 = scmp.ne.s32.totalorder %s30, %s31
    %p45 = scmp.eq.s32.totalorder %s23, 1
    %p46 = por %p44, %p45
    %p48 = scmp.ne.s32.totalorder %s31, %s47
    %p49 = scmp.eq.s32.totalorder %s23, 0
    %p50 = por %p48, %p49
    %s52 = sadd.s32 %s51, 1
    %p55 = scmp.eq.s32.totalorder %s17, 1
    %p56 = scmp.ne.s32.totalorder %s51, %s53
    %p57 = scmp.eq.s32.totalorder %s17, 0
    %p58 = por %p56, %p57
    %p59 = scmp.ne.s32.totalorder %s51, %s53
    %p60 = scmp.eq.s32.totalorder %s22, 1
    %p61 = por %p59, %p60
    %p62 = scmp.ne.s32.totalorder %s53, %s54
    %p63 = scmp.eq.s32.totalorder %s22, 0
    %p64 = por %p62, %p63
    %p65 = scmp.ne.s32.totalorder %s53, %s54
    %p66 = scmp.eq.s32.totalorder %s23, 1
    %p67 = por %p65, %p66
    %p69 = scmp.ne.s32.totalorder %s54, %s68
    %p70 = scmp.eq.s32.totalorder %s23, 0
    %p71 = por %p69, %p70
    %s73 = sadd.s32 %s72, 1
    %p76 = scmp.eq.s32.totalorder %s17, 1
    %p77 = scmp.ne.s32.totalorder %s72, %s74
    %p78 = scmp.eq.s32.totalorder %s17, 0
    %p79 = por %p77, %p78
    %p80 = scmp.ne.s32.totalorder %s72, %s74
    %p81 = scmp.eq.s32.totalorder %s22, 1
    %p82 = por %p80, %p81
    %p83 = scmp.ne.s32.totalorder %s74, %s75
    %p84 = scmp.eq.s32.totalorder %s22, 0
    %p85 = por %p83, %p84
    %p86 = scmp.ne.s32.totalorder %s74, %s75
    %p87 = scmp.eq.s32.totalorder %s23, 1
    %p88 = por %p86, %p87
    %p90 = scmp.ne.s32.totalorder %s75, %s89
    %p91 = scmp.eq.s32.totalorder %s23, 0
    %p92 = por %p90, %p91
    %s94 = sadd.s32 %s93, 1
    %p97 = scmp.eq.s32.totalorder %s17, 1
    %p98 = scmp.ne.s32.totalorder %s93, %s95
    %p99 = scmp.eq.s32.totalorder %s17, 0
    %p100 = por %p98, %p99
    %p101 = scmp.ne.s32.totalorder %s93, %s95
    %p102 = scmp.eq.s32.totalorder %s22, 1
    %p103 = por %p101, %p102
    %p104 = scmp.ne.s32.totalorder %s95, %s96
    %p105 = scmp.eq.s32.totalorder %s22, 0
    %p106 = por %p104, %p105
    %p107 = scmp.ne.s32.totalorder %s95, %s96
    %p108 = scmp.eq.s32.totalorder %s23, 1
    %p109 = por %p107, %p108
    %p111 = scmp.ne.s32.totalorder %s96, %s110
    %p112 = scmp.eq.s32.totalorder %s23, 0
    %p113 = por %p111, %p112
    %s115 = sadd.s32 %s114, 1
    %p118 = scmp.eq.s32.totalorder %s17, 1
    %p119 = scmp.ne.s32.totalorder %s114, %s116
    %p120 = scmp.eq.s32.totalorder %s17, 0
    %p121 = por %p119, %p120
    %p122 = scmp.ne.s32.totalorder %s114, %s116
    %p123 = scmp.eq.s32.totalorder %s22, 1
    %p124 = por %p122, %p123
    %p125 = scmp.ne.s32.totalorder %s116, %s117
    %p126 = scmp.eq.s32.totalorder %s22, 0
    %p127 = por %p125, %p126
    %p128 = scmp.ne.s32.totalorder %s116, %s117
    %p129 = scmp.eq.s32.totalorder %s23, 1
    %p130 = por %p128, %p129
    %p132 = scmp.ne.s32.totalorder %s117, %s131
    %p133 = scmp.eq.s32.totalorder %s23, 0
    %p134 = por %p132, %p133
    %s136 = sadd.s32 %s135, 1
    %p139 = scmp.eq.s32.totalorder %s17, 1
    %p140 = scmp.ne.s32.totalorder %s135, %s137
    %p141 = scmp.eq.s32.totalorder %s17, 0
    %p142 = por %p140, %p141
    %p143 = scmp.ne.s32.totalorder %s135, %s137
    %p144 = scmp.eq.s32.totalorder %s22, 1
    %p145 = por %p143, %p144
    %p146 = scmp.ne.s32.totalorder %s137, %s138
    %p147 = scmp.eq.s32.totalorder %s22, 0
    %p148 = por %p146, %p147
    %p149 = scmp.ne.s32.totalorder %s137, %s138
    %p150 = scmp.eq.s32.totalorder %s23, 1
    %p151 = por %p149, %p150
    %p153 = scmp.ne.s32.totalorder %s138, %s152
    %p154 = scmp.eq.s32.totalorder %s23, 0
    %p155 = por %p153, %p154
    %s157 = sadd.s32 %s156, 1
    %p160 = scmp.eq.s32.totalorder %s17, 1
    %p161 = scmp.ne.s32.totalorder %s156, %s158
    %p162 = scmp.eq.s32.totalorder %s17, 0
    %p163 = por %p161, %p162
    %p164 = scmp.ne.s32.totalorder %s156, %s158
    %p165 = scmp.eq.s32.totalorder %s22, 1
    %p166 = por %p164, %p165
    %p167 = scmp.ne.s32.totalorder %s158, %s159
    %p168 = scmp.eq.s32.totalorder %s22, 0
    %p169 = por %p167, %p168
    %p170 = scmp.ne.s32.totalorder %s158, %s159
    %p171 = scmp.eq.s32.totalorder %s23, 1
    %p172 = por %p170, %p171
    %p174 = scmp.ne.s32.totalorder %s159, %s173
    %p175 = scmp.eq.s32.totalorder %s23, 0
    %p176 = por %p174, %p175
    %s178 = sadd.s32 %s177, 1
    %p181 = scmp.eq.s32.totalorder %s17, 1
    %p182 = scmp.ne.s32.totalorder %s177, %s179
    %p183 = scmp.eq.s32.totalorder %s17, 0
    %p184 = por %p182, %p183
    %p185 = scmp.ne.s32.totalorder %s177, %s179
    %p186 = scmp.eq.s32.totalorder %s22, 1
    %p187 = por %p185, %p186
    %p188 = scmp.ne.s32.totalorder %s179, %s180
    %p189 = scmp.eq.s32.totalorder %s22, 0
    %p190 = por %p188, %p189
    %p191 = scmp.ne.s32.totalorder %s179, %s180
    %p192 = scmp.eq.s32.totalorder %s23, 1
    %p193 = por %p191, %p192
    %p195 = scmp.ne.s32.totalorder %s180, %s194
    %p196 = scmp.eq.s32.totalorder %s23, 0
    %p197 = por %p195, %p196
    %s199 = sadd.s32 %s198, 1
    %p202 = scmp.eq.s32.totalorder %s17, 1
    %p203 = scmp.ne.s32.totalorder %s198, %s200
    %p204 = scmp.eq.s32.totalorder %s17, 0
    %p205 = por %p203, %p204
    %p206 = scmp.ne.s32.totalorder %s198, %s200
    %p207 = scmp.eq.s32.totalorder %s22, 1
    %p208 = por %p206, %p207
    %p209 = scmp.ne.s32.totalorder %s200, %s201
    %p210 = scmp.eq.s32.totalorder %s22, 0
    %p211 = por %p209, %p210
    %p212 = scmp.ne.s32.totalorder %s200, %s201
    %p213 = scmp.eq.s32.totalorder %s23, 1
    %p214 = por %p212, %p213
    %p216 = scmp.ne.s32.totalorder %s201, %s215
    %p217 = scmp.eq.s32.totalorder %s23, 0
    %p218 = por %p216, %p217
    %s220 = sadd.s32 %s219, 1
    %p223 = scmp.eq.s32.totalorder %s17, 1
    %p224 = scmp.ne.s32.totalorder %s219, %s221
    %p225 = scmp.eq.s32.totalorder %s17, 0
    %p226 = por %p224, %p225
    %p227 = scmp.ne.s32.totalorder %s219, %s221
    %p228 = scmp.eq.s32.totalorder %s22, 1
    %p229 = por %p227, %p228
    %p230 = scmp.ne.s32.totalorder %s221, %s222
    %p231 = scmp.eq.s32.totalorder %s22, 0
    %p232 = por %p230, %p231
    %p233 = scmp.ne.s32.totalorder %s221, %s222
    %p234 = scmp.eq.s32.totalorder %s23, 1
    %p235 = por %p233, %p234
    %p237 = scmp.ne.s32.totalorder %s222, %s236
    %p238 = scmp.eq.s32.totalorder %s23, 0
    %p239 = por %p237, %p238
    %s241 = sadd.s32 %s240, 1
    %p244 = scmp.eq.s32.totalorder %s17, 1
    %p245 = scmp.ne.s32.totalorder %s240, %s242
    %p246 = scmp.eq.s32.totalorder %s17, 0
    %p247 = por %p245, %p246
    %p248 = scmp.ne.s32.totalorder %s240, %s242
    %p249 = scmp.eq.s32.totalorder %s22, 1
    %p250 = por %p248, %p249
    %p251 = scmp.ne.s32.totalorder %s242, %s243
    %p252 = scmp.eq.s32.totalorder %s22, 0
    %p253 = por %p251, %p252
    %p254 = scmp.ne.s32.totalorder %s242, %s243
    %p255 = scmp.eq.s32.totalorder %s23, 1
    %p256 = por %p254, %p255
    %p258 = scmp.ne.s32.totalorder %s243, %s257
    %p259 = scmp.eq.s32.totalorder %s23, 0
    %p260 = por %p258, %p259
    %s261 = ssub.s32 %s17, %s24
    %p262 = scmp.eq.s32.totalorder %s261, 0
    %s264 = sadd.s32 %s263, 1
    %s265 = scalar_select %p262, %s263, %s264
    %p268 = pneg %p262
    %p269 = scmp.eq.s32.totalorder %s17, 1
    %p270 = por %p268, %p269
    %p271 = scmp.ne.s32.totalorder %s263, %s266
    %p272 = scmp.eq.s32.totalorder %s17, 0
    %p273 = por %p271, %p272
    %p274 = scmp.ne.s32.totalorder %s263, %s266
    %p275 = scmp.eq.s32.totalorder %s22, 1
    %p276 = por %p274, %p275
    %p277 = scmp.ne.s32.totalorder %s266, %s267
    %p278 = scmp.eq.s32.totalorder %s22, 0
    %p279 = por %p277, %p278
    %p280 = scmp.ne.s32.totalorder %s266, %s267
    %p281 = scmp.eq.s32.totalorder %s23, 1
    %p282 = por %p280, %p281
    %p284 = scmp.ne.s32.totalorder %s267, %s283
    %p285 = scmp.eq.s32.totalorder %s23, 0
    %p286 = por %p284, %p285
    %p287 = scmp.le.s32.totalorder 1, %s17
    %p288 = scmp.lt.s32.totalorder %s17, 3
    %p289 = pnand %p287, %p288
    %p290 = pneg %p289
    // Predicated region
    $region9: #{per_feature_transformer_forward.2} parent=5 // pred_check
      _
    $region10: #{per_feature_transformer_forward.2} parent=5 // pred_check_branch
      %292 = sbr.rel (%p289) target = $region12
    $region11: #{per_feature_transformer_forward.2} parent=5 // pred_region
      %s293 = ssub.s32 %s17, 1
      // Predicated region
      $region13: #{per_feature_transformer_forward.2} parent=11 // pred_check
        %p294 = pneg %p64
      $region14: #{per_feature_transformer_forward.2} parent=11 // pred_check_branch
        %296 = sbr.rel (%p294) target = $region16
      $region15: #{per_feature_transformer_forward.2} parent=11 // pred_region
        _
      $region16: #{per_feature_transformer_forward.2} parent=11 // pred_fallthru
        _
      // Predicated region
      $region17: #{per_feature_transformer_forward.2} parent=11 // pred_check
        %p297 = pneg %p85
      $region18: #{per_feature_transformer_forward.2} parent=11 // pred_check_branch
        %299 = sbr.rel (%p297) target = $region20
      $region19: #{per_feature_transformer_forward.2} parent=11 // pred_region
        _
      $region20: #{per_feature_transformer_forward.2} parent=11 // pred_fallthru
        _
      // Predicated region
      $region21: #{per_feature_transformer_forward.2} parent=11 // pred_check
        %p300 = pneg %p106
      $region22: #{per_feature_transformer_forward.2} parent=11 // pred_check_branch
        %302 = sbr.rel (%p300) target = $region24
      $region23: #{per_feature_transformer_forward.2} parent=11 // pred_region
        _
      $region24: #{per_feature_transformer_forward.2} parent=11 // pred_fallthru
        _
      // Predicated region
      $region25: #{per_feature_transformer_forward.2} parent=11 // pred_check
        %p303 = pneg %p127
      $region26: #{per_feature_transformer_forward.2} parent=11 // pred_check_branch
        %305 = sbr.rel (%p303) target = $region28
      $region27: #{per_feature_transformer_forward.2} parent=11 // pred_region
        _
      $region28: #{per_feature_transformer_forward.2} parent=11 // pred_fallthru
        _
      // Predicated region
      $region29: #{per_feature_transformer_forward.2} parent=11 // pred_check
        %p306 = pneg %p148
      $region30: #{per_feature_transformer_forward.2} parent=11 // pred_check_branch
        %308 = sbr.rel (%p306) target = $region32
      $region31: #{per_feature_transformer_forward.2} parent=11 // pred_region
        _
      $region32: #{per_feature_transformer_forward.2} parent=11 // pred_fallthru
        _
      // Predicated region
      $region33: #{per_feature_transformer_forward.2} parent=11 // pred_check
        %p309 = pneg %p169
      $region34: #{per_feature_transformer_forward.2} parent=11 // pred_check_branch
        %311 = sbr.rel (%p309) target = $region36
      $region35: #{per_feature_transformer_forward.2} parent=11 // pred_region
        _
      $region36: #{per_feature_transformer_forward.2} parent=11 // pred_fallthru
        _
      // Predicated region
      $region37: #{per_feature_transformer_forward.2} parent=11 // pred_check
        %p312 = pneg %p190
      $region38: #{per_feature_transformer_forward.2} parent=11 // pred_check_branch
        %314 = sbr.rel (%p312) target = $region40
      $region39: #{per_feature_transformer_forward.2} parent=11 // pred_region
        _
      $region40: #{per_feature_transformer_forward.2} parent=11 // pred_fallthru
        _
      // Predicated region
      $region41: #{per_feature_transformer_forward.2} parent=11 // pred_check
        %p315 = pneg %p211
      $region42: #{per_feature_transformer_forward.2} parent=11 // pred_check_branch
        %317 = sbr.rel (%p315) target = $region44
      $region43: #{per_feature_transformer_forward.2} parent=11 // pred_region
        _
      $region44: #{per_feature_transformer_forward.2} parent=11 // pred_fallthru
        _
      // Predicated region
      $region45: #{per_feature_transformer_forward.2} parent=11 // pred_check
        %p318 = pneg %p232
      $region46: #{per_feature_transformer_forward.2} parent=11 // pred_check_branch
        %320 = sbr.rel (%p318) target = $region48
      $region47: #{per_feature_transformer_forward.2} parent=11 // pred_region
        _
      $region48: #{per_feature_transformer_forward.2} parent=11 // pred_fallthru
        _
      // Predicated region
      $region49: #{per_feature_transformer_forward.2} parent=11 // pred_check
        %p321 = pneg %p253
      $region50: #{per_feature_transformer_forward.2} parent=11 // pred_check_branch
        %323 = sbr.rel (%p321) target = $region52
      $region51: #{per_feature_transformer_forward.2} parent=11 // pred_region
        _
      $region52: #{per_feature_transformer_forward.2} parent=11 // pred_fallthru
        _
    $region12: #{per_feature_transformer_forward.2} parent=5 // pred_fallthru
      _
    %p324 = scmp.lt.s32.totalorder %s17, 2
    // Predicated region
    $region53: #{per_feature_transformer_forward.2} parent=5 // pred_check
      %p325 = pneg %p324
    $region54: #{per_feature_transformer_forward.2} parent=5 // pred_check_branch
      %327 = sbr.rel (%p325) target = $region56
    $region55: #{per_feature_transformer_forward.2} parent=5 // pred_region
      // Predicated region
      $region57: #{per_feature_transformer_forward.2} parent=55 // pred_check
        %p328 = pneg %p37
      $region58: #{per_feature_transformer_forward.2} parent=55 // pred_check_branch
        %330 = sbr.rel (%p328) target = $region60
      $region59: #{per_feature_transformer_forward.2} parent=55 // pred_region
        %p331 = scmp.lt.s32.totalorder %s17, 1
        %s332 = scalar_select %p331, %s17, 1
        %s333 = smul.addr %s332, 8
        %s334 = smul.addr %s333, 4
        %s335 = scalar_lea.vmem %s0, %s334
      $region60: #{per_feature_transformer_forward.2} parent=55 // pred_fallthru
        _
    $region56: #{per_feature_transformer_forward.2} parent=5 // pred_fallthru
      _
    %p336 = scmp.le.s32.totalorder 1, %s17
    %p337 = scmp.lt.s32.totalorder %s17, 3
    %p338 = pnand %p336, %p337
    %p339 = pneg %p338
    // Predicated region
    $region61: #{per_feature_transformer_forward.2} parent=5 // pred_check
      _
    $region62: #{per_feature_transformer_forward.2} parent=5 // pred_check_branch
      %341 = sbr.rel (%p338) target = $region64
    $region63: #{per_feature_transformer_forward.2} parent=5 // pred_region
      %s342 = ssub.s32 %s17, 1
      %p343 = scmp.lt.s32.totalorder %s22, 1
      %s344 = scalar_select %p343, %s22, 1
      %s345 = smul.addr %s344, 8
      %s346 = smul.addr %s345, 4
      %s347 = scalar_lea.vmem %s0, %s346
      %p348 = pneg %p43
      %p349 = pneg %p40
      %p350 = pneg %p64
      %p351 = pneg %p61
      %p352 = pneg %p85
      %p353 = pneg %p82
      %p354 = pneg %p106
      %p355 = pneg %p103
      %p356 = pneg %p127
      %p357 = pneg %p124
      %p358 = pneg %p148
      %p359 = pneg %p145
      %p360 = pneg %p169
      %p361 = pneg %p166
      %p362 = pneg %p190
      %p363 = pneg %p187
      %p364 = pneg %p211
      %p365 = pneg %p208
      %p366 = pneg %p232
      %p367 = pneg %p229
      %p368 = pneg %p253
      %p369 = pneg %p250
      %p370 = pneg %p279
      %p371 = pneg %p276
      %p372 = scmp.lt.s32.totalorder %s22, 1
      %s373 = scalar_select %p372, %s22, 1
      %s374 = smul.addr %s373, 8
      %s375 = smul.addr %s374, 4
      %s376 = scalar_lea.vmem %s11, %s375
      %p377 = scmp.lt.s32.totalorder %s22, 1
      %s378 = scalar_select %p377, %s22, 1
      %s379 = smul.addr %s378, 8
      %s380 = smul.addr %s379, 4
      %s381 = scalar_lea.vmem %s0, %s380
      %p382 = scmp.lt.s32.totalorder %s22, 1
      %s383 = scalar_select %p382, %s22, 1
      %s384 = smul.addr %s383, 8
      %s385 = smul.addr %s384, 4
      %s386 = scalar_lea.vmem %s11, %s385
      %v388 = vld [vmem:[%s381] sm:$0xf]
      %v389 = vld [vmem:[%s381 + $0x4] sm:$0xf]
      %v390 = vld [vmem:[%s381 + $0x8] sm:$0xf]
      %v391 = vld [vmem:[%s381 + $0xc] sm:$0xf]
      %v392 = vld [vmem:[%s381 + $0x10] sm:$0xf]
      %v393 = vld [vmem:[%s381 + $0x14] sm:$0xf]
      %v394 = vld [vmem:[%s381 + $0x18] sm:$0xf]
      %v395 = vld [vmem:[%s381 + $0x1c] sm:$0xf]
      %vm396 = vcmask 257024
      %397 = vst.msk [vmem:[%s386] sm:$0xf] %vm396, %v388
      %398 = vst.msk [vmem:[%s386 + $0x4] sm:$0xf] %vm396, %v389
      %399 = vst.msk [vmem:[%s386 + $0x8] sm:$0xf] %vm396, %v390
      %400 = vst.msk [vmem:[%s386 + $0xc] sm:$0xf] %vm396, %v391
      %401 = vst.msk [vmem:[%s386 + $0x10] sm:$0xf] %vm396, %v392
      %402 = vst.msk [vmem:[%s386 + $0x14] sm:$0xf] %vm396, %v393
      %403 = vst.msk [vmem:[%s386 + $0x18] sm:$0xf] %vm396, %v394
      %404 = vst.msk [vmem:[%s386 + $0x1c] sm:$0xf] %vm396, %v395
      loop: start=0, step=1, limit=2
      $region65: #{per_feature_transformer_forward.2} parent=63 // loop_pre_header
        _
      $region66: #{per_feature_transformer_forward.2} parent=63 // loop_header
        %s406 = sphi 0, %s410
        %p407 = scmp.ge.s32.totalorder %s406, 2
      $region67: #{per_feature_transformer_forward.2} parent=63 // loop_header_branch
        %409 = sbr.rel (%p407) target = $region71
      $region68: #{per_feature_transformer_forward.2} parent=63 // loop_body
        %v411 = vld [vmem:[%s386] sm:$0xf]
        %v412 = vld [vmem:[%s386 + $0x4] sm:$0xf]
        %v413 = vld [vmem:[%s386 + $0x8] sm:$0xf]
        %v414 = vld [vmem:[%s386 + $0xc] sm:$0xf]
        %v415 = vld [vmem:[%s386 + $0x10] sm:$0xf]
        %v416 = vld [vmem:[%s386 + $0x14] sm:$0xf]
        %v417 = vld [vmem:[%s386 + $0x18] sm:$0xf]
        %v418 = vld [vmem:[%s386 + $0x1c] sm:$0xf]
        %s419 = smul.u32 %s406, 12
        %s420 = smul.addr %s419, 4
        %s421 = scalar_lea.vmem %s1, %s420
        %v422 = vld [vmem:[%s421] sm:$0xf]
        %v423 = vld [vmem:[%s421 + $0x4] sm:$0xf]
        %v424 = vld [vmem:[%s421 + $0x8] sm:$0xf]
        %v425 = vld [vmem:[%s421 + $0xc] sm:$0xf]
        %v426 = vld [vmem:[%s421 + $0x10] sm:$0xf]
        %v427 = vld [vmem:[%s421 + $0x14] sm:$0xf]
        %v428 = vld [vmem:[%s421 + $0x18] sm:$0xf]
        %v429 = vld [vmem:[%s421 + $0x1c] sm:$0xf]
        %v430 = vld [vmem:[%s421 + $0x20] sm:$0xf]
        %v431 = vld [vmem:[%s421 + $0x24] sm:$0xf]
        %v432 = vld [vmem:[%s421 + $0x28] sm:$0xf]
        %v433 = vld [vmem:[%s421 + $0x2c] sm:$0xf]
        %s434 = smul.u32 %s406, 4
        %s435 = smul.addr %s434, 4
        %s436 = scalar_lea.vmem %s2, %s435
        %v437 = vld [vmem:[%s436] sm:$0xf]
        %v438 = vld [vmem:[%s436 + $0x4] sm:$0xf]
        %v439 = vld [vmem:[%s436 + $0x8] sm:$0xf]
        %v440 = vld [vmem:[%s436 + $0xc] sm:$0xf]
        %s441 = scalar_lea.vmem %s3, %s406
        %v442 = vld [vmem:[%s441] sm:$0x1]
        %s443 = smul.addr %s419, 4
        %s444 = scalar_lea.vmem %s4, %s443
        %v445 = vld [vmem:[%s444] sm:$0xf]
        %v446 = vld [vmem:[%s444 + $0x4] sm:$0xf]
        %v447 = vld [vmem:[%s444 + $0x8] sm:$0xf]
        %v448 = vld [vmem:[%s444 + $0xc] sm:$0xf]
        %v449 = vld [vmem:[%s444 + $0x10] sm:$0xf]
        %v450 = vld [vmem:[%s444 + $0x14] sm:$0xf]
        %v451 = vld [vmem:[%s444 + $0x18] sm:$0xf]
        %v452 = vld [vmem:[%s444 + $0x1c] sm:$0xf]
        %v453 = vld [vmem:[%s444 + $0x20] sm:$0xf]
        %v454 = vld [vmem:[%s444 + $0x24] sm:$0xf]
        %v455 = vld [vmem:[%s444 + $0x28] sm:$0xf]
        %v456 = vld [vmem:[%s444 + $0x2c] sm:$0xf]
        %s457 = smul.addr %s434, 4
        %s458 = scalar_lea.vmem %s5, %s457
        %v459 = vld [vmem:[%s458] sm:$0xf]
        %v460 = vld [vmem:[%s458 + $0x4] sm:$0xf]
        %v461 = vld [vmem:[%s458 + $0x8] sm:$0xf]
        %v462 = vld [vmem:[%s458 + $0xc] sm:$0xf]
        %s463 = scalar_lea.vmem %s6, %s406
        %v464 = vld [vmem:[%s463] sm:$0x1]
        %s465 = smul.addr %s434, 4
        %s466 = scalar_lea.vmem %s7, %s465
        %v467 = vld [vmem:[%s466] sm:$0xf]
        %v468 = vld [vmem:[%s466 + $0x4] sm:$0xf]
        %v469 = vld [vmem:[%s466 + $0x8] sm:$0xf]
        %v470 = vld [vmem:[%s466 + $0xc] sm:$0xf]
        %s471 = scalar_lea.vmem %s8, %s406
        %v472 = vld [vmem:[%s471] sm:$0x1]
        %s473 = smul.u32 %s406, 8
        %s474 = smul.addr %s473, 4
        %s475 = scalar_lea.vmem %s9, %s474
        %v476 = vld [vmem:[%s475] sm:$0xf]
        %v477 = vld [vmem:[%s475 + $0x4] sm:$0xf]
        %v478 = vld [vmem:[%s475 + $0x8] sm:$0xf]
        %v479 = vld [vmem:[%s475 + $0xc] sm:$0xf]
        %v480 = vld [vmem:[%s475 + $0x10] sm:$0xf]
        %v481 = vld [vmem:[%s475 + $0x14] sm:$0xf]
        %v482 = vld [vmem:[%s475 + $0x18] sm:$0xf]
        %v483 = vld [vmem:[%s475 + $0x1c] sm:$0xf]
        %s484 = scalar_lea.vmem %s10, %s406
        %v485 = vld [vmem:[%s484] sm:$0x1]
        %v494 = vcombine.low %v411, %v412
        %v495 = vcombine.low %v413, %v414
        %v496 = vcombine.low %v415, %v416
        %v497 = vcombine.low %v417, %v418
        %v502 = vpack.c.bf16 %v495, %v494
        %v503 = vpack.c.bf16 %v497, %v496
        %v508 = vunpack.c.l.b16 %v422
        %v509 = vunpack.c.l.b16 %v423
        %v510 = vunpack.c.l.b16 %v424
        %v511 = vunpack.c.l.b16 %v425
        %v512 = vpack.c.b16 %v509, %v508
        %v513 = vpack.c.b16 %v511, %v510
        %vm516 = vcmask 261120
        %v518 = vsel %vm516, %v502, 0
        %v521 = vsel %vm516, %v503, 0
        %523 = vmatprep.subr.bf16.mxu0 0
        %524 = vmatpush1.bf16.msra.mxu0 %v512
        %525 = vmatprep.subr.bf16.mxu0 0
        %526 = vmatpush1.bf16.msra.mxu0 %v513
        %527 = vmatprep.subr.bf16.mxu0 0
        %528 = vmatpush1.bf16.msra.mxu0 0
        %529 = vmatprep.subr.bf16.mxu0 0
        %530 = vmatpush1.bf16.msra.mxu0 0
        %531 = vmatprep.subr.bf16.mxu0 0
        %532 = vmatpush1.bf16.msra.mxu0 0
        %533 = vmatprep.subr.bf16.mxu0 0
        %534 = vmatpush1.bf16.msra.mxu0 0
        %535 = vmatprep.subr.bf16.mxu0 0
        %536 = vmatpush1.bf16.msra.mxu0 0
        %537 = vmatprep.subr.bf16.mxu0 0
        %538 = vmatpush1.bf16.msra.mxu0 0
        %539 = vmatprep.subr.bf16.mxu0 0
        %540 = vmatpush1.bf16.msra.mxu0 0
        %541 = vmatprep.subr.bf16.mxu0 0
        %542 = vmatpush1.bf16.msra.mxu0 0
        %543 = vmatprep.subr.bf16.mxu0 0
        %544 = vmatpush1.bf16.msra.mxu0 0
        %545 = vmatprep.subr.bf16.mxu0 0
        %546 = vmatpush1.bf16.msra.mxu0 0
        %547 = vmatprep.subr.bf16.mxu0 0
        %548 = vmatpush1.bf16.msra.mxu0 0
        %549 = vmatprep.subr.bf16.mxu0 0
        %550 = vmatpush1.bf16.msra.mxu0 0
        %551 = vmatprep.subr.bf16.mxu0 0
        %552 = vmatpush1.bf16.msra.mxu0 0
        %553 = vmatprep.subr.bf16.mxu0 0
        %554 = vmatpush1.bf16.msra.mxu0 0
        %555 = vmatprep.mubr.bf16.mxu0 0
        %556 = vmatmul.mubr.bf16.gmra.mrb[0].mxu0 %v518
        %v557 = vpop.f32.mrb[0].mxu0
        %v558 = vadd.f32 0.0, %v557
        %v559 = vpop.f32.mrb[0].mxu0
        %v560 = vpop.f32.mrb[0].mxu0
        %v561 = vadd.f32 0.0, %v560
        %v562 = vpop.f32.mrb[0].mxu0
        %563 = vmatprep.mubr.bf16.mxu0 0
        %564 = vmatmul.mubr.bf16.gmra.mrb[0].mxu0 %v521
        %v565 = vpop.f32.mrb[0].mxu0
        %v566 = vadd.f32 0.0, %v565
        %v567 = vpop.f32.mrb[0].mxu0
        %v568 = vpop.f32.mrb[0].mxu0
        %v569 = vadd.f32 0.0, %v568
        %v570 = vpop.f32.mrb[0].mxu0
        %571 = vdwg.mxu0
        %v576 = vunpack.c.l.b16 %v426
        %v577 = vunpack.c.l.b16 %v427
        %v578 = vunpack.c.l.b16 %v428
        %v579 = vunpack.c.l.b16 %v429
        %v580 = vpack.c.b16 %v577, %v576
        %v581 = vpack.c.b16 %v579, %v578
        %584 = vmatprep.subr.bf16.mxu0 0
        %585 = vmatpush1.bf16.msra.mxu0 %v580
        %586 = vmatprep.subr.bf16.mxu0 0
        %587 = vmatpush1.bf16.msra.mxu0 %v581
        %588 = vmatprep.subr.bf16.mxu0 0
        %589 = vmatpush1.bf16.msra.mxu0 0
        %590 = vmatprep.subr.bf16.mxu0 0
        %591 = vmatpush1.bf16.msra.mxu0 0
        %592 = vmatprep.subr.bf16.mxu0 0
        %593 = vmatpush1.bf16.msra.mxu0 0
        %594 = vmatprep.subr.bf16.mxu0 0
        %595 = vmatpush1.bf16.msra.mxu0 0
        %596 = vmatprep.subr.bf16.mxu0 0
        %597 = vmatpush1.bf16.msra.mxu0 0
        %598 = vmatprep.subr.bf16.mxu0 0
        %599 = vmatpush1.bf16.msra.mxu0 0
        %600 = vmatprep.subr.bf16.mxu0 0
        %601 = vmatpush1.bf16.msra.mxu0 0
        %602 = vmatprep.subr.bf16.mxu0 0
        %603 = vmatpush1.bf16.msra.mxu0 0
        %604 = vmatprep.subr.bf16.mxu0 0
        %605 = vmatpush1.bf16.msra.mxu0 0
        %606 = vmatprep.subr.bf16.mxu0 0
        %607 = vmatpush1.bf16.msra.mxu0 0
        %608 = vmatprep.subr.bf16.mxu0 0
        %609 = vmatpush1.bf16.msra.mxu0 0
        %610 = vmatprep.subr.bf16.mxu0 0
        %611 = vmatpush1.bf16.msra.mxu0 0
        %612 = vmatprep.subr.bf16.mxu0 0
        %613 = vmatpush1.bf16.msra.mxu0 0
        %614 = vmatprep.subr.bf16.mxu0 0
        %615 = vmatpush1.bf16.msra.mxu0 0
        %616 = vmatprep.mubr.bf16.mxu0 0
        %617 = vmatmul.mubr.bf16.gmra.mrb[0].mxu0 %v518
        %v618 = vpop.f32.mrb[0].mxu0
        %v619 = vadd.f32 0.0, %v618
        %v620 = vpop.f32.mrb[0].mxu0
        %v621 = vpop.f32.mrb[0].mxu0
        %v622 = vadd.f32 0.0, %v621
        %v623 = vpop.f32.mrb[0].mxu0
        %624 = vmatprep.mubr.bf16.mxu0 0
        %625 = vmatmul.mubr.bf16.gmra.mrb[0].mxu0 %v521
        %v626 = vpop.f32.mrb[0].mxu0
        %v627 = vadd.f32 0.0, %v626
        %v628 = vpop.f32.mrb[0].mxu0
        %v629 = vpop.f32.mrb[0].mxu0
        %v630 = vadd.f32 0.0, %v629
        %v631 = vpop.f32.mrb[0].mxu0
        %632 = vdwg.mxu0
        %v637 = vunpack.c.l.b16 %v430
        %v638 = vunpack.c.l.b16 %v431
        %v639 = vunpack.c.l.b16 %v432
        %v640 = vunpack.c.l.b16 %v433
        %v641 = vpack.c.b16 %v638, %v637
        %v642 = vpack.c.b16 %v640, %v639
        %645 = vmatprep.subr.bf16.mxu0 0
        %646 = vmatpush1.bf16.msra.mxu0 %v641
        %647 = vmatprep.subr.bf16.mxu0 0
        %648 = vmatpush1.bf16.msra.mxu0 %v642
        %649 = vmatprep.subr.bf16.mxu0 0
        %650 = vmatpush1.bf16.msra.mxu0 0
        %651 = vmatprep.subr.bf16.mxu0 0
        %652 = vmatpush1.bf16.msra.mxu0 0
        %653 = vmatprep.subr.bf16.mxu0 0
        %654 = vmatpush1.bf16.msra.mxu0 0
        %655 = vmatprep.subr.bf16.mxu0 0
        %656 = vmatpush1.bf16.msra.mxu0 0
        %657 = vmatprep.subr.bf16.mxu0 0
        %658 = vmatpush1.bf16.msra.mxu0 0
        %659 = vmatprep.subr.bf16.mxu0 0
        %660 = vmatpush1.bf16.msra.mxu0 0
        %661 = vmatprep.subr.bf16.mxu0 0
        %662 = vmatpush1.bf16.msra.mxu0 0
        %663 = vmatprep.subr.bf16.mxu0 0
        %664 = vmatpush1.bf16.msra.mxu0 0
        %665 = vmatprep.subr.bf16.mxu0 0
        %666 = vmatpush1.bf16.msra.mxu0 0
        %667 = vmatprep.subr.bf16.mxu0 0
        %668 = vmatpush1.bf16.msra.mxu0 0
        %669 = vmatprep.subr.bf16.mxu0 0
        %670 = vmatpush1.bf16.msra.mxu0 0
        %671 = vmatprep.subr.bf16.mxu0 0
        %672 = vmatpush1.bf16.msra.mxu0 0
        %673 = vmatprep.subr.bf16.mxu0 0
        %674 = vmatpush1.bf16.msra.mxu0 0
        %675 = vmatprep.subr.bf16.mxu0 0
        %676 = vmatpush1.bf16.msra.mxu0 0
        %677 = vmatprep.mubr.bf16.mxu0 0
        %678 = vmatmul.mubr.bf16.gmra.mrb[0].mxu0 %v518
        %v679 = vpop.f32.mrb[0].mxu0
        %v680 = vadd.f32 0.0, %v679
        %v681 = vpop.f32.mrb[0].mxu0
        %v682 = vpop.f32.mrb[0].mxu0
        %v683 = vadd.f32 0.0, %v682
        %v684 = vpop.f32.mrb[0].mxu0
        %685 = vmatprep.mubr.bf16.mxu0 0
        %686 = vmatmul.mubr.bf16.gmra.mrb[0].mxu0 %v521
        %v687 = vpop.f32.mrb[0].mxu0
        %v688 = vadd.f32 0.0, %v687
        %v689 = vpop.f32.mrb[0].mxu0
        %v690 = vpop.f32.mrb[0].mxu0
        %v691 = vadd.f32 0.0, %v690
        %v692 = vpop.f32.mrb[0].mxu0
        %693 = vdwg.mxu0
        %v694 = vpack.c.bf16 %v561, %v558
        %v695 = vpack.c.bf16 %v569, %v566
        %v698 = vcombine.high %v694, %v694
        %v700 = vunpack.c.l.s4 1983009808
        %v701 = vunpack.c.0.s8 %v700
        %v702 = vlaneseq
        %v703 = vshrl.u32 %v702, 7
        %v704 = vsub.s32 %v701, %v703
        %v705 = vrot.slane %v694, %v704
        %v707 = vunpack.c.l.s4 1983009808
        %v708 = vunpack.c.0.s8 %v707
        %v709 = vlaneseq
        %v710 = vshrl.u32 %v709, 7
        %v711 = vsub.s32 %v708, %v710
        %v712 = vrot.slane %v698, %v711
        %v713 = vcombine.high %v705, %v705
        %v714 = vcombine.high %v712, %v712
        %v715 = vcombine.high %v695, %v695
        %v717 = vunpack.c.l.s4 1983009808
        %v718 = vunpack.c.0.s8 %v717
        %v719 = vlaneseq
        %v720 = vshrl.u32 %v719, 7
        %v721 = vsub.s32 %v718, %v720
        %v722 = vrot.slane %v695, %v721
        %v724 = vunpack.c.l.s4 1983009808
        %v725 = vunpack.c.0.s8 %v724
        %v726 = vlaneseq
        %v727 = vshrl.u32 %v726, 7
        %v728 = vsub.s32 %v725, %v727
        %v729 = vrot.slane %v715, %v728
        %v730 = vcombine.high %v722, %v722
        %v731 = vcombine.high %v729, %v729
        %v732 = vpack.c.bf16 %v622, %v619
        %v733 = vpack.c.bf16 %v630, %v627
        %v736 = vcombine.high %v732, %v732
        %v738 = vunpack.c.l.s4 1983009808
        %v739 = vunpack.c.0.s8 %v738
        %v740 = vlaneseq
        %v741 = vshrl.u32 %v740, 7
        %v742 = vsub.s32 %v739, %v741
        %v743 = vrot.slane %v732, %v742
        %v745 = vunpack.c.l.s4 1983009808
        %v746 = vunpack.c.0.s8 %v745
        %v747 = vlaneseq
        %v748 = vshrl.u32 %v747, 7
        %v749 = vsub.s32 %v746, %v748
        %v750 = vrot.slane %v736, %v749
        %v751 = vcombine.high %v743, %v743
        %v752 = vcombine.high %v750, %v750
        %v753 = vcombine.high %v733, %v733
        %v755 = vunpack.c.l.s4 1983009808
        %v756 = vunpack.c.0.s8 %v755
        %v757 = vlaneseq
        %v758 = vshrl.u32 %v757, 7
        %v759 = vsub.s32 %v756, %v758
        %v760 = vrot.slane %v733, %v759
        %v762 = vunpack.c.l.s4 1983009808
        %v763 = vunpack.c.0.s8 %v762
        %v764 = vlaneseq
        %v765 = vshrl.u32 %v764, 7
        %v766 = vsub.s32 %v763, %v765
        %v767 = vrot.slane %v753, %v766
        %v768 = vcombine.high %v760, %v760
        %v769 = vcombine.high %v767, %v767
        %v770 = vpack.c.bf16 %v683, %v680
        %v771 = vpack.c.bf16 %v691, %v688
        %v774 = vcombine.high %v770, %v770
        %v776 = vunpack.c.l.s4 1983009808
        %v777 = vunpack.c.0.s8 %v776
        %v778 = vlaneseq
        %v779 = vshrl.u32 %v778, 7
        %v780 = vsub.s32 %v777, %v779
        %v781 = vrot.slane %v770, %v780
        %v783 = vunpack.c.l.s4 1983009808
        %v784 = vunpack.c.0.s8 %v783
        %v785 = vlaneseq
        %v786 = vshrl.u32 %v785, 7
        %v787 = vsub.s32 %v784, %v786
        %v788 = vrot.slane %v774, %v787
        %v789 = vcombine.high %v781, %v781
        %v790 = vcombine.high %v788, %v788
        %v791 = vcombine.high %v771, %v771
        %v793 = vunpack.c.l.s4 1983009808
        %v794 = vunpack.c.0.s8 %v793
        %v795 = vlaneseq
        %v796 = vshrl.u32 %v795, 7
        %v797 = vsub.s32 %v794, %v796
        %v798 = vrot.slane %v771, %v797
        %v800 = vunpack.c.l.s4 1983009808
        %v801 = vunpack.c.0.s8 %v800
        %v802 = vlaneseq
        %v803 = vshrl.u32 %v802, 7
        %v804 = vsub.s32 %v801, %v803
        %v805 = vrot.slane %v791, %v804
        %v806 = vcombine.high %v798, %v798
        %v807 = vcombine.high %v805, %v805
        %vm808 = vcmask 64512
        %v810 = vsel %vm808, %v705, 0
        %v813 = vsel %vm808, %v743, 0
        %815 = vmatprep.subr.bf16.mxu0 0
        %816 = vmatpush1.bf16.xpose.msra.mxu0 %v813
        %817 = vmatprep.subr.bf16.mxu0 0
        %818 = vmatpush1.bf16.xpose.msra.mxu0 0
        %819 = vmatprep.subr.bf16.mxu0 0
        %820 = vmatpush1.bf16.xpose.msra.mxu0 0
        %821 = vmatprep.subr.bf16.mxu0 0
        %822 = vmatpush1.bf16.xpose.msra.mxu0 0
        %823 = vmatprep.subr.bf16.mxu0 0
        %824 = vmatpush1.bf16.xpose.msra.mxu0 0
        %825 = vmatprep.subr.bf16.mxu0 0
        %826 = vmatpush1.bf16.xpose.msra.mxu0 0
        %827 = vmatprep.subr.bf16.mxu0 0
        %828 = vmatpush1.bf16.xpose.msra.mxu0 0
        %829 = vmatprep.subr.bf16.mxu0 0
        %830 = vmatpush1.bf16.xpose.msra.mxu0 0
        %831 = vmatprep.subr.bf16.mxu0 0
        %832 = vmatpush1.bf16.xpose.msra.mxu0 0
        %833 = vmatprep.subr.bf16.mxu0 0
        %834 = vmatpush1.bf16.xpose.msra.mxu0 0
        %835 = vmatprep.subr.bf16.mxu0 0
        %836 = vmatpush1.bf16.xpose.msra.mxu0 0
        %837 = vmatprep.subr.bf16.mxu0 0
        %838 = vmatpush1.bf16.xpose.msra.mxu0 0
        %839 = vmatprep.subr.bf16.mxu0 0
        %840 = vmatpush1.bf16.xpose.msra.mxu0 0
        %841 = vmatprep.subr.bf16.mxu0 0
        %842 = vmatpush1.bf16.xpose.msra.mxu0 0
        %843 = vmatprep.subr.bf16.mxu0 0
        %844 = vmatpush1.bf16.xpose.msra.mxu0 0
        %845 = vmatprep.subr.bf16.mxu0 0
        %846 = vmatpush1.bf16.xpose.msra.mxu0 0
        %847 = vmatprep.mubr.bf16.mxu0 0
        %848 = vmatmul.mubr.bf16.gmra.mrb[0].mxu0 %v810
        %v849 = vpop.f32.mrb[0].mxu0
        %v850 = vadd.f32 0.0, %v849
        %v851 = vpop.f32.mrb[0].mxu0
        %v852 = vpop.f32.mrb[0].mxu0
        %v853 = vpop.f32.mrb[0].mxu0
        %854 = vdwg.mxu0
        %v856 = vsel %vm808, %v713, 0
        %v859 = vsel %vm808, %v751, 0
        %861 = vmatprep.subr.bf16.mxu0 0
        %862 = vmatpush1.bf16.xpose.msra.mxu0 %v859
        %863 = vmatprep.subr.bf16.mxu0 0
        %864 = vmatpush1.bf16.xpose.msra.mxu0 0
        %865 = vmatprep.subr.bf16.mxu0 0
        %866 = vmatpush1.bf16.xpose.msra.mxu0 0
        %867 = vmatprep.subr.bf16.mxu0 0
        %868 = vmatpush1.bf16.xpose.msra.mxu0 0
        %869 = vmatprep.subr.bf16.mxu0 0
        %870 = vmatpush1.bf16.xpose.msra.mxu0 0
        %871 = vmatprep.subr.bf16.mxu0 0
        %872 = vmatpush1.bf16.xpose.msra.mxu0 0
        %873 = vmatprep.subr.bf16.mxu0 0
        %874 = vmatpush1.bf16.xpose.msra.mxu0 0
        %875 = vmatprep.subr.bf16.mxu0 0
        %876 = vmatpush1.bf16.xpose.msra.mxu0 0
        %877 = vmatprep.subr.bf16.mxu0 0
        %878 = vmatpush1.bf16.xpose.msra.mxu0 0
        %879 = vmatprep.subr.bf16.mxu0 0
        %880 = vmatpush1.bf16.xpose.msra.mxu0 0
        %881 = vmatprep.subr.bf16.mxu0 0
        %882 = vmatpush1.bf16.xpose.msra.mxu0 0
        %883 = vmatprep.subr.bf16.mxu0 0
        %884 = vmatpush1.bf16.xpose.msra.mxu0 0
        %885 = vmatprep.subr.bf16.mxu0 0
        %886 = vmatpush1.bf16.xpose.msra.mxu0 0
        %887 = vmatprep.subr.bf16.mxu0 0
        %888 = vmatpush1.bf16.xpose.msra.mxu0 0
        %889 = vmatprep.subr.bf16.mxu0 0
        %890 = vmatpush1.bf16.xpose.msra.mxu0 0
        %891 = vmatprep.subr.bf16.mxu0 0
        %892 = vmatpush1.bf16.xpose.msra.mxu0 0
        %893 = vmatprep.mubr.bf16.mxu0 0
        %894 = vmatmul.mubr.bf16.gmra.mrb[0].mxu0 %v856
        %v895 = vpop.f32.mrb[0].mxu0
        %v896 = vadd.f32 0.0, %v895
        %v897 = vpop.f32.mrb[0].mxu0
        %v898 = vpop.f32.mrb[0].mxu0
        %v899 = vpop.f32.mrb[0].mxu0
        %900 = vdwg.mxu0
        %v902 = vsel %vm808, %v712, 0
        %v905 = vsel %vm808, %v750, 0
        %907 = vmatprep.subr.bf16.mxu0 0
        %908 = vmatpush1.bf16.xpose.msra.mxu0 %v905
        %909 = vmatprep.subr.bf16.mxu0 0
        %910 = vmatpush1.bf16.xpose.msra.mxu0 0
        %911 = vmatprep.subr.bf16.mxu0 0
        %912 = vmatpush1.bf16.xpose.msra.mxu0 0
        %913 = vmatprep.subr.bf16.mxu0 0
        %914 = vmatpush1.bf16.xpose.msra.mxu0 0
        %915 = vmatprep.subr.bf16.mxu0 0
        %916 = vmatpush1.bf16.xpose.msra.mxu0 0
        %917 = vmatprep.subr.bf16.mxu0 0
        %918 = vmatpush1.bf16.xpose.msra.mxu0 0
        %919 = vmatprep.subr.bf16.mxu0 0
        %920 = vmatpush1.bf16.xpose.msra.mxu0 0
        %921 = vmatprep.subr.bf16.mxu0 0
        %922 = vmatpush1.bf16.xpose.msra.mxu0 0
        %923 = vmatprep.subr.bf16.mxu0 0
        %924 = vmatpush1.bf16.xpose.msra.mxu0 0
        %925 = vmatprep.subr.bf16.mxu0 0
        %926 = vmatpush1.bf16.xpose.msra.mxu0 0
        %927 = vmatprep.subr.bf16.mxu0 0
        %928 = vmatpush1.bf16.xpose.msra.mxu0 0
        %929 = vmatprep.subr.bf16.mxu0 0
        %930 = vmatpush1.bf16.xpose.msra.mxu0 0
        %931 = vmatprep.subr.bf16.mxu0 0
        %932 = vmatpush1.bf16.xpose.msra.mxu0 0
        %933 = vmatprep.subr.bf16.mxu0 0
        %934 = vmatpush1.bf16.xpose.msra.mxu0 0
        %935 = vmatprep.subr.bf16.mxu0 0
        %936 = vmatpush1.bf16.xpose.msra.mxu0 0
        %937 = vmatprep.subr.bf16.mxu0 0
        %938 = vmatpush1.bf16.xpose.msra.mxu0 0
        %939 = vmatprep.mubr.bf16.mxu0 0
        %940 = vmatmul.mubr.bf16.gmra.mrb[0].mxu0 %v902
        %v941 = vpop.f32.mrb[0].mxu0
        %v942 = vadd.f32 0.0, %v941
        %v943 = vpop.f32.mrb[0].mxu0
        %v944 = vpop.f32.mrb[0].mxu0
        %v945 = vpop.f32.mrb[0].mxu0
        %946 = vdwg.mxu0
        %v948 = vsel %vm808, %v714, 0
        %v951 = vsel %vm808, %v752, 0
        %953 = vmatprep.subr.bf16.mxu0 0
        %954 = vmatpush1.bf16.xpose.msra.mxu0 %v951
        %955 = vmatprep.subr.bf16.mxu0 0
        %956 = vmatpush1.bf16.xpose.msra.mxu0 0
        %957 = vmatprep.subr.bf16.mxu0 0
        %958 = vmatpush1.bf16.xpose.msra.mxu0 0
        %959 = vmatprep.subr.bf16.mxu0 0
        %960 = vmatpush1.bf16.xpose.msra.mxu0 0
        %961 = vmatprep.subr.bf16.mxu0 0
        %962 = vmatpush1.bf16.xpose.msra.mxu0 0
        %963 = vmatprep.subr.bf16.mxu0 0
        %964 = vmatpush1.bf16.xpose.msra.mxu0 0
        %965 = vmatprep.subr.bf16.mxu0 0
        %966 = vmatpush1.bf16.xpose.msra.mxu0 0
        %967 = vmatprep.subr.bf16.mxu0 0
        %968 = vmatpush1.bf16.xpose.msra.mxu0 0
        %969 = vmatprep.subr.bf16.mxu0 0
        %970 = vmatpush1.bf16.xpose.msra.mxu0 0
        %971 = vmatprep.subr.bf16.mxu0 0
        %972 = vmatpush1.bf16.xpose.msra.mxu0 0
        %973 = vmatprep.subr.bf16.mxu0 0
        %974 = vmatpush1.bf16.xpose.msra.mxu0 0
        %975 = vmatprep.subr.bf16.mxu0 0
        %976 = vmatpush1.bf16.xpose.msra.mxu0 0
        %977 = vmatprep.subr.bf16.mxu0 0
        %978 = vmatpush1.bf16.xpose.msra.mxu0 0
        %979 = vmatprep.subr.bf16.mxu0 0
        %980 = vmatpush1.bf16.xpose.msra.mxu0 0
        %981 = vmatprep.subr.bf16.mxu0 0
        %982 = vmatpush1.bf16.xpose.msra.mxu0 0
        %983 = vmatprep.subr.bf16.mxu0 0
        %984 = vmatpush1.bf16.xpose.msra.mxu0 0
        %985 = vmatprep.mubr.bf16.mxu0 0
        %986 = vmatmul.mubr.bf16.gmra.mrb[0].mxu0 %v948
        %v987 = vpop.f32.mrb[0].mxu0
        %v988 = vadd.f32 0.0, %v987
        %v989 = vpop.f32.mrb[0].mxu0
        %v990 = vpop.f32.mrb[0].mxu0
        %v991 = vpop.f32.mrb[0].mxu0
        %992 = vdwg.mxu0
        %v994 = vsel %vm808, %v722, 0
        %v997 = vsel %vm808, %v760, 0
        %999 = vmatprep.subr.bf16.mxu0 0
        %1000 = vmatpush1.bf16.xpose.msra.mxu0 %v997
        %1001 = vmatprep.subr.bf16.mxu0 0
        %1002 = vmatpush1.bf16.xpose.msra.mxu0 0
        %1003 = vmatprep.subr.bf16.mxu0 0
        %1004 = vmatpush1.bf16.xpose.msra.mxu0 0
        %1005 = vmatprep.subr.bf16.mxu0 0
        %1006 = vmatpush1.bf16.xpose.msra.mxu0 0
        %1007 = vmatprep.subr.bf16.mxu0 0
        %1008 = vmatpush1.bf16.xpose.msra.mxu0 0
        %1009 = vmatprep.subr.bf16.mxu0 0
        %1010 = vmatpush1.bf16.xpose.msra.mxu0 0
        %1011 = vmatprep.subr.bf16.mxu0 0
        %1012 = vmatpush1.bf16.xpose.msra.mxu0 0
        %1013 = vmatprep.subr.bf16.mxu0 0
        %1014 = vmatpush1.bf16.xpose.msra.mxu0 0
        %1015 = vmatprep.subr.bf16.mxu0 0
        %1016 = vmatpush1.bf16.xpose.msra.mxu0 0
        %1017 = vmatprep.subr.bf16.mxu0 0
        %1018 = vmatpush1.bf16.xpose.msra.mxu0 0
        %1019 = vmatprep.subr.bf16.mxu0 0
        %1020 = vmatpush1.bf16.xpose.msra.mxu0 0
        %1021 = vmatprep.subr.bf16.mxu0 0
        %1022 = vmatpush1.bf16.xpose.msra.mxu0 0
        %1023 = vmatprep.subr.bf16.mxu0 0
        %1024 = vmatpush1.bf16.xpose.msra.mxu0 0
        %1025 = vmatprep.subr.bf16.mxu0 0
        %1026 = vmatpush1.bf16.xpose.msra.mxu0 0
        %1027 = vmatprep.subr.bf16.mxu0 0
        %1028 = vmatpush1.bf16.xpose.msra.mxu0 0
        %1029 = vmatprep.subr.bf16.mxu0 0
        %1030 = vmatpush1.bf16.xpose.msra.mxu0 0
        %1031 = vmatprep.mubr.bf16.mxu0 0
        %1032 = vmatmul.mubr.bf16.gmra.mrb[0].mxu0 %v994
        %v1033 = vpop.f32.mrb[0].mxu0
        %v1034 = vadd.f32 0.0, %v1033
        %v1035 = vpop.f32.mrb[0].mxu0
        %v1036 = vpop.f32.mrb[0].mxu0
        %v1037 = vpop.f32.mrb[0].mxu0
        %1038 = vdwg.mxu0
        %v1040 = vsel %vm808, %v730, 0
        %v1043 = vsel %vm808, %v768, 0
        %1045 = vmatprep.subr.bf16.mxu0 0
        %1046 = vmatpush1.bf16.xpose.msra.mxu0 %v1043
        %1047 = vmatprep.subr.bf16.mxu0 0
        %1048 = vmatpush1.bf16.xpose.msra.mxu0 0
        %1049 = vmatprep.subr.bf16.mxu0 0
        %1050 = vmatpush1.bf16.xpose.msra.mxu0 0
        %1051 = vmatprep.subr.bf16.mxu0 0
        %1052 = vmatpush1.bf16.xpose.msra.mxu0 0
        %1053 = vmatprep.subr.bf16.mxu0 0
        %1054 = vmatpush1.bf16.xpose.msra.mxu0 0
        %1055 = vmatprep.subr.bf16.mxu0 0
        %1056 = vmatpush1.bf16.xpose.msra.mxu0 0
        %1057 = vmatprep.subr.bf16.mxu0 0
        %1058 = vmatpush1.bf16.xpose.msra.mxu0 0
        %1059 = vmatprep.subr.bf16.mxu0 0
        %1060 = vmatpush1.bf16.xpose.msra.mxu0 0
        %1061 = vmatprep.subr.bf16.mxu0 0
        %1062 = vmatpush1.bf16.xpose.msra.mxu0 0
        %1063 = vmatprep.subr.bf16.mxu0 0
        %1064 = vmatpush1.bf16.xpose.msra.mxu0 0
        %1065 = vmatprep.subr.bf16.mxu0 0
        %1066 = vmatpush1.bf16.xpose.msra.mxu0 0
        %1067 = vmatprep.subr.bf16.mxu0 0
        %1068 = vmatpush1.bf16.xpose.msra.mxu0 0
        %1069 = vmatprep.subr.bf16.mxu0 0
        %1070 = vmatpush1.bf16.xpose.msra.mxu0 0
        %1071 = vmatprep.subr.bf16.mxu0 0
        %1072 = vmatpush1.bf16.xpose.msra.mxu0 0
        %1073 = vmatprep.subr.bf16.mxu0 0
        %1074 = vmatpush1.bf16.xpose.msra.mxu0 0
        %1075 = vmatprep.subr.bf16.mxu0 0
        %1076 = vmatpush1.bf16.xpose.msra.mxu0 0
        %1077 = vmatprep.mubr.bf16.mxu0 0
        %1078 = vmatmul.mubr.bf16.gmra.mrb[0].mxu0 %v1040
        %v1079 = vpop.f32.mrb[0].mxu0
        %v1080 = vadd.f32 0.0, %v1079
        %v1081 = vpop.f32.mrb[0].mxu0
        %v1082 = vpop.f32.mrb[0].mxu0
        %v1083 = vpop.f32.mrb[0].mxu0
        %1084 = vdwg.mxu0
        %v1086 = vsel %vm808, %v729, 0
        %v1089 = vsel %vm808, %v767, 0
        %1091 = vmatprep.subr.bf16.mxu0 0
        %1092 = vmatpush1.bf16.xpose.msra.mxu0 %v1089
        %1093 = vmatprep.subr.bf16.mxu0 0
        %1094 = vmatpush1.bf16.xpose.msra.mxu0 0
        %1095 = vmatprep.subr.bf16.mxu0 0
        %1096 = vmatpush1.bf16.xpose.msra.mxu0 0
        %1097 = vmatprep.subr.bf16.mxu0 0
        %1098 = vmatpush1.bf16.xpose.msra.mxu0 0
        %1099 = vmatprep.subr.bf16.mxu0 0
        %1100 = vmatpush1.bf16.xpose.msra.mxu0 0
        %1101 = vmatprep.subr.bf16.mxu0 0
        %1102 = vmatpush1.bf16.xpose.msra.mxu0 0
        %1103 = vmatprep.subr.bf16.mxu0 0
        %1104 = vmatpush1.bf16.xpose.msra.mxu0 0
        %1105 = vmatprep.subr.bf16.mxu0 0
        %1106 = vmatpush1.bf16.xpose.msra.mxu0 0
        %1107 = vmatprep.subr.bf16.mxu0 0
        %1108 = vmatpush1.bf16.xpose.msra.mxu0 0
        %1109 = vmatprep.subr.bf16.mxu0 0
        %1110 = vmatpush1.bf16.xpose.msra.mxu0 0
        %1111 = vmatprep.subr.bf16.mxu0 0
        %1112 = vmatpush1.bf16.xpose.msra.mxu0 0
        %1113 = vmatprep.subr.bf16.mxu0 0
        %1114 = vmatpush1.bf16.xpose.msra.mxu0 0
        %1115 = vmatprep.subr.bf16.mxu0 0
        %1116 = vmatpush1.bf16.xpose.msra.mxu0 0
        %1117 = vmatprep.subr.bf16.mxu0 0
        %1118 = vmatpush1.bf16.xpose.msra.mxu0 0
        %1119 = vmatprep.subr.bf16.mxu0 0
        %1120 = vmatpush1.bf16.xpose.msra.mxu0 0
        %1121 = vmatprep.subr.bf16.mxu0 0
        %1122 = vmatpush1.bf16.xpose.msra.mxu0 0
        %1123 = vmatprep.mubr.bf16.mxu0 0
        %1124 = vmatmul.mubr.bf16.gmra.mrb[0].mxu0 %v1086
        %v1125 = vpop.f32.mrb[0].mxu0
        %v1126 = vadd.f32 0.0, %v1125
        %v1127 = vpop.f32.mrb[0].mxu0
        %v1128 = vpop.f32.mrb[0].mxu0
        %v1129 = vpop.f32.mrb[0].mxu0
        %1130 = vdwg.mxu0
        %v1132 = vsel %vm808, %v731, 0
        %v1135 = vsel %vm808, %v769, 0
        %1137 = vmatprep.subr.bf16.mxu0 0
        %1138 = vmatpush1.bf16.xpose.msra.mxu0 %v1135
        %1139 = vmatprep.subr.bf16.mxu0 0
        %1140 = vmatpush1.bf16.xpose.msra.mxu0 0
        %1141 = vmatprep.subr.bf16.mxu0 0
        %1142 = vmatpush1.bf16.xpose.msra.mxu0 0
        %1143 = vmatprep.subr.bf16.mxu0 0
        %1144 = vmatpush1.bf16.xpose.msra.mxu0 0
        %1145 = vmatprep.subr.bf16.mxu0 0
        %1146 = vmatpush1.bf16.xpose.msra.mxu0 0
        %1147 = vmatprep.subr.bf16.mxu0 0
        %1148 = vmatpush1.bf16.xpose.msra.mxu0 0
        %1149 = vmatprep.subr.bf16.mxu0 0
        %1150 = vmatpush1.bf16.xpose.msra.mxu0 0
        %1151 = vmatprep.subr.bf16.mxu0 0
        %1152 = vmatpush1.bf16.xpose.msra.mxu0 0
        %1153 = vmatprep.subr.bf16.mxu0 0
        %1154 = vmatpush1.bf16.xpose.msra.mxu0 0
        %1155 = vmatprep.subr.bf16.mxu0 0
        %1156 = vmatpush1.bf16.xpose.msra.mxu0 0
        %1157 = vmatprep.subr.bf16.mxu0 0
        %1158 = vmatpush1.bf16.xpose.msra.mxu0 0
        %1159 = vmatprep.subr.bf16.mxu0 0
        %1160 = vmatpush1.bf16.xpose.msra.mxu0 0
        %1161 = vmatprep.subr.bf16.mxu0 0
        %1162 = vmatpush1.bf16.xpose.msra.mxu0 0
        %1163 = vmatprep.subr.bf16.mxu0 0
        %1164 = vmatpush1.bf16.xpose.msra.mxu0 0
        %1165 = vmatprep.subr.bf16.mxu0 0
        %1166 = vmatpush1.bf16.xpose.msra.mxu0 0
        %1167 = vmatprep.subr.bf16.mxu0 0
        %1168 = vmatpush1.bf16.xpose.msra.mxu0 0
        %1169 = vmatprep.mubr.bf16.mxu0 0
        %1170 = vmatmul.mubr.bf16.gmra.mrb[0].mxu0 %v1132
        %v1171 = vpop.f32.mrb[0].mxu0
        %v1172 = vadd.f32 0.0, %v1171
        %v1173 = vpop.f32.mrb[0].mxu0
        %v1174 = vpop.f32.mrb[0].mxu0
        %v1175 = vpop.f32.mrb[0].mxu0
        %1176 = vdwg.mxu0
        %vm1177 = vcmask 27648
        %v1178 = vsel %vm1177, %v850, -inf
        %1179 = vmax.xlane.f32.xlu0 %v1178
        %v1180 = vpop.xlane.xlu0 %1179
        %v1181 = vsel %vm1177, %v896, -inf
        %1182 = vmax.xlane.f32.xlu0 %v1181
        %v1183 = vpop.xlane.xlu0 %1182
        %v1184 = vsel %vm1177, %v942, -inf
        %1185 = vmax.xlane.f32.xlu0 %v1184
        %v1186 = vpop.xlane.xlu0 %1185
        %v1187 = vsel %vm1177, %v988, -inf
        %1188 = vmax.xlane.f32.xlu0 %v1187
        %v1189 = vpop.xlane.xlu0 %1188
        %v1190 = vsel %vm1177, %v1034, -inf
        %1191 = vmax.xlane.f32.xlu0 %v1190
        %v1192 = vpop.xlane.xlu0 %1191
        %v1193 = vsel %vm1177, %v1080, -inf
        %1194 = vmax.xlane.f32.xlu0 %v1193
        %v1195 = vpop.xlane.xlu0 %1194
        %v1196 = vsel %vm1177, %v1126, -inf
        %1197 = vmax.xlane.f32.xlu0 %v1196
        %v1198 = vpop.xlane.xlu0 %1197
        %v1199 = vsel %vm1177, %v1172, -inf
        %1200 = vmax.xlane.f32.xlu0 %v1199
        %v1201 = vpop.xlane.xlu0 %1200
        %v1202 = vsub.f32 %v850, %v1180
        %v1203 = vsub.f32 %v896, %v1183
        %v1204 = vsub.f32 %v942, %v1186
        %v1205 = vsub.f32 %v988, %v1189
        %v1206 = vsub.f32 %v1034, %v1192
        %v1207 = vsub.f32 %v1080, %v1195
        %v1208 = vsub.f32 %v1126, %v1198
        %v1209 = vsub.f32 %v1172, %v1201
        %v1210 = vmul.f32 %v1202, 1.442695
        %v1211 = vpow.pop %v1210
        %v1212 = vmul.f32 %v1203, 1.442695
        %v1213 = vpow.pop %v1212
        %v1214 = vmul.f32 %v1204, 1.442695
        %v1215 = vpow.pop %v1214
        %v1216 = vmul.f32 %v1205, 1.442695
        %v1217 = vpow.pop %v1216
        %v1218 = vmul.f32 %v1206, 1.442695
        %v1219 = vpow.pop %v1218
        %v1220 = vmul.f32 %v1207, 1.442695
        %v1221 = vpow.pop %v1220
        %v1222 = vmul.f32 %v1208, 1.442695
        %v1223 = vpow.pop %v1222
        %v1224 = vmul.f32 %v1209, 1.442695
        %v1225 = vpow.pop %v1224
        %v1226 = vsel %vm1177, %v1211, 0.0
        %1227 = vadd.xlane.f32.xlu0 %v1226
        %v1228 = vpop.xlane.xlu0 %1227
        %v1229 = vsel %vm1177, %v1213, 0.0
        %1230 = vadd.xlane.f32.xlu0 %v1229
        %v1231 = vpop.xlane.xlu0 %1230
        %v1232 = vsel %vm1177, %v1215, 0.0
        %1233 = vadd.xlane.f32.xlu0 %v1232
        %v1234 = vpop.xlane.xlu0 %1233
        %v1235 = vsel %vm1177, %v1217, 0.0
        %1236 = vadd.xlane.f32.xlu0 %v1235
        %v1237 = vpop.xlane.xlu0 %1236
        %v1238 = vsel %vm1177, %v1219, 0.0
        %1239 = vadd.xlane.f32.xlu0 %v1238
        %v1240 = vpop.xlane.xlu0 %1239
        %v1241 = vsel %vm1177, %v1221, 0.0
        %1242 = vadd.xlane.f32.xlu0 %v1241
        %v1243 = vpop.xlane.xlu0 %1242
        %v1244 = vsel %vm1177, %v1223, 0.0
        %1245 = vadd.xlane.f32.xlu0 %v1244
        %v1246 = vpop.xlane.xlu0 %1245
        %v1247 = vsel %vm1177, %v1225, 0.0
        %1248 = vadd.xlane.f32.xlu0 %v1247
        %v1249 = vpop.xlane.xlu0 %1248
        %v1250 = vrcp.pop %v1228
        %v1251 = vrcp.pop %v1231
        %v1252 = vrcp.pop %v1234
        %v1253 = vrcp.pop %v1237
        %v1254 = vrcp.pop %v1240
        %v1255 = vrcp.pop %v1243
        %v1256 = vrcp.pop %v1246
        %v1257 = vrcp.pop %v1249
        %v1258 = vmul.f32 %v1211, %v1250
        %v1259 = vmul.f32 %v1213, %v1251
        %v1260 = vmul.f32 %v1215, %v1252
        %v1261 = vmul.f32 %v1217, %v1253
        %v1262 = vmul.f32 %v1219, %v1254
        %v1263 = vmul.f32 %v1221, %v1255
        %v1264 = vmul.f32 %v1223, %v1256
        %v1265 = vmul.f32 %v1225, %v1257
        %v1266 = vpack.c.bf16 %v1258, %v1258
        %v1267 = vpack.c.bf16 %v1259, %v1259
        %v1268 = vpack.c.bf16 %v1260, %v1260
        %v1269 = vpack.c.bf16 %v1261, %v1261
        %v1270 = vpack.c.bf16 %v1262, %v1262
        %v1271 = vpack.c.bf16 %v1263, %v1263
        %v1272 = vpack.c.bf16 %v1264, %v1264
        %v1273 = vpack.c.bf16 %v1265, %v1265
        %vm1274 = vcmask 31744
        %v1276 = vsel %vm1274, %v1266, 0
        %vm1278 = vcmask 1041408
        %v1280 = vsel %vm1278, %v781, 0
        %1282 = vmatprep.subr.bf16.mxu0 0
        %1283 = vmatpush1.bf16.msra.mxu0 %v1280
        %1284 = vmatprep.subr.bf16.mxu0 0
        %1285 = vmatpush1.bf16.msra.mxu0 0
        %1286 = vmatprep.subr.bf16.mxu0 0
        %1287 = vmatpush1.bf16.msra.mxu0 0
        %1288 = vmatprep.subr.bf16.mxu0 0
        %1289 = vmatpush1.bf16.msra.mxu0 0
        %1290 = vmatprep.subr.bf16.mxu0 0
        %1291 = vmatpush1.bf16.msra.mxu0 0
        %1292 = vmatprep.subr.bf16.mxu0 0
        %1293 = vmatpush1.bf16.msra.mxu0 0
        %1294 = vmatprep.subr.bf16.mxu0 0
        %1295 = vmatpush1.bf16.msra.mxu0 0
        %1296 = vmatprep.subr.bf16.mxu0 0
        %1297 = vmatpush1.bf16.msra.mxu0 0
        %1298 = vmatprep.subr.bf16.mxu0 0
        %1299 = vmatpush1.bf16.msra.mxu0 0
        %1300 = vmatprep.subr.bf16.mxu0 0
        %1301 = vmatpush1.bf16.msra.mxu0 0
        %1302 = vmatprep.subr.bf16.mxu0 0
        %1303 = vmatpush1.bf16.msra.mxu0 0
        %1304 = vmatprep.subr.bf16.mxu0 0
        %1305 = vmatpush1.bf16.msra.mxu0 0
        %1306 = vmatprep.subr.bf16.mxu0 0
        %1307 = vmatpush1.bf16.msra.mxu0 0
        %1308 = vmatprep.subr.bf16.mxu0 0
        %1309 = vmatpush1.bf16.msra.mxu0 0
        %1310 = vmatprep.subr.bf16.mxu0 0
        %1311 = vmatpush1.bf16.msra.mxu0 0
        %1312 = vmatprep.subr.bf16.mxu0 0
        %1313 = vmatpush1.bf16.msra.mxu0 0
        %1314 = vmatprep.mubr.bf16.mxu0 0
        %1315 = vmatmul.mubr.bf16.gmra.mrb[0].mxu0 %v1276
        %v1316 = vpop.f32.mrb[0].mxu0
        %v1317 = vadd.f32 0.0, %v1316
        %v1318 = vpop.f32.mrb[0].mxu0
        %v1319 = vpop.f32.mrb[0].mxu0
        %v1320 = vpop.f32.mrb[0].mxu0
        %1321 = vdwg.mxu0
        %v1323 = vsel %vm1274, %v1267, 0
        %v1326 = vsel %vm1278, %v789, 0
        %1328 = vmatprep.subr.bf16.mxu0 0
        %1329 = vmatpush1.bf16.msra.mxu0 %v1326
        %1330 = vmatprep.subr.bf16.mxu0 0
        %1331 = vmatpush1.bf16.msra.mxu0 0
        %1332 = vmatprep.subr.bf16.mxu0 0
        %1333 = vmatpush1.bf16.msra.mxu0 0
        %1334 = vmatprep.subr.bf16.mxu0 0
        %1335 = vmatpush1.bf16.msra.mxu0 0
        %1336 = vmatprep.subr.bf16.mxu0 0
        %1337 = vmatpush1.bf16.msra.mxu0 0
        %1338 = vmatprep.subr.bf16.mxu0 0
        %1339 = vmatpush1.bf16.msra.mxu0 0
        %1340 = vmatprep.subr.bf16.mxu0 0
        %1341 = vmatpush1.bf16.msra.mxu0 0
        %1342 = vmatprep.subr.bf16.mxu0 0
        %1343 = vmatpush1.bf16.msra.mxu0 0
        %1344 = vmatprep.subr.bf16.mxu0 0
        %1345 = vmatpush1.bf16.msra.mxu0 0
        %1346 = vmatprep.subr.bf16.mxu0 0
        %1347 = vmatpush1.bf16.msra.mxu0 0
        %1348 = vmatprep.subr.bf16.mxu0 0
        %1349 = vmatpush1.bf16.msra.mxu0 0
        %1350 = vmatprep.subr.bf16.mxu0 0
        %1351 = vmatpush1.bf16.msra.mxu0 0
        %1352 = vmatprep.subr.bf16.mxu0 0
        %1353 = vmatpush1.bf16.msra.mxu0 0
        %1354 = vmatprep.subr.bf16.mxu0 0
        %1355 = vmatpush1.bf16.msra.mxu0 0
        %1356 = vmatprep.subr.bf16.mxu0 0
        %1357 = vmatpush1.bf16.msra.mxu0 0
        %1358 = vmatprep.subr.bf16.mxu0 0
        %1359 = vmatpush1.bf16.msra.mxu0 0
        %1360 = vmatprep.mubr.bf16.mxu0 0
        %1361 = vmatmul.mubr.bf16.gmra.mrb[0].mxu0 %v1323
        %v1362 = vpop.f32.mrb[0].mxu0
        %v1363 = vadd.f32 0.0, %v1362
        %v1364 = vpop.f32.mrb[0].mxu0
        %v1365 = vpop.f32.mrb[0].mxu0
        %v1366 = vpop.f32.mrb[0].mxu0
        %1367 = vdwg.mxu0
        %v1369 = vsel %vm1274, %v1268, 0
        %v1372 = vsel %vm1278, %v788, 0
        %1374 = vmatprep.subr.bf16.mxu0 0
        %1375 = vmatpush1.bf16.msra.mxu0 %v1372
        %1376 = vmatprep.subr.bf16.mxu0 0
        %1377 = vmatpush1.bf16.msra.mxu0 0
        %1378 = vmatprep.subr.bf16.mxu0 0
        %1379 = vmatpush1.bf16.msra.mxu0 0
        %1380 = vmatprep.subr.bf16.mxu0 0
        %1381 = vmatpush1.bf16.msra.mxu0 0
        %1382 = vmatprep.subr.bf16.mxu0 0
        %1383 = vmatpush1.bf16.msra.mxu0 0
        %1384 = vmatprep.subr.bf16.mxu0 0
        %1385 = vmatpush1.bf16.msra.mxu0 0
        %1386 = vmatprep.subr.bf16.mxu0 0
        %1387 = vmatpush1.bf16.msra.mxu0 0
        %1388 = vmatprep.subr.bf16.mxu0 0
        %1389 = vmatpush1.bf16.msra.mxu0 0
        %1390 = vmatprep.subr.bf16.mxu0 0
        %1391 = vmatpush1.bf16.msra.mxu0 0
        %1392 = vmatprep.subr.bf16.mxu0 0
        %1393 = vmatpush1.bf16.msra.mxu0 0
        %1394 = vmatprep.subr.bf16.mxu0 0
        %1395 = vmatpush1.bf16.msra.mxu0 0
        %1396 = vmatprep.subr.bf16.mxu0 0
        %1397 = vmatpush1.bf16.msra.mxu0 0
        %1398 = vmatprep.subr.bf16.mxu0 0
        %1399 = vmatpush1.bf16.msra.mxu0 0
        %1400 = vmatprep.subr.bf16.mxu0 0
        %1401 = vmatpush1.bf16.msra.mxu0 0
        %1402 = vmatprep.subr.bf16.mxu0 0
        %1403 = vmatpush1.bf16.msra.mxu0 0
        %1404 = vmatprep.subr.bf16.mxu0 0
        %1405 = vmatpush1.bf16.msra.mxu0 0
        %1406 = vmatprep.mubr.bf16.mxu0 0
        %1407 = vmatmul.mubr.bf16.gmra.mrb[0].mxu0 %v1369
        %v1408 = vpop.f32.mrb[0].mxu0
        %v1409 = vadd.f32 0.0, %v1408
        %v1410 = vpop.f32.mrb[0].mxu0
        %v1411 = vpop.f32.mrb[0].mxu0
        %v1412 = vpop.f32.mrb[0].mxu0
        %1413 = vdwg.mxu0
        %v1415 = vsel %vm1274, %v1269, 0
        %v1418 = vsel %vm1278, %v790, 0
        %1420 = vmatprep.subr.bf16.mxu0 0
        %1421 = vmatpush1.bf16.msra.mxu0 %v1418
        %1422 = vmatprep.subr.bf16.mxu0 0
        %1423 = vmatpush1.bf16.msra.mxu0 0
        %1424 = vmatprep.subr.bf16.mxu0 0
        %1425 = vmatpush1.bf16.msra.mxu0 0
        %1426 = vmatprep.subr.bf16.mxu0 0
        %1427 = vmatpush1.bf16.msra.mxu0 0
        %1428 = vmatprep.subr.bf16.mxu0 0
        %1429 = vmatpush1.bf16.msra.mxu0 0
        %1430 = vmatprep.subr.bf16.mxu0 0
        %1431 = vmatpush1.bf16.msra.mxu0 0
        %1432 = vmatprep.subr.bf16.mxu0 0
        %1433 = vmatpush1.bf16.msra.mxu0 0
        %1434 = vmatprep.subr.bf16.mxu0 0
        %1435 = vmatpush1.bf16.msra.mxu0 0
        %1436 = vmatprep.subr.bf16.mxu0 0
        %1437 = vmatpush1.bf16.msra.mxu0 0
        %1438 = vmatprep.subr.bf16.mxu0 0
        %1439 = vmatpush1.bf16.msra.mxu0 0
        %1440 = vmatprep.subr.bf16.mxu0 0
        %1441 = vmatpush1.bf16.msra.mxu0 0
        %1442 = vmatprep.subr.bf16.mxu0 0
        %1443 = vmatpush1.bf16.msra.mxu0 0
        %1444 = vmatprep.subr.bf16.mxu0 0
        %1445 = vmatpush1.bf16.msra.mxu0 0
        %1446 = vmatprep.subr.bf16.mxu0 0
        %1447 = vmatpush1.bf16.msra.mxu0 0
        %1448 = vmatprep.subr.bf16.mxu0 0
        %1449 = vmatpush1.bf16.msra.mxu0 0
        %1450 = vmatprep.subr.bf16.mxu0 0
        %1451 = vmatpush1.bf16.msra.mxu0 0
        %1452 = vmatprep.mubr.bf16.mxu0 0
        %1453 = vmatmul.mubr.bf16.gmra.mrb[0].mxu0 %v1415
        %v1454 = vpop.f32.mrb[0].mxu0
        %v1455 = vadd.f32 0.0, %v1454
        %v1456 = vpop.f32.mrb[0].mxu0
        %v1457 = vpop.f32.mrb[0].mxu0
        %v1458 = vpop.f32.mrb[0].mxu0
        %1459 = vdwg.mxu0
        %v1461 = vsel %vm1274, %v1270, 0
        %v1464 = vsel %vm1278, %v798, 0
        %1466 = vmatprep.subr.bf16.mxu0 0
        %1467 = vmatpush1.bf16.msra.mxu0 %v1464
        %1468 = vmatprep.subr.bf16.mxu0 0
        %1469 = vmatpush1.bf16.msra.mxu0 0
        %1470 = vmatprep.subr.bf16.mxu0 0
        %1471 = vmatpush1.bf16.msra.mxu0 0
        %1472 = vmatprep.subr.bf16.mxu0 0
        %1473 = vmatpush1.bf16.msra.mxu0 0
        %1474 = vmatprep.subr.bf16.mxu0 0
        %1475 = vmatpush1.bf16.msra.mxu0 0
        %1476 = vmatprep.subr.bf16.mxu0 0
        %1477 = vmatpush1.bf16.msra.mxu0 0
        %1478 = vmatprep.subr.bf16.mxu0 0
        %1479 = vmatpush1.bf16.msra.mxu0 0
        %1480 = vmatprep.subr.bf16.mxu0 0
        %1481 = vmatpush1.bf16.msra.mxu0 0
        %1482 = vmatprep.subr.bf16.mxu0 0
        %1483 = vmatpush1.bf16.msra.mxu0 0
        %1484 = vmatprep.subr.bf16.mxu0 0
        %1485 = vmatpush1.bf16.msra.mxu0 0
        %1486 = vmatprep.subr.bf16.mxu0 0
        %1487 = vmatpush1.bf16.msra.mxu0 0
        %1488 = vmatprep.subr.bf16.mxu0 0
        %1489 = vmatpush1.bf16.msra.mxu0 0
        %1490 = vmatprep.subr.bf16.mxu0 0
        %1491 = vmatpush1.bf16.msra.mxu0 0
        %1492 = vmatprep.subr.bf16.mxu0 0
        %1493 = vmatpush1.bf16.msra.mxu0 0
        %1494 = vmatprep.subr.bf16.mxu0 0
        %1495 = vmatpush1.bf16.msra.mxu0 0
        %1496 = vmatprep.subr.bf16.mxu0 0
        %1497 = vmatpush1.bf16.msra.mxu0 0
        %1498 = vmatprep.mubr.bf16.mxu0 0
        %1499 = vmatmul.mubr.bf16.gmra.mrb[0].mxu0 %v1461
        %v1500 = vpop.f32.mrb[0].mxu0
        %v1501 = vadd.f32 0.0, %v1500
        %v1502 = vpop.f32.mrb[0].mxu0
        %v1503 = vpop.f32.mrb[0].mxu0
        %v1504 = vpop.f32.mrb[0].mxu0
        %1505 = vdwg.mxu0
        %v1507 = vsel %vm1274, %v1271, 0
        %v1510 = vsel %vm1278, %v806, 0
        %1512 = vmatprep.subr.bf16.mxu0 0
        %1513 = vmatpush1.bf16.msra.mxu0 %v1510
        %1514 = vmatprep.subr.bf16.mxu0 0
        %1515 = vmatpush1.bf16.msra.mxu0 0
        %1516 = vmatprep.subr.bf16.mxu0 0
        %1517 = vmatpush1.bf16.msra.mxu0 0
        %1518 = vmatprep.subr.bf16.mxu0 0
        %1519 = vmatpush1.bf16.msra.mxu0 0
        %1520 = vmatprep.subr.bf16.mxu0 0
        %1521 = vmatpush1.bf16.msra.mxu0 0
        %1522 = vmatprep.subr.bf16.mxu0 0
        %1523 = vmatpush1.bf16.msra.mxu0 0
        %1524 = vmatprep.subr.bf16.mxu0 0
        %1525 = vmatpush1.bf16.msra.mxu0 0
        %1526 = vmatprep.subr.bf16.mxu0 0
        %1527 = vmatpush1.bf16.msra.mxu0 0
        %1528 = vmatprep.subr.bf16.mxu0 0
        %1529 = vmatpush1.bf16.msra.mxu0 0
        %1530 = vmatprep.subr.bf16.mxu0 0
        %1531 = vmatpush1.bf16.msra.mxu0 0
        %1532 = vmatprep.subr.bf16.mxu0 0
        %1533 = vmatpush1.bf16.msra.mxu0 0
        %1534 = vmatprep.subr.bf16.mxu0 0
        %1535 = vmatpush1.bf16.msra.mxu0 0
        %1536 = vmatprep.subr.bf16.mxu0 0
        %1537 = vmatpush1.bf16.msra.mxu0 0
        %1538 = vmatprep.subr.bf16.mxu0 0
        %1539 = vmatpush1.bf16.msra.mxu0 0
        %1540 = vmatprep.subr.bf16.mxu0 0
        %1541 = vmatpush1.bf16.msra.mxu0 0
        %1542 = vmatprep.subr.bf16.mxu0 0
        %1543 = vmatpush1.bf16.msra.mxu0 0
        %1544 = vmatprep.mubr.bf16.mxu0 0
        %1545 = vmatmul.mubr.bf16.gmra.mrb[0].mxu0 %v1507
        %v1546 = vpop.f32.mrb[0].mxu0
        %v1547 = vadd.f32 0.0, %v1546
        %v1548 = vpop.f32.mrb[0].mxu0
        %v1549 = vpop.f32.mrb[0].mxu0
        %v1550 = vpop.f32.mrb[0].mxu0
        %1551 = vdwg.mxu0
        %v1553 = vsel %vm1274, %v1272, 0
        %v1556 = vsel %vm1278, %v805, 0
        %1558 = vmatprep.subr.bf16.mxu0 0
        %1559 = vmatpush1.bf16.msra.mxu0 %v1556
        %1560 = vmatprep.subr.bf16.mxu0 0
        %1561 = vmatpush1.bf16.msra.mxu0 0
        %1562 = vmatprep.subr.bf16.mxu0 0
        %1563 = vmatpush1.bf16.msra.mxu0 0
        %1564 = vmatprep.subr.bf16.mxu0 0
        %1565 = vmatpush1.bf16.msra.mxu0 0
        %1566 = vmatprep.subr.bf16.mxu0 0
        %1567 = vmatpush1.bf16.msra.mxu0 0
        %1568 = vmatprep.subr.bf16.mxu0 0
        %1569 = vmatpush1.bf16.msra.mxu0 0
        %1570 = vmatprep.subr.bf16.mxu0 0
        %1571 = vmatpush1.bf16.msra.mxu0 0
        %1572 = vmatprep.subr.bf16.mxu0 0
        %1573 = vmatpush1.bf16.msra.mxu0 0
        %1574 = vmatprep.subr.bf16.mxu0 0
        %1575 = vmatpush1.bf16.msra.mxu0 0
        %1576 = vmatprep.subr.bf16.mxu0 0
        %1577 = vmatpush1.bf16.msra.mxu0 0
        %1578 = vmatprep.subr.bf16.mxu0 0
        %1579 = vmatpush1.bf16.msra.mxu0 0
        %1580 = vmatprep.subr.bf16.mxu0 0
        %1581 = vmatpush1.bf16.msra.mxu0 0
        %1582 = vmatprep.subr.bf16.mxu0 0
        %1583 = vmatpush1.bf16.msra.mxu0 0
        %1584 = vmatprep.subr.bf16.mxu0 0
        %1585 = vmatpush1.bf16.msra.mxu0 0
        %1586 = vmatprep.subr.bf16.mxu0 0
        %1587 = vmatpush1.bf16.msra.mxu0 0
        %1588 = vmatprep.subr.bf16.mxu0 0
        %1589 = vmatpush1.bf16.msra.mxu0 0
        %1590 = vmatprep.mubr.bf16.mxu0 0
        %1591 = vmatmul.mubr.bf16.gmra.mrb[0].mxu0 %v1553
        %v1592 = vpop.f32.mrb[0].mxu0
        %v1593 = vadd.f32 0.0, %v1592
        %v1594 = vpop.f32.mrb[0].mxu0
        %v1595 = vpop.f32.mrb[0].mxu0
        %v1596 = vpop.f32.mrb[0].mxu0
        %1597 = vdwg.mxu0
        %v1599 = vsel %vm1274, %v1273, 0
        %v1602 = vsel %vm1278, %v807, 0
        %1604 = vmatprep.subr.bf16.mxu0 0
        %1605 = vmatpush1.bf16.msra.mxu0 %v1602
        %1606 = vmatprep.subr.bf16.mxu0 0
        %1607 = vmatpush1.bf16.msra.mxu0 0
        %1608 = vmatprep.subr.bf16.mxu0 0
        %1609 = vmatpush1.bf16.msra.mxu0 0
        %1610 = vmatprep.subr.bf16.mxu0 0
        %1611 = vmatpush1.bf16.msra.mxu0 0
        %1612 = vmatprep.subr.bf16.mxu0 0
        %1613 = vmatpush1.bf16.msra.mxu0 0
        %1614 = vmatprep.subr.bf16.mxu0 0
        %1615 = vmatpush1.bf16.msra.mxu0 0
        %1616 = vmatprep.subr.bf16.mxu0 0
        %1617 = vmatpush1.bf16.msra.mxu0 0
        %1618 = vmatprep.subr.bf16.mxu0 0
        %1619 = vmatpush1.bf16.msra.mxu0 0
        %1620 = vmatprep.subr.bf16.mxu0 0
        %1621 = vmatpush1.bf16.msra.mxu0 0
        %1622 = vmatprep.subr.bf16.mxu0 0
        %1623 = vmatpush1.bf16.msra.mxu0 0
        %1624 = vmatprep.subr.bf16.mxu0 0
        %1625 = vmatpush1.bf16.msra.mxu0 0
        %1626 = vmatprep.subr.bf16.mxu0 0
        %1627 = vmatpush1.bf16.msra.mxu0 0
        %1628 = vmatprep.subr.bf16.mxu0 0
        %1629 = vmatpush1.bf16.msra.mxu0 0
        %1630 = vmatprep.subr.bf16.mxu0 0
        %1631 = vmatpush1.bf16.msra.mxu0 0
        %1632 = vmatprep.subr.bf16.mxu0 0
        %1633 = vmatpush1.bf16.msra.mxu0 0
        %1634 = vmatprep.subr.bf16.mxu0 0
        %1635 = vmatpush1.bf16.msra.mxu0 0
        %1636 = vmatprep.mubr.bf16.mxu0 0
        %1637 = vmatmul.mubr.bf16.gmra.mrb[0].mxu0 %v1599
        %v1638 = vpop.f32.mrb[0].mxu0
        %v1639 = vadd.f32 0.0, %v1638
        %v1640 = vpop.f32.mrb[0].mxu0
        %v1641 = vpop.f32.mrb[0].mxu0
        %v1642 = vpop.f32.mrb[0].mxu0
        %1643 = vdwg.mxu0
        %v1644 = vpack.c.bf16 %v1317, %v1317
        %v1645 = vpack.c.bf16 %v1363, %v1363
        %v1646 = vpack.c.bf16 %v1409, %v1409
        %v1647 = vpack.c.bf16 %v1455, %v1455
        %v1648 = vpack.c.bf16 %v1501, %v1501
        %v1649 = vpack.c.bf16 %v1547, %v1547
        %v1650 = vpack.c.bf16 %v1593, %v1593
        %v1651 = vpack.c.bf16 %v1639, %v1639
        %v1653 = vunpack.c.l.s4 1983009808
        %v1654 = vunpack.c.0.s8 %v1653
        %v1655 = vlaneseq
        %v1656 = vshrl.u32 %v1655, 7
        %v1657 = vsub.s32 %v1654, %v1656
        %v1658 = vrot.slane %v705, %v1657
        %1659 = vrot.lane.b32.xlu0 %v1658, 120
        %v1660 = vpop.permute.xlu0 %1659
        %v1662 = vunpack.c.l.s4 1983009808
        %v1663 = vunpack.c.0.s8 %v1662
        %v1664 = vlaneseq
        %v1665 = vshrl.u32 %v1664, 7
        %v1666 = vsub.s32 %v1663, %v1665
        %v1667 = vrot.slane %v743, %v1666
        %1668 = vrot.lane.b32.xlu0 %v1667, 120
        %v1669 = vpop.permute.xlu0 %1668
        %v1671 = vsel %vm808, %v1660, 0
        %v1674 = vsel %vm808, %v1669, 0
        %1676 = vmatprep.subr.bf16.mxu0 0
        %1677 = vmatpush1.bf16.xpose.msra.mxu0 %v1674
        %1678 = vmatprep.subr.bf16.mxu0 0
        %1679 = vmatpush1.bf16.xpose.msra.mxu0 0
        %1680 = vmatprep.subr.bf16.mxu0 0
        %1681 = vmatpush1.bf16.xpose.msra.mxu0 0
        %1682 = vmatprep.subr.bf16.mxu0 0
        %1683 = vmatpush1.bf16.xpose.msra.mxu0 0
        %1684 = vmatprep.subr.bf16.mxu0 0
        %1685 = vmatpush1.bf16.xpose.msra.mxu0 0
        %1686 = vmatprep.subr.bf16.mxu0 0
        %1687 = vmatpush1.bf16.xpose.msra.mxu0 0
        %1688 = vmatprep.subr.bf16.mxu0 0
        %1689 = vmatpush1.bf16.xpose.msra.mxu0 0
        %1690 = vmatprep.subr.bf16.mxu0 0
        %1691 = vmatpush1.bf16.xpose.msra.mxu0 0
        %1692 = vmatprep.subr.bf16.mxu0 0
        %1693 = vmatpush1.bf16.xpose.msra.mxu0 0
        %1694 = vmatprep.subr.bf16.mxu0 0
        %1695 = vmatpush1.bf16.xpose.msra.mxu0 0
        %1696 = vmatprep.subr.bf16.mxu0 0
        %1697 = vmatpush1.bf16.xpose.msra.mxu0 0
        %1698 = vmatprep.subr.bf16.mxu0 0
        %1699 = vmatpush1.bf16.xpose.msra.mxu0 0
        %1700 = vmatprep.subr.bf16.mxu0 0
        %1701 = vmatpush1.bf16.xpose.msra.mxu0 0
        %1702 = vmatprep.subr.bf16.mxu0 0
        %1703 = vmatpush1.bf16.xpose.msra.mxu0 0
        %1704 = vmatprep.subr.bf16.mxu0 0
        %1705 = vmatpush1.bf16.xpose.msra.mxu0 0
        %1706 = vmatprep.subr.bf16.mxu0 0
        %1707 = vmatpush1.bf16.xpose.msra.mxu0 0
        %1708 = vmatprep.mubr.bf16.mxu0 0
        %1709 = vmatmul.mubr.bf16.gmra.mrb[0].mxu0 %v1671
        %v1710 = vpop.f32.mrb[0].mxu0
        %v1711 = vadd.f32 0.0, %v1710
        %v1712 = vpop.f32.mrb[0].mxu0
        %v1713 = vpop.f32.mrb[0].mxu0
        %v1714 = vpop.f32.mrb[0].mxu0
        %1715 = vdwg.mxu0
        %v1717 = vunpack.c.l.s4 1983009808
        %v1718 = vunpack.c.0.s8 %v1717
        %v1719 = vlaneseq
        %v1720 = vshrl.u32 %v1719, 7
        %v1721 = vsub.s32 %v1718, %v1720
        %v1722 = vrot.slane %v713, %v1721
        %1723 = vrot.lane.b32.xlu0 %v1722, 120
        %v1724 = vpop.permute.xlu0 %1723
        %v1726 = vunpack.c.l.s4 1983009808
        %v1727 = vunpack.c.0.s8 %v1726
        %v1728 = vlaneseq
        %v1729 = vshrl.u32 %v1728, 7
        %v1730 = vsub.s32 %v1727, %v1729
        %v1731 = vrot.slane %v751, %v1730
        %1732 = vrot.lane.b32.xlu0 %v1731, 120
        %v1733 = vpop.permute.xlu0 %1732
        %v1735 = vsel %vm808, %v1724, 0
        %v1738 = vsel %vm808, %v1733, 0
        %1740 = vmatprep.subr.bf16.mxu0 0
        %1741 = vmatpush1.bf16.xpose.msra.mxu0 %v1738
        %1742 = vmatprep.subr.bf16.mxu0 0
        %1743 = vmatpush1.bf16.xpose.msra.mxu0 0
        %1744 = vmatprep.subr.bf16.mxu0 0
        %1745 = vmatpush1.bf16.xpose.msra.mxu0 0
        %1746 = vmatprep.subr.bf16.mxu0 0
        %1747 = vmatpush1.bf16.xpose.msra.mxu0 0
        %1748 = vmatprep.subr.bf16.mxu0 0
        %1749 = vmatpush1.bf16.xpose.msra.mxu0 0
        %1750 = vmatprep.subr.bf16.mxu0 0
        %1751 = vmatpush1.bf16.xpose.msra.mxu0 0
        %1752 = vmatprep.subr.bf16.mxu0 0
        %1753 = vmatpush1.bf16.xpose.msra.mxu0 0
        %1754 = vmatprep.subr.bf16.mxu0 0
        %1755 = vmatpush1.bf16.xpose.msra.mxu0 0
        %1756 = vmatprep.subr.bf16.mxu0 0
        %1757 = vmatpush1.bf16.xpose.msra.mxu0 0
        %1758 = vmatprep.subr.bf16.mxu0 0
        %1759 = vmatpush1.bf16.xpose.msra.mxu0 0
        %1760 = vmatprep.subr.bf16.mxu0 0
        %1761 = vmatpush1.bf16.xpose.msra.mxu0 0
        %1762 = vmatprep.subr.bf16.mxu0 0
        %1763 = vmatpush1.bf16.xpose.msra.mxu0 0
        %1764 = vmatprep.subr.bf16.mxu0 0
        %1765 = vmatpush1.bf16.xpose.msra.mxu0 0
        %1766 = vmatprep.subr.bf16.mxu0 0
        %1767 = vmatpush1.bf16.xpose.msra.mxu0 0
        %1768 = vmatprep.subr.bf16.mxu0 0
        %1769 = vmatpush1.bf16.xpose.msra.mxu0 0
        %1770 = vmatprep.subr.bf16.mxu0 0
        %1771 = vmatpush1.bf16.xpose.msra.mxu0 0
        %1772 = vmatprep.mubr.bf16.mxu0 0
        %1773 = vmatmul.mubr.bf16.gmra.mrb[0].mxu0 %v1735
        %v1774 = vpop.f32.mrb[0].mxu0
        %v1775 = vadd.f32 0.0, %v1774
        %v1776 = vpop.f32.mrb[0].mxu0
        %v1777 = vpop.f32.mrb[0].mxu0
        %v1778 = vpop.f32.mrb[0].mxu0
        %1779 = vdwg.mxu0
        %v1781 = vunpack.c.l.s4 1983009808
        %v1782 = vunpack.c.0.s8 %v1781
        %v1783 = vlaneseq
        %v1784 = vshrl.u32 %v1783, 7
        %v1785 = vsub.s32 %v1782, %v1784
        %v1786 = vrot.slane %v712, %v1785
        %1787 = vrot.lane.b32.xlu0 %v1786, 120
        %v1788 = vpop.permute.xlu0 %1787
        %v1790 = vunpack.c.l.s4 1983009808
        %v1791 = vunpack.c.0.s8 %v1790
        %v1792 = vlaneseq
        %v1793 = vshrl.u32 %v1792, 7
        %v1794 = vsub.s32 %v1791, %v1793
        %v1795 = vrot.slane %v750, %v1794
        %1796 = vrot.lane.b32.xlu0 %v1795, 120
        %v1797 = vpop.permute.xlu0 %1796
        %v1799 = vsel %vm808, %v1788, 0
        %v1802 = vsel %vm808, %v1797, 0
        %1804 = vmatprep.subr.bf16.mxu0 0
        %1805 = vmatpush1.bf16.xpose.msra.mxu0 %v1802
        %1806 = vmatprep.subr.bf16.mxu0 0
        %1807 = vmatpush1.bf16.xpose.msra.mxu0 0
        %1808 = vmatprep.subr.bf16.mxu0 0
        %1809 = vmatpush1.bf16.xpose.msra.mxu0 0
        %1810 = vmatprep.subr.bf16.mxu0 0
        %1811 = vmatpush1.bf16.xpose.msra.mxu0 0
        %1812 = vmatprep.subr.bf16.mxu0 0
        %1813 = vmatpush1.bf16.xpose.msra.mxu0 0
        %1814 = vmatprep.subr.bf16.mxu0 0
        %1815 = vmatpush1.bf16.xpose.msra.mxu0 0
        %1816 = vmatprep.subr.bf16.mxu0 0
        %1817 = vmatpush1.bf16.xpose.msra.mxu0 0
        %1818 = vmatprep.subr.bf16.mxu0 0
        %1819 = vmatpush1.bf16.xpose.msra.mxu0 0
        %1820 = vmatprep.subr.bf16.mxu0 0
        %1821 = vmatpush1.bf16.xpose.msra.mxu0 0
        %1822 = vmatprep.subr.bf16.mxu0 0
        %1823 = vmatpush1.bf16.xpose.msra.mxu0 0
        %1824 = vmatprep.subr.bf16.mxu0 0
        %1825 = vmatpush1.bf16.xpose.msra.mxu0 0
        %1826 = vmatprep.subr.bf16.mxu0 0
        %1827 = vmatpush1.bf16.xpose.msra.mxu0 0
        %1828 = vmatprep.subr.bf16.mxu0 0
        %1829 = vmatpush1.bf16.xpose.msra.mxu0 0
        %1830 = vmatprep.subr.bf16.mxu0 0
        %1831 = vmatpush1.bf16.xpose.msra.mxu0 0
        %1832 = vmatprep.subr.bf16.mxu0 0
        %1833 = vmatpush1.bf16.xpose.msra.mxu0 0
        %1834 = vmatprep.subr.bf16.mxu0 0
        %1835 = vmatpush1.bf16.xpose.msra.mxu0 0
        %1836 = vmatprep.mubr.bf16.mxu0 0
        %1837 = vmatmul.mubr.bf16.gmra.mrb[0].mxu0 %v1799
        %v1838 = vpop.f32.mrb[0].mxu0
        %v1839 = vadd.f32 0.0, %v1838
        %v1840 = vpop.f32.mrb[0].mxu0
        %v1841 = vpop.f32.mrb[0].mxu0
        %v1842 = vpop.f32.mrb[0].mxu0
        %1843 = vdwg.mxu0
        %v1845 = vunpack.c.l.s4 1983009808
        %v1846 = vunpack.c.0.s8 %v1845
        %v1847 = vlaneseq
        %v1848 = vshrl.u32 %v1847, 7
        %v1849 = vsub.s32 %v1846, %v1848
        %v1850 = vrot.slane %v714, %v1849
        %1851 = vrot.lane.b32.xlu0 %v1850, 120
        %v1852 = vpop.permute.xlu0 %1851
        %v1854 = vunpack.c.l.s4 1983009808
        %v1855 = vunpack.c.0.s8 %v1854
        %v1856 = vlaneseq
        %v1857 = vshrl.u32 %v1856, 7
        %v1858 = vsub.s32 %v1855, %v1857
        %v1859 = vrot.slane %v752, %v1858
        %1860 = vrot.lane.b32.xlu0 %v1859, 120
        %v1861 = vpop.permute.xlu0 %1860
        %v1863 = vsel %vm808, %v1852, 0
        %v1866 = vsel %vm808, %v1861, 0
        %1868 = vmatprep.subr.bf16.mxu0 0
        %1869 = vmatpush1.bf16.xpose.msra.mxu0 %v1866
        %1870 = vmatprep.subr.bf16.mxu0 0
        %1871 = vmatpush1.bf16.xpose.msra.mxu0 0
        %1872 = vmatprep.subr.bf16.mxu0 0
        %1873 = vmatpush1.bf16.xpose.msra.mxu0 0
        %1874 = vmatprep.subr.bf16.mxu0 0
        %1875 = vmatpush1.bf16.xpose.msra.mxu0 0
        %1876 = vmatprep.subr.bf16.mxu0 0
        %1877 = vmatpush1.bf16.xpose.msra.mxu0 0
        %1878 = vmatprep.subr.bf16.mxu0 0
        %1879 = vmatpush1.bf16.xpose.msra.mxu0 0
        %1880 = vmatprep.subr.bf16.mxu0 0
        %1881 = vmatpush1.bf16.xpose.msra.mxu0 0
        %1882 = vmatprep.subr.bf16.mxu0 0
        %1883 = vmatpush1.bf16.xpose.msra.mxu0 0
        %1884 = vmatprep.subr.bf16.mxu0 0
        %1885 = vmatpush1.bf16.xpose.msra.mxu0 0
        %1886 = vmatprep.subr.bf16.mxu0 0
        %1887 = vmatpush1.bf16.xpose.msra.mxu0 0
        %1888 = vmatprep.subr.bf16.mxu0 0
        %1889 = vmatpush1.bf16.xpose.msra.mxu0 0
        %1890 = vmatprep.subr.bf16.mxu0 0
        %1891 = vmatpush1.bf16.xpose.msra.mxu0 0
        %1892 = vmatprep.subr.bf16.mxu0 0
        %1893 = vmatpush1.bf16.xpose.msra.mxu0 0
        %1894 = vmatprep.subr.bf16.mxu0 0
        %1895 = vmatpush1.bf16.xpose.msra.mxu0 0
        %1896 = vmatprep.subr.bf16.mxu0 0
        %1897 = vmatpush1.bf16.xpose.msra.mxu0 0
        %1898 = vmatprep.subr.bf16.mxu0 0
        %1899 = vmatpush1.bf16.xpose.msra.mxu0 0
        %1900 = vmatprep.mubr.bf16.mxu0 0
        %1901 = vmatmul.mubr.bf16.gmra.mrb[0].mxu0 %v1863
        %v1902 = vpop.f32.mrb[0].mxu0
        %v1903 = vadd.f32 0.0, %v1902
        %v1904 = vpop.f32.mrb[0].mxu0
        %v1905 = vpop.f32.mrb[0].mxu0
        %v1906 = vpop.f32.mrb[0].mxu0
        %1907 = vdwg.mxu0
        %v1909 = vunpack.c.l.s4 1983009808
        %v1910 = vunpack.c.0.s8 %v1909
        %v1911 = vlaneseq
        %v1912 = vshrl.u32 %v1911, 7
        %v1913 = vsub.s32 %v1910, %v1912
        %v1914 = vrot.slane %v722, %v1913
        %1915 = vrot.lane.b32.xlu0 %v1914, 120
        %v1916 = vpop.permute.xlu0 %1915
        %v1918 = vunpack.c.l.s4 1983009808
        %v1919 = vunpack.c.0.s8 %v1918
        %v1920 = vlaneseq
        %v1921 = vshrl.u32 %v1920, 7
        %v1922 = vsub.s32 %v1919, %v1921
        %v1923 = vrot.slane %v760, %v1922
        %1924 = vrot.lane.b32.xlu0 %v1923, 120
        %v1925 = vpop.permute.xlu0 %1924
        %v1927 = vsel %vm808, %v1916, 0
        %v1930 = vsel %vm808, %v1925, 0
        %1932 = vmatprep.subr.bf16.mxu0 0
        %1933 = vmatpush1.bf16.xpose.msra.mxu0 %v1930
        %1934 = vmatprep.subr.bf16.mxu0 0
        %1935 = vmatpush1.bf16.xpose.msra.mxu0 0
        %1936 = vmatprep.subr.bf16.mxu0 0
        %1937 = vmatpush1.bf16.xpose.msra.mxu0 0
        %1938 = vmatprep.subr.bf16.mxu0 0
        %1939 = vmatpush1.bf16.xpose.msra.mxu0 0
        %1940 = vmatprep.subr.bf16.mxu0 0
        %1941 = vmatpush1.bf16.xpose.msra.mxu0 0
        %1942 = vmatprep.subr.bf16.mxu0 0
        %1943 = vmatpush1.bf16.xpose.msra.mxu0 0
        %1944 = vmatprep.subr.bf16.mxu0 0
        %1945 = vmatpush1.bf16.xpose.msra.mxu0 0
        %1946 = vmatprep.subr.bf16.mxu0 0
        %1947 = vmatpush1.bf16.xpose.msra.mxu0 0
        %1948 = vmatprep.subr.bf16.mxu0 0
        %1949 = vmatpush1.bf16.xpose.msra.mxu0 0
        %1950 = vmatprep.subr.bf16.mxu0 0
        %1951 = vmatpush1.bf16.xpose.msra.mxu0 0
        %1952 = vmatprep.subr.bf16.mxu0 0
        %1953 = vmatpush1.bf16.xpose.msra.mxu0 0
        %1954 = vmatprep.subr.bf16.mxu0 0
        %1955 = vmatpush1.bf16.xpose.msra.mxu0 0
        %1956 = vmatprep.subr.bf16.mxu0 0
        %1957 = vmatpush1.bf16.xpose.msra.mxu0 0
        %1958 = vmatprep.subr.bf16.mxu0 0
        %1959 = vmatpush1.bf16.xpose.msra.mxu0 0
        %1960 = vmatprep.subr.bf16.mxu0 0
        %1961 = vmatpush1.bf16.xpose.msra.mxu0 0
        %1962 = vmatprep.subr.bf16.mxu0 0
        %1963 = vmatpush1.bf16.xpose.msra.mxu0 0
        %1964 = vmatprep.mubr.bf16.mxu0 0
        %1965 = vmatmul.mubr.bf16.gmra.mrb[0].mxu0 %v1927
        %v1966 = vpop.f32.mrb[0].mxu0
        %v1967 = vadd.f32 0.0, %v1966
        %v1968 = vpop.f32.mrb[0].mxu0
        %v1969 = vpop.f32.mrb[0].mxu0
        %v1970 = vpop.f32.mrb[0].mxu0
        %1971 = vdwg.mxu0
        %v1973 = vunpack.c.l.s4 1983009808
        %v1974 = vunpack.c.0.s8 %v1973
        %v1975 = vlaneseq
        %v1976 = vshrl.u32 %v1975, 7
        %v1977 = vsub.s32 %v1974, %v1976
        %v1978 = vrot.slane %v730, %v1977
        %1979 = vrot.lane.b32.xlu0 %v1978, 120
        %v1980 = vpop.permute.xlu0 %1979
        %v1982 = vunpack.c.l.s4 1983009808
        %v1983 = vunpack.c.0.s8 %v1982
        %v1984 = vlaneseq
        %v1985 = vshrl.u32 %v1984, 7
        %v1986 = vsub.s32 %v1983, %v1985
        %v1987 = vrot.slane %v768, %v1986
        %1988 = vrot.lane.b32.xlu0 %v1987, 120
        %v1989 = vpop.permute.xlu0 %1988
        %v1991 = vsel %vm808, %v1980, 0
        %v1994 = vsel %vm808, %v1989, 0
        %1996 = vmatprep.subr.bf16.mxu0 0
        %1997 = vmatpush1.bf16.xpose.msra.mxu0 %v1994
        %1998 = vmatprep.subr.bf16.mxu0 0
        %1999 = vmatpush1.bf16.xpose.msra.mxu0 0
        %2000 = vmatprep.subr.bf16.mxu0 0
        %2001 = vmatpush1.bf16.xpose.msra.mxu0 0
        %2002 = vmatprep.subr.bf16.mxu0 0
        %2003 = vmatpush1.bf16.xpose.msra.mxu0 0
        %2004 = vmatprep.subr.bf16.mxu0 0
        %2005 = vmatpush1.bf16.xpose.msra.mxu0 0
        %2006 = vmatprep.subr.bf16.mxu0 0
        %2007 = vmatpush1.bf16.xpose.msra.mxu0 0
        %2008 = vmatprep.subr.bf16.mxu0 0
        %2009 = vmatpush1.bf16.xpose.msra.mxu0 0
        %2010 = vmatprep.subr.bf16.mxu0 0
        %2011 = vmatpush1.bf16.xpose.msra.mxu0 0
        %2012 = vmatprep.subr.bf16.mxu0 0
        %2013 = vmatpush1.bf16.xpose.msra.mxu0 0
        %2014 = vmatprep.subr.bf16.mxu0 0
        %2015 = vmatpush1.bf16.xpose.msra.mxu0 0
        %2016 = vmatprep.subr.bf16.mxu0 0
        %2017 = vmatpush1.bf16.xpose.msra.mxu0 0
        %2018 = vmatprep.subr.bf16.mxu0 0
        %2019 = vmatpush1.bf16.xpose.msra.mxu0 0
        %2020 = vmatprep.subr.bf16.mxu0 0
        %2021 = vmatpush1.bf16.xpose.msra.mxu0 0
        %2022 = vmatprep.subr.bf16.mxu0 0
        %2023 = vmatpush1.bf16.xpose.msra.mxu0 0
        %2024 = vmatprep.subr.bf16.mxu0 0
        %2025 = vmatpush1.bf16.xpose.msra.mxu0 0
        %2026 = vmatprep.subr.bf16.mxu0 0
        %2027 = vmatpush1.bf16.xpose.msra.mxu0 0
        %2028 = vmatprep.mubr.bf16.mxu0 0
        %2029 = vmatmul.mubr.bf16.gmra.mrb[0].mxu0 %v1991
        %v2030 = vpop.f32.mrb[0].mxu0
        %v2031 = vadd.f32 0.0, %v2030
        %v2032 = vpop.f32.mrb[0].mxu0
        %v2033 = vpop.f32.mrb[0].mxu0
        %v2034 = vpop.f32.mrb[0].mxu0
        %2035 = vdwg.mxu0
        %v2037 = vunpack.c.l.s4 1983009808
        %v2038 = vunpack.c.0.s8 %v2037
        %v2039 = vlaneseq
        %v2040 = vshrl.u32 %v2039, 7
        %v2041 = vsub.s32 %v2038, %v2040
        %v2042 = vrot.slane %v729, %v2041
        %2043 = vrot.lane.b32.xlu0 %v2042, 120
        %v2044 = vpop.permute.xlu0 %2043
        %v2046 = vunpack.c.l.s4 1983009808
        %v2047 = vunpack.c.0.s8 %v2046
        %v2048 = vlaneseq
        %v2049 = vshrl.u32 %v2048, 7
        %v2050 = vsub.s32 %v2047, %v2049
        %v2051 = vrot.slane %v767, %v2050
        %2052 = vrot.lane.b32.xlu0 %v2051, 120
        %v2053 = vpop.permute.xlu0 %2052
        %v2055 = vsel %vm808, %v2044, 0
        %v2058 = vsel %vm808, %v2053, 0
        %2060 = vmatprep.subr.bf16.mxu0 0
        %2061 = vmatpush1.bf16.xpose.msra.mxu0 %v2058
        %2062 = vmatprep.subr.bf16.mxu0 0
        %2063 = vmatpush1.bf16.xpose.msra.mxu0 0
        %2064 = vmatprep.subr.bf16.mxu0 0
        %2065 = vmatpush1.bf16.xpose.msra.mxu0 0
        %2066 = vmatprep.subr.bf16.mxu0 0
        %2067 = vmatpush1.bf16.xpose.msra.mxu0 0
        %2068 = vmatprep.subr.bf16.mxu0 0
        %2069 = vmatpush1.bf16.xpose.msra.mxu0 0
        %2070 = vmatprep.subr.bf16.mxu0 0
        %2071 = vmatpush1.bf16.xpose.msra.mxu0 0
        %2072 = vmatprep.subr.bf16.mxu0 0
        %2073 = vmatpush1.bf16.xpose.msra.mxu0 0
        %2074 = vmatprep.subr.bf16.mxu0 0
        %2075 = vmatpush1.bf16.xpose.msra.mxu0 0
        %2076 = vmatprep.subr.bf16.mxu0 0
        %2077 = vmatpush1.bf16.xpose.msra.mxu0 0
        %2078 = vmatprep.subr.bf16.mxu0 0
        %2079 = vmatpush1.bf16.xpose.msra.mxu0 0
        %2080 = vmatprep.subr.bf16.mxu0 0
        %2081 = vmatpush1.bf16.xpose.msra.mxu0 0
        %2082 = vmatprep.subr.bf16.mxu0 0
        %2083 = vmatpush1.bf16.xpose.msra.mxu0 0
        %2084 = vmatprep.subr.bf16.mxu0 0
        %2085 = vmatpush1.bf16.xpose.msra.mxu0 0
        %2086 = vmatprep.subr.bf16.mxu0 0
        %2087 = vmatpush1.bf16.xpose.msra.mxu0 0
        %2088 = vmatprep.subr.bf16.mxu0 0
        %2089 = vmatpush1.bf16.xpose.msra.mxu0 0
        %2090 = vmatprep.subr.bf16.mxu0 0
        %2091 = vmatpush1.bf16.xpose.msra.mxu0 0
        %2092 = vmatprep.mubr.bf16.mxu0 0
        %2093 = vmatmul.mubr.bf16.gmra.mrb[0].mxu0 %v2055
        %v2094 = vpop.f32.mrb[0].mxu0
        %v2095 = vadd.f32 0.0, %v2094
        %v2096 = vpop.f32.mrb[0].mxu0
        %v2097 = vpop.f32.mrb[0].mxu0
        %v2098 = vpop.f32.mrb[0].mxu0
        %2099 = vdwg.mxu0
        %v2101 = vunpack.c.l.s4 1983009808
        %v2102 = vunpack.c.0.s8 %v2101
        %v2103 = vlaneseq
        %v2104 = vshrl.u32 %v2103, 7
        %v2105 = vsub.s32 %v2102, %v2104
        %v2106 = vrot.slane %v731, %v2105
        %2107 = vrot.lane.b32.xlu0 %v2106, 120
        %v2108 = vpop.permute.xlu0 %2107
        %v2110 = vunpack.c.l.s4 1983009808
        %v2111 = vunpack.c.0.s8 %v2110
        %v2112 = vlaneseq
        %v2113 = vshrl.u32 %v2112, 7
        %v2114 = vsub.s32 %v2111, %v2113
        %v2115 = vrot.slane %v769, %v2114
        %2116 = vrot.lane.b32.xlu0 %v2115, 120
        %v2117 = vpop.permute.xlu0 %2116
        %v2119 = vsel %vm808, %v2108, 0
        %v2122 = vsel %vm808, %v2117, 0
        %2124 = vmatprep.subr.bf16.mxu0 0
        %2125 = vmatpush1.bf16.xpose.msra.mxu0 %v2122
        %2126 = vmatprep.subr.bf16.mxu0 0
        %2127 = vmatpush1.bf16.xpose.msra.mxu0 0
        %2128 = vmatprep.subr.bf16.mxu0 0
        %2129 = vmatpush1.bf16.xpose.msra.mxu0 0
        %2130 = vmatprep.subr.bf16.mxu0 0
        %2131 = vmatpush1.bf16.xpose.msra.mxu0 0
        %2132 = vmatprep.subr.bf16.mxu0 0
        %2133 = vmatpush1.bf16.xpose.msra.mxu0 0
        %2134 = vmatprep.subr.bf16.mxu0 0
        %2135 = vmatpush1.bf16.xpose.msra.mxu0 0
        %2136 = vmatprep.subr.bf16.mxu0 0
        %2137 = vmatpush1.bf16.xpose.msra.mxu0 0
        %2138 = vmatprep.subr.bf16.mxu0 0
        %2139 = vmatpush1.bf16.xpose.msra.mxu0 0
        %2140 = vmatprep.subr.bf16.mxu0 0
        %2141 = vmatpush1.bf16.xpose.msra.mxu0 0
        %2142 = vmatprep.subr.bf16.mxu0 0
        %2143 = vmatpush1.bf16.xpose.msra.mxu0 0
        %2144 = vmatprep.subr.bf16.mxu0 0
        %2145 = vmatpush1.bf16.xpose.msra.mxu0 0
        %2146 = vmatprep.subr.bf16.mxu0 0
        %2147 = vmatpush1.bf16.xpose.msra.mxu0 0
        %2148 = vmatprep.subr.bf16.mxu0 0
        %2149 = vmatpush1.bf16.xpose.msra.mxu0 0
        %2150 = vmatprep.subr.bf16.mxu0 0
        %2151 = vmatpush1.bf16.xpose.msra.mxu0 0
        %2152 = vmatprep.subr.bf16.mxu0 0
        %2153 = vmatpush1.bf16.xpose.msra.mxu0 0
        %2154 = vmatprep.subr.bf16.mxu0 0
        %2155 = vmatpush1.bf16.xpose.msra.mxu0 0
        %2156 = vmatprep.mubr.bf16.mxu0 0
        %2157 = vmatmul.mubr.bf16.gmra.mrb[0].mxu0 %v2119
        %v2158 = vpop.f32.mrb[0].mxu0
        %v2159 = vadd.f32 0.0, %v2158
        %v2160 = vpop.f32.mrb[0].mxu0
        %v2161 = vpop.f32.mrb[0].mxu0
        %v2162 = vpop.f32.mrb[0].mxu0
        %2163 = vdwg.mxu0
        %v2164 = vsel %vm1177, %v1711, -inf
        %2165 = vmax.xlane.f32.xlu0 %v2164
        %v2166 = vpop.xlane.xlu0 %2165
        %v2167 = vsel %vm1177, %v1775, -inf
        %2168 = vmax.xlane.f32.xlu0 %v2167
        %v2169 = vpop.xlane.xlu0 %2168
        %v2170 = vsel %vm1177, %v1839, -inf
        %2171 = vmax.xlane.f32.xlu0 %v2170
        %v2172 = vpop.xlane.xlu0 %2171
        %v2173 = vsel %vm1177, %v1903, -inf
        %2174 = vmax.xlane.f32.xlu0 %v2173
        %v2175 = vpop.xlane.xlu0 %2174
        %v2176 = vsel %vm1177, %v1967, -inf
        %2177 = vmax.xlane.f32.xlu0 %v2176
        %v2178 = vpop.xlane.xlu0 %2177
        %v2179 = vsel %vm1177, %v2031, -inf
        %2180 = vmax.xlane.f32.xlu0 %v2179
        %v2181 = vpop.xlane.xlu0 %2180
        %v2182 = vsel %vm1177, %v2095, -inf
        %2183 = vmax.xlane.f32.xlu0 %v2182
        %v2184 = vpop.xlane.xlu0 %2183
        %v2185 = vsel %vm1177, %v2159, -inf
        %2186 = vmax.xlane.f32.xlu0 %v2185
        %v2187 = vpop.xlane.xlu0 %2186
        %v2188 = vsub.f32 %v1711, %v2166
        %v2189 = vsub.f32 %v1775, %v2169
        %v2190 = vsub.f32 %v1839, %v2172
        %v2191 = vsub.f32 %v1903, %v2175
        %v2192 = vsub.f32 %v1967, %v2178
        %v2193 = vsub.f32 %v2031, %v2181
        %v2194 = vsub.f32 %v2095, %v2184
        %v2195 = vsub.f32 %v2159, %v2187
        %v2196 = vmul.f32 %v2188, 1.442695
        %v2197 = vpow.pop %v2196
        %v2198 = vmul.f32 %v2189, 1.442695
        %v2199 = vpow.pop %v2198
        %v2200 = vmul.f32 %v2190, 1.442695
        %v2201 = vpow.pop %v2200
        %v2202 = vmul.f32 %v2191, 1.442695
        %v2203 = vpow.pop %v2202
        %v2204 = vmul.f32 %v2192, 1.442695
        %v2205 = vpow.pop %v2204
        %v2206 = vmul.f32 %v2193, 1.442695
        %v2207 = vpow.pop %v2206
        %v2208 = vmul.f32 %v2194, 1.442695
        %v2209 = vpow.pop %v2208
        %v2210 = vmul.f32 %v2195, 1.442695
        %v2211 = vpow.pop %v2210
        %v2212 = vsel %vm1177, %v2197, 0.0
        %2213 = vadd.xlane.f32.xlu0 %v2212
        %v2214 = vpop.xlane.xlu0 %2213
        %v2215 = vsel %vm1177, %v2199, 0.0
        %2216 = vadd.xlane.f32.xlu0 %v2215
        %v2217 = vpop.xlane.xlu0 %2216
        %v2218 = vsel %vm1177, %v2201, 0.0
        %2219 = vadd.xlane.f32.xlu0 %v2218
        %v2220 = vpop.xlane.xlu0 %2219
        %v2221 = vsel %vm1177, %v2203, 0.0
        %2222 = vadd.xlane.f32.xlu0 %v2221
        %v2223 = vpop.xlane.xlu0 %2222
        %v2224 = vsel %vm1177, %v2205, 0.0
        %2225 = vadd.xlane.f32.xlu0 %v2224
        %v2226 = vpop.xlane.xlu0 %2225
        %v2227 = vsel %vm1177, %v2207, 0.0
        %2228 = vadd.xlane.f32.xlu0 %v2227
        %v2229 = vpop.xlane.xlu0 %2228
        %v2230 = vsel %vm1177, %v2209, 0.0
        %2231 = vadd.xlane.f32.xlu0 %v2230
        %v2232 = vpop.xlane.xlu0 %2231
        %v2233 = vsel %vm1177, %v2211, 0.0
        %2234 = vadd.xlane.f32.xlu0 %v2233
        %v2235 = vpop.xlane.xlu0 %2234
        %v2236 = vrcp.pop %v2214
        %v2237 = vrcp.pop %v2217
        %v2238 = vrcp.pop %v2220
        %v2239 = vrcp.pop %v2223
        %v2240 = vrcp.pop %v2226
        %v2241 = vrcp.pop %v2229
        %v2242 = vrcp.pop %v2232
        %v2243 = vrcp.pop %v2235
        %v2244 = vmul.f32 %v2197, %v2236
        %v2245 = vmul.f32 %v2199, %v2237
        %v2246 = vmul.f32 %v2201, %v2238
        %v2247 = vmul.f32 %v2203, %v2239
        %v2248 = vmul.f32 %v2205, %v2240
        %v2249 = vmul.f32 %v2207, %v2241
        %v2250 = vmul.f32 %v2209, %v2242
        %v2251 = vmul.f32 %v2211, %v2243
        %v2252 = vpack.c.bf16 %v2244, %v2244
        %v2253 = vpack.c.bf16 %v2245, %v2245
        %v2254 = vpack.c.bf16 %v2246, %v2246
        %v2255 = vpack.c.bf16 %v2247, %v2247
        %v2256 = vpack.c.bf16 %v2248, %v2248
        %v2257 = vpack.c.bf16 %v2249, %v2249
        %v2258 = vpack.c.bf16 %v2250, %v2250
        %v2259 = vpack.c.bf16 %v2251, %v2251
        %v2261 = vunpack.c.l.s4 1983009808
        %v2262 = vunpack.c.0.s8 %v2261
        %v2263 = vlaneseq
        %v2264 = vshrl.u32 %v2263, 7
        %v2265 = vsub.s32 %v2262, %v2264
        %v2266 = vrot.slane %v781, %v2265
        %2267 = vrot.lane.b32.xlu0 %v2266, 120
        %v2268 = vpop.permute.xlu0 %2267
        %v2270 = vsel %vm1274, %v2252, 0
        %v2273 = vsel %vm1278, %v2268, 0
        %2275 = vmatprep.subr.bf16.mxu0 0
        %2276 = vmatpush1.bf16.msra.mxu0 %v2273
        %2277 = vmatprep.subr.bf16.mxu0 0
        %2278 = vmatpush1.bf16.msra.mxu0 0
        %2279 = vmatprep.subr.bf16.mxu0 0
        %2280 = vmatpush1.bf16.msra.mxu0 0
        %2281 = vmatprep.subr.bf16.mxu0 0
        %2282 = vmatpush1.bf16.msra.mxu0 0
        %2283 = vmatprep.subr.bf16.mxu0 0
        %2284 = vmatpush1.bf16.msra.mxu0 0
        %2285 = vmatprep.subr.bf16.mxu0 0
        %2286 = vmatpush1.bf16.msra.mxu0 0
        %2287 = vmatprep.subr.bf16.mxu0 0
        %2288 = vmatpush1.bf16.msra.mxu0 0
        %2289 = vmatprep.subr.bf16.mxu0 0
        %2290 = vmatpush1.bf16.msra.mxu0 0
        %2291 = vmatprep.subr.bf16.mxu0 0
        %2292 = vmatpush1.bf16.msra.mxu0 0
        %2293 = vmatprep.subr.bf16.mxu0 0
        %2294 = vmatpush1.bf16.msra.mxu0 0
        %2295 = vmatprep.subr.bf16.mxu0 0
        %2296 = vmatpush1.bf16.msra.mxu0 0
        %2297 = vmatprep.subr.bf16.mxu0 0
        %2298 = vmatpush1.bf16.msra.mxu0 0
        %2299 = vmatprep.subr.bf16.mxu0 0
        %2300 = vmatpush1.bf16.msra.mxu0 0
        %2301 = vmatprep.subr.bf16.mxu0 0
        %2302 = vmatpush1.bf16.msra.mxu0 0
        %2303 = vmatprep.subr.bf16.mxu0 0
        %2304 = vmatpush1.bf16.msra.mxu0 0
        %2305 = vmatprep.subr.bf16.mxu0 0
        %2306 = vmatpush1.bf16.msra.mxu0 0
        %2307 = vmatprep.mubr.bf16.mxu0 0
        %2308 = vmatmul.mubr.bf16.gmra.mrb[0].mxu0 %v2270
        %v2309 = vpop.f32.mrb[0].mxu0
        %v2310 = vadd.f32 0.0, %v2309
        %v2311 = vpop.f32.mrb[0].mxu0
        %v2312 = vpop.f32.mrb[0].mxu0
        %v2313 = vpop.f32.mrb[0].mxu0
        %2314 = vdwg.mxu0
        %v2316 = vunpack.c.l.s4 1983009808
        %v2317 = vunpack.c.0.s8 %v2316
        %v2318 = vlaneseq
        %v2319 = vshrl.u32 %v2318, 7
        %v2320 = vsub.s32 %v2317, %v2319
        %v2321 = vrot.slane %v789, %v2320
        %2322 = vrot.lane.b32.xlu0 %v2321, 120
        %v2323 = vpop.permute.xlu0 %2322
        %v2325 = vsel %vm1274, %v2253, 0
        %v2328 = vsel %vm1278, %v2323, 0
        %2330 = vmatprep.subr.bf16.mxu0 0
        %2331 = vmatpush1.bf16.msra.mxu0 %v2328
        %2332 = vmatprep.subr.bf16.mxu0 0
        %2333 = vmatpush1.bf16.msra.mxu0 0
        %2334 = vmatprep.subr.bf16.mxu0 0
        %2335 = vmatpush1.bf16.msra.mxu0 0
        %2336 = vmatprep.subr.bf16.mxu0 0
        %2337 = vmatpush1.bf16.msra.mxu0 0
        %2338 = vmatprep.subr.bf16.mxu0 0
        %2339 = vmatpush1.bf16.msra.mxu0 0
        %2340 = vmatprep.subr.bf16.mxu0 0
        %2341 = vmatpush1.bf16.msra.mxu0 0
        %2342 = vmatprep.subr.bf16.mxu0 0
        %2343 = vmatpush1.bf16.msra.mxu0 0
        %2344 = vmatprep.subr.bf16.mxu0 0
        %2345 = vmatpush1.bf16.msra.mxu0 0
        %2346 = vmatprep.subr.bf16.mxu0 0
        %2347 = vmatpush1.bf16.msra.mxu0 0
        %2348 = vmatprep.subr.bf16.mxu0 0
        %2349 = vmatpush1.bf16.msra.mxu0 0
        %2350 = vmatprep.subr.bf16.mxu0 0
        %2351 = vmatpush1.bf16.msra.mxu0 0
        %2352 = vmatprep.subr.bf16.mxu0 0
        %2353 = vmatpush1.bf16.msra.mxu0 0
        %2354 = vmatprep.subr.bf16.mxu0 0
        %2355 = vmatpush1.bf16.msra.mxu0 0
        %2356 = vmatprep.subr.bf16.mxu0 0
        %2357 = vmatpush1.bf16.msra.mxu0 0
        %2358 = vmatprep.subr.bf16.mxu0 0
        %2359 = vmatpush1.bf16.msra.mxu0 0
        %2360 = vmatprep.subr.bf16.mxu0 0
        %2361 = vmatpush1.bf16.msra.mxu0 0
        %2362 = vmatprep.mubr.bf16.mxu0 0
        %2363 = vmatmul.mubr.bf16.gmra.mrb[0].mxu0 %v2325
        %v2364 = vpop.f32.mrb[0].mxu0
        %v2365 = vadd.f32 0.0, %v2364
        %v2366 = vpop.f32.mrb[0].mxu0
        %v2367 = vpop.f32.mrb[0].mxu0
        %v2368 = vpop.f32.mrb[0].mxu0
        %2369 = vdwg.mxu0
        %v2371 = vunpack.c.l.s4 1983009808
        %v2372 = vunpack.c.0.s8 %v2371
        %v2373 = vlaneseq
        %v2374 = vshrl.u32 %v2373, 7
        %v2375 = vsub.s32 %v2372, %v2374
        %v2376 = vrot.slane %v788, %v2375
        %2377 = vrot.lane.b32.xlu0 %v2376, 120
        %v2378 = vpop.permute.xlu0 %2377
        %v2380 = vsel %vm1274, %v2254, 0
        %v2383 = vsel %vm1278, %v2378, 0
        %2385 = vmatprep.subr.bf16.mxu0 0
        %2386 = vmatpush1.bf16.msra.mxu0 %v2383
        %2387 = vmatprep.subr.bf16.mxu0 0
        %2388 = vmatpush1.bf16.msra.mxu0 0
        %2389 = vmatprep.subr.bf16.mxu0 0
        %2390 = vmatpush1.bf16.msra.mxu0 0
        %2391 = vmatprep.subr.bf16.mxu0 0
        %2392 = vmatpush1.bf16.msra.mxu0 0
        %2393 = vmatprep.subr.bf16.mxu0 0
        %2394 = vmatpush1.bf16.msra.mxu0 0
        %2395 = vmatprep.subr.bf16.mxu0 0
        %2396 = vmatpush1.bf16.msra.mxu0 0
        %2397 = vmatprep.subr.bf16.mxu0 0
        %2398 = vmatpush1.bf16.msra.mxu0 0
        %2399 = vmatprep.subr.bf16.mxu0 0
        %2400 = vmatpush1.bf16.msra.mxu0 0
        %2401 = vmatprep.subr.bf16.mxu0 0
        %2402 = vmatpush1.bf16.msra.mxu0 0
        %2403 = vmatprep.subr.bf16.mxu0 0
        %2404 = vmatpush1.bf16.msra.mxu0 0
        %2405 = vmatprep.subr.bf16.mxu0 0
        %2406 = vmatpush1.bf16.msra.mxu0 0
        %2407 = vmatprep.subr.bf16.mxu0 0
        %2408 = vmatpush1.bf16.msra.mxu0 0
        %2409 = vmatprep.subr.bf16.mxu0 0
        %2410 = vmatpush1.bf16.msra.mxu0 0
        %2411 = vmatprep.subr.bf16.mxu0 0
        %2412 = vmatpush1.bf16.msra.mxu0 0
        %2413 = vmatprep.subr.bf16.mxu0 0
        %2414 = vmatpush1.bf16.msra.mxu0 0
        %2415 = vmatprep.subr.bf16.mxu0 0
        %2416 = vmatpush1.bf16.msra.mxu0 0
        %2417 = vmatprep.mubr.bf16.mxu0 0
        %2418 = vmatmul.mubr.bf16.gmra.mrb[0].mxu0 %v2380
        %v2419 = vpop.f32.mrb[0].mxu0
        %v2420 = vadd.f32 0.0, %v2419
        %v2421 = vpop.f32.mrb[0].mxu0
        %v2422 = vpop.f32.mrb[0].mxu0
        %v2423 = vpop.f32.mrb[0].mxu0
        %2424 = vdwg.mxu0
        %v2426 = vunpack.c.l.s4 1983009808
        %v2427 = vunpack.c.0.s8 %v2426
        %v2428 = vlaneseq
        %v2429 = vshrl.u32 %v2428, 7
        %v2430 = vsub.s32 %v2427, %v2429
        %v2431 = vrot.slane %v790, %v2430
        %2432 = vrot.lane.b32.xlu0 %v2431, 120
        %v2433 = vpop.permute.xlu0 %2432
        %v2435 = vsel %vm1274, %v2255, 0
        %v2438 = vsel %vm1278, %v2433, 0
        %2440 = vmatprep.subr.bf16.mxu0 0
        %2441 = vmatpush1.bf16.msra.mxu0 %v2438
        %2442 = vmatprep.subr.bf16.mxu0 0
        %2443 = vmatpush1.bf16.msra.mxu0 0
        %2444 = vmatprep.subr.bf16.mxu0 0
        %2445 = vmatpush1.bf16.msra.mxu0 0
        %2446 = vmatprep.subr.bf16.mxu0 0
        %2447 = vmatpush1.bf16.msra.mxu0 0
        %2448 = vmatprep.subr.bf16.mxu0 0
        %2449 = vmatpush1.bf16.msra.mxu0 0
        %2450 = vmatprep.subr.bf16.mxu0 0
        %2451 = vmatpush1.bf16.msra.mxu0 0
        %2452 = vmatprep.subr.bf16.mxu0 0
        %2453 = vmatpush1.bf16.msra.mxu0 0
        %2454 = vmatprep.subr.bf16.mxu0 0
        %2455 = vmatpush1.bf16.msra.mxu0 0
        %2456 = vmatprep.subr.bf16.mxu0 0
        %2457 = vmatpush1.bf16.msra.mxu0 0
        %2458 = vmatprep.subr.bf16.mxu0 0
        %2459 = vmatpush1.bf16.msra.mxu0 0
        %2460 = vmatprep.subr.bf16.mxu0 0
        %2461 = vmatpush1.bf16.msra.mxu0 0
        %2462 = vmatprep.subr.bf16.mxu0 0
        %2463 = vmatpush1.bf16.msra.mxu0 0
        %2464 = vmatprep.subr.bf16.mxu0 0
        %2465 = vmatpush1.bf16.msra.mxu0 0
        %2466 = vmatprep.subr.bf16.mxu0 0
        %2467 = vmatpush1.bf16.msra.mxu0 0
        %2468 = vmatprep.subr.bf16.mxu0 0
        %2469 = vmatpush1.bf16.msra.mxu0 0
        %2470 = vmatprep.subr.bf16.mxu0 0
        %2471 = vmatpush1.bf16.msra.mxu0 0
        %2472 = vmatprep.mubr.bf16.mxu0 0
        %2473 = vmatmul.mubr.bf16.gmra.mrb[0].mxu0 %v2435
        %v2474 = vpop.f32.mrb[0].mxu0
        %v2475 = vadd.f32 0.0, %v2474
        %v2476 = vpop.f32.mrb[0].mxu0
        %v2477 = vpop.f32.mrb[0].mxu0
        %v2478 = vpop.f32.mrb[0].mxu0
        %2479 = vdwg.mxu0
        %v2481 = vunpack.c.l.s4 1983009808
        %v2482 = vunpack.c.0.s8 %v2481
        %v2483 = vlaneseq
        %v2484 = vshrl.u32 %v2483, 7
        %v2485 = vsub.s32 %v2482, %v2484
        %v2486 = vrot.slane %v798, %v2485
        %2487 = vrot.lane.b32.xlu0 %v2486, 120
        %v2488 = vpop.permute.xlu0 %2487
        %v2490 = vsel %vm1274, %v2256, 0
        %v2493 = vsel %vm1278, %v2488, 0
        %2495 = vmatprep.subr.bf16.mxu0 0
        %2496 = vmatpush1.bf16.msra.mxu0 %v2493
        %2497 = vmatprep.subr.bf16.mxu0 0
        %2498 = vmatpush1.bf16.msra.mxu0 0
        %2499 = vmatprep.subr.bf16.mxu0 0
        %2500 = vmatpush1.bf16.msra.mxu0 0
        %2501 = vmatprep.subr.bf16.mxu0 0
        %2502 = vmatpush1.bf16.msra.mxu0 0
        %2503 = vmatprep.subr.bf16.mxu0 0
        %2504 = vmatpush1.bf16.msra.mxu0 0
        %2505 = vmatprep.subr.bf16.mxu0 0
        %2506 = vmatpush1.bf16.msra.mxu0 0
        %2507 = vmatprep.subr.bf16.mxu0 0
        %2508 = vmatpush1.bf16.msra.mxu0 0
        %2509 = vmatprep.subr.bf16.mxu0 0
        %2510 = vmatpush1.bf16.msra.mxu0 0
        %2511 = vmatprep.subr.bf16.mxu0 0
        %2512 = vmatpush1.bf16.msra.mxu0 0
        %2513 = vmatprep.subr.bf16.mxu0 0
        %2514 = vmatpush1.bf16.msra.mxu0 0
        %2515 = vmatprep.subr.bf16.mxu0 0
        %2516 = vmatpush1.bf16.msra.mxu0 0
        %2517 = vmatprep.subr.bf16.mxu0 0
        %2518 = vmatpush1.bf16.msra.mxu0 0
        %2519 = vmatprep.subr.bf16.mxu0 0
        %2520 = vmatpush1.bf16.msra.mxu0 0
        %2521 = vmatprep.subr.bf16.mxu0 0
        %2522 = vmatpush1.bf16.msra.mxu0 0
        %2523 = vmatprep.subr.bf16.mxu0 0
        %2524 = vmatpush1.bf16.msra.mxu0 0
        %2525 = vmatprep.subr.bf16.mxu0 0
        %2526 = vmatpush1.bf16.msra.mxu0 0
        %2527 = vmatprep.mubr.bf16.mxu0 0
        %2528 = vmatmul.mubr.bf16.gmra.mrb[0].mxu0 %v2490
        %v2529 = vpop.f32.mrb[0].mxu0
        %v2530 = vadd.f32 0.0, %v2529
        %v2531 = vpop.f32.mrb[0].mxu0
        %v2532 = vpop.f32.mrb[0].mxu0
        %v2533 = vpop.f32.mrb[0].mxu0
        %2534 = vdwg.mxu0
        %v2536 = vunpack.c.l.s4 1983009808
        %v2537 = vunpack.c.0.s8 %v2536
        %v2538 = vlaneseq
        %v2539 = vshrl.u32 %v2538, 7
        %v2540 = vsub.s32 %v2537, %v2539
        %v2541 = vrot.slane %v806, %v2540
        %2542 = vrot.lane.b32.xlu0 %v2541, 120
        %v2543 = vpop.permute.xlu0 %2542
        %v2545 = vsel %vm1274, %v2257, 0
        %v2548 = vsel %vm1278, %v2543, 0
        %2550 = vmatprep.subr.bf16.mxu0 0
        %2551 = vmatpush1.bf16.msra.mxu0 %v2548
        %2552 = vmatprep.subr.bf16.mxu0 0
        %2553 = vmatpush1.bf16.msra.mxu0 0
        %2554 = vmatprep.subr.bf16.mxu0 0
        %2555 = vmatpush1.bf16.msra.mxu0 0
        %2556 = vmatprep.subr.bf16.mxu0 0
        %2557 = vmatpush1.bf16.msra.mxu0 0
        %2558 = vmatprep.subr.bf16.mxu0 0
        %2559 = vmatpush1.bf16.msra.mxu0 0
        %2560 = vmatprep.subr.bf16.mxu0 0
        %2561 = vmatpush1.bf16.msra.mxu0 0
        %2562 = vmatprep.subr.bf16.mxu0 0
        %2563 = vmatpush1.bf16.msra.mxu0 0
        %2564 = vmatprep.subr.bf16.mxu0 0
        %2565 = vmatpush1.bf16.msra.mxu0 0
        %2566 = vmatprep.subr.bf16.mxu0 0
        %2567 = vmatpush1.bf16.msra.mxu0 0
        %2568 = vmatprep.subr.bf16.mxu0 0
        %2569 = vmatpush1.bf16.msra.mxu0 0
        %2570 = vmatprep.subr.bf16.mxu0 0
        %2571 = vmatpush1.bf16.msra.mxu0 0
        %2572 = vmatprep.subr.bf16.mxu0 0
        %2573 = vmatpush1.bf16.msra.mxu0 0
        %2574 = vmatprep.subr.bf16.mxu0 0
        %2575 = vmatpush1.bf16.msra.mxu0 0
        %2576 = vmatprep.subr.bf16.mxu0 0
        %2577 = vmatpush1.bf16.msra.mxu0 0
        %2578 = vmatprep.subr.bf16.mxu0 0
        %2579 = vmatpush1.bf16.msra.mxu0 0
        %2580 = vmatprep.subr.bf16.mxu0 0
        %2581 = vmatpush1.bf16.msra.mxu0 0
        %2582 = vmatprep.mubr.bf16.mxu0 0
        %2583 = vmatmul.mubr.bf16.gmra.mrb[0].mxu0 %v2545
        %v2584 = vpop.f32.mrb[0].mxu0
        %v2585 = vadd.f32 0.0, %v2584
        %v2586 = vpop.f32.mrb[0].mxu0
        %v2587 = vpop.f32.mrb[0].mxu0
        %v2588 = vpop.f32.mrb[0].mxu0
        %2589 = vdwg.mxu0
        %v2591 = vunpack.c.l.s4 1983009808
        %v2592 = vunpack.c.0.s8 %v2591
        %v2593 = vlaneseq
        %v2594 = vshrl.u32 %v2593, 7
        %v2595 = vsub.s32 %v2592, %v2594
        %v2596 = vrot.slane %v805, %v2595
        %2597 = vrot.lane.b32.xlu0 %v2596, 120
        %v2598 = vpop.permute.xlu0 %2597
        %v2600 = vsel %vm1274, %v2258, 0
        %v2603 = vsel %vm1278, %v2598, 0
        %2605 = vmatprep.subr.bf16.mxu0 0
        %2606 = vmatpush1.bf16.msra.mxu0 %v2603
        %2607 = vmatprep.subr.bf16.mxu0 0
        %2608 = vmatpush1.bf16.msra.mxu0 0
        %2609 = vmatprep.subr.bf16.mxu0 0
        %2610 = vmatpush1.bf16.msra.mxu0 0
        %2611 = vmatprep.subr.bf16.mxu0 0
        %2612 = vmatpush1.bf16.msra.mxu0 0
        %2613 = vmatprep.subr.bf16.mxu0 0
        %2614 = vmatpush1.bf16.msra.mxu0 0
        %2615 = vmatprep.subr.bf16.mxu0 0
        %2616 = vmatpush1.bf16.msra.mxu0 0
        %2617 = vmatprep.subr.bf16.mxu0 0
        %2618 = vmatpush1.bf16.msra.mxu0 0
        %2619 = vmatprep.subr.bf16.mxu0 0
        %2620 = vmatpush1.bf16.msra.mxu0 0
        %2621 = vmatprep.subr.bf16.mxu0 0
        %2622 = vmatpush1.bf16.msra.mxu0 0
        %2623 = vmatprep.subr.bf16.mxu0 0
        %2624 = vmatpush1.bf16.msra.mxu0 0
        %2625 = vmatprep.subr.bf16.mxu0 0
        %2626 = vmatpush1.bf16.msra.mxu0 0
        %2627 = vmatprep.subr.bf16.mxu0 0
        %2628 = vmatpush1.bf16.msra.mxu0 0
        %2629 = vmatprep.subr.bf16.mxu0 0
        %2630 = vmatpush1.bf16.msra.mxu0 0
        %2631 = vmatprep.subr.bf16.mxu0 0
        %2632 = vmatpush1.bf16.msra.mxu0 0
        %2633 = vmatprep.subr.bf16.mxu0 0
        %2634 = vmatpush1.bf16.msra.mxu0 0
        %2635 = vmatprep.subr.bf16.mxu0 0
        %2636 = vmatpush1.bf16.msra.mxu0 0
        %2637 = vmatprep.mubr.bf16.mxu0 0
        %2638 = vmatmul.mubr.bf16.gmra.mrb[0].mxu0 %v2600
        %v2639 = vpop.f32.mrb[0].mxu0
        %v2640 = vadd.f32 0.0, %v2639
        %v2641 = vpop.f32.mrb[0].mxu0
        %v2642 = vpop.f32.mrb[0].mxu0
        %v2643 = vpop.f32.mrb[0].mxu0
        %2644 = vdwg.mxu0
        %v2646 = vunpack.c.l.s4 1983009808
        %v2647 = vunpack.c.0.s8 %v2646
        %v2648 = vlaneseq
        %v2649 = vshrl.u32 %v2648, 7
        %v2650 = vsub.s32 %v2647, %v2649
        %v2651 = vrot.slane %v807, %v2650
        %2652 = vrot.lane.b32.xlu0 %v2651, 120
        %v2653 = vpop.permute.xlu0 %2652
        %v2655 = vsel %vm1274, %v2259, 0
        %v2658 = vsel %vm1278, %v2653, 0
        %2660 = vmatprep.subr.bf16.mxu0 0
        %2661 = vmatpush1.bf16.msra.mxu0 %v2658
        %2662 = vmatprep.subr.bf16.mxu0 0
        %2663 = vmatpush1.bf16.msra.mxu0 0
        %2664 = vmatprep.subr.bf16.mxu0 0
        %2665 = vmatpush1.bf16.msra.mxu0 0
        %2666 = vmatprep.subr.bf16.mxu0 0
        %2667 = vmatpush1.bf16.msra.mxu0 0
        %2668 = vmatprep.subr.bf16.mxu0 0
        %2669 = vmatpush1.bf16.msra.mxu0 0
        %2670 = vmatprep.subr.bf16.mxu0 0
        %2671 = vmatpush1.bf16.msra.mxu0 0
        %2672 = vmatprep.subr.bf16.mxu0 0
        %2673 = vmatpush1.bf16.msra.mxu0 0
        %2674 = vmatprep.subr.bf16.mxu0 0
        %2675 = vmatpush1.bf16.msra.mxu0 0
        %2676 = vmatprep.subr.bf16.mxu0 0
        %2677 = vmatpush1.bf16.msra.mxu0 0
        %2678 = vmatprep.subr.bf16.mxu0 0
        %2679 = vmatpush1.bf16.msra.mxu0 0
        %2680 = vmatprep.subr.bf16.mxu0 0
        %2681 = vmatpush1.bf16.msra.mxu0 0
        %2682 = vmatprep.subr.bf16.mxu0 0
        %2683 = vmatpush1.bf16.msra.mxu0 0
        %2684 = vmatprep.subr.bf16.mxu0 0
        %2685 = vmatpush1.bf16.msra.mxu0 0
        %2686 = vmatprep.subr.bf16.mxu0 0
        %2687 = vmatpush1.bf16.msra.mxu0 0
        %2688 = vmatprep.subr.bf16.mxu0 0
        %2689 = vmatpush1.bf16.msra.mxu0 0
        %2690 = vmatprep.subr.bf16.mxu0 0
        %2691 = vmatpush1.bf16.msra.mxu0 0
        %2692 = vmatprep.mubr.bf16.mxu0 0
        %2693 = vmatmul.mubr.bf16.gmra.mrb[0].mxu0 %v2655
        %v2694 = vpop.f32.mrb[0].mxu0
        %v2695 = vadd.f32 0.0, %v2694
        %v2696 = vpop.f32.mrb[0].mxu0
        %v2697 = vpop.f32.mrb[0].mxu0
        %v2698 = vpop.f32.mrb[0].mxu0
        %2699 = vdwg.mxu0
        %v2700 = vpack.c.bf16 %v2310, %v2310
        %v2701 = vpack.c.bf16 %v2365, %v2365
        %v2702 = vpack.c.bf16 %v2420, %v2420
        %v2703 = vpack.c.bf16 %v2475, %v2475
        %v2704 = vpack.c.bf16 %v2530, %v2530
        %v2705 = vpack.c.bf16 %v2585, %v2585
        %v2706 = vpack.c.bf16 %v2640, %v2640
        %v2707 = vpack.c.bf16 %v2695, %v2695
        %v2716 = vcombine.low %v2700, %v2701
        %v2717 = vcombine.low %v2702, %v2703
        %v2719 = vunpack.c.l.s4 1983009808
        %v2720 = vunpack.c.0.s8 %v2719
        %v2721 = vlaneseq
        %v2722 = vshrl.u32 %v2721, 7
        %v2723 = vsub.s32 %v2720, %v2722
        %v2724 = vrot.slane %v2716, %v2723
        %v2726 = vunpack.c.l.s4 1983009808
        %v2727 = vunpack.c.0.s8 %v2726
        %v2728 = vlaneseq
        %v2729 = vshrl.u32 %v2728, 7
        %v2730 = vsub.s32 %v2727, %v2729
        %v2731 = vrot.slane %v2717, %v2730
        %v2732 = vcombine.low %v2724, %v2731
        %v2733 = vcombine.low %v2704, %v2705
        %v2734 = vcombine.low %v2706, %v2707
        %v2736 = vunpack.c.l.s4 1983009808
        %v2737 = vunpack.c.0.s8 %v2736
        %v2738 = vlaneseq
        %v2739 = vshrl.u32 %v2738, 7
        %v2740 = vsub.s32 %v2737, %v2739
        %v2741 = vrot.slane %v2733, %v2740
        %v2743 = vunpack.c.l.s4 1983009808
        %v2744 = vunpack.c.0.s8 %v2743
        %v2745 = vlaneseq
        %v2746 = vshrl.u32 %v2745, 7
        %v2747 = vsub.s32 %v2744, %v2746
        %v2748 = vrot.slane %v2734, %v2747
        %v2749 = vcombine.low %v2741, %v2748
        %v2751 = vsel %vm808, %v2732, 0
        %v2754 = vsel %vm808, %v2749, 0
        %vm2756 = vcmask 1043456
        %v2758 = vsel %vm2756, %v438, 0
        %2760 = vmatprep.subr.bf16.mxu0 0
        %2761 = vmatpush1.bf16.msra.mxu0 %v2758
        %2762 = vmatprep.subr.bf16.mxu0 0
        %2763 = vmatpush1.bf16.msra.mxu0 0
        %2764 = vmatprep.subr.bf16.mxu0 0
        %2765 = vmatpush1.bf16.msra.mxu0 0
        %2766 = vmatprep.subr.bf16.mxu0 0
        %2767 = vmatpush1.bf16.msra.mxu0 0
        %2768 = vmatprep.subr.bf16.mxu0 0
        %2769 = vmatpush1.bf16.msra.mxu0 0
        %2770 = vmatprep.subr.bf16.mxu0 0
        %2771 = vmatpush1.bf16.msra.mxu0 0
        %2772 = vmatprep.subr.bf16.mxu0 0
        %2773 = vmatpush1.bf16.msra.mxu0 0
        %2774 = vmatprep.subr.bf16.mxu0 0
        %2775 = vmatpush1.bf16.msra.mxu0 0
        %2776 = vmatprep.subr.bf16.mxu0 0
        %2777 = vmatpush1.bf16.msra.mxu0 0
        %2778 = vmatprep.subr.bf16.mxu0 0
        %2779 = vmatpush1.bf16.msra.mxu0 0
        %2780 = vmatprep.subr.bf16.mxu0 0
        %2781 = vmatpush1.bf16.msra.mxu0 0
        %2782 = vmatprep.subr.bf16.mxu0 0
        %2783 = vmatpush1.bf16.msra.mxu0 0
        %2784 = vmatprep.subr.bf16.mxu0 0
        %2785 = vmatpush1.bf16.msra.mxu0 0
        %2786 = vmatprep.subr.bf16.mxu0 0
        %2787 = vmatpush1.bf16.msra.mxu0 0
        %2788 = vmatprep.subr.bf16.mxu0 0
        %2789 = vmatpush1.bf16.msra.mxu0 0
        %2790 = vmatprep.subr.bf16.mxu0 0
        %2791 = vmatpush1.bf16.msra.mxu0 0
        %2792 = vmatprep.mubr.bf16.mxu0 0
        %2793 = vmatmul.mubr.bf16.gmra.mrb[0].mxu0 %v2751
        %v2794 = vpop.f32.mrb[0].mxu0
        %v2795 = vadd.f32 0.0, %v2794
        %v2796 = vpop.f32.mrb[0].mxu0
        %v2797 = vpop.f32.mrb[0].mxu0
        %v2798 = vadd.f32 0.0, %v2797
        %v2799 = vpop.f32.mrb[0].mxu0
        %2800 = vmatprep.mubr.bf16.mxu0 0
        %2801 = vmatmul.mubr.bf16.gmra.mrb[0].mxu0 %v2754
        %v2802 = vpop.f32.mrb[0].mxu0
        %v2803 = vadd.f32 0.0, %v2802
        %v2804 = vpop.f32.mrb[0].mxu0
        %v2805 = vpop.f32.mrb[0].mxu0
        %v2806 = vadd.f32 0.0, %v2805
        %v2807 = vpop.f32.mrb[0].mxu0
        %2808 = vdwg.mxu0
        %v2817 = vcombine.low %v1644, %v1645
        %v2818 = vcombine.low %v1646, %v1647
        %v2820 = vunpack.c.l.s4 1983009808
        %v2821 = vunpack.c.0.s8 %v2820
        %v2822 = vlaneseq
        %v2823 = vshrl.u32 %v2822, 7
        %v2824 = vsub.s32 %v2821, %v2823
        %v2825 = vrot.slane %v2817, %v2824
        %v2827 = vunpack.c.l.s4 1983009808
        %v2828 = vunpack.c.0.s8 %v2827
        %v2829 = vlaneseq
        %v2830 = vshrl.u32 %v2829, 7
        %v2831 = vsub.s32 %v2828, %v2830
        %v2832 = vrot.slane %v2818, %v2831
        %v2833 = vcombine.low %v2825, %v2832
        %v2834 = vcombine.low %v1648, %v1649
        %v2835 = vcombine.low %v1650, %v1651
        %v2837 = vunpack.c.l.s4 1983009808
        %v2838 = vunpack.c.0.s8 %v2837
        %v2839 = vlaneseq
        %v2840 = vshrl.u32 %v2839, 7
        %v2841 = vsub.s32 %v2838, %v2840
        %v2842 = vrot.slane %v2834, %v2841
        %v2844 = vunpack.c.l.s4 1983009808
        %v2845 = vunpack.c.0.s8 %v2844
        %v2846 = vlaneseq
        %v2847 = vshrl.u32 %v2846, 7
        %v2848 = vsub.s32 %v2845, %v2847
        %v2849 = vrot.slane %v2835, %v2848
        %v2850 = vcombine.low %v2842, %v2849
        %v2852 = vsel %vm808, %v2833, 0
        %v2855 = vsel %vm808, %v2850, 0
        %v2858 = vsel %vm2756, %v437, 0
        %2860 = vmatprep.subr.bf16.mxu0 0
        %2861 = vmatpush1.bf16.msra.mxu0 %v2858
        %2862 = vmatprep.subr.bf16.mxu0 0
        %2863 = vmatpush1.bf16.msra.mxu0 0
        %2864 = vmatprep.subr.bf16.mxu0 0
        %2865 = vmatpush1.bf16.msra.mxu0 0
        %2866 = vmatprep.subr.bf16.mxu0 0
        %2867 = vmatpush1.bf16.msra.mxu0 0
        %2868 = vmatprep.subr.bf16.mxu0 0
        %2869 = vmatpush1.bf16.msra.mxu0 0
        %2870 = vmatprep.subr.bf16.mxu0 0
        %2871 = vmatpush1.bf16.msra.mxu0 0
        %2872 = vmatprep.subr.bf16.mxu0 0
        %2873 = vmatpush1.bf16.msra.mxu0 0
        %2874 = vmatprep.subr.bf16.mxu0 0
        %2875 = vmatpush1.bf16.msra.mxu0 0
        %2876 = vmatprep.subr.bf16.mxu0 0
        %2877 = vmatpush1.bf16.msra.mxu0 0
        %2878 = vmatprep.subr.bf16.mxu0 0
        %2879 = vmatpush1.bf16.msra.mxu0 0
        %2880 = vmatprep.subr.bf16.mxu0 0
        %2881 = vmatpush1.bf16.msra.mxu0 0
        %2882 = vmatprep.subr.bf16.mxu0 0
        %2883 = vmatpush1.bf16.msra.mxu0 0
        %2884 = vmatprep.subr.bf16.mxu0 0
        %2885 = vmatpush1.bf16.msra.mxu0 0
        %2886 = vmatprep.subr.bf16.mxu0 0
        %2887 = vmatpush1.bf16.msra.mxu0 0
        %2888 = vmatprep.subr.bf16.mxu0 0
        %2889 = vmatpush1.bf16.msra.mxu0 0
        %2890 = vmatprep.subr.bf16.mxu0 0
        %2891 = vmatpush1.bf16.msra.mxu0 0
        %2892 = vmatprep.mubr.bf16.mxu0 0
        %2893 = vmatmul.mubr.bf16.gmra.mrb[0].mxu0 %v2852
        %v2894 = vpop.f32.mrb[0].mxu0
        %v2895 = vadd.f32 %v2795, %v2894
        %v2896 = vpop.f32.mrb[0].mxu0
        %v2897 = vpop.f32.mrb[0].mxu0
        %v2898 = vadd.f32 %v2798, %v2897
        %v2899 = vpop.f32.mrb[0].mxu0
        %2900 = vmatprep.mubr.bf16.mxu0 0
        %2901 = vmatmul.mubr.bf16.gmra.mrb[0].mxu0 %v2855
        %v2902 = vpop.f32.mrb[0].mxu0
        %v2903 = vadd.f32 %v2803, %v2902
        %v2904 = vpop.f32.mrb[0].mxu0
        %v2905 = vpop.f32.mrb[0].mxu0
        %v2906 = vadd.f32 %v2806, %v2905
        %v2907 = vpop.f32.mrb[0].mxu0
        %2908 = vdwg.mxu0
        %2909 = vrot.lane.b32.xlu0 %v1658, 112
        %v2910 = vpop.permute.xlu0 %2909
        %2911 = vrot.lane.b32.xlu0 %v1667, 112
        %v2912 = vpop.permute.xlu0 %2911
        %v2914 = vsel %vm808, %v2910, 0
        %v2917 = vsel %vm808, %v2912, 0
        %2919 = vmatprep.subr.bf16.mxu0 0
        %2920 = vmatpush1.bf16.xpose.msra.mxu0 %v2917
        %2921 = vmatprep.subr.bf16.mxu0 0
        %2922 = vmatpush1.bf16.xpose.msra.mxu0 0
        %2923 = vmatprep.subr.bf16.mxu0 0
        %2924 = vmatpush1.bf16.xpose.msra.mxu0 0
        %2925 = vmatprep.subr.bf16.mxu0 0
        %2926 = vmatpush1.bf16.xpose.msra.mxu0 0
        %2927 = vmatprep.subr.bf16.mxu0 0
        %2928 = vmatpush1.bf16.xpose.msra.mxu0 0
        %2929 = vmatprep.subr.bf16.mxu0 0
        %2930 = vmatpush1.bf16.xpose.msra.mxu0 0
        %2931 = vmatprep.subr.bf16.mxu0 0
        %2932 = vmatpush1.bf16.xpose.msra.mxu0 0
        %2933 = vmatprep.subr.bf16.mxu0 0
        %2934 = vmatpush1.bf16.xpose.msra.mxu0 0
        %2935 = vmatprep.subr.bf16.mxu0 0
        %2936 = vmatpush1.bf16.xpose.msra.mxu0 0
        %2937 = vmatprep.subr.bf16.mxu0 0
        %2938 = vmatpush1.bf16.xpose.msra.mxu0 0
        %2939 = vmatprep.subr.bf16.mxu0 0
        %2940 = vmatpush1.bf16.xpose.msra.mxu0 0
        %2941 = vmatprep.subr.bf16.mxu0 0
        %2942 = vmatpush1.bf16.xpose.msra.mxu0 0
        %2943 = vmatprep.subr.bf16.mxu0 0
        %2944 = vmatpush1.bf16.xpose.msra.mxu0 0
        %2945 = vmatprep.subr.bf16.mxu0 0
        %2946 = vmatpush1.bf16.xpose.msra.mxu0 0
        %2947 = vmatprep.subr.bf16.mxu0 0
        %2948 = vmatpush1.bf16.xpose.msra.mxu0 0
        %2949 = vmatprep.subr.bf16.mxu0 0
        %2950 = vmatpush1.bf16.xpose.msra.mxu0 0
        %2951 = vmatprep.mubr.bf16.mxu0 0
        %2952 = vmatmul.mubr.bf16.gmra.mrb[0].mxu0 %v2914
        %v2953 = vpop.f32.mrb[0].mxu0
        %v2954 = vadd.f32 0.0, %v2953
        %v2955 = vpop.f32.mrb[0].mxu0
        %v2956 = vpop.f32.mrb[0].mxu0
        %v2957 = vpop.f32.mrb[0].mxu0
        %2958 = vdwg.mxu0
        %2959 = vrot.lane.b32.xlu0 %v1722, 112
        %v2960 = vpop.permute.xlu0 %2959
        %2961 = vrot.lane.b32.xlu0 %v1731, 112
        %v2962 = vpop.permute.xlu0 %2961
        %v2964 = vsel %vm808, %v2960, 0
        %v2967 = vsel %vm808, %v2962, 0
        %2969 = vmatprep.subr.bf16.mxu0 0
        %2970 = vmatpush1.bf16.xpose.msra.mxu0 %v2967
        %2971 = vmatprep.subr.bf16.mxu0 0
        %2972 = vmatpush1.bf16.xpose.msra.mxu0 0
        %2973 = vmatprep.subr.bf16.mxu0 0
        %2974 = vmatpush1.bf16.xpose.msra.mxu0 0
        %2975 = vmatprep.subr.bf16.mxu0 0
        %2976 = vmatpush1.bf16.xpose.msra.mxu0 0
        %2977 = vmatprep.subr.bf16.mxu0 0
        %2978 = vmatpush1.bf16.xpose.msra.mxu0 0
        %2979 = vmatprep.subr.bf16.mxu0 0
        %2980 = vmatpush1.bf16.xpose.msra.mxu0 0
        %2981 = vmatprep.subr.bf16.mxu0 0
        %2982 = vmatpush1.bf16.xpose.msra.mxu0 0
        %2983 = vmatprep.subr.bf16.mxu0 0
        %2984 = vmatpush1.bf16.xpose.msra.mxu0 0
        %2985 = vmatprep.subr.bf16.mxu0 0
        %2986 = vmatpush1.bf16.xpose.msra.mxu0 0
        %2987 = vmatprep.subr.bf16.mxu0 0
        %2988 = vmatpush1.bf16.xpose.msra.mxu0 0
        %2989 = vmatprep.subr.bf16.mxu0 0
        %2990 = vmatpush1.bf16.xpose.msra.mxu0 0
        %2991 = vmatprep.subr.bf16.mxu0 0
        %2992 = vmatpush1.bf16.xpose.msra.mxu0 0
        %2993 = vmatprep.subr.bf16.mxu0 0
        %2994 = vmatpush1.bf16.xpose.msra.mxu0 0
        %2995 = vmatprep.subr.bf16.mxu0 0
        %2996 = vmatpush1.bf16.xpose.msra.mxu0 0
        %2997 = vmatprep.subr.bf16.mxu0 0
        %2998 = vmatpush1.bf16.xpose.msra.mxu0 0
        %2999 = vmatprep.subr.bf16.mxu0 0
        %3000 = vmatpush1.bf16.xpose.msra.mxu0 0
        %3001 = vmatprep.mubr.bf16.mxu0 0
        %3002 = vmatmul.mubr.bf16.gmra.mrb[0].mxu0 %v2964
        %v3003 = vpop.f32.mrb[0].mxu0
        %v3004 = vadd.f32 0.0, %v3003
        %v3005 = vpop.f32.mrb[0].mxu0
        %v3006 = vpop.f32.mrb[0].mxu0
        %v3007 = vpop.f32.mrb[0].mxu0
        %3008 = vdwg.mxu0
        %3009 = vrot.lane.b32.xlu0 %v1786, 112
        %v3010 = vpop.permute.xlu0 %3009
        %3011 = vrot.lane.b32.xlu0 %v1795, 112
        %v3012 = vpop.permute.xlu0 %3011
        %v3014 = vsel %vm808, %v3010, 0
        %v3017 = vsel %vm808, %v3012, 0
        %3019 = vmatprep.subr.bf16.mxu0 0
        %3020 = vmatpush1.bf16.xpose.msra.mxu0 %v3017
        %3021 = vmatprep.subr.bf16.mxu0 0
        %3022 = vmatpush1.bf16.xpose.msra.mxu0 0
        %3023 = vmatprep.subr.bf16.mxu0 0
        %3024 = vmatpush1.bf16.xpose.msra.mxu0 0
        %3025 = vmatprep.subr.bf16.mxu0 0
        %3026 = vmatpush1.bf16.xpose.msra.mxu0 0
        %3027 = vmatprep.subr.bf16.mxu0 0
        %3028 = vmatpush1.bf16.xpose.msra.mxu0 0
        %3029 = vmatprep.subr.bf16.mxu0 0
        %3030 = vmatpush1.bf16.xpose.msra.mxu0 0
        %3031 = vmatprep.subr.bf16.mxu0 0
        %3032 = vmatpush1.bf16.xpose.msra.mxu0 0
        %3033 = vmatprep.subr.bf16.mxu0 0
        %3034 = vmatpush1.bf16.xpose.msra.mxu0 0
        %3035 = vmatprep.subr.bf16.mxu0 0
        %3036 = vmatpush1.bf16.xpose.msra.mxu0 0
        %3037 = vmatprep.subr.bf16.mxu0 0
        %3038 = vmatpush1.bf16.xpose.msra.mxu0 0
        %3039 = vmatprep.subr.bf16.mxu0 0
        %3040 = vmatpush1.bf16.xpose.msra.mxu0 0
        %3041 = vmatprep.subr.bf16.mxu0 0
        %3042 = vmatpush1.bf16.xpose.msra.mxu0 0
        %3043 = vmatprep.subr.bf16.mxu0 0
        %3044 = vmatpush1.bf16.xpose.msra.mxu0 0
        %3045 = vmatprep.subr.bf16.mxu0 0
        %3046 = vmatpush1.bf16.xpose.msra.mxu0 0
        %3047 = vmatprep.subr.bf16.mxu0 0
        %3048 = vmatpush1.bf16.xpose.msra.mxu0 0
        %3049 = vmatprep.subr.bf16.mxu0 0
        %3050 = vmatpush1.bf16.xpose.msra.mxu0 0
        %3051 = vmatprep.mubr.bf16.mxu0 0
        %3052 = vmatmul.mubr.bf16.gmra.mrb[0].mxu0 %v3014
        %v3053 = vpop.f32.mrb[0].mxu0
        %v3054 = vadd.f32 0.0, %v3053
        %v3055 = vpop.f32.mrb[0].mxu0
        %v3056 = vpop.f32.mrb[0].mxu0
        %v3057 = vpop.f32.mrb[0].mxu0
        %3058 = vdwg.mxu0
        %3059 = vrot.lane.b32.xlu0 %v1850, 112
        %v3060 = vpop.permute.xlu0 %3059
        %3061 = vrot.lane.b32.xlu0 %v1859, 112
        %v3062 = vpop.permute.xlu0 %3061
        %v3064 = vsel %vm808, %v3060, 0
        %v3067 = vsel %vm808, %v3062, 0
        %3069 = vmatprep.subr.bf16.mxu0 0
        %3070 = vmatpush1.bf16.xpose.msra.mxu0 %v3067
        %3071 = vmatprep.subr.bf16.mxu0 0
        %3072 = vmatpush1.bf16.xpose.msra.mxu0 0
        %3073 = vmatprep.subr.bf16.mxu0 0
        %3074 = vmatpush1.bf16.xpose.msra.mxu0 0
        %3075 = vmatprep.subr.bf16.mxu0 0
        %3076 = vmatpush1.bf16.xpose.msra.mxu0 0
        %3077 = vmatprep.subr.bf16.mxu0 0
        %3078 = vmatpush1.bf16.xpose.msra.mxu0 0
        %3079 = vmatprep.subr.bf16.mxu0 0
        %3080 = vmatpush1.bf16.xpose.msra.mxu0 0
        %3081 = vmatprep.subr.bf16.mxu0 0
        %3082 = vmatpush1.bf16.xpose.msra.mxu0 0
        %3083 = vmatprep.subr.bf16.mxu0 0
        %3084 = vmatpush1.bf16.xpose.msra.mxu0 0
        %3085 = vmatprep.subr.bf16.mxu0 0
        %3086 = vmatpush1.bf16.xpose.msra.mxu0 0
        %3087 = vmatprep.subr.bf16.mxu0 0
        %3088 = vmatpush1.bf16.xpose.msra.mxu0 0
        %3089 = vmatprep.subr.bf16.mxu0 0
        %3090 = vmatpush1.bf16.xpose.msra.mxu0 0
        %3091 = vmatprep.subr.bf16.mxu0 0
        %3092 = vmatpush1.bf16.xpose.msra.mxu0 0
        %3093 = vmatprep.subr.bf16.mxu0 0
        %3094 = vmatpush1.bf16.xpose.msra.mxu0 0
        %3095 = vmatprep.subr.bf16.mxu0 0
        %3096 = vmatpush1.bf16.xpose.msra.mxu0 0
        %3097 = vmatprep.subr.bf16.mxu0 0
        %3098 = vmatpush1.bf16.xpose.msra.mxu0 0
        %3099 = vmatprep.subr.bf16.mxu0 0
        %3100 = vmatpush1.bf16.xpose.msra.mxu0 0
        %3101 = vmatprep.mubr.bf16.mxu0 0
        %3102 = vmatmul.mubr.bf16.gmra.mrb[0].mxu0 %v3064
        %v3103 = vpop.f32.mrb[0].mxu0
        %v3104 = vadd.f32 0.0, %v3103
        %v3105 = vpop.f32.mrb[0].mxu0
        %v3106 = vpop.f32.mrb[0].mxu0
        %v3107 = vpop.f32.mrb[0].mxu0
        %3108 = vdwg.mxu0
        %3109 = vrot.lane.b32.xlu0 %v1914, 112
        %v3110 = vpop.permute.xlu0 %3109
        %3111 = vrot.lane.b32.xlu0 %v1923, 112
        %v3112 = vpop.permute.xlu0 %3111
        %v3114 = vsel %vm808, %v3110, 0
        %v3117 = vsel %vm808, %v3112, 0
        %3119 = vmatprep.subr.bf16.mxu0 0
        %3120 = vmatpush1.bf16.xpose.msra.mxu0 %v3117
        %3121 = vmatprep.subr.bf16.mxu0 0
        %3122 = vmatpush1.bf16.xpose.msra.mxu0 0
        %3123 = vmatprep.subr.bf16.mxu0 0
        %3124 = vmatpush1.bf16.xpose.msra.mxu0 0
        %3125 = vmatprep.subr.bf16.mxu0 0
        %3126 = vmatpush1.bf16.xpose.msra.mxu0 0
        %3127 = vmatprep.subr.bf16.mxu0 0
        %3128 = vmatpush1.bf16.xpose.msra.mxu0 0
        %3129 = vmatprep.subr.bf16.mxu0 0
        %3130 = vmatpush1.bf16.xpose.msra.mxu0 0
        %3131 = vmatprep.subr.bf16.mxu0 0
        %3132 = vmatpush1.bf16.xpose.msra.mxu0 0
        %3133 = vmatprep.subr.bf16.mxu0 0
        %3134 = vmatpush1.bf16.xpose.msra.mxu0 0
        %3135 = vmatprep.subr.bf16.mxu0 0
        %3136 = vmatpush1.bf16.xpose.msra.mxu0 0
        %3137 = vmatprep.subr.bf16.mxu0 0
        %3138 = vmatpush1.bf16.xpose.msra.mxu0 0
        %3139 = vmatprep.subr.bf16.mxu0 0
        %3140 = vmatpush1.bf16.xpose.msra.mxu0 0
        %3141 = vmatprep.subr.bf16.mxu0 0
        %3142 = vmatpush1.bf16.xpose.msra.mxu0 0
        %3143 = vmatprep.subr.bf16.mxu0 0
        %3144 = vmatpush1.bf16.xpose.msra.mxu0 0
        %3145 = vmatprep.subr.bf16.mxu0 0
        %3146 = vmatpush1.bf16.xpose.msra.mxu0 0
        %3147 = vmatprep.subr.bf16.mxu0 0
        %3148 = vmatpush1.bf16.xpose.msra.mxu0 0
        %3149 = vmatprep.subr.bf16.mxu0 0
        %3150 = vmatpush1.bf16.xpose.msra.mxu0 0
        %3151 = vmatprep.mubr.bf16.mxu0 0
        %3152 = vmatmul.mubr.bf16.gmra.mrb[0].mxu0 %v3114
        %v3153 = vpop.f32.mrb[0].mxu0
        %v3154 = vadd.f32 0.0, %v3153
        %v3155 = vpop.f32.mrb[0].mxu0
        %v3156 = vpop.f32.mrb[0].mxu0
        %v3157 = vpop.f32.mrb[0].mxu0
        %3158 = vdwg.mxu0
        %3159 = vrot.lane.b32.xlu0 %v1978, 112
        %v3160 = vpop.permute.xlu0 %3159
        %3161 = vrot.lane.b32.xlu0 %v1987, 112
        %v3162 = vpop.permute.xlu0 %3161
        %v3164 = vsel %vm808, %v3160, 0
        %v3167 = vsel %vm808, %v3162, 0
        %3169 = vmatprep.subr.bf16.mxu0 0
        %3170 = vmatpush1.bf16.xpose.msra.mxu0 %v3167
        %3171 = vmatprep.subr.bf16.mxu0 0
        %3172 = vmatpush1.bf16.xpose.msra.mxu0 0
        %3173 = vmatprep.subr.bf16.mxu0 0
        %3174 = vmatpush1.bf16.xpose.msra.mxu0 0
        %3175 = vmatprep.subr.bf16.mxu0 0
        %3176 = vmatpush1.bf16.xpose.msra.mxu0 0
        %3177 = vmatprep.subr.bf16.mxu0 0
        %3178 = vmatpush1.bf16.xpose.msra.mxu0 0
        %3179 = vmatprep.subr.bf16.mxu0 0
        %3180 = vmatpush1.bf16.xpose.msra.mxu0 0
        %3181 = vmatprep.subr.bf16.mxu0 0
        %3182 = vmatpush1.bf16.xpose.msra.mxu0 0
        %3183 = vmatprep.subr.bf16.mxu0 0
        %3184 = vmatpush1.bf16.xpose.msra.mxu0 0
        %3185 = vmatprep.subr.bf16.mxu0 0
        %3186 = vmatpush1.bf16.xpose.msra.mxu0 0
        %3187 = vmatprep.subr.bf16.mxu0 0
        %3188 = vmatpush1.bf16.xpose.msra.mxu0 0
        %3189 = vmatprep.subr.bf16.mxu0 0
        %3190 = vmatpush1.bf16.xpose.msra.mxu0 0
        %3191 = vmatprep.subr.bf16.mxu0 0
        %3192 = vmatpush1.bf16.xpose.msra.mxu0 0
        %3193 = vmatprep.subr.bf16.mxu0 0
        %3194 = vmatpush1.bf16.xpose.msra.mxu0 0
        %3195 = vmatprep.subr.bf16.mxu0 0
        %3196 = vmatpush1.bf16.xpose.msra.mxu0 0
        %3197 = vmatprep.subr.bf16.mxu0 0
        %3198 = vmatpush1.bf16.xpose.msra.mxu0 0
        %3199 = vmatprep.subr.bf16.mxu0 0
        %3200 = vmatpush1.bf16.xpose.msra.mxu0 0
        %3201 = vmatprep.mubr.bf16.mxu0 0
        %3202 = vmatmul.mubr.bf16.gmra.mrb[0].mxu0 %v3164
        %v3203 = vpop.f32.mrb[0].mxu0
        %v3204 = vadd.f32 0.0, %v3203
        %v3205 = vpop.f32.mrb[0].mxu0
        %v3206 = vpop.f32.mrb[0].mxu0
        %v3207 = vpop.f32.mrb[0].mxu0
        %3208 = vdwg.mxu0
        %3209 = vrot.lane.b32.xlu0 %v2042, 112
        %v3210 = vpop.permute.xlu0 %3209
        %3211 = vrot.lane.b32.xlu0 %v2051, 112
        %v3212 = vpop.permute.xlu0 %3211
        %v3214 = vsel %vm808, %v3210, 0
        %v3217 = vsel %vm808, %v3212, 0
        %3219 = vmatprep.subr.bf16.mxu0 0
        %3220 = vmatpush1.bf16.xpose.msra.mxu0 %v3217
        %3221 = vmatprep.subr.bf16.mxu0 0
        %3222 = vmatpush1.bf16.xpose.msra.mxu0 0
        %3223 = vmatprep.subr.bf16.mxu0 0
        %3224 = vmatpush1.bf16.xpose.msra.mxu0 0
        %3225 = vmatprep.subr.bf16.mxu0 0
        %3226 = vmatpush1.bf16.xpose.msra.mxu0 0
        %3227 = vmatprep.subr.bf16.mxu0 0
        %3228 = vmatpush1.bf16.xpose.msra.mxu0 0
        %3229 = vmatprep.subr.bf16.mxu0 0
        %3230 = vmatpush1.bf16.xpose.msra.mxu0 0
        %3231 = vmatprep.subr.bf16.mxu0 0
        %3232 = vmatpush1.bf16.xpose.msra.mxu0 0
        %3233 = vmatprep.subr.bf16.mxu0 0
        %3234 = vmatpush1.bf16.xpose.msra.mxu0 0
        %3235 = vmatprep.subr.bf16.mxu0 0
        %3236 = vmatpush1.bf16.xpose.msra.mxu0 0
        %3237 = vmatprep.subr.bf16.mxu0 0
        %3238 = vmatpush1.bf16.xpose.msra.mxu0 0
        %3239 = vmatprep.subr.bf16.mxu0 0
        %3240 = vmatpush1.bf16.xpose.msra.mxu0 0
        %3241 = vmatprep.subr.bf16.mxu0 0
        %3242 = vmatpush1.bf16.xpose.msra.mxu0 0
        %3243 = vmatprep.subr.bf16.mxu0 0
        %3244 = vmatpush1.bf16.xpose.msra.mxu0 0
        %3245 = vmatprep.subr.bf16.mxu0 0
        %3246 = vmatpush1.bf16.xpose.msra.mxu0 0
        %3247 = vmatprep.subr.bf16.mxu0 0
        %3248 = vmatpush1.bf16.xpose.msra.mxu0 0
        %3249 = vmatprep.subr.bf16.mxu0 0
        %3250 = vmatpush1.bf16.xpose.msra.mxu0 0
        %3251 = vmatprep.mubr.bf16.mxu0 0
        %3252 = vmatmul.mubr.bf16.gmra.mrb[0].mxu0 %v3214
        %v3253 = vpop.f32.mrb[0].mxu0
        %v3254 = vadd.f32 0.0, %v3253
        %v3255 = vpop.f32.mrb[0].mxu0
        %v3256 = vpop.f32.mrb[0].mxu0
        %v3257 = vpop.f32.mrb[0].mxu0
        %3258 = vdwg.mxu0
        %3259 = vrot.lane.b32.xlu0 %v2106, 112
        %v3260 = vpop.permute.xlu0 %3259
        %3261 = vrot.lane.b32.xlu0 %v2115, 112
        %v3262 = vpop.permute.xlu0 %3261
        %v3264 = vsel %vm808, %v3260, 0
        %v3267 = vsel %vm808, %v3262, 0
        %3269 = vmatprep.subr.bf16.mxu0 0
        %3270 = vmatpush1.bf16.xpose.msra.mxu0 %v3267
        %3271 = vmatprep.subr.bf16.mxu0 0
        %3272 = vmatpush1.bf16.xpose.msra.mxu0 0
        %3273 = vmatprep.subr.bf16.mxu0 0
        %3274 = vmatpush1.bf16.xpose.msra.mxu0 0
        %3275 = vmatprep.subr.bf16.mxu0 0
        %3276 = vmatpush1.bf16.xpose.msra.mxu0 0
        %3277 = vmatprep.subr.bf16.mxu0 0
        %3278 = vmatpush1.bf16.xpose.msra.mxu0 0
        %3279 = vmatprep.subr.bf16.mxu0 0
        %3280 = vmatpush1.bf16.xpose.msra.mxu0 0
        %3281 = vmatprep.subr.bf16.mxu0 0
        %3282 = vmatpush1.bf16.xpose.msra.mxu0 0
        %3283 = vmatprep.subr.bf16.mxu0 0
        %3284 = vmatpush1.bf16.xpose.msra.mxu0 0
        %3285 = vmatprep.subr.bf16.mxu0 0
        %3286 = vmatpush1.bf16.xpose.msra.mxu0 0
        %3287 = vmatprep.subr.bf16.mxu0 0
        %3288 = vmatpush1.bf16.xpose.msra.mxu0 0
        %3289 = vmatprep.subr.bf16.mxu0 0
        %3290 = vmatpush1.bf16.xpose.msra.mxu0 0
        %3291 = vmatprep.subr.bf16.mxu0 0
        %3292 = vmatpush1.bf16.xpose.msra.mxu0 0
        %3293 = vmatprep.subr.bf16.mxu0 0
        %3294 = vmatpush1.bf16.xpose.msra.mxu0 0
        %3295 = vmatprep.subr.bf16.mxu0 0
        %3296 = vmatpush1.bf16.xpose.msra.mxu0 0
        %3297 = vmatprep.subr.bf16.mxu0 0
        %3298 = vmatpush1.bf16.xpose.msra.mxu0 0
        %3299 = vmatprep.subr.bf16.mxu0 0
        %3300 = vmatpush1.bf16.xpose.msra.mxu0 0
        %3301 = vmatprep.mubr.bf16.mxu0 0
        %3302 = vmatmul.mubr.bf16.gmra.mrb[0].mxu0 %v3264
        %v3303 = vpop.f32.mrb[0].mxu0
        %v3304 = vadd.f32 0.0, %v3303
        %v3305 = vpop.f32.mrb[0].mxu0
        %v3306 = vpop.f32.mrb[0].mxu0
        %v3307 = vpop.f32.mrb[0].mxu0
        %3308 = vdwg.mxu0
        %v3309 = vsel %vm1177, %v2954, -inf
        %3310 = vmax.xlane.f32.xlu0 %v3309
        %v3311 = vpop.xlane.xlu0 %3310
        %v3312 = vsel %vm1177, %v3004, -inf
        %3313 = vmax.xlane.f32.xlu0 %v3312
        %v3314 = vpop.xlane.xlu0 %3313
        %v3315 = vsel %vm1177, %v3054, -inf
        %3316 = vmax.xlane.f32.xlu0 %v3315
        %v3317 = vpop.xlane.xlu0 %3316
        %v3318 = vsel %vm1177, %v3104, -inf
        %3319 = vmax.xlane.f32.xlu0 %v3318
        %v3320 = vpop.xlane.xlu0 %3319
        %v3321 = vsel %vm1177, %v3154, -inf
        %3322 = vmax.xlane.f32.xlu0 %v3321
        %v3323 = vpop.xlane.xlu0 %3322
        %v3324 = vsel %vm1177, %v3204, -inf
        %3325 = vmax.xlane.f32.xlu0 %v3324
        %v3326 = vpop.xlane.xlu0 %3325
        %v3327 = vsel %vm1177, %v3254, -inf
        %3328 = vmax.xlane.f32.xlu0 %v3327
        %v3329 = vpop.xlane.xlu0 %3328
        %v3330 = vsel %vm1177, %v3304, -inf
        %3331 = vmax.xlane.f32.xlu0 %v3330
        %v3332 = vpop.xlane.xlu0 %3331
        %v3333 = vsub.f32 %v2954, %v3311
        %v3334 = vsub.f32 %v3004, %v3314
        %v3335 = vsub.f32 %v3054, %v3317
        %v3336 = vsub.f32 %v3104, %v3320
        %v3337 = vsub.f32 %v3154, %v3323
        %v3338 = vsub.f32 %v3204, %v3326
        %v3339 = vsub.f32 %v3254, %v3329
        %v3340 = vsub.f32 %v3304, %v3332
        %v3341 = vmul.f32 %v3333, 1.442695
        %v3342 = vpow.pop %v3341
        %v3343 = vmul.f32 %v3334, 1.442695
        %v3344 = vpow.pop %v3343
        %v3345 = vmul.f32 %v3335, 1.442695
        %v3346 = vpow.pop %v3345
        %v3347 = vmul.f32 %v3336, 1.442695
        %v3348 = vpow.pop %v3347
        %v3349 = vmul.f32 %v3337, 1.442695
        %v3350 = vpow.pop %v3349
        %v3351 = vmul.f32 %v3338, 1.442695
        %v3352 = vpow.pop %v3351
        %v3353 = vmul.f32 %v3339, 1.442695
        %v3354 = vpow.pop %v3353
        %v3355 = vmul.f32 %v3340, 1.442695
        %v3356 = vpow.pop %v3355
        %v3357 = vsel %vm1177, %v3342, 0.0
        %3358 = vadd.xlane.f32.xlu0 %v3357
        %v3359 = vpop.xlane.xlu0 %3358
        %v3360 = vsel %vm1177, %v3344, 0.0
        %3361 = vadd.xlane.f32.xlu0 %v3360
        %v3362 = vpop.xlane.xlu0 %3361
        %v3363 = vsel %vm1177, %v3346, 0.0
        %3364 = vadd.xlane.f32.xlu0 %v3363
        %v3365 = vpop.xlane.xlu0 %3364
        %v3366 = vsel %vm1177, %v3348, 0.0
        %3367 = vadd.xlane.f32.xlu0 %v3366
        %v3368 = vpop.xlane.xlu0 %3367
        %v3369 = vsel %vm1177, %v3350, 0.0
        %3370 = vadd.xlane.f32.xlu0 %v3369
        %v3371 = vpop.xlane.xlu0 %3370
        %v3372 = vsel %vm1177, %v3352, 0.0
        %3373 = vadd.xlane.f32.xlu0 %v3372
        %v3374 = vpop.xlane.xlu0 %3373
        %v3375 = vsel %vm1177, %v3354, 0.0
        %3376 = vadd.xlane.f32.xlu0 %v3375
        %v3377 = vpop.xlane.xlu0 %3376
        %v3378 = vsel %vm1177, %v3356, 0.0
        %3379 = vadd.xlane.f32.xlu0 %v3378
        %v3380 = vpop.xlane.xlu0 %3379
        %v3381 = vrcp.pop %v3359
        %v3382 = vrcp.pop %v3362
        %v3383 = vrcp.pop %v3365
        %v3384 = vrcp.pop %v3368
        %v3385 = vrcp.pop %v3371
        %v3386 = vrcp.pop %v3374
        %v3387 = vrcp.pop %v3377
        %v3388 = vrcp.pop %v3380
        %v3389 = vmul.f32 %v3342, %v3381
        %v3390 = vmul.f32 %v3344, %v3382
        %v3391 = vmul.f32 %v3346, %v3383
        %v3392 = vmul.f32 %v3348, %v3384
        %v3393 = vmul.f32 %v3350, %v3385
        %v3394 = vmul.f32 %v3352, %v3386
        %v3395 = vmul.f32 %v3354, %v3387
        %v3396 = vmul.f32 %v3356, %v3388
        %v3397 = vpack.c.bf16 %v3389, %v3389
        %v3398 = vpack.c.bf16 %v3390, %v3390
        %v3399 = vpack.c.bf16 %v3391, %v3391
        %v3400 = vpack.c.bf16 %v3392, %v3392
        %v3401 = vpack.c.bf16 %v3393, %v3393
        %v3402 = vpack.c.bf16 %v3394, %v3394
        %v3403 = vpack.c.bf16 %v3395, %v3395
        %v3404 = vpack.c.bf16 %v3396, %v3396
        %3405 = vrot.lane.b32.xlu0 %v2266, 112
        %v3406 = vpop.permute.xlu0 %3405
        %v3408 = vsel %vm1274, %v3397, 0
        %v3411 = vsel %vm1278, %v3406, 0
        %3413 = vmatprep.subr.bf16.mxu0 0
        %3414 = vmatpush1.bf16.msra.mxu0 %v3411
        %3415 = vmatprep.subr.bf16.mxu0 0
        %3416 = vmatpush1.bf16.msra.mxu0 0
        %3417 = vmatprep.subr.bf16.mxu0 0
        %3418 = vmatpush1.bf16.msra.mxu0 0
        %3419 = vmatprep.subr.bf16.mxu0 0
        %3420 = vmatpush1.bf16.msra.mxu0 0
        %3421 = vmatprep.subr.bf16.mxu0 0
        %3422 = vmatpush1.bf16.msra.mxu0 0
        %3423 = vmatprep.subr.bf16.mxu0 0
        %3424 = vmatpush1.bf16.msra.mxu0 0
        %3425 = vmatprep.subr.bf16.mxu0 0
        %3426 = vmatpush1.bf16.msra.mxu0 0
        %3427 = vmatprep.subr.bf16.mxu0 0
        %3428 = vmatpush1.bf16.msra.mxu0 0
        %3429 = vmatprep.subr.bf16.mxu0 0
        %3430 = vmatpush1.bf16.msra.mxu0 0
        %3431 = vmatprep.subr.bf16.mxu0 0
        %3432 = vmatpush1.bf16.msra.mxu0 0
        %3433 = vmatprep.subr.bf16.mxu0 0
        %3434 = vmatpush1.bf16.msra.mxu0 0
        %3435 = vmatprep.subr.bf16.mxu0 0
        %3436 = vmatpush1.bf16.msra.mxu0 0
        %3437 = vmatprep.subr.bf16.mxu0 0
        %3438 = vmatpush1.bf16.msra.mxu0 0
        %3439 = vmatprep.subr.bf16.mxu0 0
        %3440 = vmatpush1.bf16.msra.mxu0 0
        %3441 = vmatprep.subr.bf16.mxu0 0
        %3442 = vmatpush1.bf16.msra.mxu0 0
        %3443 = vmatprep.subr.bf16.mxu0 0
        %3444 = vmatpush1.bf16.msra.mxu0 0
        %3445 = vmatprep.mubr.bf16.mxu0 0
        %3446 = vmatmul.mubr.bf16.gmra.mrb[0].mxu0 %v3408
        %v3447 = vpop.f32.mrb[0].mxu0
        %v3448 = vadd.f32 0.0, %v3447
        %v3449 = vpop.f32.mrb[0].mxu0
        %v3450 = vpop.f32.mrb[0].mxu0
        %v3451 = vpop.f32.mrb[0].mxu0
        %3452 = vdwg.mxu0
        %3453 = vrot.lane.b32.xlu0 %v2321, 112
        %v3454 = vpop.permute.xlu0 %3453
        %v3456 = vsel %vm1274, %v3398, 0
        %v3459 = vsel %vm1278, %v3454, 0
        %3461 = vmatprep.subr.bf16.mxu0 0
        %3462 = vmatpush1.bf16.msra.mxu0 %v3459
        %3463 = vmatprep.subr.bf16.mxu0 0
        %3464 = vmatpush1.bf16.msra.mxu0 0
        %3465 = vmatprep.subr.bf16.mxu0 0
        %3466 = vmatpush1.bf16.msra.mxu0 0
        %3467 = vmatprep.subr.bf16.mxu0 0
        %3468 = vmatpush1.bf16.msra.mxu0 0
        %3469 = vmatprep.subr.bf16.mxu0 0
        %3470 = vmatpush1.bf16.msra.mxu0 0
        %3471 = vmatprep.subr.bf16.mxu0 0
        %3472 = vmatpush1.bf16.msra.mxu0 0
        %3473 = vmatprep.subr.bf16.mxu0 0
        %3474 = vmatpush1.bf16.msra.mxu0 0
        %3475 = vmatprep.subr.bf16.mxu0 0
        %3476 = vmatpush1.bf16.msra.mxu0 0
        %3477 = vmatprep.subr.bf16.mxu0 0
        %3478 = vmatpush1.bf16.msra.mxu0 0
        %3479 = vmatprep.subr.bf16.mxu0 0
        %3480 = vmatpush1.bf16.msra.mxu0 0
        %3481 = vmatprep.subr.bf16.mxu0 0
        %3482 = vmatpush1.bf16.msra.mxu0 0
        %3483 = vmatprep.subr.bf16.mxu0 0
        %3484 = vmatpush1.bf16.msra.mxu0 0
        %3485 = vmatprep.subr.bf16.mxu0 0
        %3486 = vmatpush1.bf16.msra.mxu0 0
        %3487 = vmatprep.subr.bf16.mxu0 0
        %3488 = vmatpush1.bf16.msra.mxu0 0
        %3489 = vmatprep.subr.bf16.mxu0 0
        %3490 = vmatpush1.bf16.msra.mxu0 0
        %3491 = vmatprep.subr.bf16.mxu0 0
        %3492 = vmatpush1.bf16.msra.mxu0 0
        %3493 = vmatprep.mubr.bf16.mxu0 0
        %3494 = vmatmul.mubr.bf16.gmra.mrb[0].mxu0 %v3456
        %v3495 = vpop.f32.mrb[0].mxu0
        %v3496 = vadd.f32 0.0, %v3495
        %v3497 = vpop.f32.mrb[0].mxu0
        %v3498 = vpop.f32.mrb[0].mxu0
        %v3499 = vpop.f32.mrb[0].mxu0
        %3500 = vdwg.mxu0
        %3501 = vrot.lane.b32.xlu0 %v2376, 112
        %v3502 = vpop.permute.xlu0 %3501
        %v3504 = vsel %vm1274, %v3399, 0
        %v3507 = vsel %vm1278, %v3502, 0
        %3509 = vmatprep.subr.bf16.mxu0 0
        %3510 = vmatpush1.bf16.msra.mxu0 %v3507
        %3511 = vmatprep.subr.bf16.mxu0 0
        %3512 = vmatpush1.bf16.msra.mxu0 0
        %3513 = vmatprep.subr.bf16.mxu0 0
        %3514 = vmatpush1.bf16.msra.mxu0 0
        %3515 = vmatprep.subr.bf16.mxu0 0
        %3516 = vmatpush1.bf16.msra.mxu0 0
        %3517 = vmatprep.subr.bf16.mxu0 0
        %3518 = vmatpush1.bf16.msra.mxu0 0
        %3519 = vmatprep.subr.bf16.mxu0 0
        %3520 = vmatpush1.bf16.msra.mxu0 0
        %3521 = vmatprep.subr.bf16.mxu0 0
        %3522 = vmatpush1.bf16.msra.mxu0 0
        %3523 = vmatprep.subr.bf16.mxu0 0
        %3524 = vmatpush1.bf16.msra.mxu0 0
        %3525 = vmatprep.subr.bf16.mxu0 0
        %3526 = vmatpush1.bf16.msra.mxu0 0
        %3527 = vmatprep.subr.bf16.mxu0 0
        %3528 = vmatpush1.bf16.msra.mxu0 0
        %3529 = vmatprep.subr.bf16.mxu0 0
        %3530 = vmatpush1.bf16.msra.mxu0 0
        %3531 = vmatprep.subr.bf16.mxu0 0
        %3532 = vmatpush1.bf16.msra.mxu0 0
        %3533 = vmatprep.subr.bf16.mxu0 0
        %3534 = vmatpush1.bf16.msra.mxu0 0
        %3535 = vmatprep.subr.bf16.mxu0 0
        %3536 = vmatpush1.bf16.msra.mxu0 0
        %3537 = vmatprep.subr.bf16.mxu0 0
        %3538 = vmatpush1.bf16.msra.mxu0 0
        %3539 = vmatprep.subr.bf16.mxu0 0
        %3540 = vmatpush1.bf16.msra.mxu0 0
        %3541 = vmatprep.mubr.bf16.mxu0 0
        %3542 = vmatmul.mubr.bf16.gmra.mrb[0].mxu0 %v3504
        %v3543 = vpop.f32.mrb[0].mxu0
        %v3544 = vadd.f32 0.0, %v3543
        %v3545 = vpop.f32.mrb[0].mxu0
        %v3546 = vpop.f32.mrb[0].mxu0
        %v3547 = vpop.f32.mrb[0].mxu0
        %3548 = vdwg.mxu0
        %3549 = vrot.lane.b32.xlu0 %v2431, 112
        %v3550 = vpop.permute.xlu0 %3549
        %v3552 = vsel %vm1274, %v3400, 0
        %v3555 = vsel %vm1278, %v3550, 0
        %3557 = vmatprep.subr.bf16.mxu0 0
        %3558 = vmatpush1.bf16.msra.mxu0 %v3555
        %3559 = vmatprep.subr.bf16.mxu0 0
        %3560 = vmatpush1.bf16.msra.mxu0 0
        %3561 = vmatprep.subr.bf16.mxu0 0
        %3562 = vmatpush1.bf16.msra.mxu0 0
        %3563 = vmatprep.subr.bf16.mxu0 0
        %3564 = vmatpush1.bf16.msra.mxu0 0
        %3565 = vmatprep.subr.bf16.mxu0 0
        %3566 = vmatpush1.bf16.msra.mxu0 0
        %3567 = vmatprep.subr.bf16.mxu0 0
        %3568 = vmatpush1.bf16.msra.mxu0 0
        %3569 = vmatprep.subr.bf16.mxu0 0
        %3570 = vmatpush1.bf16.msra.mxu0 0
        %3571 = vmatprep.subr.bf16.mxu0 0
        %3572 = vmatpush1.bf16.msra.mxu0 0
        %3573 = vmatprep.subr.bf16.mxu0 0
        %3574 = vmatpush1.bf16.msra.mxu0 0
        %3575 = vmatprep.subr.bf16.mxu0 0
        %3576 = vmatpush1.bf16.msra.mxu0 0
        %3577 = vmatprep.subr.bf16.mxu0 0
        %3578 = vmatpush1.bf16.msra.mxu0 0
        %3579 = vmatprep.subr.bf16.mxu0 0
        %3580 = vmatpush1.bf16.msra.mxu0 0
        %3581 = vmatprep.subr.bf16.mxu0 0
        %3582 = vmatpush1.bf16.msra.mxu0 0
        %3583 = vmatprep.subr.bf16.mxu0 0
        %3584 = vmatpush1.bf16.msra.mxu0 0
        %3585 = vmatprep.subr.bf16.mxu0 0
        %3586 = vmatpush1.bf16.msra.mxu0 0
        %3587 = vmatprep.subr.bf16.mxu0 0
        %3588 = vmatpush1.bf16.msra.mxu0 0
        %3589 = vmatprep.mubr.bf16.mxu0 0
        %3590 = vmatmul.mubr.bf16.gmra.mrb[0].mxu0 %v3552
        %v3591 = vpop.f32.mrb[0].mxu0
        %v3592 = vadd.f32 0.0, %v3591
        %v3593 = vpop.f32.mrb[0].mxu0
        %v3594 = vpop.f32.mrb[0].mxu0
        %v3595 = vpop.f32.mrb[0].mxu0
        %3596 = vdwg.mxu0
        %3597 = vrot.lane.b32.xlu0 %v2486, 112
        %v3598 = vpop.permute.xlu0 %3597
        %v3600 = vsel %vm1274, %v3401, 0
        %v3603 = vsel %vm1278, %v3598, 0
        %3605 = vmatprep.subr.bf16.mxu0 0
        %3606 = vmatpush1.bf16.msra.mxu0 %v3603
        %3607 = vmatprep.subr.bf16.mxu0 0
        %3608 = vmatpush1.bf16.msra.mxu0 0
        %3609 = vmatprep.subr.bf16.mxu0 0
        %3610 = vmatpush1.bf16.msra.mxu0 0
        %3611 = vmatprep.subr.bf16.mxu0 0
        %3612 = vmatpush1.bf16.msra.mxu0 0
        %3613 = vmatprep.subr.bf16.mxu0 0
        %3614 = vmatpush1.bf16.msra.mxu0 0
        %3615 = vmatprep.subr.bf16.mxu0 0
        %3616 = vmatpush1.bf16.msra.mxu0 0
        %3617 = vmatprep.subr.bf16.mxu0 0
        %3618 = vmatpush1.bf16.msra.mxu0 0
        %3619 = vmatprep.subr.bf16.mxu0 0
        %3620 = vmatpush1.bf16.msra.mxu0 0
        %3621 = vmatprep.subr.bf16.mxu0 0
        %3622 = vmatpush1.bf16.msra.mxu0 0
        %3623 = vmatprep.subr.bf16.mxu0 0
        %3624 = vmatpush1.bf16.msra.mxu0 0
        %3625 = vmatprep.subr.bf16.mxu0 0
        %3626 = vmatpush1.bf16.msra.mxu0 0
        %3627 = vmatprep.subr.bf16.mxu0 0
        %3628 = vmatpush1.bf16.msra.mxu0 0
        %3629 = vmatprep.subr.bf16.mxu0 0
        %3630 = vmatpush1.bf16.msra.mxu0 0
        %3631 = vmatprep.subr.bf16.mxu0 0
        %3632 = vmatpush1.bf16.msra.mxu0 0
        %3633 = vmatprep.subr.bf16.mxu0 0
        %3634 = vmatpush1.bf16.msra.mxu0 0
        %3635 = vmatprep.subr.bf16.mxu0 0
        %3636 = vmatpush1.bf16.msra.mxu0 0
        %3637 = vmatprep.mubr.bf16.mxu0 0
        %3638 = vmatmul.mubr.bf16.gmra.mrb[0].mxu0 %v3600
        %v3639 = vpop.f32.mrb[0].mxu0
        %v3640 = vadd.f32 0.0, %v3639
        %v3641 = vpop.f32.mrb[0].mxu0
        %v3642 = vpop.f32.mrb[0].mxu0
        %v3643 = vpop.f32.mrb[0].mxu0
        %3644 = vdwg.mxu0
        %3645 = vrot.lane.b32.xlu0 %v2541, 112
        %v3646 = vpop.permute.xlu0 %3645
        %v3648 = vsel %vm1274, %v3402, 0
        %v3651 = vsel %vm1278, %v3646, 0
        %3653 = vmatprep.subr.bf16.mxu0 0
        %3654 = vmatpush1.bf16.msra.mxu0 %v3651
        %3655 = vmatprep.subr.bf16.mxu0 0
        %3656 = vmatpush1.bf16.msra.mxu0 0
        %3657 = vmatprep.subr.bf16.mxu0 0
        %3658 = vmatpush1.bf16.msra.mxu0 0
        %3659 = vmatprep.subr.bf16.mxu0 0
        %3660 = vmatpush1.bf16.msra.mxu0 0
        %3661 = vmatprep.subr.bf16.mxu0 0
        %3662 = vmatpush1.bf16.msra.mxu0 0
        %3663 = vmatprep.subr.bf16.mxu0 0
        %3664 = vmatpush1.bf16.msra.mxu0 0
        %3665 = vmatprep.subr.bf16.mxu0 0
        %3666 = vmatpush1.bf16.msra.mxu0 0
        %3667 = vmatprep.subr.bf16.mxu0 0
        %3668 = vmatpush1.bf16.msra.mxu0 0
        %3669 = vmatprep.subr.bf16.mxu0 0
        %3670 = vmatpush1.bf16.msra.mxu0 0
        %3671 = vmatprep.subr.bf16.mxu0 0
        %3672 = vmatpush1.bf16.msra.mxu0 0
        %3673 = vmatprep.subr.bf16.mxu0 0
        %3674 = vmatpush1.bf16.msra.mxu0 0
        %3675 = vmatprep.subr.bf16.mxu0 0
        %3676 = vmatpush1.bf16.msra.mxu0 0
        %3677 = vmatprep.subr.bf16.mxu0 0
        %3678 = vmatpush1.bf16.msra.mxu0 0
        %3679 = vmatprep.subr.bf16.mxu0 0
        %3680 = vmatpush1.bf16.msra.mxu0 0
        %3681 = vmatprep.subr.bf16.mxu0 0
        %3682 = vmatpush1.bf16.msra.mxu0 0
        %3683 = vmatprep.subr.bf16.mxu0 0
        %3684 = vmatpush1.bf16.msra.mxu0 0
        %3685 = vmatprep.mubr.bf16.mxu0 0
        %3686 = vmatmul.mubr.bf16.gmra.mrb[0].mxu0 %v3648
        %v3687 = vpop.f32.mrb[0].mxu0
        %v3688 = vadd.f32 0.0, %v3687
        %v3689 = vpop.f32.mrb[0].mxu0
        %v3690 = vpop.f32.mrb[0].mxu0
        %v3691 = vpop.f32.mrb[0].mxu0
        %3692 = vdwg.mxu0
        %3693 = vrot.lane.b32.xlu0 %v2596, 112
        %v3694 = vpop.permute.xlu0 %3693
        %v3696 = vsel %vm1274, %v3403, 0
        %v3699 = vsel %vm1278, %v3694, 0
        %3701 = vmatprep.subr.bf16.mxu0 0
        %3702 = vmatpush1.bf16.msra.mxu0 %v3699
        %3703 = vmatprep.subr.bf16.mxu0 0
        %3704 = vmatpush1.bf16.msra.mxu0 0
        %3705 = vmatprep.subr.bf16.mxu0 0
        %3706 = vmatpush1.bf16.msra.mxu0 0
        %3707 = vmatprep.subr.bf16.mxu0 0
        %3708 = vmatpush1.bf16.msra.mxu0 0
        %3709 = vmatprep.subr.bf16.mxu0 0
        %3710 = vmatpush1.bf16.msra.mxu0 0
        %3711 = vmatprep.subr.bf16.mxu0 0
        %3712 = vmatpush1.bf16.msra.mxu0 0
        %3713 = vmatprep.subr.bf16.mxu0 0
        %3714 = vmatpush1.bf16.msra.mxu0 0
        %3715 = vmatprep.subr.bf16.mxu0 0
        %3716 = vmatpush1.bf16.msra.mxu0 0
        %3717 = vmatprep.subr.bf16.mxu0 0
        %3718 = vmatpush1.bf16.msra.mxu0 0
        %3719 = vmatprep.subr.bf16.mxu0 0
        %3720 = vmatpush1.bf16.msra.mxu0 0
        %3721 = vmatprep.subr.bf16.mxu0 0
        %3722 = vmatpush1.bf16.msra.mxu0 0
        %3723 = vmatprep.subr.bf16.mxu0 0
        %3724 = vmatpush1.bf16.msra.mxu0 0
        %3725 = vmatprep.subr.bf16.mxu0 0
        %3726 = vmatpush1.bf16.msra.mxu0 0
        %3727 = vmatprep.subr.bf16.mxu0 0
        %3728 = vmatpush1.bf16.msra.mxu0 0
        %3729 = vmatprep.subr.bf16.mxu0 0
        %3730 = vmatpush1.bf16.msra.mxu0 0
        %3731 = vmatprep.subr.bf16.mxu0 0
        %3732 = vmatpush1.bf16.msra.mxu0 0
        %3733 = vmatprep.mubr.bf16.mxu0 0
        %3734 = vmatmul.mubr.bf16.gmra.mrb[0].mxu0 %v3696
        %v3735 = vpop.f32.mrb[0].mxu0
        %v3736 = vadd.f32 0.0, %v3735
        %v3737 = vpop.f32.mrb[0].mxu0
        %v3738 = vpop.f32.mrb[0].mxu0
        %v3739 = vpop.f32.mrb[0].mxu0
        %3740 = vdwg.mxu0
        %3741 = vrot.lane.b32.xlu0 %v2651, 112
        %v3742 = vpop.permute.xlu0 %3741
        %v3744 = vsel %vm1274, %v3404, 0
        %v3747 = vsel %vm1278, %v3742, 0
        %3749 = vmatprep.subr.bf16.mxu0 0
        %3750 = vmatpush1.bf16.msra.mxu0 %v3747
        %3751 = vmatprep.subr.bf16.mxu0 0
        %3752 = vmatpush1.bf16.msra.mxu0 0
        %3753 = vmatprep.subr.bf16.mxu0 0
        %3754 = vmatpush1.bf16.msra.mxu0 0
        %3755 = vmatprep.subr.bf16.mxu0 0
        %3756 = vmatpush1.bf16.msra.mxu0 0
        %3757 = vmatprep.subr.bf16.mxu0 0
        %3758 = vmatpush1.bf16.msra.mxu0 0
        %3759 = vmatprep.subr.bf16.mxu0 0
        %3760 = vmatpush1.bf16.msra.mxu0 0
        %3761 = vmatprep.subr.bf16.mxu0 0
        %3762 = vmatpush1.bf16.msra.mxu0 0
        %3763 = vmatprep.subr.bf16.mxu0 0
        %3764 = vmatpush1.bf16.msra.mxu0 0
        %3765 = vmatprep.subr.bf16.mxu0 0
        %3766 = vmatpush1.bf16.msra.mxu0 0
        %3767 = vmatprep.subr.bf16.mxu0 0
        %3768 = vmatpush1.bf16.msra.mxu0 0
        %3769 = vmatprep.subr.bf16.mxu0 0
        %3770 = vmatpush1.bf16.msra.mxu0 0
        %3771 = vmatprep.subr.bf16.mxu0 0
        %3772 = vmatpush1.bf16.msra.mxu0 0
        %3773 = vmatprep.subr.bf16.mxu0 0
        %3774 = vmatpush1.bf16.msra.mxu0 0
        %3775 = vmatprep.subr.bf16.mxu0 0
        %3776 = vmatpush1.bf16.msra.mxu0 0
        %3777 = vmatprep.subr.bf16.mxu0 0
        %3778 = vmatpush1.bf16.msra.mxu0 0
        %3779 = vmatprep.subr.bf16.mxu0 0
        %3780 = vmatpush1.bf16.msra.mxu0 0
        %3781 = vmatprep.mubr.bf16.mxu0 0
        %3782 = vmatmul.mubr.bf16.gmra.mrb[0].mxu0 %v3744
        %v3783 = vpop.f32.mrb[0].mxu0
        %v3784 = vadd.f32 0.0, %v3783
        %v3785 = vpop.f32.mrb[0].mxu0
        %v3786 = vpop.f32.mrb[0].mxu0
        %v3787 = vpop.f32.mrb[0].mxu0
        %3788 = vdwg.mxu0
        %v3789 = vpack.c.bf16 %v3448, %v3448
        %v3790 = vpack.c.bf16 %v3496, %v3496
        %v3791 = vpack.c.bf16 %v3544, %v3544
        %v3792 = vpack.c.bf16 %v3592, %v3592
        %v3793 = vpack.c.bf16 %v3640, %v3640
        %v3794 = vpack.c.bf16 %v3688, %v3688
        %v3795 = vpack.c.bf16 %v3736, %v3736
        %v3796 = vpack.c.bf16 %v3784, %v3784
        %v3805 = vcombine.low %v3789, %v3790
        %v3806 = vcombine.low %v3791, %v3792
        %v3808 = vunpack.c.l.s4 1983009808
        %v3809 = vunpack.c.0.s8 %v3808
        %v3810 = vlaneseq
        %v3811 = vshrl.u32 %v3810, 7
        %v3812 = vsub.s32 %v3809, %v3811
        %v3813 = vrot.slane %v3805, %v3812
        %v3815 = vunpack.c.l.s4 1983009808
        %v3816 = vunpack.c.0.s8 %v3815
        %v3817 = vlaneseq
        %v3818 = vshrl.u32 %v3817, 7
        %v3819 = vsub.s32 %v3816, %v3818
        %v3820 = vrot.slane %v3806, %v3819
        %v3821 = vcombine.low %v3813, %v3820
        %v3822 = vcombine.low %v3793, %v3794
        %v3823 = vcombine.low %v3795, %v3796
        %v3825 = vunpack.c.l.s4 1983009808
        %v3826 = vunpack.c.0.s8 %v3825
        %v3827 = vlaneseq
        %v3828 = vshrl.u32 %v3827, 7
        %v3829 = vsub.s32 %v3826, %v3828
        %v3830 = vrot.slane %v3822, %v3829
        %v3832 = vunpack.c.l.s4 1983009808
        %v3833 = vunpack.c.0.s8 %v3832
        %v3834 = vlaneseq
        %v3835 = vshrl.u32 %v3834, 7
        %v3836 = vsub.s32 %v3833, %v3835
        %v3837 = vrot.slane %v3823, %v3836
        %v3838 = vcombine.low %v3830, %v3837
        %v3840 = vsel %vm808, %v3821, 0
        %v3843 = vsel %vm808, %v3838, 0
        %v3846 = vsel %vm2756, %v439, 0
        %3848 = vmatprep.subr.bf16.mxu0 0
        %3849 = vmatpush1.bf16.msra.mxu0 %v3846
        %3850 = vmatprep.subr.bf16.mxu0 0
        %3851 = vmatpush1.bf16.msra.mxu0 0
        %3852 = vmatprep.subr.bf16.mxu0 0
        %3853 = vmatpush1.bf16.msra.mxu0 0
        %3854 = vmatprep.subr.bf16.mxu0 0
        %3855 = vmatpush1.bf16.msra.mxu0 0
        %3856 = vmatprep.subr.bf16.mxu0 0
        %3857 = vmatpush1.bf16.msra.mxu0 0
        %3858 = vmatprep.subr.bf16.mxu0 0
        %3859 = vmatpush1.bf16.msra.mxu0 0
        %3860 = vmatprep.subr.bf16.mxu0 0
        %3861 = vmatpush1.bf16.msra.mxu0 0
        %3862 = vmatprep.subr.bf16.mxu0 0
        %3863 = vmatpush1.bf16.msra.mxu0 0
        %3864 = vmatprep.subr.bf16.mxu0 0
        %3865 = vmatpush1.bf16.msra.mxu0 0
        %3866 = vmatprep.subr.bf16.mxu0 0
        %3867 = vmatpush1.bf16.msra.mxu0 0
        %3868 = vmatprep.subr.bf16.mxu0 0
        %3869 = vmatpush1.bf16.msra.mxu0 0
        %3870 = vmatprep.subr.bf16.mxu0 0
        %3871 = vmatpush1.bf16.msra.mxu0 0
        %3872 = vmatprep.subr.bf16.mxu0 0
        %3873 = vmatpush1.bf16.msra.mxu0 0
        %3874 = vmatprep.subr.bf16.mxu0 0
        %3875 = vmatpush1.bf16.msra.mxu0 0
        %3876 = vmatprep.subr.bf16.mxu0 0
        %3877 = vmatpush1.bf16.msra.mxu0 0
        %3878 = vmatprep.subr.bf16.mxu0 0
        %3879 = vmatpush1.bf16.msra.mxu0 0
        %3880 = vmatprep.mubr.bf16.mxu0 0
        %3881 = vmatmul.mubr.bf16.gmra.mrb[0].mxu0 %v3840
        %v3882 = vpop.f32.mrb[0].mxu0
        %v3883 = vadd.f32 0.0, %v3882
        %v3884 = vpop.f32.mrb[0].mxu0
        %v3885 = vpop.f32.mrb[0].mxu0
        %v3886 = vadd.f32 0.0, %v3885
        %v3887 = vpop.f32.mrb[0].mxu0
        %3888 = vmatprep.mubr.bf16.mxu0 0
        %3889 = vmatmul.mubr.bf16.gmra.mrb[0].mxu0 %v3843
        %v3890 = vpop.f32.mrb[0].mxu0
        %v3891 = vadd.f32 0.0, %v3890
        %v3892 = vpop.f32.mrb[0].mxu0
        %v3893 = vpop.f32.mrb[0].mxu0
        %v3894 = vadd.f32 0.0, %v3893
        %v3895 = vpop.f32.mrb[0].mxu0
        %3896 = vdwg.mxu0
        %v3897 = vadd.f32 %v2895, %v3883
        %v3898 = vadd.f32 %v2898, %v3886
        %v3899 = vadd.f32 %v2903, %v3891
        %v3900 = vadd.f32 %v2906, %v3894
        %3901 = vrot.lane.b32.xlu0 %v1658, 104
        %v3902 = vpop.permute.xlu0 %3901
        %3903 = vrot.lane.b32.xlu0 %v1667, 104
        %v3904 = vpop.permute.xlu0 %3903
        %v3906 = vsel %vm808, %v3902, 0
        %v3909 = vsel %vm808, %v3904, 0
        %3911 = vmatprep.subr.bf16.mxu0 0
        %3912 = vmatpush1.bf16.xpose.msra.mxu0 %v3909
        %3913 = vmatprep.subr.bf16.mxu0 0
        %3914 = vmatpush1.bf16.xpose.msra.mxu0 0
        %3915 = vmatprep.subr.bf16.mxu0 0
        %3916 = vmatpush1.bf16.xpose.msra.mxu0 0
        %3917 = vmatprep.subr.bf16.mxu0 0
        %3918 = vmatpush1.bf16.xpose.msra.mxu0 0
        %3919 = vmatprep.subr.bf16.mxu0 0
        %3920 = vmatpush1.bf16.xpose.msra.mxu0 0
        %3921 = vmatprep.subr.bf16.mxu0 0
        %3922 = vmatpush1.bf16.xpose.msra.mxu0 0
        %3923 = vmatprep.subr.bf16.mxu0 0
        %3924 = vmatpush1.bf16.xpose.msra.mxu0 0
        %3925 = vmatprep.subr.bf16.mxu0 0
        %3926 = vmatpush1.bf16.xpose.msra.mxu0 0
        %3927 = vmatprep.subr.bf16.mxu0 0
        %3928 = vmatpush1.bf16.xpose.msra.mxu0 0
        %3929 = vmatprep.subr.bf16.mxu0 0
        %3930 = vmatpush1.bf16.xpose.msra.mxu0 0
        %3931 = vmatprep.subr.bf16.mxu0 0
        %3932 = vmatpush1.bf16.xpose.msra.mxu0 0
        %3933 = vmatprep.subr.bf16.mxu0 0
        %3934 = vmatpush1.bf16.xpose.msra.mxu0 0
        %3935 = vmatprep.subr.bf16.mxu0 0
        %3936 = vmatpush1.bf16.xpose.msra.mxu0 0
        %3937 = vmatprep.subr.bf16.mxu0 0
        %3938 = vmatpush1.bf16.xpose.msra.mxu0 0
        %3939 = vmatprep.subr.bf16.mxu0 0
        %3940 = vmatpush1.bf16.xpose.msra.mxu0 0
        %3941 = vmatprep.subr.bf16.mxu0 0
        %3942 = vmatpush1.bf16.xpose.msra.mxu0 0
        %3943 = vmatprep.mubr.bf16.mxu0 0
        %3944 = vmatmul.mubr.bf16.gmra.mrb[0].mxu0 %v3906
        %v3945 = vpop.f32.mrb[0].mxu0
        %v3946 = vadd.f32 0.0, %v3945
        %v3947 = vpop.f32.mrb[0].mxu0
        %v3948 = vpop.f32.mrb[0].mxu0
        %v3949 = vpop.f32.mrb[0].mxu0
        %3950 = vdwg.mxu0
        %3951 = vrot.lane.b32.xlu0 %v1722, 104
        %v3952 = vpop.permute.xlu0 %3951
        %3953 = vrot.lane.b32.xlu0 %v1731, 104
        %v3954 = vpop.permute.xlu0 %3953
        %v3956 = vsel %vm808, %v3952, 0
        %v3959 = vsel %vm808, %v3954, 0
        %3961 = vmatprep.subr.bf16.mxu0 0
        %3962 = vmatpush1.bf16.xpose.msra.mxu0 %v3959
        %3963 = vmatprep.subr.bf16.mxu0 0
        %3964 = vmatpush1.bf16.xpose.msra.mxu0 0
        %3965 = vmatprep.subr.bf16.mxu0 0
        %3966 = vmatpush1.bf16.xpose.msra.mxu0 0
        %3967 = vmatprep.subr.bf16.mxu0 0
        %3968 = vmatpush1.bf16.xpose.msra.mxu0 0
        %3969 = vmatprep.subr.bf16.mxu0 0
        %3970 = vmatpush1.bf16.xpose.msra.mxu0 0
        %3971 = vmatprep.subr.bf16.mxu0 0
        %3972 = vmatpush1.bf16.xpose.msra.mxu0 0
        %3973 = vmatprep.subr.bf16.mxu0 0
        %3974 = vmatpush1.bf16.xpose.msra.mxu0 0
        %3975 = vmatprep.subr.bf16.mxu0 0
        %3976 = vmatpush1.bf16.xpose.msra.mxu0 0
        %3977 = vmatprep.subr.bf16.mxu0 0
        %3978 = vmatpush1.bf16.xpose.msra.mxu0 0
        %3979 = vmatprep.subr.bf16.mxu0 0
        %3980 = vmatpush1.bf16.xpose.msra.mxu0 0
        %3981 = vmatprep.subr.bf16.mxu0 0
        %3982 = vmatpush1.bf16.xpose.msra.mxu0 0
        %3983 = vmatprep.subr.bf16.mxu0 0
        %3984 = vmatpush1.bf16.xpose.msra.mxu0 0
        %3985 = vmatprep.subr.bf16.mxu0 0
        %3986 = vmatpush1.bf16.xpose.msra.mxu0 0
        %3987 = vmatprep.subr.bf16.mxu0 0
        %3988 = vmatpush1.bf16.xpose.msra.mxu0 0
        %3989 = vmatprep.subr.bf16.mxu0 0
        %3990 = vmatpush1.bf16.xpose.msra.mxu0 0
        %3991 = vmatprep.subr.bf16.mxu0 0
        %3992 = vmatpush1.bf16.xpose.msra.mxu0 0
        %3993 = vmatprep.mubr.bf16.mxu0 0
        %3994 = vmatmul.mubr.bf16.gmra.mrb[0].mxu0 %v3956
        %v3995 = vpop.f32.mrb[0].mxu0
        %v3996 = vadd.f32 0.0, %v3995
        %v3997 = vpop.f32.mrb[0].mxu0
        %v3998 = vpop.f32.mrb[0].mxu0
        %v3999 = vpop.f32.mrb[0].mxu0
        %4000 = vdwg.mxu0
        %4001 = vrot.lane.b32.xlu0 %v1786, 104
        %v4002 = vpop.permute.xlu0 %4001
        %4003 = vrot.lane.b32.xlu0 %v1795, 104
        %v4004 = vpop.permute.xlu0 %4003
        %v4006 = vsel %vm808, %v4002, 0
        %v4009 = vsel %vm808, %v4004, 0
        %4011 = vmatprep.subr.bf16.mxu0 0
        %4012 = vmatpush1.bf16.xpose.msra.mxu0 %v4009
        %4013 = vmatprep.subr.bf16.mxu0 0
        %4014 = vmatpush1.bf16.xpose.msra.mxu0 0
        %4015 = vmatprep.subr.bf16.mxu0 0
        %4016 = vmatpush1.bf16.xpose.msra.mxu0 0
        %4017 = vmatprep.subr.bf16.mxu0 0
        %4018 = vmatpush1.bf16.xpose.msra.mxu0 0
        %4019 = vmatprep.subr.bf16.mxu0 0
        %4020 = vmatpush1.bf16.xpose.msra.mxu0 0
        %4021 = vmatprep.subr.bf16.mxu0 0
        %4022 = vmatpush1.bf16.xpose.msra.mxu0 0
        %4023 = vmatprep.subr.bf16.mxu0 0
        %4024 = vmatpush1.bf16.xpose.msra.mxu0 0
        %4025 = vmatprep.subr.bf16.mxu0 0
        %4026 = vmatpush1.bf16.xpose.msra.mxu0 0
        %4027 = vmatprep.subr.bf16.mxu0 0
        %4028 = vmatpush1.bf16.xpose.msra.mxu0 0
        %4029 = vmatprep.subr.bf16.mxu0 0
        %4030 = vmatpush1.bf16.xpose.msra.mxu0 0
        %4031 = vmatprep.subr.bf16.mxu0 0
        %4032 = vmatpush1.bf16.xpose.msra.mxu0 0
        %4033 = vmatprep.subr.bf16.mxu0 0
        %4034 = vmatpush1.bf16.xpose.msra.mxu0 0
        %4035 = vmatprep.subr.bf16.mxu0 0
        %4036 = vmatpush1.bf16.xpose.msra.mxu0 0
        %4037 = vmatprep.subr.bf16.mxu0 0
        %4038 = vmatpush1.bf16.xpose.msra.mxu0 0
        %4039 = vmatprep.subr.bf16.mxu0 0
        %4040 = vmatpush1.bf16.xpose.msra.mxu0 0
        %4041 = vmatprep.subr.bf16.mxu0 0
        %4042 = vmatpush1.bf16.xpose.msra.mxu0 0
        %4043 = vmatprep.mubr.bf16.mxu0 0
        %4044 = vmatmul.mubr.bf16.gmra.mrb[0].mxu0 %v4006
        %v4045 = vpop.f32.mrb[0].mxu0
        %v4046 = vadd.f32 0.0, %v4045
        %v4047 = vpop.f32.mrb[0].mxu0
        %v4048 = vpop.f32.mrb[0].mxu0
        %v4049 = vpop.f32.mrb[0].mxu0
        %4050 = vdwg.mxu0
        %4051 = vrot.lane.b32.xlu0 %v1850, 104
        %v4052 = vpop.permute.xlu0 %4051
        %4053 = vrot.lane.b32.xlu0 %v1859, 104
        %v4054 = vpop.permute.xlu0 %4053
        %v4056 = vsel %vm808, %v4052, 0
        %v4059 = vsel %vm808, %v4054, 0
        %4061 = vmatprep.subr.bf16.mxu0 0
        %4062 = vmatpush1.bf16.xpose.msra.mxu0 %v4059
        %4063 = vmatprep.subr.bf16.mxu0 0
        %4064 = vmatpush1.bf16.xpose.msra.mxu0 0
        %4065 = vmatprep.subr.bf16.mxu0 0
        %4066 = vmatpush1.bf16.xpose.msra.mxu0 0
        %4067 = vmatprep.subr.bf16.mxu0 0
        %4068 = vmatpush1.bf16.xpose.msra.mxu0 0
        %4069 = vmatprep.subr.bf16.mxu0 0
        %4070 = vmatpush1.bf16.xpose.msra.mxu0 0
        %4071 = vmatprep.subr.bf16.mxu0 0
        %4072 = vmatpush1.bf16.xpose.msra.mxu0 0
        %4073 = vmatprep.subr.bf16.mxu0 0
        %4074 = vmatpush1.bf16.xpose.msra.mxu0 0
        %4075 = vmatprep.subr.bf16.mxu0 0
        %4076 = vmatpush1.bf16.xpose.msra.mxu0 0
        %4077 = vmatprep.subr.bf16.mxu0 0
        %4078 = vmatpush1.bf16.xpose.msra.mxu0 0
        %4079 = vmatprep.subr.bf16.mxu0 0
        %4080 = vmatpush1.bf16.xpose.msra.mxu0 0
        %4081 = vmatprep.subr.bf16.mxu0 0
        %4082 = vmatpush1.bf16.xpose.msra.mxu0 0
        %4083 = vmatprep.subr.bf16.mxu0 0
        %4084 = vmatpush1.bf16.xpose.msra.mxu0 0
        %4085 = vmatprep.subr.bf16.mxu0 0
        %4086 = vmatpush1.bf16.xpose.msra.mxu0 0
        %4087 = vmatprep.subr.bf16.mxu0 0
        %4088 = vmatpush1.bf16.xpose.msra.mxu0 0
        %4089 = vmatprep.subr.bf16.mxu0 0
        %4090 = vmatpush1.bf16.xpose.msra.mxu0 0
        %4091 = vmatprep.subr.bf16.mxu0 0
        %4092 = vmatpush1.bf16.xpose.msra.mxu0 0
        %4093 = vmatprep.mubr.bf16.mxu0 0
        %4094 = vmatmul.mubr.bf16.gmra.mrb[0].mxu0 %v4056
        %v4095 = vpop.f32.mrb[0].mxu0
        %v4096 = vadd.f32 0.0, %v4095
        %v4097 = vpop.f32.mrb[0].mxu0
        %v4098 = vpop.f32.mrb[0].mxu0
        %v4099 = vpop.f32.mrb[0].mxu0
        %4100 = vdwg.mxu0
        %4101 = vrot.lane.b32.xlu0 %v1914, 104
        %v4102 = vpop.permute.xlu0 %4101
        %4103 = vrot.lane.b32.xlu0 %v1923, 104
        %v4104 = vpop.permute.xlu0 %4103
        %v4106 = vsel %vm808, %v4102, 0
        %v4109 = vsel %vm808, %v4104, 0
        %4111 = vmatprep.subr.bf16.mxu0 0
        %4112 = vmatpush1.bf16.xpose.msra.mxu0 %v4109
        %4113 = vmatprep.subr.bf16.mxu0 0
        %4114 = vmatpush1.bf16.xpose.msra.mxu0 0
        %4115 = vmatprep.subr.bf16.mxu0 0
        %4116 = vmatpush1.bf16.xpose.msra.mxu0 0
        %4117 = vmatprep.subr.bf16.mxu0 0
        %4118 = vmatpush1.bf16.xpose.msra.mxu0 0
        %4119 = vmatprep.subr.bf16.mxu0 0
        %4120 = vmatpush1.bf16.xpose.msra.mxu0 0
        %4121 = vmatprep.subr.bf16.mxu0 0
        %4122 = vmatpush1.bf16.xpose.msra.mxu0 0
        %4123 = vmatprep.subr.bf16.mxu0 0
        %4124 = vmatpush1.bf16.xpose.msra.mxu0 0
        %4125 = vmatprep.subr.bf16.mxu0 0
        %4126 = vmatpush1.bf16.xpose.msra.mxu0 0
        %4127 = vmatprep.subr.bf16.mxu0 0
        %4128 = vmatpush1.bf16.xpose.msra.mxu0 0
        %4129 = vmatprep.subr.bf16.mxu0 0
        %4130 = vmatpush1.bf16.xpose.msra.mxu0 0
        %4131 = vmatprep.subr.bf16.mxu0 0
        %4132 = vmatpush1.bf16.xpose.msra.mxu0 0
        %4133 = vmatprep.subr.bf16.mxu0 0
        %4134 = vmatpush1.bf16.xpose.msra.mxu0 0
        %4135 = vmatprep.subr.bf16.mxu0 0
        %4136 = vmatpush1.bf16.xpose.msra.mxu0 0
        %4137 = vmatprep.subr.bf16.mxu0 0
        %4138 = vmatpush1.bf16.xpose.msra.mxu0 0
        %4139 = vmatprep.subr.bf16.mxu0 0
        %4140 = vmatpush1.bf16.xpose.msra.mxu0 0
        %4141 = vmatprep.subr.bf16.mxu0 0
        %4142 = vmatpush1.bf16.xpose.msra.mxu0 0
        %4143 = vmatprep.mubr.bf16.mxu0 0
        %4144 = vmatmul.mubr.bf16.gmra.mrb[0].mxu0 %v4106
        %v4145 = vpop.f32.mrb[0].mxu0
        %v4146 = vadd.f32 0.0, %v4145
        %v4147 = vpop.f32.mrb[0].mxu0
        %v4148 = vpop.f32.mrb[0].mxu0
        %v4149 = vpop.f32.mrb[0].mxu0
        %4150 = vdwg.mxu0
        %4151 = vrot.lane.b32.xlu0 %v1978, 104
        %v4152 = vpop.permute.xlu0 %4151
        %4153 = vrot.lane.b32.xlu0 %v1987, 104
        %v4154 = vpop.permute.xlu0 %4153
        %v4156 = vsel %vm808, %v4152, 0
        %v4159 = vsel %vm808, %v4154, 0
        %4161 = vmatprep.subr.bf16.mxu0 0
        %4162 = vmatpush1.bf16.xpose.msra.mxu0 %v4159
        %4163 = vmatprep.subr.bf16.mxu0 0
        %4164 = vmatpush1.bf16.xpose.msra.mxu0 0
        %4165 = vmatprep.subr.bf16.mxu0 0
        %4166 = vmatpush1.bf16.xpose.msra.mxu0 0
        %4167 = vmatprep.subr.bf16.mxu0 0
        %4168 = vmatpush1.bf16.xpose.msra.mxu0 0
        %4169 = vmatprep.subr.bf16.mxu0 0
        %4170 = vmatpush1.bf16.xpose.msra.mxu0 0
        %4171 = vmatprep.subr.bf16.mxu0 0
        %4172 = vmatpush1.bf16.xpose.msra.mxu0 0
        %4173 = vmatprep.subr.bf16.mxu0 0
        %4174 = vmatpush1.bf16.xpose.msra.mxu0 0
        %4175 = vmatprep.subr.bf16.mxu0 0
        %4176 = vmatpush1.bf16.xpose.msra.mxu0 0
        %4177 = vmatprep.subr.bf16.mxu0 0
        %4178 = vmatpush1.bf16.xpose.msra.mxu0 0
        %4179 = vmatprep.subr.bf16.mxu0 0
        %4180 = vmatpush1.bf16.xpose.msra.mxu0 0
        %4181 = vmatprep.subr.bf16.mxu0 0
        %4182 = vmatpush1.bf16.xpose.msra.mxu0 0
        %4183 = vmatprep.subr.bf16.mxu0 0
        %4184 = vmatpush1.bf16.xpose.msra.mxu0 0
        %4185 = vmatprep.subr.bf16.mxu0 0
        %4186 = vmatpush1.bf16.xpose.msra.mxu0 0
        %4187 = vmatprep.subr.bf16.mxu0 0
        %4188 = vmatpush1.bf16.xpose.msra.mxu0 0
        %4189 = vmatprep.subr.bf16.mxu0 0
        %4190 = vmatpush1.bf16.xpose.msra.mxu0 0
        %4191 = vmatprep.subr.bf16.mxu0 0
        %4192 = vmatpush1.bf16.xpose.msra.mxu0 0
        %4193 = vmatprep.mubr.bf16.mxu0 0
        %4194 = vmatmul.mubr.bf16.gmra.mrb[0].mxu0 %v4156
        %v4195 = vpop.f32.mrb[0].mxu0
        %v4196 = vadd.f32 0.0, %v4195
        %v4197 = vpop.f32.mrb[0].mxu0
        %v4198 = vpop.f32.mrb[0].mxu0
        %v4199 = vpop.f32.mrb[0].mxu0
        %4200 = vdwg.mxu0
        %4201 = vrot.lane.b32.xlu0 %v2042, 104
        %v4202 = vpop.permute.xlu0 %4201
        %4203 = vrot.lane.b32.xlu0 %v2051, 104
        %v4204 = vpop.permute.xlu0 %4203
        %v4206 = vsel %vm808, %v4202, 0
        %v4209 = vsel %vm808, %v4204, 0
        %4211 = vmatprep.subr.bf16.mxu0 0
        %4212 = vmatpush1.bf16.xpose.msra.mxu0 %v4209
        %4213 = vmatprep.subr.bf16.mxu0 0
        %4214 = vmatpush1.bf16.xpose.msra.mxu0 0
        %4215 = vmatprep.subr.bf16.mxu0 0
        %4216 = vmatpush1.bf16.xpose.msra.mxu0 0
        %4217 = vmatprep.subr.bf16.mxu0 0
        %4218 = vmatpush1.bf16.xpose.msra.mxu0 0
        %4219 = vmatprep.subr.bf16.mxu0 0
        %4220 = vmatpush1.bf16.xpose.msra.mxu0 0
        %4221 = vmatprep.subr.bf16.mxu0 0
        %4222 = vmatpush1.bf16.xpose.msra.mxu0 0
        %4223 = vmatprep.subr.bf16.mxu0 0
        %4224 = vmatpush1.bf16.xpose.msra.mxu0 0
        %4225 = vmatprep.subr.bf16.mxu0 0
        %4226 = vmatpush1.bf16.xpose.msra.mxu0 0
        %4227 = vmatprep.subr.bf16.mxu0 0
        %4228 = vmatpush1.bf16.xpose.msra.mxu0 0
        %4229 = vmatprep.subr.bf16.mxu0 0
        %4230 = vmatpush1.bf16.xpose.msra.mxu0 0
        %4231 = vmatprep.subr.bf16.mxu0 0
        %4232 = vmatpush1.bf16.xpose.msra.mxu0 0
        %4233 = vmatprep.subr.bf16.mxu0 0
        %4234 = vmatpush1.bf16.xpose.msra.mxu0 0
        %4235 = vmatprep.subr.bf16.mxu0 0
        %4236 = vmatpush1.bf16.xpose.msra.mxu0 0
        %4237 = vmatprep.subr.bf16.mxu0 0
        %4238 = vmatpush1.bf16.xpose.msra.mxu0 0
        %4239 = vmatprep.subr.bf16.mxu0 0
        %4240 = vmatpush1.bf16.xpose.msra.mxu0 0
        %4241 = vmatprep.subr.bf16.mxu0 0
        %4242 = vmatpush1.bf16.xpose.msra.mxu0 0
        %4243 = vmatprep.mubr.bf16.mxu0 0
        %4244 = vmatmul.mubr.bf16.gmra.mrb[0].mxu0 %v4206
        %v4245 = vpop.f32.mrb[0].mxu0
        %v4246 = vadd.f32 0.0, %v4245
        %v4247 = vpop.f32.mrb[0].mxu0
        %v4248 = vpop.f32.mrb[0].mxu0
        %v4249 = vpop.f32.mrb[0].mxu0
        %4250 = vdwg.mxu0
        %4251 = vrot.lane.b32.xlu0 %v2106, 104
        %v4252 = vpop.permute.xlu0 %4251
        %4253 = vrot.lane.b32.xlu0 %v2115, 104
        %v4254 = vpop.permute.xlu0 %4253
        %v4256 = vsel %vm808, %v4252, 0
        %v4259 = vsel %vm808, %v4254, 0
        %4261 = vmatprep.subr.bf16.mxu0 0
        %4262 = vmatpush1.bf16.xpose.msra.mxu0 %v4259
        %4263 = vmatprep.subr.bf16.mxu0 0
        %4264 = vmatpush1.bf16.xpose.msra.mxu0 0
        %4265 = vmatprep.subr.bf16.mxu0 0
        %4266 = vmatpush1.bf16.xpose.msra.mxu0 0
        %4267 = vmatprep.subr.bf16.mxu0 0
        %4268 = vmatpush1.bf16.xpose.msra.mxu0 0
        %4269 = vmatprep.subr.bf16.mxu0 0
        %4270 = vmatpush1.bf16.xpose.msra.mxu0 0
        %4271 = vmatprep.subr.bf16.mxu0 0
        %4272 = vmatpush1.bf16.xpose.msra.mxu0 0
        %4273 = vmatprep.subr.bf16.mxu0 0
        %4274 = vmatpush1.bf16.xpose.msra.mxu0 0
        %4275 = vmatprep.subr.bf16.mxu0 0
        %4276 = vmatpush1.bf16.xpose.msra.mxu0 0
        %4277 = vmatprep.subr.bf16.mxu0 0
        %4278 = vmatpush1.bf16.xpose.msra.mxu0 0
        %4279 = vmatprep.subr.bf16.mxu0 0
        %4280 = vmatpush1.bf16.xpose.msra.mxu0 0
        %4281 = vmatprep.subr.bf16.mxu0 0
        %4282 = vmatpush1.bf16.xpose.msra.mxu0 0
        %4283 = vmatprep.subr.bf16.mxu0 0
        %4284 = vmatpush1.bf16.xpose.msra.mxu0 0
        %4285 = vmatprep.subr.bf16.mxu0 0
        %4286 = vmatpush1.bf16.xpose.msra.mxu0 0
        %4287 = vmatprep.subr.bf16.mxu0 0
        %4288 = vmatpush1.bf16.xpose.msra.mxu0 0
        %4289 = vmatprep.subr.bf16.mxu0 0
        %4290 = vmatpush1.bf16.xpose.msra.mxu0 0
        %4291 = vmatprep.subr.bf16.mxu0 0
        %4292 = vmatpush1.bf16.xpose.msra.mxu0 0
        %4293 = vmatprep.mubr.bf16.mxu0 0
        %4294 = vmatmul.mubr.bf16.gmra.mrb[0].mxu0 %v4256
        %v4295 = vpop.f32.mrb[0].mxu0
        %v4296 = vadd.f32 0.0, %v4295
        %v4297 = vpop.f32.mrb[0].mxu0
        %v4298 = vpop.f32.mrb[0].mxu0
        %v4299 = vpop.f32.mrb[0].mxu0
        %4300 = vdwg.mxu0
        %v4301 = vsel %vm1177, %v3946, -inf
        %4302 = vmax.xlane.f32.xlu0 %v4301
        %v4303 = vpop.xlane.xlu0 %4302
        %v4304 = vsel %vm1177, %v3996, -inf
        %4305 = vmax.xlane.f32.xlu0 %v4304
        %v4306 = vpop.xlane.xlu0 %4305
        %v4307 = vsel %vm1177, %v4046, -inf
        %4308 = vmax.xlane.f32.xlu0 %v4307
        %v4309 = vpop.xlane.xlu0 %4308
        %v4310 = vsel %vm1177, %v4096, -inf
        %4311 = vmax.xlane.f32.xlu0 %v4310
        %v4312 = vpop.xlane.xlu0 %4311
        %v4313 = vsel %vm1177, %v4146, -inf
        %4314 = vmax.xlane.f32.xlu0 %v4313
        %v4315 = vpop.xlane.xlu0 %4314
        %v4316 = vsel %vm1177, %v4196, -inf
        %4317 = vmax.xlane.f32.xlu0 %v4316
        %v4318 = vpop.xlane.xlu0 %4317
        %v4319 = vsel %vm1177, %v4246, -inf
        %4320 = vmax.xlane.f32.xlu0 %v4319
        %v4321 = vpop.xlane.xlu0 %4320
        %v4322 = vsel %vm1177, %v4296, -inf
        %4323 = vmax.xlane.f32.xlu0 %v4322
        %v4324 = vpop.xlane.xlu0 %4323
        %v4325 = vsub.f32 %v3946, %v4303
        %v4326 = vsub.f32 %v3996, %v4306
        %v4327 = vsub.f32 %v4046, %v4309
        %v4328 = vsub.f32 %v4096, %v4312
        %v4329 = vsub.f32 %v4146, %v4315
        %v4330 = vsub.f32 %v4196, %v4318
        %v4331 = vsub.f32 %v4246, %v4321
        %v4332 = vsub.f32 %v4296, %v4324
        %v4333 = vmul.f32 %v4325, 1.442695
        %v4334 = vpow.pop %v4333
        %v4335 = vmul.f32 %v4326, 1.442695
        %v4336 = vpow.pop %v4335
        %v4337 = vmul.f32 %v4327, 1.442695
        %v4338 = vpow.pop %v4337
        %v4339 = vmul.f32 %v4328, 1.442695
        %v4340 = vpow.pop %v4339
        %v4341 = vmul.f32 %v4329, 1.442695
        %v4342 = vpow.pop %v4341
        %v4343 = vmul.f32 %v4330, 1.442695
        %v4344 = vpow.pop %v4343
        %v4345 = vmul.f32 %v4331, 1.442695
        %v4346 = vpow.pop %v4345
        %v4347 = vmul.f32 %v4332, 1.442695
        %v4348 = vpow.pop %v4347
        %v4349 = vsel %vm1177, %v4334, 0.0
        %4350 = vadd.xlane.f32.xlu0 %v4349
        %v4351 = vpop.xlane.xlu0 %4350
        %v4352 = vsel %vm1177, %v4336, 0.0
        %4353 = vadd.xlane.f32.xlu0 %v4352
        %v4354 = vpop.xlane.xlu0 %4353
        %v4355 = vsel %vm1177, %v4338, 0.0
        %4356 = vadd.xlane.f32.xlu0 %v4355
        %v4357 = vpop.xlane.xlu0 %4356
        %v4358 = vsel %vm1177, %v4340, 0.0
        %4359 = vadd.xlane.f32.xlu0 %v4358
        %v4360 = vpop.xlane.xlu0 %4359
        %v4361 = vsel %vm1177, %v4342, 0.0
        %4362 = vadd.xlane.f32.xlu0 %v4361
        %v4363 = vpop.xlane.xlu0 %4362
        %v4364 = vsel %vm1177, %v4344, 0.0
        %4365 = vadd.xlane.f32.xlu0 %v4364
        %v4366 = vpop.xlane.xlu0 %4365
        %v4367 = vsel %vm1177, %v4346, 0.0
        %4368 = vadd.xlane.f32.xlu0 %v4367
        %v4369 = vpop.xlane.xlu0 %4368
        %v4370 = vsel %vm1177, %v4348, 0.0
        %4371 = vadd.xlane.f32.xlu0 %v4370
        %v4372 = vpop.xlane.xlu0 %4371
        %v4373 = vrcp.pop %v4351
        %v4374 = vrcp.pop %v4354
        %v4375 = vrcp.pop %v4357
        %v4376 = vrcp.pop %v4360
        %v4377 = vrcp.pop %v4363
        %v4378 = vrcp.pop %v4366
        %v4379 = vrcp.pop %v4369
        %v4380 = vrcp.pop %v4372
        %v4381 = vmul.f32 %v4334, %v4373
        %v4382 = vmul.f32 %v4336, %v4374
        %v4383 = vmul.f32 %v4338, %v4375
        %v4384 = vmul.f32 %v4340, %v4376
        %v4385 = vmul.f32 %v4342, %v4377
        %v4386 = vmul.f32 %v4344, %v4378
        %v4387 = vmul.f32 %v4346, %v4379
        %v4388 = vmul.f32 %v4348, %v4380
        %v4389 = vpack.c.bf16 %v4381, %v4381
        %v4390 = vpack.c.bf16 %v4382, %v4382
        %v4391 = vpack.c.bf16 %v4383, %v4383
        %v4392 = vpack.c.bf16 %v4384, %v4384
        %v4393 = vpack.c.bf16 %v4385, %v4385
        %v4394 = vpack.c.bf16 %v4386, %v4386
        %v4395 = vpack.c.bf16 %v4387, %v4387
        %v4396 = vpack.c.bf16 %v4388, %v4388
        %4397 = vrot.lane.b32.xlu0 %v2266, 104
        %v4398 = vpop.permute.xlu0 %4397
        %v4400 = vsel %vm1274, %v4389, 0
        %v4403 = vsel %vm1278, %v4398, 0
        %4405 = vmatprep.subr.bf16.mxu0 0
        %4406 = vmatpush1.bf16.msra.mxu0 %v4403
        %4407 = vmatprep.subr.bf16.mxu0 0
        %4408 = vmatpush1.bf16.msra.mxu0 0
        %4409 = vmatprep.subr.bf16.mxu0 0
        %4410 = vmatpush1.bf16.msra.mxu0 0
        %4411 = vmatprep.subr.bf16.mxu0 0
        %4412 = vmatpush1.bf16.msra.mxu0 0
        %4413 = vmatprep.subr.bf16.mxu0 0
        %4414 = vmatpush1.bf16.msra.mxu0 0
        %4415 = vmatprep.subr.bf16.mxu0 0
        %4416 = vmatpush1.bf16.msra.mxu0 0
        %4417 = vmatprep.subr.bf16.mxu0 0
        %4418 = vmatpush1.bf16.msra.mxu0 0
        %4419 = vmatprep.subr.bf16.mxu0 0
        %4420 = vmatpush1.bf16.msra.mxu0 0
        %4421 = vmatprep.subr.bf16.mxu0 0
        %4422 = vmatpush1.bf16.msra.mxu0 0
        %4423 = vmatprep.subr.bf16.mxu0 0
        %4424 = vmatpush1.bf16.msra.mxu0 0
        %4425 = vmatprep.subr.bf16.mxu0 0
        %4426 = vmatpush1.bf16.msra.mxu0 0
        %4427 = vmatprep.subr.bf16.mxu0 0
        %4428 = vmatpush1.bf16.msra.mxu0 0
        %4429 = vmatprep.subr.bf16.mxu0 0
        %4430 = vmatpush1.bf16.msra.mxu0 0
        %4431 = vmatprep.subr.bf16.mxu0 0
        %4432 = vmatpush1.bf16.msra.mxu0 0
        %4433 = vmatprep.subr.bf16.mxu0 0
        %4434 = vmatpush1.bf16.msra.mxu0 0
        %4435 = vmatprep.subr.bf16.mxu0 0
        %4436 = vmatpush1.bf16.msra.mxu0 0
        %4437 = vmatprep.mubr.bf16.mxu0 0
        %4438 = vmatmul.mubr.bf16.gmra.mrb[0].mxu0 %v4400
        %v4439 = vpop.f32.mrb[0].mxu0
        %v4440 = vadd.f32 0.0, %v4439
        %v4441 = vpop.f32.mrb[0].mxu0
        %v4442 = vpop.f32.mrb[0].mxu0
        %v4443 = vpop.f32.mrb[0].mxu0
        %4444 = vdwg.mxu0
        %4445 = vrot.lane.b32.xlu0 %v2321, 104
        %v4446 = vpop.permute.xlu0 %4445
        %v4448 = vsel %vm1274, %v4390, 0
        %v4451 = vsel %vm1278, %v4446, 0
        %4453 = vmatprep.subr.bf16.mxu0 0
        %4454 = vmatpush1.bf16.msra.mxu0 %v4451
        %4455 = vmatprep.subr.bf16.mxu0 0
        %4456 = vmatpush1.bf16.msra.mxu0 0
        %4457 = vmatprep.subr.bf16.mxu0 0
        %4458 = vmatpush1.bf16.msra.mxu0 0
        %4459 = vmatprep.subr.bf16.mxu0 0
        %4460 = vmatpush1.bf16.msra.mxu0 0
        %4461 = vmatprep.subr.bf16.mxu0 0
        %4462 = vmatpush1.bf16.msra.mxu0 0
        %4463 = vmatprep.subr.bf16.mxu0 0
        %4464 = vmatpush1.bf16.msra.mxu0 0
        %4465 = vmatprep.subr.bf16.mxu0 0
        %4466 = vmatpush1.bf16.msra.mxu0 0
        %4467 = vmatprep.subr.bf16.mxu0 0
        %4468 = vmatpush1.bf16.msra.mxu0 0
        %4469 = vmatprep.subr.bf16.mxu0 0
        %4470 = vmatpush1.bf16.msra.mxu0 0
        %4471 = vmatprep.subr.bf16.mxu0 0
        %4472 = vmatpush1.bf16.msra.mxu0 0
        %4473 = vmatprep.subr.bf16.mxu0 0
        %4474 = vmatpush1.bf16.msra.mxu0 0
        %4475 = vmatprep.subr.bf16.mxu0 0
        %4476 = vmatpush1.bf16.msra.mxu0 0
        %4477 = vmatprep.subr.bf16.mxu0 0
        %4478 = vmatpush1.bf16.msra.mxu0 0
        %4479 = vmatprep.subr.bf16.mxu0 0
        %4480 = vmatpush1.bf16.msra.mxu0 0
        %4481 = vmatprep.subr.bf16.mxu0 0
        %4482 = vmatpush1.bf16.msra.mxu0 0
        %4483 = vmatprep.subr.bf16.mxu0 0
        %4484 = vmatpush1.bf16.msra.mxu0 0
        %4485 = vmatprep.mubr.bf16.mxu0 0
        %4486 = vmatmul.mubr.bf16.gmra.mrb[0].mxu0 %v4448
        %v4487 = vpop.f32.mrb[0].mxu0
        %v4488 = vadd.f32 0.0, %v4487
        %v4489 = vpop.f32.mrb[0].mxu0
        %v4490 = vpop.f32.mrb[0].mxu0
        %v4491 = vpop.f32.mrb[0].mxu0
        %4492 = vdwg.mxu0
        %4493 = vrot.lane.b32.xlu0 %v2376, 104
        %v4494 = vpop.permute.xlu0 %4493
        %v4496 = vsel %vm1274, %v4391, 0
        %v4499 = vsel %vm1278, %v4494, 0
        %4501 = vmatprep.subr.bf16.mxu0 0
        %4502 = vmatpush1.bf16.msra.mxu0 %v4499
        %4503 = vmatprep.subr.bf16.mxu0 0
        %4504 = vmatpush1.bf16.msra.mxu0 0
        %4505 = vmatprep.subr.bf16.mxu0 0
        %4506 = vmatpush1.bf16.msra.mxu0 0
        %4507 = vmatprep.subr.bf16.mxu0 0
        %4508 = vmatpush1.bf16.msra.mxu0 0
        %4509 = vmatprep.subr.bf16.mxu0 0
        %4510 = vmatpush1.bf16.msra.mxu0 0
        %4511 = vmatprep.subr.bf16.mxu0 0
        %4512 = vmatpush1.bf16.msra.mxu0 0
        %4513 = vmatprep.subr.bf16.mxu0 0
        %4514 = vmatpush1.bf16.msra.mxu0 0
        %4515 = vmatprep.subr.bf16.mxu0 0
        %4516 = vmatpush1.bf16.msra.mxu0 0
        %4517 = vmatprep.subr.bf16.mxu0 0
        %4518 = vmatpush1.bf16.msra.mxu0 0
        %4519 = vmatprep.subr.bf16.mxu0 0
        %4520 = vmatpush1.bf16.msra.mxu0 0
        %4521 = vmatprep.subr.bf16.mxu0 0
        %4522 = vmatpush1.bf16.msra.mxu0 0
        %4523 = vmatprep.subr.bf16.mxu0 0
        %4524 = vmatpush1.bf16.msra.mxu0 0
        %4525 = vmatprep.subr.bf16.mxu0 0
        %4526 = vmatpush1.bf16.msra.mxu0 0
        %4527 = vmatprep.subr.bf16.mxu0 0
        %4528 = vmatpush1.bf16.msra.mxu0 0
        %4529 = vmatprep.subr.bf16.mxu0 0
        %4530 = vmatpush1.bf16.msra.mxu0 0
        %4531 = vmatprep.subr.bf16.mxu0 0
        %4532 = vmatpush1.bf16.msra.mxu0 0
        %4533 = vmatprep.mubr.bf16.mxu0 0
        %4534 = vmatmul.mubr.bf16.gmra.mrb[0].mxu0 %v4496
        %v4535 = vpop.f32.mrb[0].mxu0
        %v4536 = vadd.f32 0.0, %v4535
        %v4537 = vpop.f32.mrb[0].mxu0
        %v4538 = vpop.f32.mrb[0].mxu0
        %v4539 = vpop.f32.mrb[0].mxu0
        %4540 = vdwg.mxu0
        %4541 = vrot.lane.b32.xlu0 %v2431, 104
        %v4542 = vpop.permute.xlu0 %4541
        %v4544 = vsel %vm1274, %v4392, 0
        %v4547 = vsel %vm1278, %v4542, 0
        %4549 = vmatprep.subr.bf16.mxu0 0
        %4550 = vmatpush1.bf16.msra.mxu0 %v4547
        %4551 = vmatprep.subr.bf16.mxu0 0
        %4552 = vmatpush1.bf16.msra.mxu0 0
        %4553 = vmatprep.subr.bf16.mxu0 0
        %4554 = vmatpush1.bf16.msra.mxu0 0
        %4555 = vmatprep.subr.bf16.mxu0 0
        %4556 = vmatpush1.bf16.msra.mxu0 0
        %4557 = vmatprep.subr.bf16.mxu0 0
        %4558 = vmatpush1.bf16.msra.mxu0 0
        %4559 = vmatprep.subr.bf16.mxu0 0
        %4560 = vmatpush1.bf16.msra.mxu0 0
        %4561 = vmatprep.subr.bf16.mxu0 0
        %4562 = vmatpush1.bf16.msra.mxu0 0
        %4563 = vmatprep.subr.bf16.mxu0 0
        %4564 = vmatpush1.bf16.msra.mxu0 0
        %4565 = vmatprep.subr.bf16.mxu0 0
        %4566 = vmatpush1.bf16.msra.mxu0 0
        %4567 = vmatprep.subr.bf16.mxu0 0
        %4568 = vmatpush1.bf16.msra.mxu0 0
        %4569 = vmatprep.subr.bf16.mxu0 0
        %4570 = vmatpush1.bf16.msra.mxu0 0
        %4571 = vmatprep.subr.bf16.mxu0 0
        %4572 = vmatpush1.bf16.msra.mxu0 0
        %4573 = vmatprep.subr.bf16.mxu0 0
        %4574 = vmatpush1.bf16.msra.mxu0 0
        %4575 = vmatprep.subr.bf16.mxu0 0
        %4576 = vmatpush1.bf16.msra.mxu0 0
        %4577 = vmatprep.subr.bf16.mxu0 0
        %4578 = vmatpush1.bf16.msra.mxu0 0
        %4579 = vmatprep.subr.bf16.mxu0 0
        %4580 = vmatpush1.bf16.msra.mxu0 0
        %4581 = vmatprep.mubr.bf16.mxu0 0
        %4582 = vmatmul.mubr.bf16.gmra.mrb[0].mxu0 %v4544
        %v4583 = vpop.f32.mrb[0].mxu0
        %v4584 = vadd.f32 0.0, %v4583
        %v4585 = vpop.f32.mrb[0].mxu0
        %v4586 = vpop.f32.mrb[0].mxu0
        %v4587 = vpop.f32.mrb[0].mxu0
        %4588 = vdwg.mxu0
        %4589 = vrot.lane.b32.xlu0 %v2486, 104
        %v4590 = vpop.permute.xlu0 %4589
        %v4592 = vsel %vm1274, %v4393, 0
        %v4595 = vsel %vm1278, %v4590, 0
        %4597 = vmatprep.subr.bf16.mxu0 0
        %4598 = vmatpush1.bf16.msra.mxu0 %v4595
        %4599 = vmatprep.subr.bf16.mxu0 0
        %4600 = vmatpush1.bf16.msra.mxu0 0
        %4601 = vmatprep.subr.bf16.mxu0 0
        %4602 = vmatpush1.bf16.msra.mxu0 0
        %4603 = vmatprep.subr.bf16.mxu0 0
        %4604 = vmatpush1.bf16.msra.mxu0 0
        %4605 = vmatprep.subr.bf16.mxu0 0
        %4606 = vmatpush1.bf16.msra.mxu0 0
        %4607 = vmatprep.subr.bf16.mxu0 0
        %4608 = vmatpush1.bf16.msra.mxu0 0
        %4609 = vmatprep.subr.bf16.mxu0 0
        %4610 = vmatpush1.bf16.msra.mxu0 0
        %4611 = vmatprep.subr.bf16.mxu0 0
        %4612 = vmatpush1.bf16.msra.mxu0 0
        %4613 = vmatprep.subr.bf16.mxu0 0
        %4614 = vmatpush1.bf16.msra.mxu0 0
        %4615 = vmatprep.subr.bf16.mxu0 0
        %4616 = vmatpush1.bf16.msra.mxu0 0
        %4617 = vmatprep.subr.bf16.mxu0 0
        %4618 = vmatpush1.bf16.msra.mxu0 0
        %4619 = vmatprep.subr.bf16.mxu0 0
        %4620 = vmatpush1.bf16.msra.mxu0 0
        %4621 = vmatprep.subr.bf16.mxu0 0
        %4622 = vmatpush1.bf16.msra.mxu0 0
        %4623 = vmatprep.subr.bf16.mxu0 0
        %4624 = vmatpush1.bf16.msra.mxu0 0
        %4625 = vmatprep.subr.bf16.mxu0 0
        %4626 = vmatpush1.bf16.msra.mxu0 0
        %4627 = vmatprep.subr.bf16.mxu0 0
        %4628 = vmatpush1.bf16.msra.mxu0 0
        %4629 = vmatprep.mubr.bf16.mxu0 0
        %4630 = vmatmul.mubr.bf16.gmra.mrb[0].mxu0 %v4592
        %v4631 = vpop.f32.mrb[0].mxu0
        %v4632 = vadd.f32 0.0, %v4631
        %v4633 = vpop.f32.mrb[0].mxu0
        %v4634 = vpop.f32.mrb[0].mxu0
        %v4635 = vpop.f32.mrb[0].mxu0
        %4636 = vdwg.mxu0
        %4637 = vrot.lane.b32.xlu0 %v2541, 104
        %v4638 = vpop.permute.xlu0 %4637
        %v4640 = vsel %vm1274, %v4394, 0
        %v4643 = vsel %vm1278, %v4638, 0
        %4645 = vmatprep.subr.bf16.mxu0 0
        %4646 = vmatpush1.bf16.msra.mxu0 %v4643
        %4647 = vmatprep.subr.bf16.mxu0 0
        %4648 = vmatpush1.bf16.msra.mxu0 0
        %4649 = vmatprep.subr.bf16.mxu0 0
        %4650 = vmatpush1.bf16.msra.mxu0 0
        %4651 = vmatprep.subr.bf16.mxu0 0
        %4652 = vmatpush1.bf16.msra.mxu0 0
        %4653 = vmatprep.subr.bf16.mxu0 0
        %4654 = vmatpush1.bf16.msra.mxu0 0
        %4655 = vmatprep.subr.bf16.mxu0 0
        %4656 = vmatpush1.bf16.msra.mxu0 0
        %4657 = vmatprep.subr.bf16.mxu0 0
        %4658 = vmatpush1.bf16.msra.mxu0 0
        %4659 = vmatprep.subr.bf16.mxu0 0
        %4660 = vmatpush1.bf16.msra.mxu0 0
        %4661 = vmatprep.subr.bf16.mxu0 0
        %4662 = vmatpush1.bf16.msra.mxu0 0
        %4663 = vmatprep.subr.bf16.mxu0 0
        %4664 = vmatpush1.bf16.msra.mxu0 0
        %4665 = vmatprep.subr.bf16.mxu0 0
        %4666 = vmatpush1.bf16.msra.mxu0 0
        %4667 = vmatprep.subr.bf16.mxu0 0
        %4668 = vmatpush1.bf16.msra.mxu0 0
        %4669 = vmatprep.subr.bf16.mxu0 0
        %4670 = vmatpush1.bf16.msra.mxu0 0
        %4671 = vmatprep.subr.bf16.mxu0 0
        %4672 = vmatpush1.bf16.msra.mxu0 0
        %4673 = vmatprep.subr.bf16.mxu0 0
        %4674 = vmatpush1.bf16.msra.mxu0 0
        %4675 = vmatprep.subr.bf16.mxu0 0
        %4676 = vmatpush1.bf16.msra.mxu0 0
        %4677 = vmatprep.mubr.bf16.mxu0 0
        %4678 = vmatmul.mubr.bf16.gmra.mrb[0].mxu0 %v4640
        %v4679 = vpop.f32.mrb[0].mxu0
        %v4680 = vadd.f32 0.0, %v4679
        %v4681 = vpop.f32.mrb[0].mxu0
        %v4682 = vpop.f32.mrb[0].mxu0
        %v4683 = vpop.f32.mrb[0].mxu0
        %4684 = vdwg.mxu0
        %4685 = vrot.lane.b32.xlu0 %v2596, 104
        %v4686 = vpop.permute.xlu0 %4685
        %v4688 = vsel %vm1274, %v4395, 0
        %v4691 = vsel %vm1278, %v4686, 0
        %4693 = vmatprep.subr.bf16.mxu0 0
        %4694 = vmatpush1.bf16.msra.mxu0 %v4691
        %4695 = vmatprep.subr.bf16.mxu0 0
        %4696 = vmatpush1.bf16.msra.mxu0 0
        %4697 = vmatprep.subr.bf16.mxu0 0
        %4698 = vmatpush1.bf16.msra.mxu0 0
        %4699 = vmatprep.subr.bf16.mxu0 0
        %4700 = vmatpush1.bf16.msra.mxu0 0
        %4701 = vmatprep.subr.bf16.mxu0 0
        %4702 = vmatpush1.bf16.msra.mxu0 0
        %4703 = vmatprep.subr.bf16.mxu0 0
        %4704 = vmatpush1.bf16.msra.mxu0 0
        %4705 = vmatprep.subr.bf16.mxu0 0
        %4706 = vmatpush1.bf16.msra.mxu0 0
        %4707 = vmatprep.subr.bf16.mxu0 0
        %4708 = vmatpush1.bf16.msra.mxu0 0
        %4709 = vmatprep.subr.bf16.mxu0 0
        %4710 = vmatpush1.bf16.msra.mxu0 0
        %4711 = vmatprep.subr.bf16.mxu0 0
        %4712 = vmatpush1.bf16.msra.mxu0 0
        %4713 = vmatprep.subr.bf16.mxu0 0
        %4714 = vmatpush1.bf16.msra.mxu0 0
        %4715 = vmatprep.subr.bf16.mxu0 0
        %4716 = vmatpush1.bf16.msra.mxu0 0
        %4717 = vmatprep.subr.bf16.mxu0 0
        %4718 = vmatpush1.bf16.msra.mxu0 0
        %4719 = vmatprep.subr.bf16.mxu0 0
        %4720 = vmatpush1.bf16.msra.mxu0 0
        %4721 = vmatprep.subr.bf16.mxu0 0
        %4722 = vmatpush1.bf16.msra.mxu0 0
        %4723 = vmatprep.subr.bf16.mxu0 0
        %4724 = vmatpush1.bf16.msra.mxu0 0
        %4725 = vmatprep.mubr.bf16.mxu0 0
        %4726 = vmatmul.mubr.bf16.gmra.mrb[0].mxu0 %v4688
        %v4727 = vpop.f32.mrb[0].mxu0
        %v4728 = vadd.f32 0.0, %v4727
        %v4729 = vpop.f32.mrb[0].mxu0
        %v4730 = vpop.f32.mrb[0].mxu0
        %v4731 = vpop.f32.mrb[0].mxu0
        %4732 = vdwg.mxu0
        %4733 = vrot.lane.b32.xlu0 %v2651, 104
        %v4734 = vpop.permute.xlu0 %4733
        %v4736 = vsel %vm1274, %v4396, 0
        %v4739 = vsel %vm1278, %v4734, 0
        %4741 = vmatprep.subr.bf16.mxu0 0
        %4742 = vmatpush1.bf16.msra.mxu0 %v4739
        %4743 = vmatprep.subr.bf16.mxu0 0
        %4744 = vmatpush1.bf16.msra.mxu0 0
        %4745 = vmatprep.subr.bf16.mxu0 0
        %4746 = vmatpush1.bf16.msra.mxu0 0
        %4747 = vmatprep.subr.bf16.mxu0 0
        %4748 = vmatpush1.bf16.msra.mxu0 0
        %4749 = vmatprep.subr.bf16.mxu0 0
        %4750 = vmatpush1.bf16.msra.mxu0 0
        %4751 = vmatprep.subr.bf16.mxu0 0
        %4752 = vmatpush1.bf16.msra.mxu0 0
        %4753 = vmatprep.subr.bf16.mxu0 0
        %4754 = vmatpush1.bf16.msra.mxu0 0
        %4755 = vmatprep.subr.bf16.mxu0 0
        %4756 = vmatpush1.bf16.msra.mxu0 0
        %4757 = vmatprep.subr.bf16.mxu0 0
        %4758 = vmatpush1.bf16.msra.mxu0 0
        %4759 = vmatprep.subr.bf16.mxu0 0
        %4760 = vmatpush1.bf16.msra.mxu0 0
        %4761 = vmatprep.subr.bf16.mxu0 0
        %4762 = vmatpush1.bf16.msra.mxu0 0
        %4763 = vmatprep.subr.bf16.mxu0 0
        %4764 = vmatpush1.bf16.msra.mxu0 0
        %4765 = vmatprep.subr.bf16.mxu0 0
        %4766 = vmatpush1.bf16.msra.mxu0 0
        %4767 = vmatprep.subr.bf16.mxu0 0
        %4768 = vmatpush1.bf16.msra.mxu0 0
        %4769 = vmatprep.subr.bf16.mxu0 0
        %4770 = vmatpush1.bf16.msra.mxu0 0
        %4771 = vmatprep.subr.bf16.mxu0 0
        %4772 = vmatpush1.bf16.msra.mxu0 0
        %4773 = vmatprep.mubr.bf16.mxu0 0
        %4774 = vmatmul.mubr.bf16.gmra.mrb[0].mxu0 %v4736
        %v4775 = vpop.f32.mrb[0].mxu0
        %v4776 = vadd.f32 0.0, %v4775
        %v4777 = vpop.f32.mrb[0].mxu0
        %v4778 = vpop.f32.mrb[0].mxu0
        %v4779 = vpop.f32.mrb[0].mxu0
        %4780 = vdwg.mxu0
        %v4781 = vpack.c.bf16 %v4440, %v4440
        %v4782 = vpack.c.bf16 %v4488, %v4488
        %v4783 = vpack.c.bf16 %v4536, %v4536
        %v4784 = vpack.c.bf16 %v4584, %v4584
        %v4785 = vpack.c.bf16 %v4632, %v4632
        %v4786 = vpack.c.bf16 %v4680, %v4680
        %v4787 = vpack.c.bf16 %v4728, %v4728
        %v4788 = vpack.c.bf16 %v4776, %v4776
        %v4797 = vcombine.low %v4781, %v4782
        %v4798 = vcombine.low %v4783, %v4784
        %v4800 = vunpack.c.l.s4 1983009808
        %v4801 = vunpack.c.0.s8 %v4800
        %v4802 = vlaneseq
        %v4803 = vshrl.u32 %v4802, 7
        %v4804 = vsub.s32 %v4801, %v4803
        %v4805 = vrot.slane %v4797, %v4804
        %v4807 = vunpack.c.l.s4 1983009808
        %v4808 = vunpack.c.0.s8 %v4807
        %v4809 = vlaneseq
        %v4810 = vshrl.u32 %v4809, 7
        %v4811 = vsub.s32 %v4808, %v4810
        %v4812 = vrot.slane %v4798, %v4811
        %v4813 = vcombine.low %v4805, %v4812
        %v4814 = vcombine.low %v4785, %v4786
        %v4815 = vcombine.low %v4787, %v4788
        %v4817 = vunpack.c.l.s4 1983009808
        %v4818 = vunpack.c.0.s8 %v4817
        %v4819 = vlaneseq
        %v4820 = vshrl.u32 %v4819, 7
        %v4821 = vsub.s32 %v4818, %v4820
        %v4822 = vrot.slane %v4814, %v4821
        %v4824 = vunpack.c.l.s4 1983009808
        %v4825 = vunpack.c.0.s8 %v4824
        %v4826 = vlaneseq
        %v4827 = vshrl.u32 %v4826, 7
        %v4828 = vsub.s32 %v4825, %v4827
        %v4829 = vrot.slane %v4815, %v4828
        %v4830 = vcombine.low %v4822, %v4829
        %v4832 = vsel %vm808, %v4813, 0
        %v4835 = vsel %vm808, %v4830, 0
        %v4838 = vsel %vm2756, %v440, 0
        %4840 = vmatprep.subr.bf16.mxu0 0
        %4841 = vmatpush1.bf16.msra.mxu0 %v4838
        %4842 = vmatprep.subr.bf16.mxu0 0
        %4843 = vmatpush1.bf16.msra.mxu0 0
        %4844 = vmatprep.subr.bf16.mxu0 0
        %4845 = vmatpush1.bf16.msra.mxu0 0
        %4846 = vmatprep.subr.bf16.mxu0 0
        %4847 = vmatpush1.bf16.msra.mxu0 0
        %4848 = vmatprep.subr.bf16.mxu0 0
        %4849 = vmatpush1.bf16.msra.mxu0 0
        %4850 = vmatprep.subr.bf16.mxu0 0
        %4851 = vmatpush1.bf16.msra.mxu0 0
        %4852 = vmatprep.subr.bf16.mxu0 0
        %4853 = vmatpush1.bf16.msra.mxu0 0
        %4854 = vmatprep.subr.bf16.mxu0 0
        %4855 = vmatpush1.bf16.msra.mxu0 0
        %4856 = vmatprep.subr.bf16.mxu0 0
        %4857 = vmatpush1.bf16.msra.mxu0 0
        %4858 = vmatprep.subr.bf16.mxu0 0
        %4859 = vmatpush1.bf16.msra.mxu0 0
        %4860 = vmatprep.subr.bf16.mxu0 0
        %4861 = vmatpush1.bf16.msra.mxu0 0
        %4862 = vmatprep.subr.bf16.mxu0 0
        %4863 = vmatpush1.bf16.msra.mxu0 0
        %4864 = vmatprep.subr.bf16.mxu0 0
        %4865 = vmatpush1.bf16.msra.mxu0 0
        %4866 = vmatprep.subr.bf16.mxu0 0
        %4867 = vmatpush1.bf16.msra.mxu0 0
        %4868 = vmatprep.subr.bf16.mxu0 0
        %4869 = vmatpush1.bf16.msra.mxu0 0
        %4870 = vmatprep.subr.bf16.mxu0 0
        %4871 = vmatpush1.bf16.msra.mxu0 0
        %4872 = vmatprep.mubr.bf16.mxu0 0
        %4873 = vmatmul.mubr.bf16.gmra.mrb[0].mxu0 %v4832
        %v4874 = vpop.f32.mrb[0].mxu0
        %v4875 = vadd.f32 0.0, %v4874
        %v4876 = vpop.f32.mrb[0].mxu0
        %v4877 = vpop.f32.mrb[0].mxu0
        %v4878 = vadd.f32 0.0, %v4877
        %v4879 = vpop.f32.mrb[0].mxu0
        %4880 = vmatprep.mubr.bf16.mxu0 0
        %4881 = vmatmul.mubr.bf16.gmra.mrb[0].mxu0 %v4835
        %v4882 = vpop.f32.mrb[0].mxu0
        %v4883 = vadd.f32 0.0, %v4882
        %v4884 = vpop.f32.mrb[0].mxu0
        %v4885 = vpop.f32.mrb[0].mxu0
        %v4886 = vadd.f32 0.0, %v4885
        %v4887 = vpop.f32.mrb[0].mxu0
        %4888 = vdwg.mxu0
        %v4889 = vadd.f32 %v3897, %v4875
        %v4890 = vadd.f32 %v3898, %v4878
        %v4891 = vadd.f32 %v3899, %v4883
        %v4892 = vadd.f32 %v3900, %v4886
        %v4894 = vlaneseq
        %v4895 = vshrl.u32 %v4894, 7
        %v4896 = vsub.s32 0, %v4895
        %v4897 = vrot.slane %v442, %v4896
        %v4899 = vadd.f32 %v4889, %v4897
        %v4900 = vadd.f32 %v4890, %v4897
        %v4901 = vadd.f32 %v4891, %v4897
        %v4902 = vadd.f32 %v4892, %v4897
        %v4907 = vcombine.high %v4899, %v4899
        %v4908 = vcombine.high %v4900, %v4900
        %v4909 = vcombine.high %v4901, %v4901
        %v4910 = vcombine.high %v4902, %v4902
        %v4915 = vadd.f32 %v411, %v4899
        %v4916 = vadd.f32 %v412, %v4907
        %v4917 = vadd.f32 %v413, %v4900
        %v4918 = vadd.f32 %v414, %v4908
        %v4919 = vadd.f32 %v415, %v4901
        %v4920 = vadd.f32 %v416, %v4909
        %v4921 = vadd.f32 %v417, %v4902
        %v4922 = vadd.f32 %v418, %v4910
        %v4923 = vsel %vm396, %v4915, 0.0
        %4924 = vadd.xlane.f32.xlu0 %v4923
        %v4925 = vpop.xlane.xlu0 %4924
        %v4926 = vsel %vm396, %v4916, 0.0
        %4927 = vadd.xlane.f32.xlu0 %v4926
        %v4928 = vpop.xlane.xlu0 %4927
        %v4929 = vsel %vm396, %v4917, 0.0
        %4930 = vadd.xlane.f32.xlu0 %v4929
        %v4931 = vpop.xlane.xlu0 %4930
        %v4932 = vsel %vm396, %v4918, 0.0
        %4933 = vadd.xlane.f32.xlu0 %v4932
        %v4934 = vpop.xlane.xlu0 %4933
        %v4935 = vsel %vm396, %v4919, 0.0
        %4936 = vadd.xlane.f32.xlu0 %v4935
        %v4937 = vpop.xlane.xlu0 %4936
        %v4938 = vsel %vm396, %v4920, 0.0
        %4939 = vadd.xlane.f32.xlu0 %v4938
        %v4940 = vpop.xlane.xlu0 %4939
        %v4941 = vsel %vm396, %v4921, 0.0
        %4942 = vadd.xlane.f32.xlu0 %v4941
        %v4943 = vpop.xlane.xlu0 %4942
        %v4944 = vsel %vm396, %v4922, 0.0
        %4945 = vadd.xlane.f32.xlu0 %v4944
        %v4946 = vpop.xlane.xlu0 %4945
        %v4947 = vrcp.pop 32.0
        %v4948 = vmul.f32 %v4925, %v4947
        %v4949 = vmul.f32 %v4928, %v4947
        %v4950 = vmul.f32 %v4931, %v4947
        %v4951 = vmul.f32 %v4934, %v4947
        %v4952 = vmul.f32 %v4937, %v4947
        %v4953 = vmul.f32 %v4940, %v4947
        %v4954 = vmul.f32 %v4943, %v4947
        %v4955 = vmul.f32 %v4946, %v4947
        %v4956 = vsub.f32 %v4915, %v4948
        %v4957 = vsub.f32 %v4916, %v4949
        %v4958 = vsub.f32 %v4917, %v4950
        %v4959 = vsub.f32 %v4918, %v4951
        %v4960 = vsub.f32 %v4919, %v4952
        %v4961 = vsub.f32 %v4920, %v4953
        %v4962 = vsub.f32 %v4921, %v4954
        %v4963 = vsub.f32 %v4922, %v4955
        %v4964 = vmul.f32 %v4956, %v4956
        %v4965 = vmul.f32 %v4957, %v4957
        %v4966 = vmul.f32 %v4958, %v4958
        %v4967 = vmul.f32 %v4959, %v4959
        %v4968 = vmul.f32 %v4960, %v4960
        %v4969 = vmul.f32 %v4961, %v4961
        %v4970 = vmul.f32 %v4962, %v4962
        %v4971 = vmul.f32 %v4963, %v4963
        %v4972 = vsel %vm396, %v4964, 0.0
        %4973 = vadd.xlane.f32.xlu0 %v4972
        %v4974 = vpop.xlane.xlu0 %4973
        %v4975 = vsel %vm396, %v4965, 0.0
        %4976 = vadd.xlane.f32.xlu0 %v4975
        %v4977 = vpop.xlane.xlu0 %4976
        %v4978 = vsel %vm396, %v4966, 0.0
        %4979 = vadd.xlane.f32.xlu0 %v4978
        %v4980 = vpop.xlane.xlu0 %4979
        %v4981 = vsel %vm396, %v4967, 0.0
        %4982 = vadd.xlane.f32.xlu0 %v4981
        %v4983 = vpop.xlane.xlu0 %4982
        %v4984 = vsel %vm396, %v4968, 0.0
        %4985 = vadd.xlane.f32.xlu0 %v4984
        %v4986 = vpop.xlane.xlu0 %4985
        %v4987 = vsel %vm396, %v4969, 0.0
        %4988 = vadd.xlane.f32.xlu0 %v4987
        %v4989 = vpop.xlane.xlu0 %4988
        %v4990 = vsel %vm396, %v4970, 0.0
        %4991 = vadd.xlane.f32.xlu0 %v4990
        %v4992 = vpop.xlane.xlu0 %4991
        %v4993 = vsel %vm396, %v4971, 0.0
        %4994 = vadd.xlane.f32.xlu0 %v4993
        %v4995 = vpop.xlane.xlu0 %4994
        %v4996 = vmul.f32 %v4974, %v4947
        %v4997 = vmul.f32 %v4977, %v4947
        %v4998 = vmul.f32 %v4980, %v4947
        %v4999 = vmul.f32 %v4983, %v4947
        %v5000 = vmul.f32 %v4986, %v4947
        %v5001 = vmul.f32 %v4989, %v4947
        %v5002 = vmul.f32 %v4992, %v4947
        %v5003 = vmul.f32 %v4995, %v4947
        %v5004 = vadd.f32 %v4996, 1e-05
        %v5005 = vadd.f32 %v4997, 1e-05
        %v5006 = vadd.f32 %v4998, 1e-05
        %v5007 = vadd.f32 %v4999, 1e-05
        %v5008 = vadd.f32 %v5000, 1e-05
        %v5009 = vadd.f32 %v5001, 1e-05
        %v5010 = vadd.f32 %v5002, 1e-05
        %v5011 = vadd.f32 %v5003, 1e-05
        %v5012 = vrsqrt.pop %v5004
        %v5013 = vrsqrt.pop %v5005
        %v5014 = vrsqrt.pop %v5006
        %v5015 = vrsqrt.pop %v5007
        %v5016 = vrsqrt.pop %v5008
        %v5017 = vrsqrt.pop %v5009
        %v5018 = vrsqrt.pop %v5010
        %v5019 = vrsqrt.pop %v5011
        %v5020 = vmul.f32 %v4956, %v5012
        %v5021 = vmul.f32 %v4957, %v5013
        %v5022 = vmul.f32 %v4958, %v5014
        %v5023 = vmul.f32 %v4959, %v5015
        %v5024 = vmul.f32 %v4960, %v5016
        %v5025 = vmul.f32 %v4961, %v5017
        %v5026 = vmul.f32 %v4962, %v5018
        %v5027 = vmul.f32 %v4963, %v5019
        %v5028 = vpack.c.bf16 %v5020, %v5020
        %v5029 = vpack.c.bf16 %v5021, %v5021
        %v5030 = vpack.c.bf16 %v5022, %v5022
        %v5031 = vpack.c.bf16 %v5023, %v5023
        %v5032 = vpack.c.bf16 %v5024, %v5024
        %v5033 = vpack.c.bf16 %v5025, %v5025
        %v5034 = vpack.c.bf16 %v5026, %v5026
        %v5035 = vpack.c.bf16 %v5027, %v5027
        %v5036 = vcombine.low %v5028, %v5032
        %v5038 = vunpack.c.l.s4 1983009808
        %v5039 = vunpack.c.0.s8 %v5038
        %v5040 = vlaneseq
        %v5041 = vshrl.u32 %v5040, 7
        %v5042 = vsub.s32 %v5039, %v5041
        %v5043 = vrot.slane %v5036, %v5042
        %v5044 = vcombine.low %v5030, %v5034
        %v5046 = vunpack.c.l.s4 1983009808
        %v5047 = vunpack.c.0.s8 %v5046
        %v5048 = vlaneseq
        %v5049 = vshrl.u32 %v5048, 7
        %v5050 = vsub.s32 %v5047, %v5049
        %v5051 = vrot.slane %v5044, %v5050
        %v5052 = vcombine.low %v5043, %v5051
        %v5054 = vunpack.c.l.s4 1934713408
        %v5055 = vunpack.c.0.s8 %v5054
        %v5056 = vlaneseq
        %v5057 = vshrl.u32 %v5056, 7
        %v5058 = vsub.s32 %v5055, %v5057
        %v5059 = vrot.slane %v5052, %v5058
        %v5060 = vcombine.high %v5059, 0
        %v5061 = vcombine.low %v5029, %v5033
        %v5063 = vunpack.c.l.s4 1983009808
        %v5064 = vunpack.c.0.s8 %v5063
        %v5065 = vlaneseq
        %v5066 = vshrl.u32 %v5065, 7
        %v5067 = vsub.s32 %v5064, %v5066
        %v5068 = vrot.slane %v5061, %v5067
        %v5069 = vcombine.low %v5031, %v5035
        %v5071 = vunpack.c.l.s4 1983009808
        %v5072 = vunpack.c.0.s8 %v5071
        %v5073 = vlaneseq
        %v5074 = vshrl.u32 %v5073, 7
        %v5075 = vsub.s32 %v5072, %v5074
        %v5076 = vrot.slane %v5069, %v5075
        %v5077 = vcombine.low %v5068, %v5076
        %v5079 = vunpack.c.l.s4 1934713408
        %v5080 = vunpack.c.0.s8 %v5079
        %v5081 = vlaneseq
        %v5082 = vshrl.u32 %v5081, 7
        %v5083 = vsub.s32 %v5080, %v5082
        %v5084 = vrot.slane %v5077, %v5083
        %v5085 = vcombine.high %v5084, 0
        %v5088 = vpack.i.b16 %v5084, %v5059
        %v5089 = vshrl.u32 %v5059, 16
        %v5090 = vshrl.u32 %v5084, 16
        %v5091 = vpack.i.b16 %v5090, %v5089
        %v5094 = vpack.i.b16 %v5085, %v5060
        %v5095 = vshrl.u32 %v5060, 16
        %v5096 = vshrl.u32 %v5085, 16
        %v5097 = vpack.i.b16 %v5096, %v5095
        %v5099 = vunpack.c.l.s4 1966171168
        %v5100 = vunpack.c.0.s8 %v5099
        %v5101 = vlaneseq
        %v5102 = vshrl.u32 %v5101, 7
        %v5103 = vsub.s32 %v5100, %v5102
        %v5104 = vrot.slane %v5088, %v5103
        %v5105 = vcombine.high %v5104, %v5104
        %v5107 = vunpack.c.l.s4 1966171168
        %v5108 = vunpack.c.0.s8 %v5107
        %v5109 = vlaneseq
        %v5110 = vshrl.u32 %v5109, 7
        %v5111 = vsub.s32 %v5108, %v5110
        %v5112 = vrot.slane %v5104, %v5111
        %v5114 = vunpack.c.l.s4 1966171168
        %v5115 = vunpack.c.0.s8 %v5114
        %v5116 = vlaneseq
        %v5117 = vshrl.u32 %v5116, 7
        %v5118 = vsub.s32 %v5115, %v5117
        %v5119 = vrot.slane %v5105, %v5118
        %v5120 = vcombine.high %v5112, %v5112
        %v5122 = vunpack.c.l.s4 1966171168
        %v5123 = vunpack.c.0.s8 %v5122
        %v5124 = vlaneseq
        %v5125 = vshrl.u32 %v5124, 7
        %v5126 = vsub.s32 %v5123, %v5125
        %v5127 = vrot.slane %v5091, %v5126
        %v5128 = vcombine.high %v5127, %v5127
        %v5130 = vunpack.c.l.s4 1966171168
        %v5131 = vunpack.c.0.s8 %v5130
        %v5132 = vlaneseq
        %v5133 = vshrl.u32 %v5132, 7
        %v5134 = vsub.s32 %v5131, %v5133
        %v5135 = vrot.slane %v5127, %v5134
        %v5137 = vunpack.c.l.s4 1966171168
        %v5138 = vunpack.c.0.s8 %v5137
        %v5139 = vlaneseq
        %v5140 = vshrl.u32 %v5139, 7
        %v5141 = vsub.s32 %v5138, %v5140
        %v5142 = vrot.slane %v5128, %v5141
        %v5143 = vcombine.high %v5135, %v5135
        %v5145 = vunpack.c.l.s4 1966171168
        %v5146 = vunpack.c.0.s8 %v5145
        %v5147 = vlaneseq
        %v5148 = vshrl.u32 %v5147, 7
        %v5149 = vsub.s32 %v5146, %v5148
        %v5150 = vrot.slane %v5094, %v5149
        %v5151 = vcombine.high %v5150, %v5150
        %v5153 = vunpack.c.l.s4 1966171168
        %v5154 = vunpack.c.0.s8 %v5153
        %v5155 = vlaneseq
        %v5156 = vshrl.u32 %v5155, 7
        %v5157 = vsub.s32 %v5154, %v5156
        %v5158 = vrot.slane %v5150, %v5157
        %v5160 = vunpack.c.l.s4 1966171168
        %v5161 = vunpack.c.0.s8 %v5160
        %v5162 = vlaneseq
        %v5163 = vshrl.u32 %v5162, 7
        %v5164 = vsub.s32 %v5161, %v5163
        %v5165 = vrot.slane %v5151, %v5164
        %v5166 = vcombine.high %v5158, %v5158
        %v5168 = vunpack.c.l.s4 1966171168
        %v5169 = vunpack.c.0.s8 %v5168
        %v5170 = vlaneseq
        %v5171 = vshrl.u32 %v5170, 7
        %v5172 = vsub.s32 %v5169, %v5171
        %v5173 = vrot.slane %v5097, %v5172
        %v5174 = vcombine.high %v5173, %v5173
        %v5176 = vunpack.c.l.s4 1966171168
        %v5177 = vunpack.c.0.s8 %v5176
        %v5178 = vlaneseq
        %v5179 = vshrl.u32 %v5178, 7
        %v5180 = vsub.s32 %v5177, %v5179
        %v5181 = vrot.slane %v5173, %v5180
        %v5183 = vunpack.c.l.s4 1966171168
        %v5184 = vunpack.c.0.s8 %v5183
        %v5185 = vlaneseq
        %v5186 = vshrl.u32 %v5185, 7
        %v5187 = vsub.s32 %v5184, %v5186
        %v5188 = vrot.slane %v5174, %v5187
        %v5189 = vcombine.high %v5181, %v5181
        %v5190 = vunpack.c.l.b16 %v5088
        %v5191 = vunpack.c.l.b16 %v5091
        %v5192 = vunpack.c.l.b16 %v5094
        %v5193 = vunpack.c.l.b16 %v5097
        %v5194 = vpack.c.b16 %v5191, %v5190
        %v5195 = vpack.c.b16 %v5193, %v5192
        %v5200 = vunpack.c.l.b16 %v445
        %v5201 = vunpack.c.l.b16 %v446
        %v5202 = vunpack.c.l.b16 %v447
        %v5203 = vunpack.c.l.b16 %v448
        %v5204 = vpack.c.b16 %v5201, %v5200
        %v5205 = vpack.c.b16 %v5203, %v5202
        %v5209 = vsel %vm516, %v5194, 0
        %v5212 = vsel %vm516, %v5195, 0
        %5214 = vmatprep.subr.bf16.mxu0 0
        %5215 = vmatpush1.bf16.msra.mxu0 %v5204
        %5216 = vmatprep.subr.bf16.mxu0 0
        %5217 = vmatpush1.bf16.msra.mxu0 %v5205
        %5218 = vmatprep.subr.bf16.mxu0 0
        %5219 = vmatpush1.bf16.msra.mxu0 0
        %5220 = vmatprep.subr.bf16.mxu0 0
        %5221 = vmatpush1.bf16.msra.mxu0 0
        %5222 = vmatprep.subr.bf16.mxu0 0
        %5223 = vmatpush1.bf16.msra.mxu0 0
        %5224 = vmatprep.subr.bf16.mxu0 0
        %5225 = vmatpush1.bf16.msra.mxu0 0
        %5226 = vmatprep.subr.bf16.mxu0 0
        %5227 = vmatpush1.bf16.msra.mxu0 0
        %5228 = vmatprep.subr.bf16.mxu0 0
        %5229 = vmatpush1.bf16.msra.mxu0 0
        %5230 = vmatprep.subr.bf16.mxu0 0
        %5231 = vmatpush1.bf16.msra.mxu0 0
        %5232 = vmatprep.subr.bf16.mxu0 0
        %5233 = vmatpush1.bf16.msra.mxu0 0
        %5234 = vmatprep.subr.bf16.mxu0 0
        %5235 = vmatpush1.bf16.msra.mxu0 0
        %5236 = vmatprep.subr.bf16.mxu0 0
        %5237 = vmatpush1.bf16.msra.mxu0 0
        %5238 = vmatprep.subr.bf16.mxu0 0
        %5239 = vmatpush1.bf16.msra.mxu0 0
        %5240 = vmatprep.subr.bf16.mxu0 0
        %5241 = vmatpush1.bf16.msra.mxu0 0
        %5242 = vmatprep.subr.bf16.mxu0 0
        %5243 = vmatpush1.bf16.msra.mxu0 0
        %5244 = vmatprep.subr.bf16.mxu0 0
        %5245 = vmatpush1.bf16.msra.mxu0 0
        %5246 = vmatprep.mubr.bf16.mxu0 0
        %5247 = vmatmul.mubr.bf16.gmra.mrb[0].mxu0 %v5209
        %v5248 = vpop.f32.mrb[0].mxu0
        %v5249 = vadd.f32 0.0, %v5248
        %v5250 = vpop.f32.mrb[0].mxu0
        %v5251 = vpop.f32.mrb[0].mxu0
        %v5252 = vadd.f32 0.0, %v5251
        %v5253 = vpop.f32.mrb[0].mxu0
        %5254 = vmatprep.mubr.bf16.mxu0 0
        %5255 = vmatmul.mubr.bf16.gmra.mrb[0].mxu0 %v5212
        %v5256 = vpop.f32.mrb[0].mxu0
        %v5257 = vadd.f32 0.0, %v5256
        %v5258 = vpop.f32.mrb[0].mxu0
        %v5259 = vpop.f32.mrb[0].mxu0
        %v5260 = vadd.f32 0.0, %v5259
        %v5261 = vpop.f32.mrb[0].mxu0
        %5262 = vdwg.mxu0
        %v5263 = vcombine.low %v5112, %v5119
        %v5264 = vcombine.low %v5120, %v5135
        %v5265 = vcombine.low %v5142, %v5143
        %v5266 = vcombine.low %v5158, %v5165
        %v5268 = vunpack.c.l.s4 1966171168
        %v5269 = vunpack.c.0.s8 %v5268
        %v5270 = vlaneseq
        %v5271 = vshrl.u32 %v5270, 7
        %v5272 = vsub.s32 %v5269, %v5271
        %v5273 = vrot.slane %v5263, %v5272
        %v5275 = vunpack.c.l.s4 1966171168
        %v5276 = vunpack.c.0.s8 %v5275
        %v5277 = vlaneseq
        %v5278 = vshrl.u32 %v5277, 7
        %v5279 = vsub.s32 %v5276, %v5278
        %v5280 = vrot.slane %v5264, %v5279
        %v5282 = vunpack.c.l.s4 1966171168
        %v5283 = vunpack.c.0.s8 %v5282
        %v5284 = vlaneseq
        %v5285 = vshrl.u32 %v5284, 7
        %v5286 = vsub.s32 %v5283, %v5285
        %v5287 = vrot.slane %v5265, %v5286
        %v5289 = vunpack.c.l.s4 1966171168
        %v5290 = vunpack.c.0.s8 %v5289
        %v5291 = vlaneseq
        %v5292 = vshrl.u32 %v5291, 7
        %v5293 = vsub.s32 %v5290, %v5292
        %v5294 = vrot.slane %v5266, %v5293
        %v5295 = vcombine.low %v5273, %v5280
        %v5296 = vcombine.low %v5287, %v5294
        %v5298 = vunpack.c.l.s4 1966171168
        %v5299 = vunpack.c.0.s8 %v5298
        %v5300 = vlaneseq
        %v5301 = vshrl.u32 %v5300, 7
        %v5302 = vsub.s32 %v5299, %v5301
        %v5303 = vrot.slane %v5295, %v5302
        %v5305 = vunpack.c.l.s4 1966171168
        %v5306 = vunpack.c.0.s8 %v5305
        %v5307 = vlaneseq
        %v5308 = vshrl.u32 %v5307, 7
        %v5309 = vsub.s32 %v5306, %v5308
        %v5310 = vrot.slane %v5296, %v5309
        %v5311 = vcombine.low %v5303, %v5310
        %v5312 = vcombine.low %v5166, %v5181
        %v5313 = vcombine.low %v5188, %v5189
        %v5315 = vunpack.c.l.s4 1966171168
        %v5316 = vunpack.c.0.s8 %v5315
        %v5317 = vlaneseq
        %v5318 = vshrl.u32 %v5317, 7
        %v5319 = vsub.s32 %v5316, %v5318
        %v5320 = vrot.slane %v5312, %v5319
        %v5322 = vunpack.c.l.s4 1966171168
        %v5323 = vunpack.c.0.s8 %v5322
        %v5324 = vlaneseq
        %v5325 = vshrl.u32 %v5324, 7
        %v5326 = vsub.s32 %v5323, %v5325
        %v5327 = vrot.slane %v5313, %v5326
        %v5328 = vcombine.low %v5320, %v5327
        %v5330 = vunpack.c.l.s4 1966171168
        %v5331 = vunpack.c.0.s8 %v5330
        %v5332 = vlaneseq
        %v5333 = vshrl.u32 %v5332, 7
        %v5334 = vsub.s32 %v5331, %v5333
        %v5335 = vrot.slane %v5328, %v5334
        %v5340 = vunpack.c.l.b16 %v449
        %v5341 = vunpack.c.l.b16 %v450
        %v5342 = vunpack.c.l.b16 %v451
        %v5343 = vunpack.c.l.b16 %v452
        %v5344 = vpack.c.b16 %v5341, %v5340
        %v5345 = vpack.c.b16 %v5343, %v5342
        %v5349 = vsel %vm516, %v5311, 0
        %v5352 = vsel %vm516, %v5335, 0
        %5354 = vmatprep.subr.bf16.mxu0 0
        %5355 = vmatpush1.bf16.msra.mxu0 %v5344
        %5356 = vmatprep.subr.bf16.mxu0 0
        %5357 = vmatpush1.bf16.msra.mxu0 %v5345
        %5358 = vmatprep.subr.bf16.mxu0 0
        %5359 = vmatpush1.bf16.msra.mxu0 0
        %5360 = vmatprep.subr.bf16.mxu0 0
        %5361 = vmatpush1.bf16.msra.mxu0 0
        %5362 = vmatprep.subr.bf16.mxu0 0
        %5363 = vmatpush1.bf16.msra.mxu0 0
        %5364 = vmatprep.subr.bf16.mxu0 0
        %5365 = vmatpush1.bf16.msra.mxu0 0
        %5366 = vmatprep.subr.bf16.mxu0 0
        %5367 = vmatpush1.bf16.msra.mxu0 0
        %5368 = vmatprep.subr.bf16.mxu0 0
        %5369 = vmatpush1.bf16.msra.mxu0 0
        %5370 = vmatprep.subr.bf16.mxu0 0
        %5371 = vmatpush1.bf16.msra.mxu0 0
        %5372 = vmatprep.subr.bf16.mxu0 0
        %5373 = vmatpush1.bf16.msra.mxu0 0
        %5374 = vmatprep.subr.bf16.mxu0 0
        %5375 = vmatpush1.bf16.msra.mxu0 0
        %5376 = vmatprep.subr.bf16.mxu0 0
        %5377 = vmatpush1.bf16.msra.mxu0 0
        %5378 = vmatprep.subr.bf16.mxu0 0
        %5379 = vmatpush1.bf16.msra.mxu0 0
        %5380 = vmatprep.subr.bf16.mxu0 0
        %5381 = vmatpush1.bf16.msra.mxu0 0
        %5382 = vmatprep.subr.bf16.mxu0 0
        %5383 = vmatpush1.bf16.msra.mxu0 0
        %5384 = vmatprep.subr.bf16.mxu0 0
        %5385 = vmatpush1.bf16.msra.mxu0 0
        %5386 = vmatprep.mubr.bf16.mxu0 0
        %5387 = vmatmul.mubr.bf16.gmra.mrb[0].mxu0 %v5349
        %v5388 = vpop.f32.mrb[0].mxu0
        %v5389 = vadd.f32 0.0, %v5388
        %v5390 = vpop.f32.mrb[0].mxu0
        %v5391 = vpop.f32.mrb[0].mxu0
        %v5392 = vadd.f32 0.0, %v5391
        %v5393 = vpop.f32.mrb[0].mxu0
        %5394 = vmatprep.mubr.bf16.mxu0 0
        %5395 = vmatmul.mubr.bf16.gmra.mrb[0].mxu0 %v5352
        %v5396 = vpop.f32.mrb[0].mxu0
        %v5397 = vadd.f32 0.0, %v5396
        %v5398 = vpop.f32.mrb[0].mxu0
        %v5399 = vpop.f32.mrb[0].mxu0
        %v5400 = vpop.f32.mrb[0].mxu0
        %5401 = vdwg.mxu0
        %v5406 = vunpack.c.l.b16 %v453
        %v5407 = vunpack.c.l.b16 %v454
        %v5408 = vunpack.c.l.b16 %v455
        %v5409 = vunpack.c.l.b16 %v456
        %v5410 = vpack.c.b16 %v5407, %v5406
        %v5411 = vpack.c.b16 %v5409, %v5408
        %5414 = vmatprep.subr.bf16.mxu0 0
        %5415 = vmatpush1.bf16.msra.mxu0 %v5410
        %5416 = vmatprep.subr.bf16.mxu0 0
        %5417 = vmatpush1.bf16.msra.mxu0 %v5411
        %5418 = vmatprep.subr.bf16.mxu0 0
        %5419 = vmatpush1.bf16.msra.mxu0 0
        %5420 = vmatprep.subr.bf16.mxu0 0
        %5421 = vmatpush1.bf16.msra.mxu0 0
        %5422 = vmatprep.subr.bf16.mxu0 0
        %5423 = vmatpush1.bf16.msra.mxu0 0
        %5424 = vmatprep.subr.bf16.mxu0 0
        %5425 = vmatpush1.bf16.msra.mxu0 0
        %5426 = vmatprep.subr.bf16.mxu0 0
        %5427 = vmatpush1.bf16.msra.mxu0 0
        %5428 = vmatprep.subr.bf16.mxu0 0
        %5429 = vmatpush1.bf16.msra.mxu0 0
        %5430 = vmatprep.subr.bf16.mxu0 0
        %5431 = vmatpush1.bf16.msra.mxu0 0
        %5432 = vmatprep.subr.bf16.mxu0 0
        %5433 = vmatpush1.bf16.msra.mxu0 0
        %5434 = vmatprep.subr.bf16.mxu0 0
        %5435 = vmatpush1.bf16.msra.mxu0 0
        %5436 = vmatprep.subr.bf16.mxu0 0
        %5437 = vmatpush1.bf16.msra.mxu0 0
        %5438 = vmatprep.subr.bf16.mxu0 0
        %5439 = vmatpush1.bf16.msra.mxu0 0
        %5440 = vmatprep.subr.bf16.mxu0 0
        %5441 = vmatpush1.bf16.msra.mxu0 0
        %5442 = vmatprep.subr.bf16.mxu0 0
        %5443 = vmatpush1.bf16.msra.mxu0 0
        %5444 = vmatprep.subr.bf16.mxu0 0
        %5445 = vmatpush1.bf16.msra.mxu0 0
        %5446 = vmatprep.mubr.bf16.mxu0 0
        %5447 = vmatmul.mubr.bf16.gmra.mrb[0].mxu0 %v5349
        %v5448 = vpop.f32.mrb[0].mxu0
        %v5449 = vadd.f32 0.0, %v5448
        %v5450 = vpop.f32.mrb[0].mxu0
        %v5451 = vpop.f32.mrb[0].mxu0
        %v5452 = vadd.f32 0.0, %v5451
        %v5453 = vpop.f32.mrb[0].mxu0
        %5454 = vmatprep.mubr.bf16.mxu0 0
        %5455 = vmatmul.mubr.bf16.gmra.mrb[0].mxu0 %v5352
        %v5456 = vpop.f32.mrb[0].mxu0
        %v5457 = vadd.f32 0.0, %v5456
        %v5458 = vpop.f32.mrb[0].mxu0
        %v5459 = vpop.f32.mrb[0].mxu0
        %v5460 = vpop.f32.mrb[0].mxu0
        %5461 = vdwg.mxu0
        %v5462 = vpack.c.bf16 %v5252, %v5249
        %v5463 = vpack.c.bf16 %v5260, %v5257
        %v5466 = vunpack.c.l.b16 %v5462
        %v5467 = vunpack.c.h.b16 %v5462
        %v5468 = vunpack.c.l.b16 %v5463
        %v5469 = vunpack.c.h.b16 %v5463
        %v5470 = vpack.c.b16 %v5466, %v5466
        %v5471 = vpack.c.b16 %v5467, %v5467
        %v5472 = vpack.c.b16 %v5468, %v5468
        %v5473 = vpack.c.b16 %v5469, %v5469
        %v5474 = vpack.c.bf16 %v5392, %v5389
        %v5475 = vpack.c.bf16 %v5397, %v5397
        %v5478 = vcombine.high %v5474, %v5474
        %v5480 = vunpack.c.l.s4 1966171168
        %v5481 = vunpack.c.0.s8 %v5480
        %v5482 = vlaneseq
        %v5483 = vshrl.u32 %v5482, 7
        %v5484 = vsub.s32 %v5481, %v5483
        %v5485 = vrot.slane %v5474, %v5484
        %v5487 = vunpack.c.l.s4 1966171168
        %v5488 = vunpack.c.0.s8 %v5487
        %v5489 = vlaneseq
        %v5490 = vshrl.u32 %v5489, 7
        %v5491 = vsub.s32 %v5488, %v5490
        %v5492 = vrot.slane %v5478, %v5491
        %v5493 = vcombine.high %v5485, %v5485
        %v5494 = vcombine.high %v5492, %v5492
        %v5496 = vunpack.c.l.s4 1966171168
        %v5497 = vunpack.c.0.s8 %v5496
        %v5498 = vlaneseq
        %v5499 = vshrl.u32 %v5498, 7
        %v5500 = vsub.s32 %v5497, %v5499
        %v5501 = vrot.slane %v5485, %v5500
        %v5503 = vunpack.c.l.s4 1966171168
        %v5504 = vunpack.c.0.s8 %v5503
        %v5505 = vlaneseq
        %v5506 = vshrl.u32 %v5505, 7
        %v5507 = vsub.s32 %v5504, %v5506
        %v5508 = vrot.slane %v5492, %v5507
        %v5510 = vunpack.c.l.s4 1966171168
        %v5511 = vunpack.c.0.s8 %v5510
        %v5512 = vlaneseq
        %v5513 = vshrl.u32 %v5512, 7
        %v5514 = vsub.s32 %v5511, %v5513
        %v5515 = vrot.slane %v5493, %v5514
        %v5517 = vunpack.c.l.s4 1966171168
        %v5518 = vunpack.c.0.s8 %v5517
        %v5519 = vlaneseq
        %v5520 = vshrl.u32 %v5519, 7
        %v5521 = vsub.s32 %v5518, %v5520
        %v5522 = vrot.slane %v5494, %v5521
        %v5523 = vcombine.high %v5501, %v5501
        %v5524 = vcombine.high %v5508, %v5508
        %v5525 = vcombine.high %v5515, %v5515
        %v5526 = vcombine.high %v5522, %v5522
        %v5528 = vunpack.c.l.s4 1966171168
        %v5529 = vunpack.c.0.s8 %v5528
        %v5530 = vlaneseq
        %v5531 = vshrl.u32 %v5530, 7
        %v5532 = vsub.s32 %v5529, %v5531
        %v5533 = vrot.slane %v5475, %v5532
        %v5534 = vcombine.high %v5533, %v5533
        %v5536 = vunpack.c.l.s4 1966171168
        %v5537 = vunpack.c.0.s8 %v5536
        %v5538 = vlaneseq
        %v5539 = vshrl.u32 %v5538, 7
        %v5540 = vsub.s32 %v5537, %v5539
        %v5541 = vrot.slane %v5533, %v5540
        %v5543 = vunpack.c.l.s4 1966171168
        %v5544 = vunpack.c.0.s8 %v5543
        %v5545 = vlaneseq
        %v5546 = vshrl.u32 %v5545, 7
        %v5547 = vsub.s32 %v5544, %v5546
        %v5548 = vrot.slane %v5534, %v5547
        %v5549 = vcombine.high %v5541, %v5541
        %v5550 = vcombine.high %v5548, %v5548
        %v5551 = vpack.c.bf16 %v5452, %v5449
        %v5552 = vpack.c.bf16 %v5457, %v5457
        %v5555 = vcombine.high %v5551, %v5551
        %v5557 = vunpack.c.l.s4 1966171168
        %v5558 = vunpack.c.0.s8 %v5557
        %v5559 = vlaneseq
        %v5560 = vshrl.u32 %v5559, 7
        %v5561 = vsub.s32 %v5558, %v5560
        %v5562 = vrot.slane %v5551, %v5561
        %v5564 = vunpack.c.l.s4 1966171168
        %v5565 = vunpack.c.0.s8 %v5564
        %v5566 = vlaneseq
        %v5567 = vshrl.u32 %v5566, 7
        %v5568 = vsub.s32 %v5565, %v5567
        %v5569 = vrot.slane %v5555, %v5568
        %v5570 = vcombine.high %v5562, %v5562
        %v5571 = vcombine.high %v5569, %v5569
        %v5573 = vunpack.c.l.s4 1966171168
        %v5574 = vunpack.c.0.s8 %v5573
        %v5575 = vlaneseq
        %v5576 = vshrl.u32 %v5575, 7
        %v5577 = vsub.s32 %v5574, %v5576
        %v5578 = vrot.slane %v5562, %v5577
        %v5580 = vunpack.c.l.s4 1966171168
        %v5581 = vunpack.c.0.s8 %v5580
        %v5582 = vlaneseq
        %v5583 = vshrl.u32 %v5582, 7
        %v5584 = vsub.s32 %v5581, %v5583
        %v5585 = vrot.slane %v5569, %v5584
        %v5587 = vunpack.c.l.s4 1966171168
        %v5588 = vunpack.c.0.s8 %v5587
        %v5589 = vlaneseq
        %v5590 = vshrl.u32 %v5589, 7
        %v5591 = vsub.s32 %v5588, %v5590
        %v5592 = vrot.slane %v5570, %v5591
        %v5594 = vunpack.c.l.s4 1966171168
        %v5595 = vunpack.c.0.s8 %v5594
        %v5596 = vlaneseq
        %v5597 = vshrl.u32 %v5596, 7
        %v5598 = vsub.s32 %v5595, %v5597
        %v5599 = vrot.slane %v5571, %v5598
        %v5600 = vcombine.high %v5578, %v5578
        %v5601 = vcombine.high %v5585, %v5585
        %v5602 = vcombine.high %v5592, %v5592
        %v5603 = vcombine.high %v5599, %v5599
        %v5605 = vunpack.c.l.s4 1966171168
        %v5606 = vunpack.c.0.s8 %v5605
        %v5607 = vlaneseq
        %v5608 = vshrl.u32 %v5607, 7
        %v5609 = vsub.s32 %v5606, %v5608
        %v5610 = vrot.slane %v5552, %v5609
        %v5611 = vcombine.high %v5610, %v5610
        %v5613 = vunpack.c.l.s4 1966171168
        %v5614 = vunpack.c.0.s8 %v5613
        %v5615 = vlaneseq
        %v5616 = vshrl.u32 %v5615, 7
        %v5617 = vsub.s32 %v5614, %v5616
        %v5618 = vrot.slane %v5610, %v5617
        %v5620 = vunpack.c.l.s4 1966171168
        %v5621 = vunpack.c.0.s8 %v5620
        %v5622 = vlaneseq
        %v5623 = vshrl.u32 %v5622, 7
        %v5624 = vsub.s32 %v5621, %v5623
        %v5625 = vrot.slane %v5611, %v5624
        %v5626 = vcombine.high %v5618, %v5618
        %v5627 = vcombine.high %v5625, %v5625
        %v5628 = vcombine.low %v5501, %v5515
        %v5630 = vunpack.c.l.s4 1966171168
        %v5631 = vunpack.c.0.s8 %v5630
        %v5632 = vlaneseq
        %v5633 = vshrl.u32 %v5632, 7
        %v5634 = vsub.s32 %v5631, %v5633
        %v5635 = vrot.slane %v5628, %v5634
        %v5637 = vunpack.c.l.s4 1966171168
        %v5638 = vunpack.c.0.s8 %v5637
        %v5639 = vlaneseq
        %v5640 = vshrl.u32 %v5639, 7
        %v5641 = vsub.s32 %v5638, %v5640
        %v5642 = vrot.slane %v5523, %v5641
        %v5643 = vcombine.low %v5635, %v5642
        %v5645 = vunpack.c.l.s4 1966171168
        %v5646 = vunpack.c.0.s8 %v5645
        %v5647 = vlaneseq
        %v5648 = vshrl.u32 %v5647, 7
        %v5649 = vsub.s32 %v5646, %v5648
        %v5650 = vrot.slane %v5643, %v5649
        %v5652 = vsel %vm808, %v5470, 0
        %v5655 = vsel %vm808, %v5650, 0
        %5657 = vmatprep.subr.bf16.mxu0 0
        %5658 = vmatpush1.bf16.xpose.msra.mxu0 %v5655
        %5659 = vmatprep.subr.bf16.mxu0 0
        %5660 = vmatpush1.bf16.xpose.msra.mxu0 0
        %5661 = vmatprep.subr.bf16.mxu0 0
        %5662 = vmatpush1.bf16.xpose.msra.mxu0 0
        %5663 = vmatprep.subr.bf16.mxu0 0
        %5664 = vmatpush1.bf16.xpose.msra.mxu0 0
        %5665 = vmatprep.subr.bf16.mxu0 0
        %5666 = vmatpush1.bf16.xpose.msra.mxu0 0
        %5667 = vmatprep.subr.bf16.mxu0 0
        %5668 = vmatpush1.bf16.xpose.msra.mxu0 0
        %5669 = vmatprep.subr.bf16.mxu0 0
        %5670 = vmatpush1.bf16.xpose.msra.mxu0 0
        %5671 = vmatprep.subr.bf16.mxu0 0
        %5672 = vmatpush1.bf16.xpose.msra.mxu0 0
        %5673 = vmatprep.subr.bf16.mxu0 0
        %5674 = vmatpush1.bf16.xpose.msra.mxu0 0
        %5675 = vmatprep.subr.bf16.mxu0 0
        %5676 = vmatpush1.bf16.xpose.msra.mxu0 0
        %5677 = vmatprep.subr.bf16.mxu0 0
        %5678 = vmatpush1.bf16.xpose.msra.mxu0 0
        %5679 = vmatprep.subr.bf16.mxu0 0
        %5680 = vmatpush1.bf16.xpose.msra.mxu0 0
        %5681 = vmatprep.subr.bf16.mxu0 0
        %5682 = vmatpush1.bf16.xpose.msra.mxu0 0
        %5683 = vmatprep.subr.bf16.mxu0 0
        %5684 = vmatpush1.bf16.xpose.msra.mxu0 0
        %5685 = vmatprep.subr.bf16.mxu0 0
        %5686 = vmatpush1.bf16.xpose.msra.mxu0 0
        %5687 = vmatprep.subr.bf16.mxu0 0
        %5688 = vmatpush1.bf16.xpose.msra.mxu0 0
        %5689 = vmatprep.mubr.bf16.mxu0 0
        %5690 = vmatmul.mubr.bf16.gmra.mrb[0].mxu0 %v5652
        %v5691 = vpop.f32.mrb[0].mxu0
        %v5692 = vadd.f32 0.0, %v5691
        %v5693 = vpop.f32.mrb[0].mxu0
        %v5694 = vpop.f32.mrb[0].mxu0
        %v5695 = vpop.f32.mrb[0].mxu0
        %5696 = vdwg.mxu0
        %v5697 = vcombine.low %v5525, %v5508
        %v5699 = vunpack.c.l.s4 1966171168
        %v5700 = vunpack.c.0.s8 %v5699
        %v5701 = vlaneseq
        %v5702 = vshrl.u32 %v5701, 7
        %v5703 = vsub.s32 %v5700, %v5702
        %v5704 = vrot.slane %v5697, %v5703
        %v5706 = vunpack.c.l.s4 1966171168
        %v5707 = vunpack.c.0.s8 %v5706
        %v5708 = vlaneseq
        %v5709 = vshrl.u32 %v5708, 7
        %v5710 = vsub.s32 %v5707, %v5709
        %v5711 = vrot.slane %v5522, %v5710
        %v5712 = vcombine.low %v5704, %v5711
        %v5714 = vunpack.c.l.s4 1966171168
        %v5715 = vunpack.c.0.s8 %v5714
        %v5716 = vlaneseq
        %v5717 = vshrl.u32 %v5716, 7
        %v5718 = vsub.s32 %v5715, %v5717
        %v5719 = vrot.slane %v5712, %v5718
        %v5721 = vsel %vm808, %v5471, 0
        %v5724 = vsel %vm808, %v5719, 0
        %5726 = vmatprep.subr.bf16.mxu0 0
        %5727 = vmatpush1.bf16.xpose.msra.mxu0 %v5724
        %5728 = vmatprep.subr.bf16.mxu0 0
        %5729 = vmatpush1.bf16.xpose.msra.mxu0 0
        %5730 = vmatprep.subr.bf16.mxu0 0
        %5731 = vmatpush1.bf16.xpose.msra.mxu0 0
        %5732 = vmatprep.subr.bf16.mxu0 0
        %5733 = vmatpush1.bf16.xpose.msra.mxu0 0
        %5734 = vmatprep.subr.bf16.mxu0 0
        %5735 = vmatpush1.bf16.xpose.msra.mxu0 0
        %5736 = vmatprep.subr.bf16.mxu0 0
        %5737 = vmatpush1.bf16.xpose.msra.mxu0 0
        %5738 = vmatprep.subr.bf16.mxu0 0
        %5739 = vmatpush1.bf16.xpose.msra.mxu0 0
        %5740 = vmatprep.subr.bf16.mxu0 0
        %5741 = vmatpush1.bf16.xpose.msra.mxu0 0
        %5742 = vmatprep.subr.bf16.mxu0 0
        %5743 = vmatpush1.bf16.xpose.msra.mxu0 0
        %5744 = vmatprep.subr.bf16.mxu0 0
        %5745 = vmatpush1.bf16.xpose.msra.mxu0 0
        %5746 = vmatprep.subr.bf16.mxu0 0
        %5747 = vmatpush1.bf16.xpose.msra.mxu0 0
        %5748 = vmatprep.subr.bf16.mxu0 0
        %5749 = vmatpush1.bf16.xpose.msra.mxu0 0
        %5750 = vmatprep.subr.bf16.mxu0 0
        %5751 = vmatpush1.bf16.xpose.msra.mxu0 0
        %5752 = vmatprep.subr.bf16.mxu0 0
        %5753 = vmatpush1.bf16.xpose.msra.mxu0 0
        %5754 = vmatprep.subr.bf16.mxu0 0
        %5755 = vmatpush1.bf16.xpose.msra.mxu0 0
        %5756 = vmatprep.subr.bf16.mxu0 0
        %5757 = vmatpush1.bf16.xpose.msra.mxu0 0
        %5758 = vmatprep.mubr.bf16.mxu0 0
        %5759 = vmatmul.mubr.bf16.gmra.mrb[0].mxu0 %v5721
        %v5760 = vpop.f32.mrb[0].mxu0
        %v5761 = vadd.f32 0.0, %v5760
        %v5762 = vpop.f32.mrb[0].mxu0
        %v5763 = vpop.f32.mrb[0].mxu0
        %v5764 = vpop.f32.mrb[0].mxu0
        %5765 = vdwg.mxu0
        %v5766 = vcombine.low %v5524, %v5526
        %v5768 = vunpack.c.l.s4 1966171168
        %v5769 = vunpack.c.0.s8 %v5768
        %v5770 = vlaneseq
        %v5771 = vshrl.u32 %v5770, 7
        %v5772 = vsub.s32 %v5769, %v5771
        %v5773 = vrot.slane %v5766, %v5772
        %v5775 = vunpack.c.l.s4 1966171168
        %v5776 = vunpack.c.0.s8 %v5775
        %v5777 = vlaneseq
        %v5778 = vshrl.u32 %v5777, 7
        %v5779 = vsub.s32 %v5776, %v5778
        %v5780 = vrot.slane %v5541, %v5779
        %v5781 = vcombine.low %v5773, %v5780
        %v5783 = vunpack.c.l.s4 1966171168
        %v5784 = vunpack.c.0.s8 %v5783
        %v5785 = vlaneseq
        %v5786 = vshrl.u32 %v5785, 7
        %v5787 = vsub.s32 %v5784, %v5786
        %v5788 = vrot.slane %v5781, %v5787
        %v5790 = vsel %vm808, %v5472, 0
        %v5793 = vsel %vm808, %v5788, 0
        %5795 = vmatprep.subr.bf16.mxu0 0
        %5796 = vmatpush1.bf16.xpose.msra.mxu0 %v5793
        %5797 = vmatprep.subr.bf16.mxu0 0
        %5798 = vmatpush1.bf16.xpose.msra.mxu0 0
        %5799 = vmatprep.subr.bf16.mxu0 0
        %5800 = vmatpush1.bf16.xpose.msra.mxu0 0
        %5801 = vmatprep.subr.bf16.mxu0 0
        %5802 = vmatpush1.bf16.xpose.msra.mxu0 0
        %5803 = vmatprep.subr.bf16.mxu0 0
        %5804 = vmatpush1.bf16.xpose.msra.mxu0 0
        %5805 = vmatprep.subr.bf16.mxu0 0
        %5806 = vmatpush1.bf16.xpose.msra.mxu0 0
        %5807 = vmatprep.subr.bf16.mxu0 0
        %5808 = vmatpush1.bf16.xpose.msra.mxu0 0
        %5809 = vmatprep.subr.bf16.mxu0 0
        %5810 = vmatpush1.bf16.xpose.msra.mxu0 0
        %5811 = vmatprep.subr.bf16.mxu0 0
        %5812 = vmatpush1.bf16.xpose.msra.mxu0 0
        %5813 = vmatprep.subr.bf16.mxu0 0
        %5814 = vmatpush1.bf16.xpose.msra.mxu0 0
        %5815 = vmatprep.subr.bf16.mxu0 0
        %5816 = vmatpush1.bf16.xpose.msra.mxu0 0
        %5817 = vmatprep.subr.bf16.mxu0 0
        %5818 = vmatpush1.bf16.xpose.msra.mxu0 0
        %5819 = vmatprep.subr.bf16.mxu0 0
        %5820 = vmatpush1.bf16.xpose.msra.mxu0 0
        %5821 = vmatprep.subr.bf16.mxu0 0
        %5822 = vmatpush1.bf16.xpose.msra.mxu0 0
        %5823 = vmatprep.subr.bf16.mxu0 0
        %5824 = vmatpush1.bf16.xpose.msra.mxu0 0
        %5825 = vmatprep.subr.bf16.mxu0 0
        %5826 = vmatpush1.bf16.xpose.msra.mxu0 0
        %5827 = vmatprep.mubr.bf16.mxu0 0
        %5828 = vmatmul.mubr.bf16.gmra.mrb[0].mxu0 %v5790
        %v5829 = vpop.f32.mrb[0].mxu0
        %v5830 = vadd.f32 0.0, %v5829
        %v5831 = vpop.f32.mrb[0].mxu0
        %v5832 = vpop.f32.mrb[0].mxu0
        %v5833 = vpop.f32.mrb[0].mxu0
        %5834 = vdwg.mxu0
        %v5835 = vcombine.low %v5548, %v5549
        %v5837 = vunpack.c.l.s4 1966171168
        %v5838 = vunpack.c.0.s8 %v5837
        %v5839 = vlaneseq
        %v5840 = vshrl.u32 %v5839, 7
        %v5841 = vsub.s32 %v5838, %v5840
        %v5842 = vrot.slane %v5835, %v5841
        %v5844 = vunpack.c.l.s4 1966171168
        %v5845 = vunpack.c.0.s8 %v5844
        %v5846 = vlaneseq
        %v5847 = vshrl.u32 %v5846, 7
        %v5848 = vsub.s32 %v5845, %v5847
        %v5849 = vrot.slane %v5550, %v5848
        %v5850 = vcombine.low %v5842, %v5849
        %v5852 = vunpack.c.l.s4 1966171168
        %v5853 = vunpack.c.0.s8 %v5852
        %v5854 = vlaneseq
        %v5855 = vshrl.u32 %v5854, 7
        %v5856 = vsub.s32 %v5853, %v5855
        %v5857 = vrot.slane %v5850, %v5856
        %v5859 = vsel %vm808, %v5473, 0
        %v5862 = vsel %vm808, %v5857, 0
        %5864 = vmatprep.subr.bf16.mxu0 0
        %5865 = vmatpush1.bf16.xpose.msra.mxu0 %v5862
        %5866 = vmatprep.subr.bf16.mxu0 0
        %5867 = vmatpush1.bf16.xpose.msra.mxu0 0
        %5868 = vmatprep.subr.bf16.mxu0 0
        %5869 = vmatpush1.bf16.xpose.msra.mxu0 0
        %5870 = vmatprep.subr.bf16.mxu0 0
        %5871 = vmatpush1.bf16.xpose.msra.mxu0 0
        %5872 = vmatprep.subr.bf16.mxu0 0
        %5873 = vmatpush1.bf16.xpose.msra.mxu0 0
        %5874 = vmatprep.subr.bf16.mxu0 0
        %5875 = vmatpush1.bf16.xpose.msra.mxu0 0
        %5876 = vmatprep.subr.bf16.mxu0 0
        %5877 = vmatpush1.bf16.xpose.msra.mxu0 0
        %5878 = vmatprep.subr.bf16.mxu0 0
        %5879 = vmatpush1.bf16.xpose.msra.mxu0 0
        %5880 = vmatprep.subr.bf16.mxu0 0
        %5881 = vmatpush1.bf16.xpose.msra.mxu0 0
        %5882 = vmatprep.subr.bf16.mxu0 0
        %5883 = vmatpush1.bf16.xpose.msra.mxu0 0
        %5884 = vmatprep.subr.bf16.mxu0 0
        %5885 = vmatpush1.bf16.xpose.msra.mxu0 0
        %5886 = vmatprep.subr.bf16.mxu0 0
        %5887 = vmatpush1.bf16.xpose.msra.mxu0 0
        %5888 = vmatprep.subr.bf16.mxu0 0
        %5889 = vmatpush1.bf16.xpose.msra.mxu0 0
        %5890 = vmatprep.subr.bf16.mxu0 0
        %5891 = vmatpush1.bf16.xpose.msra.mxu0 0
        %5892 = vmatprep.subr.bf16.mxu0 0
        %5893 = vmatpush1.bf16.xpose.msra.mxu0 0
        %5894 = vmatprep.subr.bf16.mxu0 0
        %5895 = vmatpush1.bf16.xpose.msra.mxu0 0
        %5896 = vmatprep.mubr.bf16.mxu0 0
        %5897 = vmatmul.mubr.bf16.gmra.mrb[0].mxu0 %v5859
        %v5898 = vpop.f32.mrb[0].mxu0
        %v5899 = vadd.f32 0.0, %v5898
        %v5900 = vpop.f32.mrb[0].mxu0
        %v5901 = vpop.f32.mrb[0].mxu0
        %v5902 = vpop.f32.mrb[0].mxu0
        %5903 = vdwg.mxu0
        %vm5904 = vcmask 48128
        %v5905 = vsel %vm5904, %v5692, -inf
        %5906 = vmax.xlane.f32.xlu0 %v5905
        %v5907 = vpop.xlane.xlu0 %5906
        %v5908 = vsel %vm5904, %v5761, -inf
        %5909 = vmax.xlane.f32.xlu0 %v5908
        %v5910 = vpop.xlane.xlu0 %5909
        %v5911 = vsel %vm5904, %v5830, -inf
        %5912 = vmax.xlane.f32.xlu0 %v5911
        %v5913 = vpop.xlane.xlu0 %5912
        %v5914 = vsel %vm5904, %v5899, -inf
        %5915 = vmax.xlane.f32.xlu0 %v5914
        %v5916 = vpop.xlane.xlu0 %5915
        %v5917 = vsub.f32 %v5692, %v5907
        %v5918 = vsub.f32 %v5761, %v5910
        %v5919 = vsub.f32 %v5830, %v5913
        %v5920 = vsub.f32 %v5899, %v5916
        %v5921 = vmul.f32 %v5917, 1.442695
        %v5922 = vpow.pop %v5921
        %v5923 = vmul.f32 %v5918, 1.442695
        %v5924 = vpow.pop %v5923
        %v5925 = vmul.f32 %v5919, 1.442695
        %v5926 = vpow.pop %v5925
        %v5927 = vmul.f32 %v5920, 1.442695
        %v5928 = vpow.pop %v5927
        %v5929 = vsel %vm5904, %v5922, 0.0
        %5930 = vadd.xlane.f32.xlu0 %v5929
        %v5931 = vpop.xlane.xlu0 %5930
        %v5932 = vsel %vm5904, %v5924, 0.0
        %5933 = vadd.xlane.f32.xlu0 %v5932
        %v5934 = vpop.xlane.xlu0 %5933
        %v5935 = vsel %vm5904, %v5926, 0.0
        %5936 = vadd.xlane.f32.xlu0 %v5935
        %v5937 = vpop.xlane.xlu0 %5936
        %v5938 = vsel %vm5904, %v5928, 0.0
        %5939 = vadd.xlane.f32.xlu0 %v5938
        %v5940 = vpop.xlane.xlu0 %5939
        %v5941 = vrcp.pop %v5931
        %v5942 = vrcp.pop %v5934
        %v5943 = vrcp.pop %v5937
        %v5944 = vrcp.pop %v5940
        %v5945 = vmul.f32 %v5922, %v5941
        %v5946 = vmul.f32 %v5924, %v5942
        %v5947 = vmul.f32 %v5926, %v5943
        %v5948 = vmul.f32 %v5928, %v5944
        %v5949 = vpack.c.bf16 %v5945, %v5945
        %v5950 = vpack.c.bf16 %v5946, %v5946
        %v5951 = vpack.c.bf16 %v5947, %v5947
        %v5952 = vpack.c.bf16 %v5948, %v5948
        %v5953 = vcombine.low %v5578, %v5592
        %v5955 = vunpack.c.l.s4 1966171168
        %v5956 = vunpack.c.0.s8 %v5955
        %v5957 = vlaneseq
        %v5958 = vshrl.u32 %v5957, 7
        %v5959 = vsub.s32 %v5956, %v5958
        %v5960 = vrot.slane %v5953, %v5959
        %v5962 = vunpack.c.l.s4 1966171168
        %v5963 = vunpack.c.0.s8 %v5962
        %v5964 = vlaneseq
        %v5965 = vshrl.u32 %v5964, 7
        %v5966 = vsub.s32 %v5963, %v5965
        %v5967 = vrot.slane %v5600, %v5966
        %v5968 = vcombine.low %v5960, %v5967
        %v5970 = vunpack.c.l.s4 1966171168
        %v5971 = vunpack.c.0.s8 %v5970
        %v5972 = vlaneseq
        %v5973 = vshrl.u32 %v5972, 7
        %v5974 = vsub.s32 %v5971, %v5973
        %v5975 = vrot.slane %v5968, %v5974
        %v5977 = vsel %vm5904, %v5949, 0
        %vm5979 = vcmask 1042432
        %v5981 = vsel %vm5979, %v5975, 0
        %5983 = vmatprep.subr.bf16.mxu0 0
        %5984 = vmatpush1.bf16.msra.mxu0 %v5981
        %5985 = vmatprep.subr.bf16.mxu0 0
        %5986 = vmatpush1.bf16.msra.mxu0 0
        %5987 = vmatprep.subr.bf16.mxu0 0
        %5988 = vmatpush1.bf16.msra.mxu0 0
        %5989 = vmatprep.subr.bf16.mxu0 0
        %5990 = vmatpush1.bf16.msra.mxu0 0
        %5991 = vmatprep.subr.bf16.mxu0 0
        %5992 = vmatpush1.bf16.msra.mxu0 0
        %5993 = vmatprep.subr.bf16.mxu0 0
        %5994 = vmatpush1.bf16.msra.mxu0 0
        %5995 = vmatprep.subr.bf16.mxu0 0
        %5996 = vmatpush1.bf16.msra.mxu0 0
        %5997 = vmatprep.subr.bf16.mxu0 0
        %5998 = vmatpush1.bf16.msra.mxu0 0
        %5999 = vmatprep.subr.bf16.mxu0 0
        %6000 = vmatpush1.bf16.msra.mxu0 0
        %6001 = vmatprep.subr.bf16.mxu0 0
        %6002 = vmatpush1.bf16.msra.mxu0 0
        %6003 = vmatprep.subr.bf16.mxu0 0
        %6004 = vmatpush1.bf16.msra.mxu0 0
        %6005 = vmatprep.subr.bf16.mxu0 0
        %6006 = vmatpush1.bf16.msra.mxu0 0
        %6007 = vmatprep.subr.bf16.mxu0 0
        %6008 = vmatpush1.bf16.msra.mxu0 0
        %6009 = vmatprep.subr.bf16.mxu0 0
        %6010 = vmatpush1.bf16.msra.mxu0 0
        %6011 = vmatprep.subr.bf16.mxu0 0
        %6012 = vmatpush1.bf16.msra.mxu0 0
        %6013 = vmatprep.subr.bf16.mxu0 0
        %6014 = vmatpush1.bf16.msra.mxu0 0
        %6015 = vmatprep.mubr.bf16.mxu0 0
        %6016 = vmatmul.mubr.bf16.gmra.mrb[0].mxu0 %v5977
        %v6017 = vpop.f32.mrb[0].mxu0
        %v6018 = vadd.f32 0.0, %v6017
        %v6019 = vpop.f32.mrb[0].mxu0
        %v6020 = vpop.f32.mrb[0].mxu0
        %v6021 = vpop.f32.mrb[0].mxu0
        %6022 = vdwg.mxu0
        %v6023 = vcombine.low %v5602, %v5585
        %v6025 = vunpack.c.l.s4 1966171168
        %v6026 = vunpack.c.0.s8 %v6025
        %v6027 = vlaneseq
        %v6028 = vshrl.u32 %v6027, 7
        %v6029 = vsub.s32 %v6026, %v6028
        %v6030 = vrot.slane %v6023, %v6029
        %v6032 = vunpack.c.l.s4 1966171168
        %v6033 = vunpack.c.0.s8 %v6032
        %v6034 = vlaneseq
        %v6035 = vshrl.u32 %v6034, 7
        %v6036 = vsub.s32 %v6033, %v6035
        %v6037 = vrot.slane %v5599, %v6036
        %v6038 = vcombine.low %v6030, %v6037
        %v6040 = vunpack.c.l.s4 1966171168
        %v6041 = vunpack.c.0.s8 %v6040
        %v6042 = vlaneseq
        %v6043 = vshrl.u32 %v6042, 7
        %v6044 = vsub.s32 %v6041, %v6043
        %v6045 = vrot.slane %v6038, %v6044
        %v6047 = vsel %vm5904, %v5950, 0
        %v6050 = vsel %vm5979, %v6045, 0
        %6052 = vmatprep.subr.bf16.mxu0 0
        %6053 = vmatpush1.bf16.msra.mxu0 %v6050
        %6054 = vmatprep.subr.bf16.mxu0 0
        %6055 = vmatpush1.bf16.msra.mxu0 0
        %6056 = vmatprep.subr.bf16.mxu0 0
        %6057 = vmatpush1.bf16.msra.mxu0 0
        %6058 = vmatprep.subr.bf16.mxu0 0
        %6059 = vmatpush1.bf16.msra.mxu0 0
        %6060 = vmatprep.subr.bf16.mxu0 0
        %6061 = vmatpush1.bf16.msra.mxu0 0
        %6062 = vmatprep.subr.bf16.mxu0 0
        %6063 = vmatpush1.bf16.msra.mxu0 0
        %6064 = vmatprep.subr.bf16.mxu0 0
        %6065 = vmatpush1.bf16.msra.mxu0 0
        %6066 = vmatprep.subr.bf16.mxu0 0
        %6067 = vmatpush1.bf16.msra.mxu0 0
        %6068 = vmatprep.subr.bf16.mxu0 0
        %6069 = vmatpush1.bf16.msra.mxu0 0
        %6070 = vmatprep.subr.bf16.mxu0 0
        %6071 = vmatpush1.bf16.msra.mxu0 0
        %6072 = vmatprep.subr.bf16.mxu0 0
        %6073 = vmatpush1.bf16.msra.mxu0 0
        %6074 = vmatprep.subr.bf16.mxu0 0
        %6075 = vmatpush1.bf16.msra.mxu0 0
        %6076 = vmatprep.subr.bf16.mxu0 0
        %6077 = vmatpush1.bf16.msra.mxu0 0
        %6078 = vmatprep.subr.bf16.mxu0 0
        %6079 = vmatpush1.bf16.msra.mxu0 0
        %6080 = vmatprep.subr.bf16.mxu0 0
        %6081 = vmatpush1.bf16.msra.mxu0 0
        %6082 = vmatprep.subr.bf16.mxu0 0
        %6083 = vmatpush1.bf16.msra.mxu0 0
        %6084 = vmatprep.mubr.bf16.mxu0 0
        %6085 = vmatmul.mubr.bf16.gmra.mrb[0].mxu0 %v6047
        %v6086 = vpop.f32.mrb[0].mxu0
        %v6087 = vadd.f32 0.0, %v6086
        %v6088 = vpop.f32.mrb[0].mxu0
        %v6089 = vpop.f32.mrb[0].mxu0
        %v6090 = vpop.f32.mrb[0].mxu0
        %6091 = vdwg.mxu0
        %v6092 = vcombine.low %v5601, %v5603
        %v6094 = vunpack.c.l.s4 1966171168
        %v6095 = vunpack.c.0.s8 %v6094
        %v6096 = vlaneseq
        %v6097 = vshrl.u32 %v6096, 7
        %v6098 = vsub.s32 %v6095, %v6097
        %v6099 = vrot.slane %v6092, %v6098
        %v6101 = vunpack.c.l.s4 1966171168
        %v6102 = vunpack.c.0.s8 %v6101
        %v6103 = vlaneseq
        %v6104 = vshrl.u32 %v6103, 7
        %v6105 = vsub.s32 %v6102, %v6104
        %v6106 = vrot.slane %v5618, %v6105
        %v6107 = vcombine.low %v6099, %v6106
        %v6109 = vunpack.c.l.s4 1966171168
        %v6110 = vunpack.c.0.s8 %v6109
        %v6111 = vlaneseq
        %v6112 = vshrl.u32 %v6111, 7
        %v6113 = vsub.s32 %v6110, %v6112
        %v6114 = vrot.slane %v6107, %v6113
        %v6116 = vsel %vm5904, %v5951, 0
        %v6119 = vsel %vm5979, %v6114, 0
        %6121 = vmatprep.subr.bf16.mxu0 0
        %6122 = vmatpush1.bf16.msra.mxu0 %v6119
        %6123 = vmatprep.subr.bf16.mxu0 0
        %6124 = vmatpush1.bf16.msra.mxu0 0
        %6125 = vmatprep.subr.bf16.mxu0 0
        %6126 = vmatpush1.bf16.msra.mxu0 0
        %6127 = vmatprep.subr.bf16.mxu0 0
        %6128 = vmatpush1.bf16.msra.mxu0 0
        %6129 = vmatprep.subr.bf16.mxu0 0
        %6130 = vmatpush1.bf16.msra.mxu0 0
        %6131 = vmatprep.subr.bf16.mxu0 0
        %6132 = vmatpush1.bf16.msra.mxu0 0
        %6133 = vmatprep.subr.bf16.mxu0 0
        %6134 = vmatpush1.bf16.msra.mxu0 0
        %6135 = vmatprep.subr.bf16.mxu0 0
        %6136 = vmatpush1.bf16.msra.mxu0 0
        %6137 = vmatprep.subr.bf16.mxu0 0
        %6138 = vmatpush1.bf16.msra.mxu0 0
        %6139 = vmatprep.subr.bf16.mxu0 0
        %6140 = vmatpush1.bf16.msra.mxu0 0
        %6141 = vmatprep.subr.bf16.mxu0 0
        %6142 = vmatpush1.bf16.msra.mxu0 0
        %6143 = vmatprep.subr.bf16.mxu0 0
        %6144 = vmatpush1.bf16.msra.mxu0 0
        %6145 = vmatprep.subr.bf16.mxu0 0
        %6146 = vmatpush1.bf16.msra.mxu0 0
        %6147 = vmatprep.subr.bf16.mxu0 0
        %6148 = vmatpush1.bf16.msra.mxu0 0
        %6149 = vmatprep.subr.bf16.mxu0 0
        %6150 = vmatpush1.bf16.msra.mxu0 0
        %6151 = vmatprep.subr.bf16.mxu0 0
        %6152 = vmatpush1.bf16.msra.mxu0 0
        %6153 = vmatprep.mubr.bf16.mxu0 0
        %6154 = vmatmul.mubr.bf16.gmra.mrb[0].mxu0 %v6116
        %v6155 = vpop.f32.mrb[0].mxu0
        %v6156 = vadd.f32 0.0, %v6155
        %v6157 = vpop.f32.mrb[0].mxu0
        %v6158 = vpop.f32.mrb[0].mxu0
        %v6159 = vpop.f32.mrb[0].mxu0
        %6160 = vdwg.mxu0
        %v6161 = vcombine.low %v5625, %v5626
        %v6163 = vunpack.c.l.s4 1966171168
        %v6164 = vunpack.c.0.s8 %v6163
        %v6165 = vlaneseq
        %v6166 = vshrl.u32 %v6165, 7
        %v6167 = vsub.s32 %v6164, %v6166
        %v6168 = vrot.slane %v6161, %v6167
        %v6170 = vunpack.c.l.s4 1966171168
        %v6171 = vunpack.c.0.s8 %v6170
        %v6172 = vlaneseq
        %v6173 = vshrl.u32 %v6172, 7
        %v6174 = vsub.s32 %v6171, %v6173
        %v6175 = vrot.slane %v5627, %v6174
        %v6176 = vcombine.low %v6168, %v6175
        %v6178 = vunpack.c.l.s4 1966171168
        %v6179 = vunpack.c.0.s8 %v6178
        %v6180 = vlaneseq
        %v6181 = vshrl.u32 %v6180, 7
        %v6182 = vsub.s32 %v6179, %v6181
        %v6183 = vrot.slane %v6176, %v6182
        %v6185 = vsel %vm5904, %v5952, 0
        %v6188 = vsel %vm5979, %v6183, 0
        %6190 = vmatprep.subr.bf16.mxu0 0
        %6191 = vmatpush1.bf16.msra.mxu0 %v6188
        %6192 = vmatprep.subr.bf16.mxu0 0
        %6193 = vmatpush1.bf16.msra.mxu0 0
        %6194 = vmatprep.subr.bf16.mxu0 0
        %6195 = vmatpush1.bf16.msra.mxu0 0
        %6196 = vmatprep.subr.bf16.mxu0 0
        %6197 = vmatpush1.bf16.msra.mxu0 0
        %6198 = vmatprep.subr.bf16.mxu0 0
        %6199 = vmatpush1.bf16.msra.mxu0 0
        %6200 = vmatprep.subr.bf16.mxu0 0
        %6201 = vmatpush1.bf16.msra.mxu0 0
        %6202 = vmatprep.subr.bf16.mxu0 0
        %6203 = vmatpush1.bf16.msra.mxu0 0
        %6204 = vmatprep.subr.bf16.mxu0 0
        %6205 = vmatpush1.bf16.msra.mxu0 0
        %6206 = vmatprep.subr.bf16.mxu0 0
        %6207 = vmatpush1.bf16.msra.mxu0 0
        %6208 = vmatprep.subr.bf16.mxu0 0
        %6209 = vmatpush1.bf16.msra.mxu0 0
        %6210 = vmatprep.subr.bf16.mxu0 0
        %6211 = vmatpush1.bf16.msra.mxu0 0
        %6212 = vmatprep.subr.bf16.mxu0 0
        %6213 = vmatpush1.bf16.msra.mxu0 0
        %6214 = vmatprep.subr.bf16.mxu0 0
        %6215 = vmatpush1.bf16.msra.mxu0 0
        %6216 = vmatprep.subr.bf16.mxu0 0
        %6217 = vmatpush1.bf16.msra.mxu0 0
        %6218 = vmatprep.subr.bf16.mxu0 0
        %6219 = vmatpush1.bf16.msra.mxu0 0
        %6220 = vmatprep.subr.bf16.mxu0 0
        %6221 = vmatpush1.bf16.msra.mxu0 0
        %6222 = vmatprep.mubr.bf16.mxu0 0
        %6223 = vmatmul.mubr.bf16.gmra.mrb[0].mxu0 %v6185
        %v6224 = vpop.f32.mrb[0].mxu0
        %v6225 = vadd.f32 0.0, %v6224
        %v6226 = vpop.f32.mrb[0].mxu0
        %v6227 = vpop.f32.mrb[0].mxu0
        %v6228 = vpop.f32.mrb[0].mxu0
        %6229 = vdwg.mxu0
        %v6230 = vpack.c.bf16 %v6018, %v6018
        %v6231 = vpack.c.bf16 %v6087, %v6087
        %v6232 = vpack.c.bf16 %v6156, %v6156
        %v6233 = vpack.c.bf16 %v6225, %v6225
        %6234 = vrot.lane.b32.xlu0 %v5470, 120
        %v6235 = vpop.permute.xlu0 %6234
        %6236 = vrot.lane.b32.xlu0 %v5650, 120
        %v6237 = vpop.permute.xlu0 %6236
        %v6239 = vsel %vm808, %v6235, 0
        %v6242 = vsel %vm808, %v6237, 0
        %6244 = vmatprep.subr.bf16.mxu0 0
        %6245 = vmatpush1.bf16.xpose.msra.mxu0 %v6242
        %6246 = vmatprep.subr.bf16.mxu0 0
        %6247 = vmatpush1.bf16.xpose.msra.mxu0 0
        %6248 = vmatprep.subr.bf16.mxu0 0
        %6249 = vmatpush1.bf16.xpose.msra.mxu0 0
        %6250 = vmatprep.subr.bf16.mxu0 0
        %6251 = vmatpush1.bf16.xpose.msra.mxu0 0
        %6252 = vmatprep.subr.bf16.mxu0 0
        %6253 = vmatpush1.bf16.xpose.msra.mxu0 0
        %6254 = vmatprep.subr.bf16.mxu0 0
        %6255 = vmatpush1.bf16.xpose.msra.mxu0 0
        %6256 = vmatprep.subr.bf16.mxu0 0
        %6257 = vmatpush1.bf16.xpose.msra.mxu0 0
        %6258 = vmatprep.subr.bf16.mxu0 0
        %6259 = vmatpush1.bf16.xpose.msra.mxu0 0
        %6260 = vmatprep.subr.bf16.mxu0 0
        %6261 = vmatpush1.bf16.xpose.msra.mxu0 0
        %6262 = vmatprep.subr.bf16.mxu0 0
        %6263 = vmatpush1.bf16.xpose.msra.mxu0 0
        %6264 = vmatprep.subr.bf16.mxu0 0
        %6265 = vmatpush1.bf16.xpose.msra.mxu0 0
        %6266 = vmatprep.subr.bf16.mxu0 0
        %6267 = vmatpush1.bf16.xpose.msra.mxu0 0
        %6268 = vmatprep.subr.bf16.mxu0 0
        %6269 = vmatpush1.bf16.xpose.msra.mxu0 0
        %6270 = vmatprep.subr.bf16.mxu0 0
        %6271 = vmatpush1.bf16.xpose.msra.mxu0 0
        %6272 = vmatprep.subr.bf16.mxu0 0
        %6273 = vmatpush1.bf16.xpose.msra.mxu0 0
        %6274 = vmatprep.subr.bf16.mxu0 0
        %6275 = vmatpush1.bf16.xpose.msra.mxu0 0
        %6276 = vmatprep.mubr.bf16.mxu0 0
        %6277 = vmatmul.mubr.bf16.gmra.mrb[0].mxu0 %v6239
        %v6278 = vpop.f32.mrb[0].mxu0
        %v6279 = vadd.f32 0.0, %v6278
        %v6280 = vpop.f32.mrb[0].mxu0
        %v6281 = vpop.f32.mrb[0].mxu0
        %v6282 = vpop.f32.mrb[0].mxu0
        %6283 = vdwg.mxu0
        %6284 = vrot.lane.b32.xlu0 %v5471, 120
        %v6285 = vpop.permute.xlu0 %6284
        %6286 = vrot.lane.b32.xlu0 %v5719, 120
        %v6287 = vpop.permute.xlu0 %6286
        %v6289 = vsel %vm808, %v6285, 0
        %v6292 = vsel %vm808, %v6287, 0
        %6294 = vmatprep.subr.bf16.mxu0 0
        %6295 = vmatpush1.bf16.xpose.msra.mxu0 %v6292
        %6296 = vmatprep.subr.bf16.mxu0 0
        %6297 = vmatpush1.bf16.xpose.msra.mxu0 0
        %6298 = vmatprep.subr.bf16.mxu0 0
        %6299 = vmatpush1.bf16.xpose.msra.mxu0 0
        %6300 = vmatprep.subr.bf16.mxu0 0
        %6301 = vmatpush1.bf16.xpose.msra.mxu0 0
        %6302 = vmatprep.subr.bf16.mxu0 0
        %6303 = vmatpush1.bf16.xpose.msra.mxu0 0
        %6304 = vmatprep.subr.bf16.mxu0 0
        %6305 = vmatpush1.bf16.xpose.msra.mxu0 0
        %6306 = vmatprep.subr.bf16.mxu0 0
        %6307 = vmatpush1.bf16.xpose.msra.mxu0 0
        %6308 = vmatprep.subr.bf16.mxu0 0
        %6309 = vmatpush1.bf16.xpose.msra.mxu0 0
        %6310 = vmatprep.subr.bf16.mxu0 0
        %6311 = vmatpush1.bf16.xpose.msra.mxu0 0
        %6312 = vmatprep.subr.bf16.mxu0 0
        %6313 = vmatpush1.bf16.xpose.msra.mxu0 0
        %6314 = vmatprep.subr.bf16.mxu0 0
        %6315 = vmatpush1.bf16.xpose.msra.mxu0 0
        %6316 = vmatprep.subr.bf16.mxu0 0
        %6317 = vmatpush1.bf16.xpose.msra.mxu0 0
        %6318 = vmatprep.subr.bf16.mxu0 0
        %6319 = vmatpush1.bf16.xpose.msra.mxu0 0
        %6320 = vmatprep.subr.bf16.mxu0 0
        %6321 = vmatpush1.bf16.xpose.msra.mxu0 0
        %6322 = vmatprep.subr.bf16.mxu0 0
        %6323 = vmatpush1.bf16.xpose.msra.mxu0 0
        %6324 = vmatprep.subr.bf16.mxu0 0
        %6325 = vmatpush1.bf16.xpose.msra.mxu0 0
        %6326 = vmatprep.mubr.bf16.mxu0 0
        %6327 = vmatmul.mubr.bf16.gmra.mrb[0].mxu0 %v6289
        %v6328 = vpop.f32.mrb[0].mxu0
        %v6329 = vadd.f32 0.0, %v6328
        %v6330 = vpop.f32.mrb[0].mxu0
        %v6331 = vpop.f32.mrb[0].mxu0
        %v6332 = vpop.f32.mrb[0].mxu0
        %6333 = vdwg.mxu0
        %6334 = vrot.lane.b32.xlu0 %v5472, 120
        %v6335 = vpop.permute.xlu0 %6334
        %6336 = vrot.lane.b32.xlu0 %v5788, 120
        %v6337 = vpop.permute.xlu0 %6336
        %v6339 = vsel %vm808, %v6335, 0
        %v6342 = vsel %vm808, %v6337, 0
        %6344 = vmatprep.subr.bf16.mxu0 0
        %6345 = vmatpush1.bf16.xpose.msra.mxu0 %v6342
        %6346 = vmatprep.subr.bf16.mxu0 0
        %6347 = vmatpush1.bf16.xpose.msra.mxu0 0
        %6348 = vmatprep.subr.bf16.mxu0 0
        %6349 = vmatpush1.bf16.xpose.msra.mxu0 0
        %6350 = vmatprep.subr.bf16.mxu0 0
        %6351 = vmatpush1.bf16.xpose.msra.mxu0 0
        %6352 = vmatprep.subr.bf16.mxu0 0
        %6353 = vmatpush1.bf16.xpose.msra.mxu0 0
        %6354 = vmatprep.subr.bf16.mxu0 0
        %6355 = vmatpush1.bf16.xpose.msra.mxu0 0
        %6356 = vmatprep.subr.bf16.mxu0 0
        %6357 = vmatpush1.bf16.xpose.msra.mxu0 0
        %6358 = vmatprep.subr.bf16.mxu0 0
        %6359 = vmatpush1.bf16.xpose.msra.mxu0 0
        %6360 = vmatprep.subr.bf16.mxu0 0
        %6361 = vmatpush1.bf16.xpose.msra.mxu0 0
        %6362 = vmatprep.subr.bf16.mxu0 0
        %6363 = vmatpush1.bf16.xpose.msra.mxu0 0
        %6364 = vmatprep.subr.bf16.mxu0 0
        %6365 = vmatpush1.bf16.xpose.msra.mxu0 0
        %6366 = vmatprep.subr.bf16.mxu0 0
        %6367 = vmatpush1.bf16.xpose.msra.mxu0 0
        %6368 = vmatprep.subr.bf16.mxu0 0
        %6369 = vmatpush1.bf16.xpose.msra.mxu0 0
        %6370 = vmatprep.subr.bf16.mxu0 0
        %6371 = vmatpush1.bf16.xpose.msra.mxu0 0
        %6372 = vmatprep.subr.bf16.mxu0 0
        %6373 = vmatpush1.bf16.xpose.msra.mxu0 0
        %6374 = vmatprep.subr.bf16.mxu0 0
        %6375 = vmatpush1.bf16.xpose.msra.mxu0 0
        %6376 = vmatprep.mubr.bf16.mxu0 0
        %6377 = vmatmul.mubr.bf16.gmra.mrb[0].mxu0 %v6339
        %v6378 = vpop.f32.mrb[0].mxu0
        %v6379 = vadd.f32 0.0, %v6378
        %v6380 = vpop.f32.mrb[0].mxu0
        %v6381 = vpop.f32.mrb[0].mxu0
        %v6382 = vpop.f32.mrb[0].mxu0
        %6383 = vdwg.mxu0
        %6384 = vrot.lane.b32.xlu0 %v5473, 120
        %v6385 = vpop.permute.xlu0 %6384
        %6386 = vrot.lane.b32.xlu0 %v5857, 120
        %v6387 = vpop.permute.xlu0 %6386
        %v6389 = vsel %vm808, %v6385, 0
        %v6392 = vsel %vm808, %v6387, 0
        %6394 = vmatprep.subr.bf16.mxu0 0
        %6395 = vmatpush1.bf16.xpose.msra.mxu0 %v6392
        %6396 = vmatprep.subr.bf16.mxu0 0
        %6397 = vmatpush1.bf16.xpose.msra.mxu0 0
        %6398 = vmatprep.subr.bf16.mxu0 0
        %6399 = vmatpush1.bf16.xpose.msra.mxu0 0
        %6400 = vmatprep.subr.bf16.mxu0 0
        %6401 = vmatpush1.bf16.xpose.msra.mxu0 0
        %6402 = vmatprep.subr.bf16.mxu0 0
        %6403 = vmatpush1.bf16.xpose.msra.mxu0 0
        %6404 = vmatprep.subr.bf16.mxu0 0
        %6405 = vmatpush1.bf16.xpose.msra.mxu0 0
        %6406 = vmatprep.subr.bf16.mxu0 0
        %6407 = vmatpush1.bf16.xpose.msra.mxu0 0
        %6408 = vmatprep.subr.bf16.mxu0 0
        %6409 = vmatpush1.bf16.xpose.msra.mxu0 0
        %6410 = vmatprep.subr.bf16.mxu0 0
        %6411 = vmatpush1.bf16.xpose.msra.mxu0 0
        %6412 = vmatprep.subr.bf16.mxu0 0
        %6413 = vmatpush1.bf16.xpose.msra.mxu0 0
        %6414 = vmatprep.subr.bf16.mxu0 0
        %6415 = vmatpush1.bf16.xpose.msra.mxu0 0
        %6416 = vmatprep.subr.bf16.mxu0 0
        %6417 = vmatpush1.bf16.xpose.msra.mxu0 0
        %6418 = vmatprep.subr.bf16.mxu0 0
        %6419 = vmatpush1.bf16.xpose.msra.mxu0 0
        %6420 = vmatprep.subr.bf16.mxu0 0
        %6421 = vmatpush1.bf16.xpose.msra.mxu0 0
        %6422 = vmatprep.subr.bf16.mxu0 0
        %6423 = vmatpush1.bf16.xpose.msra.mxu0 0
        %6424 = vmatprep.subr.bf16.mxu0 0
        %6425 = vmatpush1.bf16.xpose.msra.mxu0 0
        %6426 = vmatprep.mubr.bf16.mxu0 0
        %6427 = vmatmul.mubr.bf16.gmra.mrb[0].mxu0 %v6389
        %v6428 = vpop.f32.mrb[0].mxu0
        %v6429 = vadd.f32 0.0, %v6428
        %v6430 = vpop.f32.mrb[0].mxu0
        %v6431 = vpop.f32.mrb[0].mxu0
        %v6432 = vpop.f32.mrb[0].mxu0
        %6433 = vdwg.mxu0
        %v6434 = vsel %vm5904, %v6279, -inf
        %6435 = vmax.xlane.f32.xlu0 %v6434
        %v6436 = vpop.xlane.xlu0 %6435
        %v6437 = vsel %vm5904, %v6329, -inf
        %6438 = vmax.xlane.f32.xlu0 %v6437
        %v6439 = vpop.xlane.xlu0 %6438
        %v6440 = vsel %vm5904, %v6379, -inf
        %6441 = vmax.xlane.f32.xlu0 %v6440
        %v6442 = vpop.xlane.xlu0 %6441
        %v6443 = vsel %vm5904, %v6429, -inf
        %6444 = vmax.xlane.f32.xlu0 %v6443
        %v6445 = vpop.xlane.xlu0 %6444
        %v6446 = vsub.f32 %v6279, %v6436
        %v6447 = vsub.f32 %v6329, %v6439
        %v6448 = vsub.f32 %v6379, %v6442
        %v6449 = vsub.f32 %v6429, %v6445
        %v6450 = vmul.f32 %v6446, 1.442695
        %v6451 = vpow.pop %v6450
        %v6452 = vmul.f32 %v6447, 1.442695
        %v6453 = vpow.pop %v6452
        %v6454 = vmul.f32 %v6448, 1.442695
        %v6455 = vpow.pop %v6454
        %v6456 = vmul.f32 %v6449, 1.442695
        %v6457 = vpow.pop %v6456
        %v6458 = vsel %vm5904, %v6451, 0.0
        %6459 = vadd.xlane.f32.xlu0 %v6458
        %v6460 = vpop.xlane.xlu0 %6459
        %v6461 = vsel %vm5904, %v6453, 0.0
        %6462 = vadd.xlane.f32.xlu0 %v6461
        %v6463 = vpop.xlane.xlu0 %6462
        %v6464 = vsel %vm5904, %v6455, 0.0
        %6465 = vadd.xlane.f32.xlu0 %v6464
        %v6466 = vpop.xlane.xlu0 %6465
        %v6467 = vsel %vm5904, %v6457, 0.0
        %6468 = vadd.xlane.f32.xlu0 %v6467
        %v6469 = vpop.xlane.xlu0 %6468
        %v6470 = vrcp.pop %v6460
        %v6471 = vrcp.pop %v6463
        %v6472 = vrcp.pop %v6466
        %v6473 = vrcp.pop %v6469
        %v6474 = vmul.f32 %v6451, %v6470
        %v6475 = vmul.f32 %v6453, %v6471
        %v6476 = vmul.f32 %v6455, %v6472
        %v6477 = vmul.f32 %v6457, %v6473
        %v6478 = vpack.c.bf16 %v6474, %v6474
        %v6479 = vpack.c.bf16 %v6475, %v6475
        %v6480 = vpack.c.bf16 %v6476, %v6476
        %v6481 = vpack.c.bf16 %v6477, %v6477
        %6482 = vrot.lane.b32.xlu0 %v5975, 120
        %v6483 = vpop.permute.xlu0 %6482
        %v6485 = vsel %vm5904, %v6478, 0
        %v6488 = vsel %vm5979, %v6483, 0
        %6490 = vmatprep.subr.bf16.mxu0 0
        %6491 = vmatpush1.bf16.msra.mxu0 %v6488
        %6492 = vmatprep.subr.bf16.mxu0 0
        %6493 = vmatpush1.bf16.msra.mxu0 0
        %6494 = vmatprep.subr.bf16.mxu0 0
        %6495 = vmatpush1.bf16.msra.mxu0 0
        %6496 = vmatprep.subr.bf16.mxu0 0
        %6497 = vmatpush1.bf16.msra.mxu0 0
        %6498 = vmatprep.subr.bf16.mxu0 0
        %6499 = vmatpush1.bf16.msra.mxu0 0
        %6500 = vmatprep.subr.bf16.mxu0 0
        %6501 = vmatpush1.bf16.msra.mxu0 0
        %6502 = vmatprep.subr.bf16.mxu0 0
        %6503 = vmatpush1.bf16.msra.mxu0 0
        %6504 = vmatprep.subr.bf16.mxu0 0
        %6505 = vmatpush1.bf16.msra.mxu0 0
        %6506 = vmatprep.subr.bf16.mxu0 0
        %6507 = vmatpush1.bf16.msra.mxu0 0
        %6508 = vmatprep.subr.bf16.mxu0 0
        %6509 = vmatpush1.bf16.msra.mxu0 0
        %6510 = vmatprep.subr.bf16.mxu0 0
        %6511 = vmatpush1.bf16.msra.mxu0 0
        %6512 = vmatprep.subr.bf16.mxu0 0
        %6513 = vmatpush1.bf16.msra.mxu0 0
        %6514 = vmatprep.subr.bf16.mxu0 0
        %6515 = vmatpush1.bf16.msra.mxu0 0
        %6516 = vmatprep.subr.bf16.mxu0 0
        %6517 = vmatpush1.bf16.msra.mxu0 0
        %6518 = vmatprep.subr.bf16.mxu0 0
        %6519 = vmatpush1.bf16.msra.mxu0 0
        %6520 = vmatprep.subr.bf16.mxu0 0
        %6521 = vmatpush1.bf16.msra.mxu0 0
        %6522 = vmatprep.mubr.bf16.mxu0 0
        %6523 = vmatmul.mubr.bf16.gmra.mrb[0].mxu0 %v6485
        %v6524 = vpop.f32.mrb[0].mxu0
        %v6525 = vadd.f32 0.0, %v6524
        %v6526 = vpop.f32.mrb[0].mxu0
        %v6527 = vpop.f32.mrb[0].mxu0
        %v6528 = vpop.f32.mrb[0].mxu0
        %6529 = vdwg.mxu0
        %6530 = vrot.lane.b32.xlu0 %v6045, 120
        %v6531 = vpop.permute.xlu0 %6530
        %v6533 = vsel %vm5904, %v6479, 0
        %v6536 = vsel %vm5979, %v6531, 0
        %6538 = vmatprep.subr.bf16.mxu0 0
        %6539 = vmatpush1.bf16.msra.mxu0 %v6536
        %6540 = vmatprep.subr.bf16.mxu0 0
        %6541 = vmatpush1.bf16.msra.mxu0 0
        %6542 = vmatprep.subr.bf16.mxu0 0
        %6543 = vmatpush1.bf16.msra.mxu0 0
        %6544 = vmatprep.subr.bf16.mxu0 0
        %6545 = vmatpush1.bf16.msra.mxu0 0
        %6546 = vmatprep.subr.bf16.mxu0 0
        %6547 = vmatpush1.bf16.msra.mxu0 0
        %6548 = vmatprep.subr.bf16.mxu0 0
        %6549 = vmatpush1.bf16.msra.mxu0 0
        %6550 = vmatprep.subr.bf16.mxu0 0
        %6551 = vmatpush1.bf16.msra.mxu0 0
        %6552 = vmatprep.subr.bf16.mxu0 0
        %6553 = vmatpush1.bf16.msra.mxu0 0
        %6554 = vmatprep.subr.bf16.mxu0 0
        %6555 = vmatpush1.bf16.msra.mxu0 0
        %6556 = vmatprep.subr.bf16.mxu0 0
        %6557 = vmatpush1.bf16.msra.mxu0 0
        %6558 = vmatprep.subr.bf16.mxu0 0
        %6559 = vmatpush1.bf16.msra.mxu0 0
        %6560 = vmatprep.subr.bf16.mxu0 0
        %6561 = vmatpush1.bf16.msra.mxu0 0
        %6562 = vmatprep.subr.bf16.mxu0 0
        %6563 = vmatpush1.bf16.msra.mxu0 0
        %6564 = vmatprep.subr.bf16.mxu0 0
        %6565 = vmatpush1.bf16.msra.mxu0 0
        %6566 = vmatprep.subr.bf16.mxu0 0
        %6567 = vmatpush1.bf16.msra.mxu0 0
        %6568 = vmatprep.subr.bf16.mxu0 0
        %6569 = vmatpush1.bf16.msra.mxu0 0
        %6570 = vmatprep.mubr.bf16.mxu0 0
        %6571 = vmatmul.mubr.bf16.gmra.mrb[0].mxu0 %v6533
        %v6572 = vpop.f32.mrb[0].mxu0
        %v6573 = vadd.f32 0.0, %v6572
        %v6574 = vpop.f32.mrb[0].mxu0
        %v6575 = vpop.f32.mrb[0].mxu0
        %v6576 = vpop.f32.mrb[0].mxu0
        %6577 = vdwg.mxu0
        %6578 = vrot.lane.b32.xlu0 %v6114, 120
        %v6579 = vpop.permute.xlu0 %6578
        %v6581 = vsel %vm5904, %v6480, 0
        %v6584 = vsel %vm5979, %v6579, 0
        %6586 = vmatprep.subr.bf16.mxu0 0
        %6587 = vmatpush1.bf16.msra.mxu0 %v6584
        %6588 = vmatprep.subr.bf16.mxu0 0
        %6589 = vmatpush1.bf16.msra.mxu0 0
        %6590 = vmatprep.subr.bf16.mxu0 0
        %6591 = vmatpush1.bf16.msra.mxu0 0
        %6592 = vmatprep.subr.bf16.mxu0 0
        %6593 = vmatpush1.bf16.msra.mxu0 0
        %6594 = vmatprep.subr.bf16.mxu0 0
        %6595 = vmatpush1.bf16.msra.mxu0 0
        %6596 = vmatprep.subr.bf16.mxu0 0
        %6597 = vmatpush1.bf16.msra.mxu0 0
        %6598 = vmatprep.subr.bf16.mxu0 0
        %6599 = vmatpush1.bf16.msra.mxu0 0
        %6600 = vmatprep.subr.bf16.mxu0 0
        %6601 = vmatpush1.bf16.msra.mxu0 0
        %6602 = vmatprep.subr.bf16.mxu0 0
        %6603 = vmatpush1.bf16.msra.mxu0 0
        %6604 = vmatprep.subr.bf16.mxu0 0
        %6605 = vmatpush1.bf16.msra.mxu0 0
        %6606 = vmatprep.subr.bf16.mxu0 0
        %6607 = vmatpush1.bf16.msra.mxu0 0
        %6608 = vmatprep.subr.bf16.mxu0 0
        %6609 = vmatpush1.bf16.msra.mxu0 0
        %6610 = vmatprep.subr.bf16.mxu0 0
        %6611 = vmatpush1.bf16.msra.mxu0 0
        %6612 = vmatprep.subr.bf16.mxu0 0
        %6613 = vmatpush1.bf16.msra.mxu0 0
        %6614 = vmatprep.subr.bf16.mxu0 0
        %6615 = vmatpush1.bf16.msra.mxu0 0
        %6616 = vmatprep.subr.bf16.mxu0 0
        %6617 = vmatpush1.bf16.msra.mxu0 0
        %6618 = vmatprep.mubr.bf16.mxu0 0
        %6619 = vmatmul.mubr.bf16.gmra.mrb[0].mxu0 %v6581
        %v6620 = vpop.f32.mrb[0].mxu0
        %v6621 = vadd.f32 0.0, %v6620
        %v6622 = vpop.f32.mrb[0].mxu0
        %v6623 = vpop.f32.mrb[0].mxu0
        %v6624 = vpop.f32.mrb[0].mxu0
        %6625 = vdwg.mxu0
        %6626 = vrot.lane.b32.xlu0 %v6183, 120
        %v6627 = vpop.permute.xlu0 %6626
        %v6629 = vsel %vm5904, %v6481, 0
        %v6632 = vsel %vm5979, %v6627, 0
        %6634 = vmatprep.subr.bf16.mxu0 0
        %6635 = vmatpush1.bf16.msra.mxu0 %v6632
        %6636 = vmatprep.subr.bf16.mxu0 0
        %6637 = vmatpush1.bf16.msra.mxu0 0
        %6638 = vmatprep.subr.bf16.mxu0 0
        %6639 = vmatpush1.bf16.msra.mxu0 0
        %6640 = vmatprep.subr.bf16.mxu0 0
        %6641 = vmatpush1.bf16.msra.mxu0 0
        %6642 = vmatprep.subr.bf16.mxu0 0
        %6643 = vmatpush1.bf16.msra.mxu0 0
        %6644 = vmatprep.subr.bf16.mxu0 0
        %6645 = vmatpush1.bf16.msra.mxu0 0
        %6646 = vmatprep.subr.bf16.mxu0 0
        %6647 = vmatpush1.bf16.msra.mxu0 0
        %6648 = vmatprep.subr.bf16.mxu0 0
        %6649 = vmatpush1.bf16.msra.mxu0 0
        %6650 = vmatprep.subr.bf16.mxu0 0
        %6651 = vmatpush1.bf16.msra.mxu0 0
        %6652 = vmatprep.subr.bf16.mxu0 0
        %6653 = vmatpush1.bf16.msra.mxu0 0
        %6654 = vmatprep.subr.bf16.mxu0 0
        %6655 = vmatpush1.bf16.msra.mxu0 0
        %6656 = vmatprep.subr.bf16.mxu0 0
        %6657 = vmatpush1.bf16.msra.mxu0 0
        %6658 = vmatprep.subr.bf16.mxu0 0
        %6659 = vmatpush1.bf16.msra.mxu0 0
        %6660 = vmatprep.subr.bf16.mxu0 0
        %6661 = vmatpush1.bf16.msra.mxu0 0
        %6662 = vmatprep.subr.bf16.mxu0 0
        %6663 = vmatpush1.bf16.msra.mxu0 0
        %6664 = vmatprep.subr.bf16.mxu0 0
        %6665 = vmatpush1.bf16.msra.mxu0 0
        %6666 = vmatprep.mubr.bf16.mxu0 0
        %6667 = vmatmul.mubr.bf16.gmra.mrb[0].mxu0 %v6629
        %v6668 = vpop.f32.mrb[0].mxu0
        %v6669 = vadd.f32 0.0, %v6668
        %v6670 = vpop.f32.mrb[0].mxu0
        %v6671 = vpop.f32.mrb[0].mxu0
        %v6672 = vpop.f32.mrb[0].mxu0
        %6673 = vdwg.mxu0
        %v6674 = vpack.c.bf16 %v6525, %v6525
        %v6675 = vpack.c.bf16 %v6573, %v6573
        %v6676 = vpack.c.bf16 %v6621, %v6621
        %v6677 = vpack.c.bf16 %v6669, %v6669
        %v6682 = vunpack.c.l.b16 %v6674
        %v6683 = vunpack.c.l.b16 %v6675
        %v6684 = vunpack.c.l.b16 %v6676
        %v6685 = vunpack.c.l.b16 %v6677
        %v6686 = vpack.c.b16 %v6683, %v6682
        %v6687 = vpack.c.b16 %v6685, %v6684
        %v6689 = vsel %vm808, %v6686, 0
        %v6692 = vsel %vm808, %v6687, 0
        %v6695 = vsel %vm2756, %v460, 0
        %6697 = vmatprep.subr.bf16.mxu0 0
        %6698 = vmatpush1.bf16.msra.mxu0 %v6695
        %6699 = vmatprep.subr.bf16.mxu0 0
        %6700 = vmatpush1.bf16.msra.mxu0 0
        %6701 = vmatprep.subr.bf16.mxu0 0
        %6702 = vmatpush1.bf16.msra.mxu0 0
        %6703 = vmatprep.subr.bf16.mxu0 0
        %6704 = vmatpush1.bf16.msra.mxu0 0
        %6705 = vmatprep.subr.bf16.mxu0 0
        %6706 = vmatpush1.bf16.msra.mxu0 0
        %6707 = vmatprep.subr.bf16.mxu0 0
        %6708 = vmatpush1.bf16.msra.mxu0 0
        %6709 = vmatprep.subr.bf16.mxu0 0
        %6710 = vmatpush1.bf16.msra.mxu0 0
        %6711 = vmatprep.subr.bf16.mxu0 0
        %6712 = vmatpush1.bf16.msra.mxu0 0
        %6713 = vmatprep.subr.bf16.mxu0 0
        %6714 = vmatpush1.bf16.msra.mxu0 0
        %6715 = vmatprep.subr.bf16.mxu0 0
        %6716 = vmatpush1.bf16.msra.mxu0 0
        %6717 = vmatprep.subr.bf16.mxu0 0
        %6718 = vmatpush1.bf16.msra.mxu0 0
        %6719 = vmatprep.subr.bf16.mxu0 0
        %6720 = vmatpush1.bf16.msra.mxu0 0
        %6721 = vmatprep.subr.bf16.mxu0 0
        %6722 = vmatpush1.bf16.msra.mxu0 0
        %6723 = vmatprep.subr.bf16.mxu0 0
        %6724 = vmatpush1.bf16.msra.mxu0 0
        %6725 = vmatprep.subr.bf16.mxu0 0
        %6726 = vmatpush1.bf16.msra.mxu0 0
        %6727 = vmatprep.subr.bf16.mxu0 0
        %6728 = vmatpush1.bf16.msra.mxu0 0
        %6729 = vmatprep.mubr.bf16.mxu0 0
        %6730 = vmatmul.mubr.bf16.gmra.mrb[0].mxu0 %v6689
        %v6731 = vpop.f32.mrb[0].mxu0
        %v6732 = vadd.f32 0.0, %v6731
        %v6733 = vpop.f32.mrb[0].mxu0
        %v6734 = vpop.f32.mrb[0].mxu0
        %v6735 = vadd.f32 0.0, %v6734
        %v6736 = vpop.f32.mrb[0].mxu0
        %6737 = vmatprep.mubr.bf16.mxu0 0
        %6738 = vmatmul.mubr.bf16.gmra.mrb[0].mxu0 %v6692
        %v6739 = vpop.f32.mrb[0].mxu0
        %v6740 = vadd.f32 0.0, %v6739
        %v6741 = vpop.f32.mrb[0].mxu0
        %v6742 = vpop.f32.mrb[0].mxu0
        %v6743 = vadd.f32 0.0, %v6742
        %v6744 = vpop.f32.mrb[0].mxu0
        %6745 = vdwg.mxu0
        %v6750 = vunpack.c.l.b16 %v6230
        %v6751 = vunpack.c.l.b16 %v6231
        %v6752 = vunpack.c.l.b16 %v6232
        %v6753 = vunpack.c.l.b16 %v6233
        %v6754 = vpack.c.b16 %v6751, %v6750
        %v6755 = vpack.c.b16 %v6753, %v6752
        %v6757 = vsel %vm808, %v6754, 0
        %v6760 = vsel %vm808, %v6755, 0
        %v6763 = vsel %vm2756, %v459, 0
        %6765 = vmatprep.subr.bf16.mxu0 0
        %6766 = vmatpush1.bf16.msra.mxu0 %v6763
        %6767 = vmatprep.subr.bf16.mxu0 0
        %6768 = vmatpush1.bf16.msra.mxu0 0
        %6769 = vmatprep.subr.bf16.mxu0 0
        %6770 = vmatpush1.bf16.msra.mxu0 0
        %6771 = vmatprep.subr.bf16.mxu0 0
        %6772 = vmatpush1.bf16.msra.mxu0 0
        %6773 = vmatprep.subr.bf16.mxu0 0
        %6774 = vmatpush1.bf16.msra.mxu0 0
        %6775 = vmatprep.subr.bf16.mxu0 0
        %6776 = vmatpush1.bf16.msra.mxu0 0
        %6777 = vmatprep.subr.bf16.mxu0 0
        %6778 = vmatpush1.bf16.msra.mxu0 0
        %6779 = vmatprep.subr.bf16.mxu0 0
        %6780 = vmatpush1.bf16.msra.mxu0 0
        %6781 = vmatprep.subr.bf16.mxu0 0
        %6782 = vmatpush1.bf16.msra.mxu0 0
        %6783 = vmatprep.subr.bf16.mxu0 0
        %6784 = vmatpush1.bf16.msra.mxu0 0
        %6785 = vmatprep.subr.bf16.mxu0 0
        %6786 = vmatpush1.bf16.msra.mxu0 0
        %6787 = vmatprep.subr.bf16.mxu0 0
        %6788 = vmatpush1.bf16.msra.mxu0 0
        %6789 = vmatprep.subr.bf16.mxu0 0
        %6790 = vmatpush1.bf16.msra.mxu0 0
        %6791 = vmatprep.subr.bf16.mxu0 0
        %6792 = vmatpush1.bf16.msra.mxu0 0
        %6793 = vmatprep.subr.bf16.mxu0 0
        %6794 = vmatpush1.bf16.msra.mxu0 0
        %6795 = vmatprep.subr.bf16.mxu0 0
        %6796 = vmatpush1.bf16.msra.mxu0 0
        %6797 = vmatprep.mubr.bf16.mxu0 0
        %6798 = vmatmul.mubr.bf16.gmra.mrb[0].mxu0 %v6757
        %v6799 = vpop.f32.mrb[0].mxu0
        %v6800 = vadd.f32 %v6732, %v6799
        %v6801 = vpop.f32.mrb[0].mxu0
        %v6802 = vpop.f32.mrb[0].mxu0
        %v6803 = vadd.f32 %v6735, %v6802
        %v6804 = vpop.f32.mrb[0].mxu0
        %6805 = vmatprep.mubr.bf16.mxu0 0
        %6806 = vmatmul.mubr.bf16.gmra.mrb[0].mxu0 %v6760
        %v6807 = vpop.f32.mrb[0].mxu0
        %v6808 = vadd.f32 %v6740, %v6807
        %v6809 = vpop.f32.mrb[0].mxu0
        %v6810 = vpop.f32.mrb[0].mxu0
        %v6811 = vadd.f32 %v6743, %v6810
        %v6812 = vpop.f32.mrb[0].mxu0
        %6813 = vdwg.mxu0
        %6814 = vrot.lane.b32.xlu0 %v5470, 112
        %v6815 = vpop.permute.xlu0 %6814
        %6816 = vrot.lane.b32.xlu0 %v5650, 112
        %v6817 = vpop.permute.xlu0 %6816
        %v6819 = vsel %vm808, %v6815, 0
        %v6822 = vsel %vm808, %v6817, 0
        %6824 = vmatprep.subr.bf16.mxu0 0
        %6825 = vmatpush1.bf16.xpose.msra.mxu0 %v6822
        %6826 = vmatprep.subr.bf16.mxu0 0
        %6827 = vmatpush1.bf16.xpose.msra.mxu0 0
        %6828 = vmatprep.subr.bf16.mxu0 0
        %6829 = vmatpush1.bf16.xpose.msra.mxu0 0
        %6830 = vmatprep.subr.bf16.mxu0 0
        %6831 = vmatpush1.bf16.xpose.msra.mxu0 0
        %6832 = vmatprep.subr.bf16.mxu0 0
        %6833 = vmatpush1.bf16.xpose.msra.mxu0 0
        %6834 = vmatprep.subr.bf16.mxu0 0
        %6835 = vmatpush1.bf16.xpose.msra.mxu0 0
        %6836 = vmatprep.subr.bf16.mxu0 0
        %6837 = vmatpush1.bf16.xpose.msra.mxu0 0
        %6838 = vmatprep.subr.bf16.mxu0 0
        %6839 = vmatpush1.bf16.xpose.msra.mxu0 0
        %6840 = vmatprep.subr.bf16.mxu0 0
        %6841 = vmatpush1.bf16.xpose.msra.mxu0 0
        %6842 = vmatprep.subr.bf16.mxu0 0
        %6843 = vmatpush1.bf16.xpose.msra.mxu0 0
        %6844 = vmatprep.subr.bf16.mxu0 0
        %6845 = vmatpush1.bf16.xpose.msra.mxu0 0
        %6846 = vmatprep.subr.bf16.mxu0 0
        %6847 = vmatpush1.bf16.xpose.msra.mxu0 0
        %6848 = vmatprep.subr.bf16.mxu0 0
        %6849 = vmatpush1.bf16.xpose.msra.mxu0 0
        %6850 = vmatprep.subr.bf16.mxu0 0
        %6851 = vmatpush1.bf16.xpose.msra.mxu0 0
        %6852 = vmatprep.subr.bf16.mxu0 0
        %6853 = vmatpush1.bf16.xpose.msra.mxu0 0
        %6854 = vmatprep.subr.bf16.mxu0 0
        %6855 = vmatpush1.bf16.xpose.msra.mxu0 0
        %6856 = vmatprep.mubr.bf16.mxu0 0
        %6857 = vmatmul.mubr.bf16.gmra.mrb[0].mxu0 %v6819
        %v6858 = vpop.f32.mrb[0].mxu0
        %v6859 = vadd.f32 0.0, %v6858
        %v6860 = vpop.f32.mrb[0].mxu0
        %v6861 = vpop.f32.mrb[0].mxu0
        %v6862 = vpop.f32.mrb[0].mxu0
        %6863 = vdwg.mxu0
        %6864 = vrot.lane.b32.xlu0 %v5471, 112
        %v6865 = vpop.permute.xlu0 %6864
        %6866 = vrot.lane.b32.xlu0 %v5719, 112
        %v6867 = vpop.permute.xlu0 %6866
        %v6869 = vsel %vm808, %v6865, 0
        %v6872 = vsel %vm808, %v6867, 0
        %6874 = vmatprep.subr.bf16.mxu0 0
        %6875 = vmatpush1.bf16.xpose.msra.mxu0 %v6872
        %6876 = vmatprep.subr.bf16.mxu0 0
        %6877 = vmatpush1.bf16.xpose.msra.mxu0 0
        %6878 = vmatprep.subr.bf16.mxu0 0
        %6879 = vmatpush1.bf16.xpose.msra.mxu0 0
        %6880 = vmatprep.subr.bf16.mxu0 0
        %6881 = vmatpush1.bf16.xpose.msra.mxu0 0
        %6882 = vmatprep.subr.bf16.mxu0 0
        %6883 = vmatpush1.bf16.xpose.msra.mxu0 0
        %6884 = vmatprep.subr.bf16.mxu0 0
        %6885 = vmatpush1.bf16.xpose.msra.mxu0 0
        %6886 = vmatprep.subr.bf16.mxu0 0
        %6887 = vmatpush1.bf16.xpose.msra.mxu0 0
        %6888 = vmatprep.subr.bf16.mxu0 0
        %6889 = vmatpush1.bf16.xpose.msra.mxu0 0
        %6890 = vmatprep.subr.bf16.mxu0 0
        %6891 = vmatpush1.bf16.xpose.msra.mxu0 0
        %6892 = vmatprep.subr.bf16.mxu0 0
        %6893 = vmatpush1.bf16.xpose.msra.mxu0 0
        %6894 = vmatprep.subr.bf16.mxu0 0
        %6895 = vmatpush1.bf16.xpose.msra.mxu0 0
        %6896 = vmatprep.subr.bf16.mxu0 0
        %6897 = vmatpush1.bf16.xpose.msra.mxu0 0
        %6898 = vmatprep.subr.bf16.mxu0 0
        %6899 = vmatpush1.bf16.xpose.msra.mxu0 0
        %6900 = vmatprep.subr.bf16.mxu0 0
        %6901 = vmatpush1.bf16.xpose.msra.mxu0 0
        %6902 = vmatprep.subr.bf16.mxu0 0
        %6903 = vmatpush1.bf16.xpose.msra.mxu0 0
        %6904 = vmatprep.subr.bf16.mxu0 0
        %6905 = vmatpush1.bf16.xpose.msra.mxu0 0
        %6906 = vmatprep.mubr.bf16.mxu0 0
        %6907 = vmatmul.mubr.bf16.gmra.mrb[0].mxu0 %v6869
        %v6908 = vpop.f32.mrb[0].mxu0
        %v6909 = vadd.f32 0.0, %v6908
        %v6910 = vpop.f32.mrb[0].mxu0
        %v6911 = vpop.f32.mrb[0].mxu0
        %v6912 = vpop.f32.mrb[0].mxu0
        %6913 = vdwg.mxu0
        %6914 = vrot.lane.b32.xlu0 %v5472, 112
        %v6915 = vpop.permute.xlu0 %6914
        %6916 = vrot.lane.b32.xlu0 %v5788, 112
        %v6917 = vpop.permute.xlu0 %6916
        %v6919 = vsel %vm808, %v6915, 0
        %v6922 = vsel %vm808, %v6917, 0
        %6924 = vmatprep.subr.bf16.mxu0 0
        %6925 = vmatpush1.bf16.xpose.msra.mxu0 %v6922
        %6926 = vmatprep.subr.bf16.mxu0 0
        %6927 = vmatpush1.bf16.xpose.msra.mxu0 0
        %6928 = vmatprep.subr.bf16.mxu0 0
        %6929 = vmatpush1.bf16.xpose.msra.mxu0 0
        %6930 = vmatprep.subr.bf16.mxu0 0
        %6931 = vmatpush1.bf16.xpose.msra.mxu0 0
        %6932 = vmatprep.subr.bf16.mxu0 0
        %6933 = vmatpush1.bf16.xpose.msra.mxu0 0
        %6934 = vmatprep.subr.bf16.mxu0 0
        %6935 = vmatpush1.bf16.xpose.msra.mxu0 0
        %6936 = vmatprep.subr.bf16.mxu0 0
        %6937 = vmatpush1.bf16.xpose.msra.mxu0 0
        %6938 = vmatprep.subr.bf16.mxu0 0
        %6939 = vmatpush1.bf16.xpose.msra.mxu0 0
        %6940 = vmatprep.subr.bf16.mxu0 0
        %6941 = vmatpush1.bf16.xpose.msra.mxu0 0
        %6942 = vmatprep.subr.bf16.mxu0 0
        %6943 = vmatpush1.bf16.xpose.msra.mxu0 0
        %6944 = vmatprep.subr.bf16.mxu0 0
        %6945 = vmatpush1.bf16.xpose.msra.mxu0 0
        %6946 = vmatprep.subr.bf16.mxu0 0
        %6947 = vmatpush1.bf16.xpose.msra.mxu0 0
        %6948 = vmatprep.subr.bf16.mxu0 0
        %6949 = vmatpush1.bf16.xpose.msra.mxu0 0
        %6950 = vmatprep.subr.bf16.mxu0 0
        %6951 = vmatpush1.bf16.xpose.msra.mxu0 0
        %6952 = vmatprep.subr.bf16.mxu0 0
        %6953 = vmatpush1.bf16.xpose.msra.mxu0 0
        %6954 = vmatprep.subr.bf16.mxu0 0
        %6955 = vmatpush1.bf16.xpose.msra.mxu0 0
        %6956 = vmatprep.mubr.bf16.mxu0 0
        %6957 = vmatmul.mubr.bf16.gmra.mrb[0].mxu0 %v6919
        %v6958 = vpop.f32.mrb[0].mxu0
        %v6959 = vadd.f32 0.0, %v6958
        %v6960 = vpop.f32.mrb[0].mxu0
        %v6961 = vpop.f32.mrb[0].mxu0
        %v6962 = vpop.f32.mrb[0].mxu0
        %6963 = vdwg.mxu0
        %6964 = vrot.lane.b32.xlu0 %v5473, 112
        %v6965 = vpop.permute.xlu0 %6964
        %6966 = vrot.lane.b32.xlu0 %v5857, 112
        %v6967 = vpop.permute.xlu0 %6966
        %v6969 = vsel %vm808, %v6965, 0
        %v6972 = vsel %vm808, %v6967, 0
        %6974 = vmatprep.subr.bf16.mxu0 0
        %6975 = vmatpush1.bf16.xpose.msra.mxu0 %v6972
        %6976 = vmatprep.subr.bf16.mxu0 0
        %6977 = vmatpush1.bf16.xpose.msra.mxu0 0
        %6978 = vmatprep.subr.bf16.mxu0 0
        %6979 = vmatpush1.bf16.xpose.msra.mxu0 0
        %6980 = vmatprep.subr.bf16.mxu0 0
        %6981 = vmatpush1.bf16.xpose.msra.mxu0 0
        %6982 = vmatprep.subr.bf16.mxu0 0
        %6983 = vmatpush1.bf16.xpose.msra.mxu0 0
        %6984 = vmatprep.subr.bf16.mxu0 0
        %6985 = vmatpush1.bf16.xpose.msra.mxu0 0
        %6986 = vmatprep.subr.bf16.mxu0 0
        %6987 = vmatpush1.bf16.xpose.msra.mxu0 0
        %6988 = vmatprep.subr.bf16.mxu0 0
        %6989 = vmatpush1.bf16.xpose.msra.mxu0 0
        %6990 = vmatprep.subr.bf16.mxu0 0
        %6991 = vmatpush1.bf16.xpose.msra.mxu0 0
        %6992 = vmatprep.subr.bf16.mxu0 0
        %6993 = vmatpush1.bf16.xpose.msra.mxu0 0
        %6994 = vmatprep.subr.bf16.mxu0 0
        %6995 = vmatpush1.bf16.xpose.msra.mxu0 0
        %6996 = vmatprep.subr.bf16.mxu0 0
        %6997 = vmatpush1.bf16.xpose.msra.mxu0 0
        %6998 = vmatprep.subr.bf16.mxu0 0
        %6999 = vmatpush1.bf16.xpose.msra.mxu0 0
        %7000 = vmatprep.subr.bf16.mxu0 0
        %7001 = vmatpush1.bf16.xpose.msra.mxu0 0
        %7002 = vmatprep.subr.bf16.mxu0 0
        %7003 = vmatpush1.bf16.xpose.msra.mxu0 0
        %7004 = vmatprep.subr.bf16.mxu0 0
        %7005 = vmatpush1.bf16.xpose.msra.mxu0 0
        %7006 = vmatprep.mubr.bf16.mxu0 0
        %7007 = vmatmul.mubr.bf16.gmra.mrb[0].mxu0 %v6969
        %v7008 = vpop.f32.mrb[0].mxu0
        %v7009 = vadd.f32 0.0, %v7008
        %v7010 = vpop.f32.mrb[0].mxu0
        %v7011 = vpop.f32.mrb[0].mxu0
        %v7012 = vpop.f32.mrb[0].mxu0
        %7013 = vdwg.mxu0
        %v7014 = vsel %vm5904, %v6859, -inf
        %7015 = vmax.xlane.f32.xlu0 %v7014
        %v7016 = vpop.xlane.xlu0 %7015
        %v7017 = vsel %vm5904, %v6909, -inf
        %7018 = vmax.xlane.f32.xlu0 %v7017
        %v7019 = vpop.xlane.xlu0 %7018
        %v7020 = vsel %vm5904, %v6959, -inf
        %7021 = vmax.xlane.f32.xlu0 %v7020
        %v7022 = vpop.xlane.xlu0 %7021
        %v7023 = vsel %vm5904, %v7009, -inf
        %7024 = vmax.xlane.f32.xlu0 %v7023
        %v7025 = vpop.xlane.xlu0 %7024
        %v7026 = vsub.f32 %v6859, %v7016
        %v7027 = vsub.f32 %v6909, %v7019
        %v7028 = vsub.f32 %v6959, %v7022
        %v7029 = vsub.f32 %v7009, %v7025
        %v7030 = vmul.f32 %v7026, 1.442695
        %v7031 = vpow.pop %v7030
        %v7032 = vmul.f32 %v7027, 1.442695
        %v7033 = vpow.pop %v7032
        %v7034 = vmul.f32 %v7028, 1.442695
        %v7035 = vpow.pop %v7034
        %v7036 = vmul.f32 %v7029, 1.442695
        %v7037 = vpow.pop %v7036
        %v7038 = vsel %vm5904, %v7031, 0.0
        %7039 = vadd.xlane.f32.xlu0 %v7038
        %v7040 = vpop.xlane.xlu0 %7039
        %v7041 = vsel %vm5904, %v7033, 0.0
        %7042 = vadd.xlane.f32.xlu0 %v7041
        %v7043 = vpop.xlane.xlu0 %7042
        %v7044 = vsel %vm5904, %v7035, 0.0
        %7045 = vadd.xlane.f32.xlu0 %v7044
        %v7046 = vpop.xlane.xlu0 %7045
        %v7047 = vsel %vm5904, %v7037, 0.0
        %7048 = vadd.xlane.f32.xlu0 %v7047
        %v7049 = vpop.xlane.xlu0 %7048
        %v7050 = vrcp.pop %v7040
        %v7051 = vrcp.pop %v7043
        %v7052 = vrcp.pop %v7046
        %v7053 = vrcp.pop %v7049
        %v7054 = vmul.f32 %v7031, %v7050
        %v7055 = vmul.f32 %v7033, %v7051
        %v7056 = vmul.f32 %v7035, %v7052
        %v7057 = vmul.f32 %v7037, %v7053
        %v7058 = vpack.c.bf16 %v7054, %v7054
        %v7059 = vpack.c.bf16 %v7055, %v7055
        %v7060 = vpack.c.bf16 %v7056, %v7056
        %v7061 = vpack.c.bf16 %v7057, %v7057
        %7062 = vrot.lane.b32.xlu0 %v5975, 112
        %v7063 = vpop.permute.xlu0 %7062
        %v7065 = vsel %vm5904, %v7058, 0
        %v7068 = vsel %vm5979, %v7063, 0
        %7070 = vmatprep.subr.bf16.mxu0 0
        %7071 = vmatpush1.bf16.msra.mxu0 %v7068
        %7072 = vmatprep.subr.bf16.mxu0 0
        %7073 = vmatpush1.bf16.msra.mxu0 0
        %7074 = vmatprep.subr.bf16.mxu0 0
        %7075 = vmatpush1.bf16.msra.mxu0 0
        %7076 = vmatprep.subr.bf16.mxu0 0
        %7077 = vmatpush1.bf16.msra.mxu0 0
        %7078 = vmatprep.subr.bf16.mxu0 0
        %7079 = vmatpush1.bf16.msra.mxu0 0
        %7080 = vmatprep.subr.bf16.mxu0 0
        %7081 = vmatpush1.bf16.msra.mxu0 0
        %7082 = vmatprep.subr.bf16.mxu0 0
        %7083 = vmatpush1.bf16.msra.mxu0 0
        %7084 = vmatprep.subr.bf16.mxu0 0
        %7085 = vmatpush1.bf16.msra.mxu0 0
        %7086 = vmatprep.subr.bf16.mxu0 0
        %7087 = vmatpush1.bf16.msra.mxu0 0
        %7088 = vmatprep.subr.bf16.mxu0 0
        %7089 = vmatpush1.bf16.msra.mxu0 0
        %7090 = vmatprep.subr.bf16.mxu0 0
        %7091 = vmatpush1.bf16.msra.mxu0 0
        %7092 = vmatprep.subr.bf16.mxu0 0
        %7093 = vmatpush1.bf16.msra.mxu0 0
        %7094 = vmatprep.subr.bf16.mxu0 0
        %7095 = vmatpush1.bf16.msra.mxu0 0
        %7096 = vmatprep.subr.bf16.mxu0 0
        %7097 = vmatpush1.bf16.msra.mxu0 0
        %7098 = vmatprep.subr.bf16.mxu0 0
        %7099 = vmatpush1.bf16.msra.mxu0 0
        %7100 = vmatprep.subr.bf16.mxu0 0
        %7101 = vmatpush1.bf16.msra.mxu0 0
        %7102 = vmatprep.mubr.bf16.mxu0 0
        %7103 = vmatmul.mubr.bf16.gmra.mrb[0].mxu0 %v7065
        %v7104 = vpop.f32.mrb[0].mxu0
        %v7105 = vadd.f32 0.0, %v7104
        %v7106 = vpop.f32.mrb[0].mxu0
        %v7107 = vpop.f32.mrb[0].mxu0
        %v7108 = vpop.f32.mrb[0].mxu0
        %7109 = vdwg.mxu0
        %7110 = vrot.lane.b32.xlu0 %v6045, 112
        %v7111 = vpop.permute.xlu0 %7110
        %v7113 = vsel %vm5904, %v7059, 0
        %v7116 = vsel %vm5979, %v7111, 0
        %7118 = vmatprep.subr.bf16.mxu0 0
        %7119 = vmatpush1.bf16.msra.mxu0 %v7116
        %7120 = vmatprep.subr.bf16.mxu0 0
        %7121 = vmatpush1.bf16.msra.mxu0 0
        %7122 = vmatprep.subr.bf16.mxu0 0
        %7123 = vmatpush1.bf16.msra.mxu0 0
        %7124 = vmatprep.subr.bf16.mxu0 0
        %7125 = vmatpush1.bf16.msra.mxu0 0
        %7126 = vmatprep.subr.bf16.mxu0 0
        %7127 = vmatpush1.bf16.msra.mxu0 0
        %7128 = vmatprep.subr.bf16.mxu0 0
        %7129 = vmatpush1.bf16.msra.mxu0 0
        %7130 = vmatprep.subr.bf16.mxu0 0
        %7131 = vmatpush1.bf16.msra.mxu0 0
        %7132 = vmatprep.subr.bf16.mxu0 0
        %7133 = vmatpush1.bf16.msra.mxu0 0
        %7134 = vmatprep.subr.bf16.mxu0 0
        %7135 = vmatpush1.bf16.msra.mxu0 0
        %7136 = vmatprep.subr.bf16.mxu0 0
        %7137 = vmatpush1.bf16.msra.mxu0 0
        %7138 = vmatprep.subr.bf16.mxu0 0
        %7139 = vmatpush1.bf16.msra.mxu0 0
        %7140 = vmatprep.subr.bf16.mxu0 0
        %7141 = vmatpush1.bf16.msra.mxu0 0
        %7142 = vmatprep.subr.bf16.mxu0 0
        %7143 = vmatpush1.bf16.msra.mxu0 0
        %7144 = vmatprep.subr.bf16.mxu0 0
        %7145 = vmatpush1.bf16.msra.mxu0 0
        %7146 = vmatprep.subr.bf16.mxu0 0
        %7147 = vmatpush1.bf16.msra.mxu0 0
        %7148 = vmatprep.subr.bf16.mxu0 0
        %7149 = vmatpush1.bf16.msra.mxu0 0
        %7150 = vmatprep.mubr.bf16.mxu0 0
        %7151 = vmatmul.mubr.bf16.gmra.mrb[0].mxu0 %v7113
        %v7152 = vpop.f32.mrb[0].mxu0
        %v7153 = vadd.f32 0.0, %v7152
        %v7154 = vpop.f32.mrb[0].mxu0
        %v7155 = vpop.f32.mrb[0].mxu0
        %v7156 = vpop.f32.mrb[0].mxu0
        %7157 = vdwg.mxu0
        %7158 = vrot.lane.b32.xlu0 %v6114, 112
        %v7159 = vpop.permute.xlu0 %7158
        %v7161 = vsel %vm5904, %v7060, 0
        %v7164 = vsel %vm5979, %v7159, 0
        %7166 = vmatprep.subr.bf16.mxu0 0
        %7167 = vmatpush1.bf16.msra.mxu0 %v7164
        %7168 = vmatprep.subr.bf16.mxu0 0
        %7169 = vmatpush1.bf16.msra.mxu0 0
        %7170 = vmatprep.subr.bf16.mxu0 0
        %7171 = vmatpush1.bf16.msra.mxu0 0
        %7172 = vmatprep.subr.bf16.mxu0 0
        %7173 = vmatpush1.bf16.msra.mxu0 0
        %7174 = vmatprep.subr.bf16.mxu0 0
        %7175 = vmatpush1.bf16.msra.mxu0 0
        %7176 = vmatprep.subr.bf16.mxu0 0
        %7177 = vmatpush1.bf16.msra.mxu0 0
        %7178 = vmatprep.subr.bf16.mxu0 0
        %7179 = vmatpush1.bf16.msra.mxu0 0
        %7180 = vmatprep.subr.bf16.mxu0 0
        %7181 = vmatpush1.bf16.msra.mxu0 0
        %7182 = vmatprep.subr.bf16.mxu0 0
        %7183 = vmatpush1.bf16.msra.mxu0 0
        %7184 = vmatprep.subr.bf16.mxu0 0
        %7185 = vmatpush1.bf16.msra.mxu0 0
        %7186 = vmatprep.subr.bf16.mxu0 0
        %7187 = vmatpush1.bf16.msra.mxu0 0
        %7188 = vmatprep.subr.bf16.mxu0 0
        %7189 = vmatpush1.bf16.msra.mxu0 0
        %7190 = vmatprep.subr.bf16.mxu0 0
        %7191 = vmatpush1.bf16.msra.mxu0 0
        %7192 = vmatprep.subr.bf16.mxu0 0
        %7193 = vmatpush1.bf16.msra.mxu0 0
        %7194 = vmatprep.subr.bf16.mxu0 0
        %7195 = vmatpush1.bf16.msra.mxu0 0
        %7196 = vmatprep.subr.bf16.mxu0 0
        %7197 = vmatpush1.bf16.msra.mxu0 0
        %7198 = vmatprep.mubr.bf16.mxu0 0
        %7199 = vmatmul.mubr.bf16.gmra.mrb[0].mxu0 %v7161
        %v7200 = vpop.f32.mrb[0].mxu0
        %v7201 = vadd.f32 0.0, %v7200
        %v7202 = vpop.f32.mrb[0].mxu0
        %v7203 = vpop.f32.mrb[0].mxu0
        %v7204 = vpop.f32.mrb[0].mxu0
        %7205 = vdwg.mxu0
        %7206 = vrot.lane.b32.xlu0 %v6183, 112
        %v7207 = vpop.permute.xlu0 %7206
        %v7209 = vsel %vm5904, %v7061, 0
        %v7212 = vsel %vm5979, %v7207, 0
        %7214 = vmatprep.subr.bf16.mxu0 0
        %7215 = vmatpush1.bf16.msra.mxu0 %v7212
        %7216 = vmatprep.subr.bf16.mxu0 0
        %7217 = vmatpush1.bf16.msra.mxu0 0
        %7218 = vmatprep.subr.bf16.mxu0 0
        %7219 = vmatpush1.bf16.msra.mxu0 0
        %7220 = vmatprep.subr.bf16.mxu0 0
        %7221 = vmatpush1.bf16.msra.mxu0 0
        %7222 = vmatprep.subr.bf16.mxu0 0
        %7223 = vmatpush1.bf16.msra.mxu0 0
        %7224 = vmatprep.subr.bf16.mxu0 0
        %7225 = vmatpush1.bf16.msra.mxu0 0
        %7226 = vmatprep.subr.bf16.mxu0 0
        %7227 = vmatpush1.bf16.msra.mxu0 0
        %7228 = vmatprep.subr.bf16.mxu0 0
        %7229 = vmatpush1.bf16.msra.mxu0 0
        %7230 = vmatprep.subr.bf16.mxu0 0
        %7231 = vmatpush1.bf16.msra.mxu0 0
        %7232 = vmatprep.subr.bf16.mxu0 0
        %7233 = vmatpush1.bf16.msra.mxu0 0
        %7234 = vmatprep.subr.bf16.mxu0 0
        %7235 = vmatpush1.bf16.msra.mxu0 0
        %7236 = vmatprep.subr.bf16.mxu0 0
        %7237 = vmatpush1.bf16.msra.mxu0 0
        %7238 = vmatprep.subr.bf16.mxu0 0
        %7239 = vmatpush1.bf16.msra.mxu0 0
        %7240 = vmatprep.subr.bf16.mxu0 0
        %7241 = vmatpush1.bf16.msra.mxu0 0
        %7242 = vmatprep.subr.bf16.mxu0 0
        %7243 = vmatpush1.bf16.msra.mxu0 0
        %7244 = vmatprep.subr.bf16.mxu0 0
        %7245 = vmatpush1.bf16.msra.mxu0 0
        %7246 = vmatprep.mubr.bf16.mxu0 0
        %7247 = vmatmul.mubr.bf16.gmra.mrb[0].mxu0 %v7209
        %v7248 = vpop.f32.mrb[0].mxu0
        %v7249 = vadd.f32 0.0, %v7248
        %v7250 = vpop.f32.mrb[0].mxu0
        %v7251 = vpop.f32.mrb[0].mxu0
        %v7252 = vpop.f32.mrb[0].mxu0
        %7253 = vdwg.mxu0
        %v7254 = vpack.c.bf16 %v7105, %v7105
        %v7255 = vpack.c.bf16 %v7153, %v7153
        %v7256 = vpack.c.bf16 %v7201, %v7201
        %v7257 = vpack.c.bf16 %v7249, %v7249
        %v7262 = vunpack.c.l.b16 %v7254
        %v7263 = vunpack.c.l.b16 %v7255
        %v7264 = vunpack.c.l.b16 %v7256
        %v7265 = vunpack.c.l.b16 %v7257
        %v7266 = vpack.c.b16 %v7263, %v7262
        %v7267 = vpack.c.b16 %v7265, %v7264
        %v7269 = vsel %vm808, %v7266, 0
        %v7272 = vsel %vm808, %v7267, 0
        %v7275 = vsel %vm2756, %v461, 0
        %7277 = vmatprep.subr.bf16.mxu0 0
        %7278 = vmatpush1.bf16.msra.mxu0 %v7275
        %7279 = vmatprep.subr.bf16.mxu0 0
        %7280 = vmatpush1.bf16.msra.mxu0 0
        %7281 = vmatprep.subr.bf16.mxu0 0
        %7282 = vmatpush1.bf16.msra.mxu0 0
        %7283 = vmatprep.subr.bf16.mxu0 0
        %7284 = vmatpush1.bf16.msra.mxu0 0
        %7285 = vmatprep.subr.bf16.mxu0 0
        %7286 = vmatpush1.bf16.msra.mxu0 0
        %7287 = vmatprep.subr.bf16.mxu0 0
        %7288 = vmatpush1.bf16.msra.mxu0 0
        %7289 = vmatprep.subr.bf16.mxu0 0
        %7290 = vmatpush1.bf16.msra.mxu0 0
        %7291 = vmatprep.subr.bf16.mxu0 0
        %7292 = vmatpush1.bf16.msra.mxu0 0
        %7293 = vmatprep.subr.bf16.mxu0 0
        %7294 = vmatpush1.bf16.msra.mxu0 0
        %7295 = vmatprep.subr.bf16.mxu0 0
        %7296 = vmatpush1.bf16.msra.mxu0 0
        %7297 = vmatprep.subr.bf16.mxu0 0
        %7298 = vmatpush1.bf16.msra.mxu0 0
        %7299 = vmatprep.subr.bf16.mxu0 0
        %7300 = vmatpush1.bf16.msra.mxu0 0
        %7301 = vmatprep.subr.bf16.mxu0 0
        %7302 = vmatpush1.bf16.msra.mxu0 0
        %7303 = vmatprep.subr.bf16.mxu0 0
        %7304 = vmatpush1.bf16.msra.mxu0 0
        %7305 = vmatprep.subr.bf16.mxu0 0
        %7306 = vmatpush1.bf16.msra.mxu0 0
        %7307 = vmatprep.subr.bf16.mxu0 0
        %7308 = vmatpush1.bf16.msra.mxu0 0
        %7309 = vmatprep.mubr.bf16.mxu0 0
        %7310 = vmatmul.mubr.bf16.gmra.mrb[0].mxu0 %v7269
        %v7311 = vpop.f32.mrb[0].mxu0
        %v7312 = vadd.f32 0.0, %v7311
        %v7313 = vpop.f32.mrb[0].mxu0
        %v7314 = vpop.f32.mrb[0].mxu0
        %v7315 = vadd.f32 0.0, %v7314
        %v7316 = vpop.f32.mrb[0].mxu0
        %7317 = vmatprep.mubr.bf16.mxu0 0
        %7318 = vmatmul.mubr.bf16.gmra.mrb[0].mxu0 %v7272
        %v7319 = vpop.f32.mrb[0].mxu0
        %v7320 = vadd.f32 0.0, %v7319
        %v7321 = vpop.f32.mrb[0].mxu0
        %v7322 = vpop.f32.mrb[0].mxu0
        %v7323 = vadd.f32 0.0, %v7322
        %v7324 = vpop.f32.mrb[0].mxu0
        %7325 = vdwg.mxu0
        %v7326 = vadd.f32 %v6800, %v7312
        %v7327 = vadd.f32 %v6803, %v7315
        %v7328 = vadd.f32 %v6808, %v7320
        %v7329 = vadd.f32 %v6811, %v7323
        %7330 = vrot.lane.b32.xlu0 %v5470, 104
        %v7331 = vpop.permute.xlu0 %7330
        %7332 = vrot.lane.b32.xlu0 %v5650, 104
        %v7333 = vpop.permute.xlu0 %7332
        %v7335 = vsel %vm808, %v7331, 0
        %v7338 = vsel %vm808, %v7333, 0
        %7340 = vmatprep.subr.bf16.mxu0 0
        %7341 = vmatpush1.bf16.xpose.msra.mxu0 %v7338
        %7342 = vmatprep.subr.bf16.mxu0 0
        %7343 = vmatpush1.bf16.xpose.msra.mxu0 0
        %7344 = vmatprep.subr.bf16.mxu0 0
        %7345 = vmatpush1.bf16.xpose.msra.mxu0 0
        %7346 = vmatprep.subr.bf16.mxu0 0
        %7347 = vmatpush1.bf16.xpose.msra.mxu0 0
        %7348 = vmatprep.subr.bf16.mxu0 0
        %7349 = vmatpush1.bf16.xpose.msra.mxu0 0
        %7350 = vmatprep.subr.bf16.mxu0 0
        %7351 = vmatpush1.bf16.xpose.msra.mxu0 0
        %7352 = vmatprep.subr.bf16.mxu0 0
        %7353 = vmatpush1.bf16.xpose.msra.mxu0 0
        %7354 = vmatprep.subr.bf16.mxu0 0
        %7355 = vmatpush1.bf16.xpose.msra.mxu0 0
        %7356 = vmatprep.subr.bf16.mxu0 0
        %7357 = vmatpush1.bf16.xpose.msra.mxu0 0
        %7358 = vmatprep.subr.bf16.mxu0 0
        %7359 = vmatpush1.bf16.xpose.msra.mxu0 0
        %7360 = vmatprep.subr.bf16.mxu0 0
        %7361 = vmatpush1.bf16.xpose.msra.mxu0 0
        %7362 = vmatprep.subr.bf16.mxu0 0
        %7363 = vmatpush1.bf16.xpose.msra.mxu0 0
        %7364 = vmatprep.subr.bf16.mxu0 0
        %7365 = vmatpush1.bf16.xpose.msra.mxu0 0
        %7366 = vmatprep.subr.bf16.mxu0 0
        %7367 = vmatpush1.bf16.xpose.msra.mxu0 0
        %7368 = vmatprep.subr.bf16.mxu0 0
        %7369 = vmatpush1.bf16.xpose.msra.mxu0 0
        %7370 = vmatprep.subr.bf16.mxu0 0
        %7371 = vmatpush1.bf16.xpose.msra.mxu0 0
        %7372 = vmatprep.mubr.bf16.mxu0 0
        %7373 = vmatmul.mubr.bf16.gmra.mrb[0].mxu0 %v7335
        %v7374 = vpop.f32.mrb[0].mxu0
        %v7375 = vadd.f32 0.0, %v7374
        %v7376 = vpop.f32.mrb[0].mxu0
        %v7377 = vpop.f32.mrb[0].mxu0
        %v7378 = vpop.f32.mrb[0].mxu0
        %7379 = vdwg.mxu0
        %7380 = vrot.lane.b32.xlu0 %v5471, 104
        %v7381 = vpop.permute.xlu0 %7380
        %7382 = vrot.lane.b32.xlu0 %v5719, 104
        %v7383 = vpop.permute.xlu0 %7382
        %v7385 = vsel %vm808, %v7381, 0
        %v7388 = vsel %vm808, %v7383, 0
        %7390 = vmatprep.subr.bf16.mxu0 0
        %7391 = vmatpush1.bf16.xpose.msra.mxu0 %v7388
        %7392 = vmatprep.subr.bf16.mxu0 0
        %7393 = vmatpush1.bf16.xpose.msra.mxu0 0
        %7394 = vmatprep.subr.bf16.mxu0 0
        %7395 = vmatpush1.bf16.xpose.msra.mxu0 0
        %7396 = vmatprep.subr.bf16.mxu0 0
        %7397 = vmatpush1.bf16.xpose.msra.mxu0 0
        %7398 = vmatprep.subr.bf16.mxu0 0
        %7399 = vmatpush1.bf16.xpose.msra.mxu0 0
        %7400 = vmatprep.subr.bf16.mxu0 0
        %7401 = vmatpush1.bf16.xpose.msra.mxu0 0
        %7402 = vmatprep.subr.bf16.mxu0 0
        %7403 = vmatpush1.bf16.xpose.msra.mxu0 0
        %7404 = vmatprep.subr.bf16.mxu0 0
        %7405 = vmatpush1.bf16.xpose.msra.mxu0 0
        %7406 = vmatprep.subr.bf16.mxu0 0
        %7407 = vmatpush1.bf16.xpose.msra.mxu0 0
        %7408 = vmatprep.subr.bf16.mxu0 0
        %7409 = vmatpush1.bf16.xpose.msra.mxu0 0
        %7410 = vmatprep.subr.bf16.mxu0 0
        %7411 = vmatpush1.bf16.xpose.msra.mxu0 0
        %7412 = vmatprep.subr.bf16.mxu0 0
        %7413 = vmatpush1.bf16.xpose.msra.mxu0 0
        %7414 = vmatprep.subr.bf16.mxu0 0
        %7415 = vmatpush1.bf16.xpose.msra.mxu0 0
        %7416 = vmatprep.subr.bf16.mxu0 0
        %7417 = vmatpush1.bf16.xpose.msra.mxu0 0
        %7418 = vmatprep.subr.bf16.mxu0 0
        %7419 = vmatpush1.bf16.xpose.msra.mxu0 0
        %7420 = vmatprep.subr.bf16.mxu0 0
        %7421 = vmatpush1.bf16.xpose.msra.mxu0 0
        %7422 = vmatprep.mubr.bf16.mxu0 0
        %7423 = vmatmul.mubr.bf16.gmra.mrb[0].mxu0 %v7385
        %v7424 = vpop.f32.mrb[0].mxu0
        %v7425 = vadd.f32 0.0, %v7424
        %v7426 = vpop.f32.mrb[0].mxu0
        %v7427 = vpop.f32.mrb[0].mxu0
        %v7428 = vpop.f32.mrb[0].mxu0
        %7429 = vdwg.mxu0
        %7430 = vrot.lane.b32.xlu0 %v5472, 104
        %v7431 = vpop.permute.xlu0 %7430
        %7432 = vrot.lane.b32.xlu0 %v5788, 104
        %v7433 = vpop.permute.xlu0 %7432
        %v7435 = vsel %vm808, %v7431, 0
        %v7438 = vsel %vm808, %v7433, 0
        %7440 = vmatprep.subr.bf16.mxu0 0
        %7441 = vmatpush1.bf16.xpose.msra.mxu0 %v7438
        %7442 = vmatprep.subr.bf16.mxu0 0
        %7443 = vmatpush1.bf16.xpose.msra.mxu0 0
        %7444 = vmatprep.subr.bf16.mxu0 0
        %7445 = vmatpush1.bf16.xpose.msra.mxu0 0
        %7446 = vmatprep.subr.bf16.mxu0 0
        %7447 = vmatpush1.bf16.xpose.msra.mxu0 0
        %7448 = vmatprep.subr.bf16.mxu0 0
        %7449 = vmatpush1.bf16.xpose.msra.mxu0 0
        %7450 = vmatprep.subr.bf16.mxu0 0
        %7451 = vmatpush1.bf16.xpose.msra.mxu0 0
        %7452 = vmatprep.subr.bf16.mxu0 0
        %7453 = vmatpush1.bf16.xpose.msra.mxu0 0
        %7454 = vmatprep.subr.bf16.mxu0 0
        %7455 = vmatpush1.bf16.xpose.msra.mxu0 0
        %7456 = vmatprep.subr.bf16.mxu0 0
        %7457 = vmatpush1.bf16.xpose.msra.mxu0 0
        %7458 = vmatprep.subr.bf16.mxu0 0
        %7459 = vmatpush1.bf16.xpose.msra.mxu0 0
        %7460 = vmatprep.subr.bf16.mxu0 0
        %7461 = vmatpush1.bf16.xpose.msra.mxu0 0
        %7462 = vmatprep.subr.bf16.mxu0 0
        %7463 = vmatpush1.bf16.xpose.msra.mxu0 0
        %7464 = vmatprep.subr.bf16.mxu0 0
        %7465 = vmatpush1.bf16.xpose.msra.mxu0 0
        %7466 = vmatprep.subr.bf16.mxu0 0
        %7467 = vmatpush1.bf16.xpose.msra.mxu0 0
        %7468 = vmatprep.subr.bf16.mxu0 0
        %7469 = vmatpush1.bf16.xpose.msra.mxu0 0
        %7470 = vmatprep.subr.bf16.mxu0 0
        %7471 = vmatpush1.bf16.xpose.msra.mxu0 0
        %7472 = vmatprep.mubr.bf16.mxu0 0
        %7473 = vmatmul.mubr.bf16.gmra.mrb[0].mxu0 %v7435
        %v7474 = vpop.f32.mrb[0].mxu0
        %v7475 = vadd.f32 0.0, %v7474
        %v7476 = vpop.f32.mrb[0].mxu0
        %v7477 = vpop.f32.mrb[0].mxu0
        %v7478 = vpop.f32.mrb[0].mxu0
        %7479 = vdwg.mxu0
        %7480 = vrot.lane.b32.xlu0 %v5473, 104
        %v7481 = vpop.permute.xlu0 %7480
        %7482 = vrot.lane.b32.xlu0 %v5857, 104
        %v7483 = vpop.permute.xlu0 %7482
        %v7485 = vsel %vm808, %v7481, 0
        %v7488 = vsel %vm808, %v7483, 0
        %7490 = vmatprep.subr.bf16.mxu0 0
        %7491 = vmatpush1.bf16.xpose.msra.mxu0 %v7488
        %7492 = vmatprep.subr.bf16.mxu0 0
        %7493 = vmatpush1.bf16.xpose.msra.mxu0 0
        %7494 = vmatprep.subr.bf16.mxu0 0
        %7495 = vmatpush1.bf16.xpose.msra.mxu0 0
        %7496 = vmatprep.subr.bf16.mxu0 0
        %7497 = vmatpush1.bf16.xpose.msra.mxu0 0
        %7498 = vmatprep.subr.bf16.mxu0 0
        %7499 = vmatpush1.bf16.xpose.msra.mxu0 0
        %7500 = vmatprep.subr.bf16.mxu0 0
        %7501 = vmatpush1.bf16.xpose.msra.mxu0 0
        %7502 = vmatprep.subr.bf16.mxu0 0
        %7503 = vmatpush1.bf16.xpose.msra.mxu0 0
        %7504 = vmatprep.subr.bf16.mxu0 0
        %7505 = vmatpush1.bf16.xpose.msra.mxu0 0
        %7506 = vmatprep.subr.bf16.mxu0 0
        %7507 = vmatpush1.bf16.xpose.msra.mxu0 0
        %7508 = vmatprep.subr.bf16.mxu0 0
        %7509 = vmatpush1.bf16.xpose.msra.mxu0 0
        %7510 = vmatprep.subr.bf16.mxu0 0
        %7511 = vmatpush1.bf16.xpose.msra.mxu0 0
        %7512 = vmatprep.subr.bf16.mxu0 0
        %7513 = vmatpush1.bf16.xpose.msra.mxu0 0
        %7514 = vmatprep.subr.bf16.mxu0 0
        %7515 = vmatpush1.bf16.xpose.msra.mxu0 0
        %7516 = vmatprep.subr.bf16.mxu0 0
        %7517 = vmatpush1.bf16.xpose.msra.mxu0 0
        %7518 = vmatprep.subr.bf16.mxu0 0
        %7519 = vmatpush1.bf16.xpose.msra.mxu0 0
        %7520 = vmatprep.subr.bf16.mxu0 0
        %7521 = vmatpush1.bf16.xpose.msra.mxu0 0
        %7522 = vmatprep.mubr.bf16.mxu0 0
        %7523 = vmatmul.mubr.bf16.gmra.mrb[0].mxu0 %v7485
        %v7524 = vpop.f32.mrb[0].mxu0
        %v7525 = vadd.f32 0.0, %v7524
        %v7526 = vpop.f32.mrb[0].mxu0
        %v7527 = vpop.f32.mrb[0].mxu0
        %v7528 = vpop.f32.mrb[0].mxu0
        %7529 = vdwg.mxu0
        %v7530 = vsel %vm5904, %v7375, -inf
        %7531 = vmax.xlane.f32.xlu0 %v7530
        %v7532 = vpop.xlane.xlu0 %7531
        %v7533 = vsel %vm5904, %v7425, -inf
        %7534 = vmax.xlane.f32.xlu0 %v7533
        %v7535 = vpop.xlane.xlu0 %7534
        %v7536 = vsel %vm5904, %v7475, -inf
        %7537 = vmax.xlane.f32.xlu0 %v7536
        %v7538 = vpop.xlane.xlu0 %7537
        %v7539 = vsel %vm5904, %v7525, -inf
        %7540 = vmax.xlane.f32.xlu0 %v7539
        %v7541 = vpop.xlane.xlu0 %7540
        %v7542 = vsub.f32 %v7375, %v7532
        %v7543 = vsub.f32 %v7425, %v7535
        %v7544 = vsub.f32 %v7475, %v7538
        %v7545 = vsub.f32 %v7525, %v7541
        %v7546 = vmul.f32 %v7542, 1.442695
        %v7547 = vpow.pop %v7546
        %v7548 = vmul.f32 %v7543, 1.442695
        %v7549 = vpow.pop %v7548
        %v7550 = vmul.f32 %v7544, 1.442695
        %v7551 = vpow.pop %v7550
        %v7552 = vmul.f32 %v7545, 1.442695
        %v7553 = vpow.pop %v7552
        %v7554 = vsel %vm5904, %v7547, 0.0
        %7555 = vadd.xlane.f32.xlu0 %v7554
        %v7556 = vpop.xlane.xlu0 %7555
        %v7557 = vsel %vm5904, %v7549, 0.0
        %7558 = vadd.xlane.f32.xlu0 %v7557
        %v7559 = vpop.xlane.xlu0 %7558
        %v7560 = vsel %vm5904, %v7551, 0.0
        %7561 = vadd.xlane.f32.xlu0 %v7560
        %v7562 = vpop.xlane.xlu0 %7561
        %v7563 = vsel %vm5904, %v7553, 0.0
        %7564 = vadd.xlane.f32.xlu0 %v7563
        %v7565 = vpop.xlane.xlu0 %7564
        %v7566 = vrcp.pop %v7556
        %v7567 = vrcp.pop %v7559
        %v7568 = vrcp.pop %v7562
        %v7569 = vrcp.pop %v7565
        %v7570 = vmul.f32 %v7547, %v7566
        %v7571 = vmul.f32 %v7549, %v7567
        %v7572 = vmul.f32 %v7551, %v7568
        %v7573 = vmul.f32 %v7553, %v7569
        %v7574 = vpack.c.bf16 %v7570, %v7570
        %v7575 = vpack.c.bf16 %v7571, %v7571
        %v7576 = vpack.c.bf16 %v7572, %v7572
        %v7577 = vpack.c.bf16 %v7573, %v7573
        %7578 = vrot.lane.b32.xlu0 %v5975, 104
        %v7579 = vpop.permute.xlu0 %7578
        %v7581 = vsel %vm5904, %v7574, 0
        %v7584 = vsel %vm5979, %v7579, 0
        %7586 = vmatprep.subr.bf16.mxu0 0
        %7587 = vmatpush1.bf16.msra.mxu0 %v7584
        %7588 = vmatprep.subr.bf16.mxu0 0
        %7589 = vmatpush1.bf16.msra.mxu0 0
        %7590 = vmatprep.subr.bf16.mxu0 0
        %7591 = vmatpush1.bf16.msra.mxu0 0
        %7592 = vmatprep.subr.bf16.mxu0 0
        %7593 = vmatpush1.bf16.msra.mxu0 0
        %7594 = vmatprep.subr.bf16.mxu0 0
        %7595 = vmatpush1.bf16.msra.mxu0 0
        %7596 = vmatprep.subr.bf16.mxu0 0
        %7597 = vmatpush1.bf16.msra.mxu0 0
        %7598 = vmatprep.subr.bf16.mxu0 0
        %7599 = vmatpush1.bf16.msra.mxu0 0
        %7600 = vmatprep.subr.bf16.mxu0 0
        %7601 = vmatpush1.bf16.msra.mxu0 0
        %7602 = vmatprep.subr.bf16.mxu0 0
        %7603 = vmatpush1.bf16.msra.mxu0 0
        %7604 = vmatprep.subr.bf16.mxu0 0
        %7605 = vmatpush1.bf16.msra.mxu0 0
        %7606 = vmatprep.subr.bf16.mxu0 0
        %7607 = vmatpush1.bf16.msra.mxu0 0
        %7608 = vmatprep.subr.bf16.mxu0 0
        %7609 = vmatpush1.bf16.msra.mxu0 0
        %7610 = vmatprep.subr.bf16.mxu0 0
        %7611 = vmatpush1.bf16.msra.mxu0 0
        %7612 = vmatprep.subr.bf16.mxu0 0
        %7613 = vmatpush1.bf16.msra.mxu0 0
        %7614 = vmatprep.subr.bf16.mxu0 0
        %7615 = vmatpush1.bf16.msra.mxu0 0
        %7616 = vmatprep.subr.bf16.mxu0 0
        %7617 = vmatpush1.bf16.msra.mxu0 0
        %7618 = vmatprep.mubr.bf16.mxu0 0
        %7619 = vmatmul.mubr.bf16.gmra.mrb[0].mxu0 %v7581
        %v7620 = vpop.f32.mrb[0].mxu0
        %v7621 = vadd.f32 0.0, %v7620
        %v7622 = vpop.f32.mrb[0].mxu0
        %v7623 = vpop.f32.mrb[0].mxu0
        %v7624 = vpop.f32.mrb[0].mxu0
        %7625 = vdwg.mxu0
        %7626 = vrot.lane.b32.xlu0 %v6045, 104
        %v7627 = vpop.permute.xlu0 %7626
        %v7629 = vsel %vm5904, %v7575, 0
        %v7632 = vsel %vm5979, %v7627, 0
        %7634 = vmatprep.subr.bf16.mxu0 0
        %7635 = vmatpush1.bf16.msra.mxu0 %v7632
        %7636 = vmatprep.subr.bf16.mxu0 0
        %7637 = vmatpush1.bf16.msra.mxu0 0
        %7638 = vmatprep.subr.bf16.mxu0 0
        %7639 = vmatpush1.bf16.msra.mxu0 0
        %7640 = vmatprep.subr.bf16.mxu0 0
        %7641 = vmatpush1.bf16.msra.mxu0 0
        %7642 = vmatprep.subr.bf16.mxu0 0
        %7643 = vmatpush1.bf16.msra.mxu0 0
        %7644 = vmatprep.subr.bf16.mxu0 0
        %7645 = vmatpush1.bf16.msra.mxu0 0
        %7646 = vmatprep.subr.bf16.mxu0 0
        %7647 = vmatpush1.bf16.msra.mxu0 0
        %7648 = vmatprep.subr.bf16.mxu0 0
        %7649 = vmatpush1.bf16.msra.mxu0 0
        %7650 = vmatprep.subr.bf16.mxu0 0
        %7651 = vmatpush1.bf16.msra.mxu0 0
        %7652 = vmatprep.subr.bf16.mxu0 0
        %7653 = vmatpush1.bf16.msra.mxu0 0
        %7654 = vmatprep.subr.bf16.mxu0 0
        %7655 = vmatpush1.bf16.msra.mxu0 0
        %7656 = vmatprep.subr.bf16.mxu0 0
        %7657 = vmatpush1.bf16.msra.mxu0 0
        %7658 = vmatprep.subr.bf16.mxu0 0
        %7659 = vmatpush1.bf16.msra.mxu0 0
        %7660 = vmatprep.subr.bf16.mxu0 0
        %7661 = vmatpush1.bf16.msra.mxu0 0
        %7662 = vmatprep.subr.bf16.mxu0 0
        %7663 = vmatpush1.bf16.msra.mxu0 0
        %7664 = vmatprep.subr.bf16.mxu0 0
        %7665 = vmatpush1.bf16.msra.mxu0 0
        %7666 = vmatprep.mubr.bf16.mxu0 0
        %7667 = vmatmul.mubr.bf16.gmra.mrb[0].mxu0 %v7629
        %v7668 = vpop.f32.mrb[0].mxu0
        %v7669 = vadd.f32 0.0, %v7668
        %v7670 = vpop.f32.mrb[0].mxu0
        %v7671 = vpop.f32.mrb[0].mxu0
        %v7672 = vpop.f32.mrb[0].mxu0
        %7673 = vdwg.mxu0
        %7674 = vrot.lane.b32.xlu0 %v6114, 104
        %v7675 = vpop.permute.xlu0 %7674
        %v7677 = vsel %vm5904, %v7576, 0
        %v7680 = vsel %vm5979, %v7675, 0
        %7682 = vmatprep.subr.bf16.mxu0 0
        %7683 = vmatpush1.bf16.msra.mxu0 %v7680
        %7684 = vmatprep.subr.bf16.mxu0 0
        %7685 = vmatpush1.bf16.msra.mxu0 0
        %7686 = vmatprep.subr.bf16.mxu0 0
        %7687 = vmatpush1.bf16.msra.mxu0 0
        %7688 = vmatprep.subr.bf16.mxu0 0
        %7689 = vmatpush1.bf16.msra.mxu0 0
        %7690 = vmatprep.subr.bf16.mxu0 0
        %7691 = vmatpush1.bf16.msra.mxu0 0
        %7692 = vmatprep.subr.bf16.mxu0 0
        %7693 = vmatpush1.bf16.msra.mxu0 0
        %7694 = vmatprep.subr.bf16.mxu0 0
        %7695 = vmatpush1.bf16.msra.mxu0 0
        %7696 = vmatprep.subr.bf16.mxu0 0
        %7697 = vmatpush1.bf16.msra.mxu0 0
        %7698 = vmatprep.subr.bf16.mxu0 0
        %7699 = vmatpush1.bf16.msra.mxu0 0
        %7700 = vmatprep.subr.bf16.mxu0 0
        %7701 = vmatpush1.bf16.msra.mxu0 0
        %7702 = vmatprep.subr.bf16.mxu0 0
        %7703 = vmatpush1.bf16.msra.mxu0 0
        %7704 = vmatprep.subr.bf16.mxu0 0
        %7705 = vmatpush1.bf16.msra.mxu0 0
        %7706 = vmatprep.subr.bf16.mxu0 0
        %7707 = vmatpush1.bf16.msra.mxu0 0
        %7708 = vmatprep.subr.bf16.mxu0 0
        %7709 = vmatpush1.bf16.msra.mxu0 0
        %7710 = vmatprep.subr.bf16.mxu0 0
        %7711 = vmatpush1.bf16.msra.mxu0 0
        %7712 = vmatprep.subr.bf16.mxu0 0
        %7713 = vmatpush1.bf16.msra.mxu0 0
        %7714 = vmatprep.mubr.bf16.mxu0 0
        %7715 = vmatmul.mubr.bf16.gmra.mrb[0].mxu0 %v7677
        %v7716 = vpop.f32.mrb[0].mxu0
        %v7717 = vadd.f32 0.0, %v7716
        %v7718 = vpop.f32.mrb[0].mxu0
        %v7719 = vpop.f32.mrb[0].mxu0
        %v7720 = vpop.f32.mrb[0].mxu0
        %7721 = vdwg.mxu0
        %7722 = vrot.lane.b32.xlu0 %v6183, 104
        %v7723 = vpop.permute.xlu0 %7722
        %v7725 = vsel %vm5904, %v7577, 0
        %v7728 = vsel %vm5979, %v7723, 0
        %7730 = vmatprep.subr.bf16.mxu0 0
        %7731 = vmatpush1.bf16.msra.mxu0 %v7728
        %7732 = vmatprep.subr.bf16.mxu0 0
        %7733 = vmatpush1.bf16.msra.mxu0 0
        %7734 = vmatprep.subr.bf16.mxu0 0
        %7735 = vmatpush1.bf16.msra.mxu0 0
        %7736 = vmatprep.subr.bf16.mxu0 0
        %7737 = vmatpush1.bf16.msra.mxu0 0
        %7738 = vmatprep.subr.bf16.mxu0 0
        %7739 = vmatpush1.bf16.msra.mxu0 0
        %7740 = vmatprep.subr.bf16.mxu0 0
        %7741 = vmatpush1.bf16.msra.mxu0 0
        %7742 = vmatprep.subr.bf16.mxu0 0
        %7743 = vmatpush1.bf16.msra.mxu0 0
        %7744 = vmatprep.subr.bf16.mxu0 0
        %7745 = vmatpush1.bf16.msra.mxu0 0
        %7746 = vmatprep.subr.bf16.mxu0 0
        %7747 = vmatpush1.bf16.msra.mxu0 0
        %7748 = vmatprep.subr.bf16.mxu0 0
        %7749 = vmatpush1.bf16.msra.mxu0 0
        %7750 = vmatprep.subr.bf16.mxu0 0
        %7751 = vmatpush1.bf16.msra.mxu0 0
        %7752 = vmatprep.subr.bf16.mxu0 0
        %7753 = vmatpush1.bf16.msra.mxu0 0
        %7754 = vmatprep.subr.bf16.mxu0 0
        %7755 = vmatpush1.bf16.msra.mxu0 0
        %7756 = vmatprep.subr.bf16.mxu0 0
        %7757 = vmatpush1.bf16.msra.mxu0 0
        %7758 = vmatprep.subr.bf16.mxu0 0
        %7759 = vmatpush1.bf16.msra.mxu0 0
        %7760 = vmatprep.subr.bf16.mxu0 0
        %7761 = vmatpush1.bf16.msra.mxu0 0
        %7762 = vmatprep.mubr.bf16.mxu0 0
        %7763 = vmatmul.mubr.bf16.gmra.mrb[0].mxu0 %v7725
        %v7764 = vpop.f32.mrb[0].mxu0
        %v7765 = vadd.f32 0.0, %v7764
        %v7766 = vpop.f32.mrb[0].mxu0
        %v7767 = vpop.f32.mrb[0].mxu0
        %v7768 = vpop.f32.mrb[0].mxu0
        %7769 = vdwg.mxu0
        %v7770 = vpack.c.bf16 %v7621, %v7621
        %v7771 = vpack.c.bf16 %v7669, %v7669
        %v7772 = vpack.c.bf16 %v7717, %v7717
        %v7773 = vpack.c.bf16 %v7765, %v7765
        %v7778 = vunpack.c.l.b16 %v7770
        %v7779 = vunpack.c.l.b16 %v7771
        %v7780 = vunpack.c.l.b16 %v7772
        %v7781 = vunpack.c.l.b16 %v7773
        %v7782 = vpack.c.b16 %v7779, %v7778
        %v7783 = vpack.c.b16 %v7781, %v7780
        %v7785 = vsel %vm808, %v7782, 0
        %v7788 = vsel %vm808, %v7783, 0
        %v7791 = vsel %vm2756, %v462, 0
        %7793 = vmatprep.subr.bf16.mxu0 0
        %7794 = vmatpush1.bf16.msra.mxu0 %v7791
        %7795 = vmatprep.subr.bf16.mxu0 0
        %7796 = vmatpush1.bf16.msra.mxu0 0
        %7797 = vmatprep.subr.bf16.mxu0 0
        %7798 = vmatpush1.bf16.msra.mxu0 0
        %7799 = vmatprep.subr.bf16.mxu0 0
        %7800 = vmatpush1.bf16.msra.mxu0 0
        %7801 = vmatprep.subr.bf16.mxu0 0
        %7802 = vmatpush1.bf16.msra.mxu0 0
        %7803 = vmatprep.subr.bf16.mxu0 0
        %7804 = vmatpush1.bf16.msra.mxu0 0
        %7805 = vmatprep.subr.bf16.mxu0 0
        %7806 = vmatpush1.bf16.msra.mxu0 0
        %7807 = vmatprep.subr.bf16.mxu0 0
        %7808 = vmatpush1.bf16.msra.mxu0 0
        %7809 = vmatprep.subr.bf16.mxu0 0
        %7810 = vmatpush1.bf16.msra.mxu0 0
        %7811 = vmatprep.subr.bf16.mxu0 0
        %7812 = vmatpush1.bf16.msra.mxu0 0
        %7813 = vmatprep.subr.bf16.mxu0 0
        %7814 = vmatpush1.bf16.msra.mxu0 0
        %7815 = vmatprep.subr.bf16.mxu0 0
        %7816 = vmatpush1.bf16.msra.mxu0 0
        %7817 = vmatprep.subr.bf16.mxu0 0
        %7818 = vmatpush1.bf16.msra.mxu0 0
        %7819 = vmatprep.subr.bf16.mxu0 0
        %7820 = vmatpush1.bf16.msra.mxu0 0
        %7821 = vmatprep.subr.bf16.mxu0 0
        %7822 = vmatpush1.bf16.msra.mxu0 0
        %7823 = vmatprep.subr.bf16.mxu0 0
        %7824 = vmatpush1.bf16.msra.mxu0 0
        %7825 = vmatprep.mubr.bf16.mxu0 0
        %7826 = vmatmul.mubr.bf16.gmra.mrb[0].mxu0 %v7785
        %v7827 = vpop.f32.mrb[0].mxu0
        %v7828 = vadd.f32 0.0, %v7827
        %v7829 = vpop.f32.mrb[0].mxu0
        %v7830 = vpop.f32.mrb[0].mxu0
        %v7831 = vadd.f32 0.0, %v7830
        %v7832 = vpop.f32.mrb[0].mxu0
        %7833 = vmatprep.mubr.bf16.mxu0 0
        %7834 = vmatmul.mubr.bf16.gmra.mrb[0].mxu0 %v7788
        %v7835 = vpop.f32.mrb[0].mxu0
        %v7836 = vadd.f32 0.0, %v7835
        %v7837 = vpop.f32.mrb[0].mxu0
        %v7838 = vpop.f32.mrb[0].mxu0
        %v7839 = vadd.f32 0.0, %v7838
        %v7840 = vpop.f32.mrb[0].mxu0
        %7841 = vdwg.mxu0
        %v7842 = vadd.f32 %v7326, %v7828
        %v7843 = vadd.f32 %v7327, %v7831
        %v7844 = vadd.f32 %v7328, %v7836
        %v7845 = vadd.f32 %v7329, %v7839
        %v7847 = vlaneseq
        %v7848 = vshrl.u32 %v7847, 7
        %v7849 = vsub.s32 0, %v7848
        %v7850 = vrot.slane %v464, %v7849
        %v7852 = vadd.f32 %v7842, %v7850
        %v7853 = vadd.f32 %v7843, %v7850
        %v7854 = vadd.f32 %v7844, %v7850
        %v7855 = vadd.f32 %v7845, %v7850
        %v7856 = vcombine.low %v7852, %v7854
        %v7857 = vcombine.high %v7852, %v7854
        %v7859 = vunpack.c.l.s4 1983009808
        %v7860 = vunpack.c.0.s8 %v7859
        %v7861 = vlaneseq
        %v7862 = vshrl.u32 %v7861, 7
        %v7863 = vsub.s32 %v7860, %v7862
        %v7864 = vrot.slane %v7856, %v7863
        %v7866 = vunpack.c.l.s4 1983009808
        %v7867 = vunpack.c.0.s8 %v7866
        %v7868 = vlaneseq
        %v7869 = vshrl.u32 %v7868, 7
        %v7870 = vsub.s32 %v7867, %v7869
        %v7871 = vrot.slane %v7857, %v7870
        %v7872 = vcombine.low %v7853, %v7855
        %v7873 = vcombine.high %v7853, %v7855
        %v7875 = vunpack.c.l.s4 1983009808
        %v7876 = vunpack.c.0.s8 %v7875
        %v7877 = vlaneseq
        %v7878 = vshrl.u32 %v7877, 7
        %v7879 = vsub.s32 %v7876, %v7878
        %v7880 = vrot.slane %v7872, %v7879
        %v7882 = vunpack.c.l.s4 1983009808
        %v7883 = vunpack.c.0.s8 %v7882
        %v7884 = vlaneseq
        %v7885 = vshrl.u32 %v7884, 7
        %v7886 = vsub.s32 %v7883, %v7885
        %v7887 = vrot.slane %v7873, %v7886
        %v7888 = vcombine.low %v7864, %v7880
        %v7889 = vcombine.high %v7864, %v7880
        %v7891 = vunpack.c.l.s4 1934713408
        %v7892 = vunpack.c.0.s8 %v7891
        %v7893 = vlaneseq
        %v7894 = vshrl.u32 %v7893, 7
        %v7895 = vsub.s32 %v7892, %v7894
        %v7896 = vrot.slane %v7888, %v7895
        %v7898 = vunpack.c.l.s4 1934713408
        %v7899 = vunpack.c.0.s8 %v7898
        %v7900 = vlaneseq
        %v7901 = vshrl.u32 %v7900, 7
        %v7902 = vsub.s32 %v7899, %v7901
        %v7903 = vrot.slane %v7889, %v7902
        %v7904 = vcombine.low %v7871, %v7887
        %v7905 = vcombine.high %v7871, %v7887
        %v7907 = vunpack.c.l.s4 1934713408
        %v7908 = vunpack.c.0.s8 %v7907
        %v7909 = vlaneseq
        %v7910 = vshrl.u32 %v7909, 7
        %v7911 = vsub.s32 %v7908, %v7910
        %v7912 = vrot.slane %v7904, %v7911
        %v7914 = vunpack.c.l.s4 1934713408
        %v7915 = vunpack.c.0.s8 %v7914
        %v7916 = vlaneseq
        %v7917 = vshrl.u32 %v7916, 7
        %v7918 = vsub.s32 %v7915, %v7917
        %v7919 = vrot.slane %v7905, %v7918
        %v7920 = vcombine.high %v7896, 0.0
        %v7921 = vcombine.high %v7903, 0.0
        %v7922 = vcombine.high %v7912, 0.0
        %v7923 = vcombine.high %v7919, 0.0
        %v7924 = vadd.f32 %v5020, %v7896
        %v7925 = vadd.f32 %v5021, %v7920
        %v7926 = vadd.f32 %v5022, %v7903
        %v7927 = vadd.f32 %v5023, %v7921
        %v7928 = vadd.f32 %v5024, %v7912
        %v7929 = vadd.f32 %v5025, %v7922
        %v7930 = vadd.f32 %v5026, %v7919
        %v7931 = vadd.f32 %v5027, %v7923
        %v7932 = vsel %vm396, %v7924, 0.0
        %7933 = vadd.xlane.f32.xlu0 %v7932
        %v7934 = vpop.xlane.xlu0 %7933
        %v7935 = vsel %vm396, %v7925, 0.0
        %7936 = vadd.xlane.f32.xlu0 %v7935
        %v7937 = vpop.xlane.xlu0 %7936
        %v7938 = vsel %vm396, %v7926, 0.0
        %7939 = vadd.xlane.f32.xlu0 %v7938
        %v7940 = vpop.xlane.xlu0 %7939
        %v7941 = vsel %vm396, %v7927, 0.0
        %7942 = vadd.xlane.f32.xlu0 %v7941
        %v7943 = vpop.xlane.xlu0 %7942
        %v7944 = vsel %vm396, %v7928, 0.0
        %7945 = vadd.xlane.f32.xlu0 %v7944
        %v7946 = vpop.xlane.xlu0 %7945
        %v7947 = vsel %vm396, %v7929, 0.0
        %7948 = vadd.xlane.f32.xlu0 %v7947
        %v7949 = vpop.xlane.xlu0 %7948
        %v7950 = vsel %vm396, %v7930, 0.0
        %7951 = vadd.xlane.f32.xlu0 %v7950
        %v7952 = vpop.xlane.xlu0 %7951
        %v7953 = vsel %vm396, %v7931, 0.0
        %7954 = vadd.xlane.f32.xlu0 %v7953
        %v7955 = vpop.xlane.xlu0 %7954
        %v7956 = vmul.f32 %v7934, %v4947
        %v7957 = vmul.f32 %v7937, %v4947
        %v7958 = vmul.f32 %v7940, %v4947
        %v7959 = vmul.f32 %v7943, %v4947
        %v7960 = vmul.f32 %v7946, %v4947
        %v7961 = vmul.f32 %v7949, %v4947
        %v7962 = vmul.f32 %v7952, %v4947
        %v7963 = vmul.f32 %v7955, %v4947
        %v7964 = vsub.f32 %v7924, %v7956
        %v7965 = vsub.f32 %v7925, %v7957
        %v7966 = vsub.f32 %v7926, %v7958
        %v7967 = vsub.f32 %v7927, %v7959
        %v7968 = vsub.f32 %v7928, %v7960
        %v7969 = vsub.f32 %v7929, %v7961
        %v7970 = vsub.f32 %v7930, %v7962
        %v7971 = vsub.f32 %v7931, %v7963
        %v7972 = vmul.f32 %v7964, %v7964
        %v7973 = vmul.f32 %v7965, %v7965
        %v7974 = vmul.f32 %v7966, %v7966
        %v7975 = vmul.f32 %v7967, %v7967
        %v7976 = vmul.f32 %v7968, %v7968
        %v7977 = vmul.f32 %v7969, %v7969
        %v7978 = vmul.f32 %v7970, %v7970
        %v7979 = vmul.f32 %v7971, %v7971
        %v7980 = vsel %vm396, %v7972, 0.0
        %7981 = vadd.xlane.f32.xlu0 %v7980
        %v7982 = vpop.xlane.xlu0 %7981
        %v7983 = vsel %vm396, %v7973, 0.0
        %7984 = vadd.xlane.f32.xlu0 %v7983
        %v7985 = vpop.xlane.xlu0 %7984
        %v7986 = vsel %vm396, %v7974, 0.0
        %7987 = vadd.xlane.f32.xlu0 %v7986
        %v7988 = vpop.xlane.xlu0 %7987
        %v7989 = vsel %vm396, %v7975, 0.0
        %7990 = vadd.xlane.f32.xlu0 %v7989
        %v7991 = vpop.xlane.xlu0 %7990
        %v7992 = vsel %vm396, %v7976, 0.0
        %7993 = vadd.xlane.f32.xlu0 %v7992
        %v7994 = vpop.xlane.xlu0 %7993
        %v7995 = vsel %vm396, %v7977, 0.0
        %7996 = vadd.xlane.f32.xlu0 %v7995
        %v7997 = vpop.xlane.xlu0 %7996
        %v7998 = vsel %vm396, %v7978, 0.0
        %7999 = vadd.xlane.f32.xlu0 %v7998
        %v8000 = vpop.xlane.xlu0 %7999
        %v8001 = vsel %vm396, %v7979, 0.0
        %8002 = vadd.xlane.f32.xlu0 %v8001
        %v8003 = vpop.xlane.xlu0 %8002
        %v8004 = vmul.f32 %v7982, %v4947
        %v8005 = vmul.f32 %v7985, %v4947
        %v8006 = vmul.f32 %v7988, %v4947
        %v8007 = vmul.f32 %v7991, %v4947
        %v8008 = vmul.f32 %v7994, %v4947
        %v8009 = vmul.f32 %v7997, %v4947
        %v8010 = vmul.f32 %v8000, %v4947
        %v8011 = vmul.f32 %v8003, %v4947
        %v8012 = vadd.f32 %v8004, 1e-05
        %v8013 = vadd.f32 %v8005, 1e-05
        %v8014 = vadd.f32 %v8006, 1e-05
        %v8015 = vadd.f32 %v8007, 1e-05
        %v8016 = vadd.f32 %v8008, 1e-05
        %v8017 = vadd.f32 %v8009, 1e-05
        %v8018 = vadd.f32 %v8010, 1e-05
        %v8019 = vadd.f32 %v8011, 1e-05
        %v8020 = vrsqrt.pop %v8012
        %v8021 = vrsqrt.pop %v8013
        %v8022 = vrsqrt.pop %v8014
        %v8023 = vrsqrt.pop %v8015
        %v8024 = vrsqrt.pop %v8016
        %v8025 = vrsqrt.pop %v8017
        %v8026 = vrsqrt.pop %v8018
        %v8027 = vrsqrt.pop %v8019
        %v8028 = vmul.f32 %v7964, %v8020
        %v8029 = vmul.f32 %v7965, %v8021
        %v8030 = vmul.f32 %v7966, %v8022
        %v8031 = vmul.f32 %v7967, %v8023
        %v8032 = vmul.f32 %v7968, %v8024
        %v8033 = vmul.f32 %v7969, %v8025
        %v8034 = vmul.f32 %v7970, %v8026
        %v8035 = vmul.f32 %v7971, %v8027
        %v8044 = vcombine.low %v8028, %v8029
        %v8045 = vcombine.low %v8030, %v8031
        %v8046 = vcombine.low %v8032, %v8033
        %v8047 = vcombine.low %v8034, %v8035
        %v8052 = vpack.c.bf16 %v8045, %v8044
        %v8053 = vpack.c.bf16 %v8047, %v8046
        %v8055 = vlaneseq
        %v8056 = vshrl.u32 %v8055, 7
        %v8057 = vsub.s32 0, %v8056
        %v8058 = vrot.slane %v472, %v8057
        %v8064 = vunpack.c.l.b16 %v467
        %v8065 = vunpack.c.l.b16 %v468
        %v8066 = vunpack.c.l.b16 %v469
        %v8067 = vunpack.c.l.b16 %v470
        %v8068 = vpack.c.b16 %v8065, %v8064
        %v8069 = vpack.c.b16 %v8067, %v8066
        %v8073 = vsel %vm516, %v8052, 0
        %v8076 = vsel %vm516, %v8053, 0
        %8078 = vmatprep.subr.bf16.mxu0 0
        %8079 = vmatpush1.bf16.msra.mxu0 %v8068
        %8080 = vmatprep.subr.bf16.mxu0 0
        %8081 = vmatpush1.bf16.msra.mxu0 %v8069
        %8082 = vmatprep.subr.bf16.mxu0 0
        %8083 = vmatpush1.bf16.msra.mxu0 0
        %8084 = vmatprep.subr.bf16.mxu0 0
        %8085 = vmatpush1.bf16.msra.mxu0 0
        %8086 = vmatprep.subr.bf16.mxu0 0
        %8087 = vmatpush1.bf16.msra.mxu0 0
        %8088 = vmatprep.subr.bf16.mxu0 0
        %8089 = vmatpush1.bf16.msra.mxu0 0
        %8090 = vmatprep.subr.bf16.mxu0 0
        %8091 = vmatpush1.bf16.msra.mxu0 0
        %8092 = vmatprep.subr.bf16.mxu0 0
        %8093 = vmatpush1.bf16.msra.mxu0 0
        %8094 = vmatprep.subr.bf16.mxu0 0
        %8095 = vmatpush1.bf16.msra.mxu0 0
        %8096 = vmatprep.subr.bf16.mxu0 0
        %8097 = vmatpush1.bf16.msra.mxu0 0
        %8098 = vmatprep.subr.bf16.mxu0 0
        %8099 = vmatpush1.bf16.msra.mxu0 0
        %8100 = vmatprep.subr.bf16.mxu0 0
        %8101 = vmatpush1.bf16.msra.mxu0 0
        %8102 = vmatprep.subr.bf16.mxu0 0
        %8103 = vmatpush1.bf16.msra.mxu0 0
        %8104 = vmatprep.subr.bf16.mxu0 0
        %8105 = vmatpush1.bf16.msra.mxu0 0
        %8106 = vmatprep.subr.bf16.mxu0 0
        %8107 = vmatpush1.bf16.msra.mxu0 0
        %8108 = vmatprep.subr.bf16.mxu0 0
        %8109 = vmatpush1.bf16.msra.mxu0 0
        %8110 = vmatprep.mubr.bf16.mxu0 0
        %8111 = vmatmul.mubr.bf16.gmra.mrb[0].mxu0 %v8073
        %v8112 = vpop.f32.mrb[0].mxu0
        %v8113 = vadd.f32 %v8058, %v8112
        %v8114 = vpop.f32.mrb[0].mxu0
        %v8115 = vpop.f32.mrb[0].mxu0
        %v8116 = vadd.f32 %v8058, %v8115
        %v8117 = vpop.f32.mrb[0].mxu0
        %8118 = vmatprep.mubr.bf16.mxu0 0
        %8119 = vmatmul.mubr.bf16.gmra.mrb[0].mxu0 %v8076
        %v8120 = vpop.f32.mrb[0].mxu0
        %v8121 = vadd.f32 %v8058, %v8120
        %v8122 = vpop.f32.mrb[0].mxu0
        %v8123 = vpop.f32.mrb[0].mxu0
        %v8124 = vadd.f32 %v8058, %v8123
        %v8125 = vpop.f32.mrb[0].mxu0
        %8126 = vdwg.mxu0
        %v8127 = vmul.f32 %v8113, 0.5
        %v8128 = vmul.f32 %v8116, 0.5
        %v8129 = vmul.f32 %v8121, 0.5
        %v8130 = vmul.f32 %v8124, 0.5
        %v8131 = vmul.f32 %v8113, %v8113
        %v8132 = vmul.f32 %v8116, %v8116
        %v8133 = vmul.f32 %v8121, %v8121
        %v8134 = vmul.f32 %v8124, %v8124
        %v8135 = vmul.f32 %v8131, %v8113
        %v8136 = vmul.f32 %v8132, %v8116
        %v8137 = vmul.f32 %v8133, %v8121
        %v8138 = vmul.f32 %v8134, %v8124
        %v8139 = vmul.f32 %v8135, 0.044715
        %v8140 = vmul.f32 %v8136, 0.044715
        %v8141 = vmul.f32 %v8137, 0.044715
        %v8142 = vmul.f32 %v8138, 0.044715
        %v8143 = vadd.f32 %v8113, %v8139
        %v8144 = vadd.f32 %v8116, %v8140
        %v8145 = vadd.f32 %v8121, %v8141
        %v8146 = vadd.f32 %v8124, %v8142
        %v8147 = vmul.f32 %v8143, 0.7978846
        %v8148 = vmul.f32 %v8144, 0.7978846
        %v8149 = vmul.f32 %v8145, 0.7978846
        %v8150 = vmul.f32 %v8146, 0.7978846
        %v8151 = vtanh.pop %v8147
        %v8152 = vtanh.pop %v8148
        %v8153 = vtanh.pop %v8149
        %v8154 = vtanh.pop %v8150
        %v8155 = vadd.f32 %v8151, 1.0
        %v8156 = vadd.f32 %v8152, 1.0
        %v8157 = vadd.f32 %v8153, 1.0
        %v8158 = vadd.f32 %v8154, 1.0
        %v8159 = vmul.f32 %v8127, %v8155
        %v8160 = vmul.f32 %v8128, %v8156
        %v8161 = vmul.f32 %v8129, %v8157
        %v8162 = vmul.f32 %v8130, %v8158
        %v8163 = vpack.c.bf16 %v8160, %v8159
        %v8164 = vpack.c.bf16 %v8162, %v8161
        %v8166 = vlaneseq
        %v8167 = vshrl.u32 %v8166, 7
        %v8168 = vsub.s32 0, %v8167
        %v8169 = vrot.slane %v485, %v8168
        %v8179 = vunpack.c.l.b16 %v476
        %v8180 = vunpack.c.l.b16 %v477
        %v8181 = vunpack.c.l.b16 %v478
        %v8182 = vunpack.c.l.b16 %v479
        %v8183 = vunpack.c.l.b16 %v480
        %v8184 = vunpack.c.l.b16 %v481
        %v8185 = vunpack.c.l.b16 %v482
        %v8186 = vunpack.c.l.b16 %v483
        %v8187 = vpack.c.b16 %v8180, %v8179
        %v8188 = vpack.c.b16 %v8182, %v8181
        %v8189 = vpack.c.b16 %v8184, %v8183
        %v8190 = vpack.c.b16 %v8186, %v8185
        %vm8195 = vcmask 523264
        %v8197 = vsel %vm8195, %v8163, 0
        %v8200 = vsel %vm8195, %v8164, 0
        %8202 = vmatprep.subr.bf16.mxu0 0
        %8203 = vmatpush1.bf16.msra.mxu0 %v8187
        %8204 = vmatprep.subr.bf16.mxu0 0
        %8205 = vmatpush1.bf16.msra.mxu0 %v8188
        %8206 = vmatprep.subr.bf16.mxu0 0
        %8207 = vmatpush1.bf16.msra.mxu0 %v8189
        %8208 = vmatprep.subr.bf16.mxu0 0
        %8209 = vmatpush1.bf16.msra.mxu0 %v8190
        %8210 = vmatprep.subr.bf16.mxu0 0
        %8211 = vmatpush1.bf16.msra.mxu0 0
        %8212 = vmatprep.subr.bf16.mxu0 0
        %8213 = vmatpush1.bf16.msra.mxu0 0
        %8214 = vmatprep.subr.bf16.mxu0 0
        %8215 = vmatpush1.bf16.msra.mxu0 0
        %8216 = vmatprep.subr.bf16.mxu0 0
        %8217 = vmatpush1.bf16.msra.mxu0 0
        %8218 = vmatprep.subr.bf16.mxu0 0
        %8219 = vmatpush1.bf16.msra.mxu0 0
        %8220 = vmatprep.subr.bf16.mxu0 0
        %8221 = vmatpush1.bf16.msra.mxu0 0
        %8222 = vmatprep.subr.bf16.mxu0 0
        %8223 = vmatpush1.bf16.msra.mxu0 0
        %8224 = vmatprep.subr.bf16.mxu0 0
        %8225 = vmatpush1.bf16.msra.mxu0 0
        %8226 = vmatprep.subr.bf16.mxu0 0
        %8227 = vmatpush1.bf16.msra.mxu0 0
        %8228 = vmatprep.subr.bf16.mxu0 0
        %8229 = vmatpush1.bf16.msra.mxu0 0
        %8230 = vmatprep.subr.bf16.mxu0 0
        %8231 = vmatpush1.bf16.msra.mxu0 0
        %8232 = vmatprep.subr.bf16.mxu0 0
        %8233 = vmatpush1.bf16.msra.mxu0 0
        %8234 = vmatprep.mubr.bf16.mxu0 0
        %8235 = vmatmul.mubr.bf16.gmra.mrb[0].mxu0 %v8197
        %v8236 = vpop.f32.mrb[0].mxu0
        %v8237 = vadd.f32 %v8169, %v8236
        %v8238 = vpop.f32.mrb[0].mxu0
        %v8239 = vpop.f32.mrb[0].mxu0
        %v8240 = vadd.f32 %v8169, %v8239
        %v8241 = vpop.f32.mrb[0].mxu0
        %8242 = vmatprep.mubr.bf16.mxu0 0
        %8243 = vmatmul.mubr.bf16.gmra.mrb[0].mxu0 %v8200
        %v8244 = vpop.f32.mrb[0].mxu0
        %v8245 = vadd.f32 %v8169, %v8244
        %v8246 = vpop.f32.mrb[0].mxu0
        %v8247 = vpop.f32.mrb[0].mxu0
        %v8248 = vadd.f32 %v8169, %v8247
        %v8249 = vpop.f32.mrb[0].mxu0
        %8250 = vdwg.mxu0
        %v8255 = vcombine.high %v8237, %v8237
        %v8256 = vcombine.high %v8240, %v8240
        %v8257 = vcombine.high %v8245, %v8245
        %v8258 = vcombine.high %v8248, %v8248
        %v8263 = vadd.f32 %v8028, %v8237
        %v8264 = vadd.f32 %v8029, %v8255
        %v8265 = vadd.f32 %v8030, %v8240
        %v8266 = vadd.f32 %v8031, %v8256
        %v8267 = vadd.f32 %v8032, %v8245
        %v8268 = vadd.f32 %v8033, %v8257
        %v8269 = vadd.f32 %v8034, %v8248
        %v8270 = vadd.f32 %v8035, %v8258
        %v8271 = vsel %vm396, %v8263, 0.0
        %8272 = vadd.xlane.f32.xlu0 %v8271
        %v8273 = vpop.xlane.xlu0 %8272
        %v8274 = vsel %vm396, %v8264, 0.0
        %8275 = vadd.xlane.f32.xlu0 %v8274
        %v8276 = vpop.xlane.xlu0 %8275
        %v8277 = vsel %vm396, %v8265, 0.0
        %8278 = vadd.xlane.f32.xlu0 %v8277
        %v8279 = vpop.xlane.xlu0 %8278
        %v8280 = vsel %vm396, %v8266, 0.0
        %8281 = vadd.xlane.f32.xlu0 %v8280
        %v8282 = vpop.xlane.xlu0 %8281
        %v8283 = vsel %vm396, %v8267, 0.0
        %8284 = vadd.xlane.f32.xlu0 %v8283
        %v8285 = vpop.xlane.xlu0 %8284
        %v8286 = vsel %vm396, %v8268, 0.0
        %8287 = vadd.xlane.f32.xlu0 %v8286
        %v8288 = vpop.xlane.xlu0 %8287
        %v8289 = vsel %vm396, %v8269, 0.0
        %8290 = vadd.xlane.f32.xlu0 %v8289
        %v8291 = vpop.xlane.xlu0 %8290
        %v8292 = vsel %vm396, %v8270, 0.0
        %8293 = vadd.xlane.f32.xlu0 %v8292
        %v8294 = vpop.xlane.xlu0 %8293
        %v8295 = vmul.f32 %v8273, %v4947
        %v8296 = vmul.f32 %v8276, %v4947
        %v8297 = vmul.f32 %v8279, %v4947
        %v8298 = vmul.f32 %v8282, %v4947
        %v8299 = vmul.f32 %v8285, %v4947
        %v8300 = vmul.f32 %v8288, %v4947
        %v8301 = vmul.f32 %v8291, %v4947
        %v8302 = vmul.f32 %v8294, %v4947
        %v8303 = vsub.f32 %v8263, %v8295
        %v8304 = vsub.f32 %v8264, %v8296
        %v8305 = vsub.f32 %v8265, %v8297
        %v8306 = vsub.f32 %v8266, %v8298
        %v8307 = vsub.f32 %v8267, %v8299
        %v8308 = vsub.f32 %v8268, %v8300
        %v8309 = vsub.f32 %v8269, %v8301
        %v8310 = vsub.f32 %v8270, %v8302
        %v8311 = vmul.f32 %v8303, %v8303
        %v8312 = vmul.f32 %v8304, %v8304
        %v8313 = vmul.f32 %v8305, %v8305
        %v8314 = vmul.f32 %v8306, %v8306
        %v8315 = vmul.f32 %v8307, %v8307
        %v8316 = vmul.f32 %v8308, %v8308
        %v8317 = vmul.f32 %v8309, %v8309
        %v8318 = vmul.f32 %v8310, %v8310
        %v8319 = vsel %vm396, %v8311, 0.0
        %8320 = vadd.xlane.f32.xlu0 %v8319
        %v8321 = vpop.xlane.xlu0 %8320
        %v8322 = vsel %vm396, %v8312, 0.0
        %8323 = vadd.xlane.f32.xlu0 %v8322
        %v8324 = vpop.xlane.xlu0 %8323
        %v8325 = vsel %vm396, %v8313, 0.0
        %8326 = vadd.xlane.f32.xlu0 %v8325
        %v8327 = vpop.xlane.xlu0 %8326
        %v8328 = vsel %vm396, %v8314, 0.0
        %8329 = vadd.xlane.f32.xlu0 %v8328
        %v8330 = vpop.xlane.xlu0 %8329
        %v8331 = vsel %vm396, %v8315, 0.0
        %8332 = vadd.xlane.f32.xlu0 %v8331
        %v8333 = vpop.xlane.xlu0 %8332
        %v8334 = vsel %vm396, %v8316, 0.0
        %8335 = vadd.xlane.f32.xlu0 %v8334
        %v8336 = vpop.xlane.xlu0 %8335
        %v8337 = vsel %vm396, %v8317, 0.0
        %8338 = vadd.xlane.f32.xlu0 %v8337
        %v8339 = vpop.xlane.xlu0 %8338
        %v8340 = vsel %vm396, %v8318, 0.0
        %8341 = vadd.xlane.f32.xlu0 %v8340
        %v8342 = vpop.xlane.xlu0 %8341
        %v8343 = vmul.f32 %v8321, %v4947
        %v8344 = vmul.f32 %v8324, %v4947
        %v8345 = vmul.f32 %v8327, %v4947
        %v8346 = vmul.f32 %v8330, %v4947
        %v8347 = vmul.f32 %v8333, %v4947
        %v8348 = vmul.f32 %v8336, %v4947
        %v8349 = vmul.f32 %v8339, %v4947
        %v8350 = vmul.f32 %v8342, %v4947
        %v8351 = vadd.f32 %v8343, 1e-05
        %v8352 = vadd.f32 %v8344, 1e-05
        %v8353 = vadd.f32 %v8345, 1e-05
        %v8354 = vadd.f32 %v8346, 1e-05
        %v8355 = vadd.f32 %v8347, 1e-05
        %v8356 = vadd.f32 %v8348, 1e-05
        %v8357 = vadd.f32 %v8349, 1e-05
        %v8358 = vadd.f32 %v8350, 1e-05
        %v8359 = vrsqrt.pop %v8351
        %v8360 = vrsqrt.pop %v8352
        %v8361 = vrsqrt.pop %v8353
        %v8362 = vrsqrt.pop %v8354
        %v8363 = vrsqrt.pop %v8355
        %v8364 = vrsqrt.pop %v8356
        %v8365 = vrsqrt.pop %v8357
        %v8366 = vrsqrt.pop %v8358
        %v8367 = vmul.f32 %v8303, %v8359
        %v8368 = vmul.f32 %v8304, %v8360
        %v8369 = vmul.f32 %v8305, %v8361
        %v8370 = vmul.f32 %v8306, %v8362
        %v8371 = vmul.f32 %v8307, %v8363
        %v8372 = vmul.f32 %v8308, %v8364
        %v8373 = vmul.f32 %v8309, %v8365
        %v8374 = vmul.f32 %v8310, %v8366
        %8375 = vst.msk [vmem:[%s386] sm:$0xf] %vm396, %v8367
        %8376 = vst.msk [vmem:[%s386 + $0x4] sm:$0xf] %vm396, %v8368
        %8377 = vst.msk [vmem:[%s386 + $0x8] sm:$0xf] %vm396, %v8369
        %8378 = vst.msk [vmem:[%s386 + $0xc] sm:$0xf] %vm396, %v8370
        %8379 = vst.msk [vmem:[%s386 + $0x10] sm:$0xf] %vm396, %v8371
        %8380 = vst.msk [vmem:[%s386 + $0x14] sm:$0xf] %vm396, %v8372
        %8381 = vst.msk [vmem:[%s386 + $0x18] sm:$0xf] %vm396, %v8373
        %8382 = vst.msk [vmem:[%s386 + $0x1c] sm:$0xf] %vm396, %v8374
      $region69: #{per_feature_transformer_forward.2} parent=63 // loop_footer
        %s410 = sadd.s32 1, %s406
      $region70: #{per_feature_transformer_forward.2} parent=63 // loop_footer_branch
        %405 = sbr.rel target = $region66
      $region71: #{per_feature_transformer_forward.2} parent=63 // loop_exit
        _
      %p8383 = scmp.lt.s32.totalorder %s22, 1
      %s8384 = scalar_select %p8383, %s22, 1
      %s8385 = smul.addr %s8384, 8
      %s8386 = smul.addr %s8385, 4
      %s8387 = scalar_lea.vmem %s11, %s8386
      // Predicated region
      $region72: #{per_feature_transformer_forward.2} parent=63 // pred_check
        %p8388 = pneg %p276
      $region73: #{per_feature_transformer_forward.2} parent=63 // pred_check_branch
        %8390 = sbr.rel (%p8388) target = $region75
      $region74: #{per_feature_transformer_forward.2} parent=63 // pred_region
        _
      $region75: #{per_feature_transformer_forward.2} parent=63 // pred_fallthru
        _
    $region64: #{per_feature_transformer_forward.2} parent=5 // pred_fallthru
      _
    %p8391 = scmp.le.s32.totalorder 2, %s17
    // Predicated region
    $region76: #{per_feature_transformer_forward.2} parent=5 // pred_check
      %p8392 = pneg %p8391
    $region77: #{per_feature_transformer_forward.2} parent=5 // pred_check_branch
      %8394 = sbr.rel (%p8392) target = $region79
    $region78: #{per_feature_transformer_forward.2} parent=5 // pred_region
      %s8395 = ssub.s32 %s17, 2
      // Predicated region
      $region80: #{per_feature_transformer_forward.2} parent=78 // pred_check
        %p8396 = pneg %p282
      $region81: #{per_feature_transformer_forward.2} parent=78 // pred_check_branch
        %8398 = sbr.rel (%p8396) target = $region83
      $region82: #{per_feature_transformer_forward.2} parent=78 // pred_region
        %p8399 = scmp.lt.s32.totalorder %s23, 1
        %s8400 = scalar_select %p8399, %s23, 1
        %s8401 = smul.addr %s8400, 8
        %s8402 = smul.addr %s8401, 4
        %s8403 = scalar_lea.vmem %s11, %s8402
      $region83: #{per_feature_transformer_forward.2} parent=78 // pred_fallthru
        _
    $region79: #{per_feature_transformer_forward.2} parent=5 // pred_fallthru
      _
  $region6: #{per_feature_transformer_forward.2} parent=0 // loop_footer
    %s21 = sadd.s32 1, %s17
  $region7: #{per_feature_transformer_forward.2} parent=0 // loop_footer_branch
    %16 = sbr.rel target = $region3
  $region8: #{per_feature_transformer_forward.2} parent=0 // loop_exit
    _

</llo_original>
